<compile_context>
chip_gen: v6e
topology: v6e:2x2x1
jax: 0.10.0
libtpu: 0.0.40
codegen_flags: <defaults>
</compile_context>

<pallas_src>
import functools
import math

import jax
import jax.numpy as jnp
import numpy as np
from jax.experimental import pallas as pl
from jax.experimental.pallas import tpu as pltpu

# ----------------------------------------------------------------------------
# Model configuration (mirrors Neural_Network_lstmcell.__init__)
# ----------------------------------------------------------------------------
EMB_TMPL_LIST_INP = [11, 13]
EMB_TMPL_LIST_OUT = [16, 16]
EMB_STATIC_LIST_INP = [7, 9]
EMB_STATIC_LIST_OUT = [16, 16]
MLP_TMPL_ID = 40
MLP_STATIC_ID = 40

EMB_INP = EMB_TMPL_LIST_INP + EMB_STATIC_LIST_INP
EMB_OUT = EMB_TMPL_LIST_OUT + EMB_STATIC_LIST_OUT
LSTM1_INP_DIM = MLP_TMPL_ID + MLP_STATIC_ID + sum(EMB_OUT)      # 144
HIDDEN = 2 ** int(math.log(LSTM1_INP_DIM, 2))                   # 128
H2 = HIDDEN // 4                                                # 32
H8 = HIDDEN // 8                                                # 16


# ----------------------------------------------------------------------------
# Pallas kernel: whole sequence in ONE invocation
# ----------------------------------------------------------------------------
def _lstm_seq_kernel(x_ref, w_ih1_ref, w_hh1_ref, b1_ref,
                     w_c2_ref, b2_ref,
                     wl1_ref, bl1_ref, wl2_row_ref, bl2_ref,
                     out_ref, gx_ref, h2_all_ref, *, seq_len, batch):
    S, B = seq_len, batch
    H = w_hh1_ref.shape[0]          # 128
    Hq = w_c2_ref.shape[1] // 4     # 32

    # (1) Hoisted input projection for cell 1: one full-occupancy bf16 matmul
    #     for all time steps, f32 accumulate, bias folded in once. Parked in
    #     VMEM scratch so the serial loop only reads B rows per step.
    gx_ref[...] = (
        jnp.dot(x_ref[...], w_ih1_ref[...], preferred_element_type=jnp.float32)
        + b1_ref[...])

    # f32 state carries (tiny: 2x(B,128) + 2x(B,32) ~ 2.5 vregs).
    h1 = jnp.zeros((B, H), jnp.float32)
    c1 = jnp.zeros((B, H), jnp.float32)
    h2 = jnp.zeros((B, Hq), jnp.float32)
    c2 = jnp.zeros((B, Hq), jnp.float32)

    # Hoisted lane mask for the cell-2 activation blend (sigmoid lanes < 3*Hq).
    sig_lanes2 = jax.lax.broadcasted_iota(jnp.int32, (B, 4 * Hq), 1) < 3 * Hq

    # (2) Serial recurrence, statically unrolled (S small & static). Weights
    #     are read from their VMEM refs at each use so they never become
    #     long-lived vregs (no spill). Gate columns were pre-permuted
    #     (i,f,g,o) -> (i,f,o,g): one contiguous sigmoid slab + one tanh slab.
    #     NOTE: B % 8 == 0 keeps the gx / h2 slices sublane-aligned.
    for s in range(S):
        # ---- cell 1 ----
        gates1 = gx_ref[pl.ds(s * B, B), :] + jnp.dot(
            h1.astype(jnp.bfloat16), w_hh1_ref[...],
            preferred_element_type=jnp.float32)
        sig1 = jax.nn.sigmoid(gates1[:, :3 * H])     # lane-tile aligned slabs
        g1 = jnp.tanh(gates1[:, 3 * H:])
        c1 = sig1[:, H:2 * H] * c1 + sig1[:, :H] * g1
        h1 = sig1[:, 2 * H:3 * H] * jnp.tanh(c1)

        # ---- cell 2 (fused input/recurrent weight: one dot per step) ----
        hcat = jnp.concatenate([h1, h2], axis=-1).astype(jnp.bfloat16)
        gates2 = (jnp.dot(hcat, w_c2_ref[...],
                          preferred_element_type=jnp.float32)
                  + b2_ref[...])                     # (B, 4*Hq) == one vreg
        act2 = jnp.where(sig_lanes2, jax.nn.sigmoid(gates2), jnp.tanh(gates2))
        c2 = act2[:, Hq:2 * Hq] * c2 + act2[:, :Hq] * act2[:, 3 * Hq:]
        h2 = act2[:, 2 * Hq:3 * Hq] * jnp.tanh(c2)

        # Park h2 for the deferred output head (B=8 -> sublane-aligned store).
        h2_all_ref[pl.ds(s * B, B), :] = h2

    # (3) Deferred output head, batched over all (time, batch) rows.
    lin1 = jnp.maximum(
        jnp.dot(h2_all_ref[...].astype(jnp.bfloat16), wl1_ref[...],
                preferred_element_type=jnp.float32) + bl1_ref[...], 0.0)
    # Linear2 (out_features == 1) as VPU multiply + lane reduction.
    logit = jnp.sum(lin1 * wl2_row_ref[...], axis=-1, keepdims=True) + bl2_ref[...]
    # TODO(synk): output stays (S*B, 1); a lane-dense (1, S*B) layout would need
    # an extra XLU transpose for 512 B of data, not worth it.
    out_ref[...] = jax.nn.sigmoid(logit)


def _reorder_gates(w, h):
    """Permute torch LSTMCell gate columns (i, f, g, o) -> (i, f, o, g)."""
    return jnp.concatenate([w[:, :2 * h], w[:, 3 * h:4 * h], w[:, 2 * h:3 * h]],
                           axis=1)


def lstm_sequence(x_sbd, params):
    """x_sbd: (S, B, D) time-major packed features. Returns (B, S)."""
    S, B, D = x_sbd.shape
    H, Hq = HIDDEN, H2

    # One-time weight prep: fused biases, gate-column permutation, fused
    # cell-2 weight [W_ih2 ; W_hh2], Linear2 row, bf16 MXU operands.
    b1 = _reorder_gates(params["lstm1_b_ih"] + params["lstm1_b_hh"], H)   # (1,4H) f32
    b2 = _reorder_gates(params["lstm2_b_ih"] + params["lstm2_b_hh"], Hq)  # (1,4*H2) f32
    w_ih1 = _reorder_gates(params["lstm1_w_ih"], H).astype(jnp.bfloat16)  # (D,4H)
    w_hh1 = _reorder_gates(params["lstm1_w_hh"], H).astype(jnp.bfloat16)  # (H,4H)
    w_c2 = jnp.concatenate(
        [_reorder_gates(params["lstm2_w_ih"], Hq),
         _reorder_gates(params["lstm2_w_hh"], Hq)],
        axis=0).astype(jnp.bfloat16)                                      # (H+H2,4*H2)
    wl1 = params["lin1_w"].astype(jnp.bfloat16)                           # (H2,H8)
    wl2_row = jnp.transpose(params["lin2_w"])                             # (1,H8) f32

    x2d = jnp.reshape(x_sbd, (S * B, D)).astype(jnp.bfloat16)

    vmem = pl.BlockSpec(memory_space=pltpu.MemorySpace.VMEM)
    # TODO(synk): on v7x, if B grows beyond ~8, add a leading parallel grid axis
    # over batch halves so each TensorCore runs an independent recurrence.
    out_flat = pl.pallas_call(
        functools.partial(_lstm_seq_kernel, seq_len=S, batch=B),
        out_shape=jax.ShapeDtypeStruct((S * B, 1), jnp.float32),
        in_specs=[vmem] * 10,
        out_specs=vmem,
        scratch_shapes=[
            pltpu.VMEM((S * B, 4 * H), jnp.float32),   # hoisted x @ W_ih1 + b1
            pltpu.VMEM((S * B, Hq), jnp.float32),      # per-step h2 slab
        ],
    )(x2d, w_ih1, w_hh1, b1, w_c2, b2,
      wl1, params["lin1_b"], wl2_row, params["lin2_b"])

    # out_flat[s*B + b] -> (B, S)
    return jnp.transpose(jnp.reshape(out_flat[:, 0], (S, B)))


# ----------------------------------------------------------------------------
# Forward pass (glue: embedding gather / concat / view, hot loop in Pallas)
# ----------------------------------------------------------------------------
# TODO(synk): MultiEmbedding is not defined in the reference file; implemented
# here as one embedding table per categorical feature column, concatenated on
# the last dim (the standard interpretation of its constructor arguments).
def _embed_and_pack(params, mlp_static_data, mlp_tmpl_data,
                    emb_static_data, emb_tmpl_data):
    emb_data = jnp.concatenate([emb_tmpl_data, emb_static_data], axis=2)
    emb_cols = [jnp.take(tbl, emb_data[:, :, j], axis=0)
                for j, tbl in enumerate(params["emb_tables"])]
    emb = jnp.concatenate(emb_cols, axis=2)
    enc = jnp.concatenate([mlp_tmpl_data, mlp_static_data], axis=2)
    enc = jnp.concatenate([enc, emb], axis=2).astype(jnp.float32)
    a0, a1, d = enc.shape
    # torch: enc_data.view(size[1], size[0], -1)  (a pure reshape, NOT a transpose)
    enc = jnp.reshape(enc, (a1, a0, d))
    return enc                                       # (batch=a1, time=a0, D)


def forward(params, mlp_static_data, mlp_tmpl_data, emb_static_data, emb_tmpl_data):
    enc = _embed_and_pack(params, mlp_static_data, mlp_tmpl_data,
                          emb_static_data, emb_tmpl_data)
    batch, seq, d = enc.shape
    x = jnp.transpose(enc, (1, 0, 2))                # (S, B, D) time-major for kernel
    out_bs = lstm_sequence(x, params)                # (B, S)
    # torch: outputs.view(outputs.size()[1], outputs.size()[0])  (pure reshape)
    return jnp.reshape(out_bs, (seq, batch))


# ----------------------------------------------------------------------------
# Pure-JAX reference (for a correctness check of the kernel)
# ----------------------------------------------------------------------------
def _lstm_cell_ref(x, h, c, w_ih, w_hh, b):
    H = h.shape[1]
    gates = x @ w_ih + h @ w_hh + b
    i = jax.nn.sigmoid(gates[:, :H])
    f = jax.nn.sigmoid(gates[:, H:2 * H])
    g = jnp.tanh(gates[:, 2 * H:3 * H])
    o = jax.nn.sigmoid(gates[:, 3 * H:])
    c = f * c + i * g
    h = o * jnp.tanh(c)
    return h, c


def forward_reference(params, mlp_static_data, mlp_tmpl_data,
                      emb_static_data, emb_tmpl_data):
    enc = _embed_and_pack(params, mlp_static_data, mlp_tmpl_data,
                          emb_static_data, emb_tmpl_data)
    batch, seq, d = enc.shape
    b1 = params["lstm1_b_ih"] + params["lstm1_b_hh"]
    b2 = params["lstm2_b_ih"] + params["lstm2_b_hh"]
    h1 = jnp.zeros((batch, HIDDEN), jnp.float32)
    c1 = jnp.zeros((batch, HIDDEN), jnp.float32)
    h2 = jnp.zeros((batch, H2), jnp.float32)
    c2 = jnp.zeros((batch, H2), jnp.float32)
    outs = []
    for t in range(seq):
        x_t = enc[:, t, :]
        h1, c1 = _lstm_cell_ref(x_t, h1, c1,
                                params["lstm1_w_ih"], params["lstm1_w_hh"], b1)
        h2, c2 = _lstm_cell_ref(h1, h2, c2,
                                params["lstm2_w_ih"], params["lstm2_w_hh"], b2)
        lin1 = jax.nn.relu(h2 @ params["lin1_w"] + params["lin1_b"])
        outs.append(jax.nn.sigmoid(lin1 @ params["lin2_w"] + params["lin2_b"]))
    out_bs = jnp.concatenate(outs, axis=1)           # (B, S)
    return jnp.reshape(out_bs, (seq, batch))


# ----------------------------------------------------------------------------
# Main
# ----------------------------------------------------------------------------
if __name__ == "__main__":
    key = jax.random.PRNGKey(0)
    keys = iter(jax.random.split(key, 40))

    # Deterministic parameter init (shapes from the module's __init__; weights
    # stored pre-transposed so the kernel does x @ W).
    params = {
        "emb_tables": [0.1 * jax.random.normal(next(keys), (v, o), jnp.float32)
                       for v, o in zip(EMB_INP, EMB_OUT)],
        "lstm1_w_ih": 0.1 * jax.random.normal(next(keys), (LSTM1_INP_DIM, 4 * HIDDEN), jnp.float32),
        "lstm1_w_hh": 0.1 * jax.random.normal(next(keys), (HIDDEN, 4 * HIDDEN), jnp.float32),
        "lstm1_b_ih": 0.1 * jax.random.normal(next(keys), (1, 4 * HIDDEN), jnp.float32),
        "lstm1_b_hh": 0.1 * jax.random.normal(next(keys), (1, 4 * HIDDEN), jnp.float32),
        "lstm2_w_ih": 0.1 * jax.random.normal(next(keys), (HIDDEN, 4 * H2), jnp.float32),
        "lstm2_w_hh": 0.1 * jax.random.normal(next(keys), (H2, 4 * H2), jnp.float32),
        "lstm2_b_ih": 0.1 * jax.random.normal(next(keys), (1, 4 * H2), jnp.float32),
        "lstm2_b_hh": 0.1 * jax.random.normal(next(keys), (1, 4 * H2), jnp.float32),
        "lin1_w": 0.1 * jax.random.normal(next(keys), (H2, H8), jnp.float32),
        "lin1_b": 0.1 * jax.random.normal(next(keys), (1, H8), jnp.float32),
        "lin2_w": 0.1 * jax.random.normal(next(keys), (H8, 1), jnp.float32),
        "lin2_b": 0.1 * jax.random.normal(next(keys), (1, 1), jnp.float32),
    }

    # Example inputs: (seq, batch, feat) as in the PyTorch forward.
    SEQ, BATCH = 16, 8
    mlp_tmpl_data = jax.random.normal(next(keys), (SEQ, BATCH, MLP_TMPL_ID), jnp.float32)
    mlp_static_data = jax.random.normal(next(keys), (SEQ, BATCH, MLP_STATIC_ID), jnp.float32)
    emb_tmpl_data = jnp.stack(
        [jax.random.randint(next(keys), (SEQ, BATCH), 0, v)
         for v in EMB_TMPL_LIST_INP], axis=2).astype(jnp.int32)
    emb_static_data = jnp.stack(
        [jax.random.randint(next(keys), (SEQ, BATCH), 0, v)
         for v in EMB_STATIC_LIST_INP], axis=2).astype(jnp.int32)

    fwd = jax.jit(forward)
    out = fwd(params, mlp_static_data, mlp_tmpl_data, emb_static_data, emb_tmpl_data)
    out = jax.block_until_ready(out)

    ref = forward_reference(params, mlp_static_data, mlp_tmpl_data,
                            emb_static_data, emb_tmpl_data)
    assert out.shape == (SEQ, BATCH), out.shape
    np.testing.assert_allclose(np.asarray(out), np.asarray(ref), rtol=2e-2, atol=2e-2)

    print("KERNEL_OK")
</pallas_src>

<mosaic_0001>
module attributes {stable_mosaic.version = 11 : i64} {
  func.func @_lstm_seq_kernel(%arg0: memref<128x144xbf16, #tpu.memory_space<vmem>>, %arg1: memref<144x512xbf16, #tpu.memory_space<vmem>>, %arg2: memref<128x512xbf16, #tpu.memory_space<vmem>>, %arg3: memref<1x512xf32, #tpu.memory_space<vmem>>, %arg4: memref<160x128xbf16, #tpu.memory_space<vmem>>, %arg5: memref<1x128xf32, #tpu.memory_space<vmem>>, %arg6: memref<32x16xbf16, #tpu.memory_space<vmem>>, %arg7: memref<1x16xf32, #tpu.memory_space<vmem>>, %arg8: memref<1x16xf32, #tpu.memory_space<vmem>>, %arg9: memref<1x1xf32, #tpu.memory_space<vmem>>, %arg10: memref<128x1xf32, #tpu.memory_space<vmem>>, %arg11: memref<128x512xf32, #tpu.memory_space<vmem>>, %arg12: memref<128x32xf32, #tpu.memory_space<vmem>>) attributes {dimension_semantics = [], scalar_prefetch = 0 : i64, scratch_operands = 2 : i64, tpu.core_type = #tpu.core_type<tc>} {
    %c0 = arith.constant 0 : index
    %c0_0 = arith.constant 0 : index
    %0 = vector.load %arg0[%c0, %c0_0] : memref<128x144xbf16, #tpu.memory_space<vmem>>, vector<128x144xbf16>
    %c0_1 = arith.constant 0 : index
    %c0_2 = arith.constant 0 : index
    %1 = vector.load %arg1[%c0_1, %c0_2] : memref<144x512xbf16, #tpu.memory_space<vmem>>, vector<144x512xbf16>
    %cst = arith.constant dense<0.000000e+00> : vector<128x512xf32>
    %2 = tpu.matmul %0, %1, %cst {dimension_numbers = #tpu.dot_dimension_numbers<[1], [0], [0], [1], [0, 0, 1, 1], [], []>} : vector<128x144xbf16>, vector<144x512xbf16>, vector<128x512xf32> -> vector<128x512xf32>
    %c0_3 = arith.constant 0 : index
    %c0_4 = arith.constant 0 : index
    %3 = vector.load %arg3[%c0_3, %c0_4] : memref<1x512xf32, #tpu.memory_space<vmem>>, vector<1x512xf32>
    %4 = vector.broadcast %3 : vector<1x512xf32> to vector<128x512xf32>
    %5 = arith.addf %2, %4 : vector<128x512xf32>
    %c0_5 = arith.constant 0 : index
    %c0_6 = arith.constant 0 : index
    %6 = vector.load %arg11[%c0_5, %c0_6] : memref<128x512xf32, #tpu.memory_space<vmem>>, vector<128x512xf32>
    tpu.vector_store %arg11[%c0_5, %c0_6], %5 {strides = array<i32>} : memref<128x512xf32, #tpu.memory_space<vmem>>, vector<128x512xf32>,
    %cst_7 = arith.constant 0.000000e+00 : f32
    %7 = vector.broadcast %cst_7 : f32 to vector<8x128xf32>
    %cst_8 = arith.constant 0.000000e+00 : f32
    %8 = vector.broadcast %cst_8 : f32 to vector<8x128xf32>
    %cst_9 = arith.constant 0.000000e+00 : f32
    %9 = vector.broadcast %cst_9 : f32 to vector<8x32xf32>
    %cst_10 = arith.constant 0.000000e+00 : f32
    %10 = vector.broadcast %cst_10 : f32 to vector<8x32xf32>
    %11 = tpu.iota {dimensions = array<i32: 1>} : vector<8x128xi32>
    %c96_i32 = arith.constant 96 : i32
    %12 = vector.broadcast %c96_i32 : i32 to vector<8x128xi32>
    %13 = arith.cmpi slt, %11, %12 : vector<8x128xi32>
    %c0_11 = arith.constant 0 : index
    %c0_12 = arith.constant 0 : index
    %14 = vector.load %arg11[%c0_11, %c0_12] : memref<128x512xf32, #tpu.memory_space<vmem>>, vector<8x512xf32>
    %15 = arith.truncf %7 : vector<8x128xf32> to vector<8x128xbf16>
    %c0_13 = arith.constant 0 : index
    %c0_14 = arith.constant 0 : index
    %16 = vector.load %arg2[%c0_13, %c0_14] : memref<128x512xbf16, #tpu.memory_space<vmem>>, vector<128x512xbf16>
    %cst_15 = arith.constant dense<0.000000e+00> : vector<8x512xf32>
    %17 = tpu.matmul %15, %16, %cst_15 {dimension_numbers = #tpu.dot_dimension_numbers<[1], [0], [0], [1], [0, 0, 1, 1], [], []>} : vector<8x128xbf16>, vector<128x512xbf16>, vector<8x512xf32> -> vector<8x512xf32>
    %18 = arith.addf %14, %17 : vector<8x512xf32>
    %19 = vector.extract_strided_slice %18 {offsets = [0, 0], sizes = [8, 384], strides = [1, 1]} : vector<8x512xf32> to vector<8x384xf32>
    %20 = arith.negf %19 : vector<8x384xf32>
    %21 = math.exp %20 : vector<8x384xf32>
    %cst_16 = arith.constant 1.000000e+00 : f32
    %22 = vector.broadcast %cst_16 : f32 to vector<8x384xf32>
    %23 = arith.addf %22, %21 : vector<8x384xf32>
    %24 = arith.divf %22, %23 : vector<8x384xf32>
    %25 = vector.extract_strided_slice %18 {offsets = [0, 384], sizes = [8, 128], strides = [1, 1]} : vector<8x512xf32> to vector<8x128xf32>
    %26 = math.tanh %25 : vector<8x128xf32>
    %27 = vector.extract_strided_slice %24 {offsets = [0, 128], sizes = [8, 128], strides = [1, 1]} : vector<8x384xf32> to vector<8x128xf32>
    %28 = arith.mulf %27, %8 : vector<8x128xf32>
    %29 = vector.extract_strided_slice %24 {offsets = [0, 0], sizes = [8, 128], strides = [1, 1]} : vector<8x384xf32> to vector<8x128xf32>
    %30 = arith.mulf %29, %26 : vector<8x128xf32>
    %31 = arith.addf %28, %30 : vector<8x128xf32>
    %32 = vector.extract_strided_slice %24 {offsets = [0, 256], sizes = [8, 128], strides = [1, 1]} : vector<8x384xf32> to vector<8x128xf32>
    %33 = math.tanh %31 : vector<8x128xf32>
    %34 = arith.mulf %32, %33 : vector<8x128xf32>
    %35 = tpu.concatenate %34, %9 in 1 : vector<8x128xf32>, vector<8x32xf32> -> vector<8x160xf32>
    %36 = arith.truncf %35 : vector<8x160xf32> to vector<8x160xbf16>
    %c0_17 = arith.constant 0 : index
    %c0_18 = arith.constant 0 : index
    %37 = vector.load %arg4[%c0_17, %c0_18] : memref<160x128xbf16, #tpu.memory_space<vmem>>, vector<160x128xbf16>
    %cst_19 = arith.constant dense<0.000000e+00> : vector<8x128xf32>
    %38 = tpu.matmul %36, %37, %cst_19 {dimension_numbers = #tpu.dot_dimension_numbers<[1], [0], [0], [1], [0, 0, 1, 1], [], []>} : vector<8x160xbf16>, vector<160x128xbf16>, vector<8x128xf32> -> vector<8x128xf32>
    %c0_20 = arith.constant 0 : index
    %c0_21 = arith.constant 0 : index
    %39 = vector.load %arg5[%c0_20, %c0_21] : memref<1x128xf32, #tpu.memory_space<vmem>>, vector<1x128xf32>
    %40 = vector.broadcast %39 : vector<1x128xf32> to vector<8x128xf32>
    %41 = arith.addf %38, %40 : vector<8x128xf32>
    %42 = arith.negf %41 : vector<8x128xf32>
    %43 = math.exp %42 : vector<8x128xf32>
    %cst_22 = arith.constant 1.000000e+00 : f32
    %44 = vector.broadcast %cst_22 : f32 to vector<8x128xf32>
    %45 = arith.addf %44, %43 : vector<8x128xf32>
    %46 = arith.divf %44, %45 : vector<8x128xf32>
    %47 = math.tanh %41 : vector<8x128xf32>
    %48 = arith.select %13, %46, %47 : vector<8x128xi1>, vector<8x128xf32>
    %49 = vector.extract_strided_slice %48 {offsets = [0, 32], sizes = [8, 32], strides = [1, 1]} : vector<8x128xf32> to vector<8x32xf32>
    %50 = arith.mulf %49, %10 : vector<8x32xf32>
    %51 = vector.extract_strided_slice %48 {offsets = [0, 0], sizes = [8, 32], strides = [1, 1]} : vector<8x128xf32> to vector<8x32xf32>
    %52 = vector.extract_strided_slice %48 {offsets = [0, 96], sizes = [8, 32], strides = [1, 1]} : vector<8x128xf32> to vector<8x32xf32>
    %53 = arith.mulf %51, %52 : vector<8x32xf32>
    %54 = arith.addf %50, %53 : vector<8x32xf32>
    %55 = vector.extract_strided_slice %48 {offsets = [0, 64], sizes = [8, 32], strides = [1, 1]} : vector<8x128xf32> to vector<8x32xf32>
    %56 = math.tanh %54 : vector<8x32xf32>
    %57 = arith.mulf %55, %56 : vector<8x32xf32>
    %c0_23 = arith.constant 0 : index
    %c0_24 = arith.constant 0 : index
    %58 = vector.load %arg12[%c0_23, %c0_24] : memref<128x32xf32, #tpu.memory_space<vmem>>, vector<8x32xf32>
    tpu.vector_store %arg12[%c0_23, %c0_24], %57 {strides = array<i32>} : memref<128x32xf32, #tpu.memory_space<vmem>>, vector<8x32xf32>,
    %c8 = arith.constant 8 : index
    %c0_25 = arith.constant 0 : index
    %59 = vector.load %arg11[%c8, %c0_25] : memref<128x512xf32, #tpu.memory_space<vmem>>, vector<8x512xf32>
    %60 = arith.truncf %34 : vector<8x128xf32> to vector<8x128xbf16>
    %c0_26 = arith.constant 0 : index
    %c0_27 = arith.constant 0 : index
    %61 = vector.load %arg2[%c0_26, %c0_27] : memref<128x512xbf16, #tpu.memory_space<vmem>>, vector<128x512xbf16>
    %cst_28 = arith.constant dense<0.000000e+00> : vector<8x512xf32>
    %62 = tpu.matmul %60, %61, %cst_28 {dimension_numbers = #tpu.dot_dimension_numbers<[1], [0], [0], [1], [0, 0, 1, 1], [], []>} : vector<8x128xbf16>, vector<128x512xbf16>, vector<8x512xf32> -> vector<8x512xf32>
    %63 = arith.addf %59, %62 : vector<8x512xf32>
    %64 = vector.extract_strided_slice %63 {offsets = [0, 0], sizes = [8, 384], strides = [1, 1]} : vector<8x512xf32> to vector<8x384xf32>
    %65 = arith.negf %64 : vector<8x384xf32>
    %66 = math.exp %65 : vector<8x384xf32>
    %cst_29 = arith.constant 1.000000e+00 : f32
    %67 = vector.broadcast %cst_29 : f32 to vector<8x384xf32>
    %68 = arith.addf %67, %66 : vector<8x384xf32>
    %69 = arith.divf %67, %68 : vector<8x384xf32>
    %70 = vector.extract_strided_slice %63 {offsets = [0, 384], sizes = [8, 128], strides = [1, 1]} : vector<8x512xf32> to vector<8x128xf32>
    %71 = math.tanh %70 : vector<8x128xf32>
    %72 = vector.extract_strided_slice %69 {offsets = [0, 128], sizes = [8, 128], strides = [1, 1]} : vector<8x384xf32> to vector<8x128xf32>
    %73 = arith.mulf %72, %31 : vector<8x128xf32>
    %74 = vector.extract_strided_slice %69 {offsets = [0, 0], sizes = [8, 128], strides = [1, 1]} : vector<8x384xf32> to vector<8x128xf32>
    %75 = arith.mulf %74, %71 : vector<8x128xf32>
    %76 = arith.addf %73, %75 : vector<8x128xf32>
    %77 = vector.extract_strided_slice %69 {offsets = [0, 256], sizes = [8, 128], strides = [1, 1]} : vector<8x384xf32> to vector<8x128xf32>
    %78 = math.tanh %76 : vector<8x128xf32>
    %79 = arith.mulf %77, %78 : vector<8x128xf32>
    %80 = tpu.concatenate %79, %57 in 1 : vector<8x128xf32>, vector<8x32xf32> -> vector<8x160xf32>
    %81 = arith.truncf %80 : vector<8x160xf32> to vector<8x160xbf16>
    %c0_30 = arith.constant 0 : index
    %c0_31 = arith.constant 0 : index
    %82 = vector.load %arg4[%c0_30, %c0_31] : memref<160x128xbf16, #tpu.memory_space<vmem>>, vector<160x128xbf16>
    %cst_32 = arith.constant dense<0.000000e+00> : vector<8x128xf32>
    %83 = tpu.matmul %81, %82, %cst_32 {dimension_numbers = #tpu.dot_dimension_numbers<[1], [0], [0], [1], [0, 0, 1, 1], [], []>} : vector<8x160xbf16>, vector<160x128xbf16>, vector<8x128xf32> -> vector<8x128xf32>
    %c0_33 = arith.constant 0 : index
    %c0_34 = arith.constant 0 : index
    %84 = vector.load %arg5[%c0_33, %c0_34] : memref<1x128xf32, #tpu.memory_space<vmem>>, vector<1x128xf32>
    %85 = vector.broadcast %84 : vector<1x128xf32> to vector<8x128xf32>
    %86 = arith.addf %83, %85 : vector<8x128xf32>
    %87 = arith.negf %86 : vector<8x128xf32>
    %88 = math.exp %87 : vector<8x128xf32>
    %cst_35 = arith.constant 1.000000e+00 : f32
    %89 = vector.broadcast %cst_35 : f32 to vector<8x128xf32>
    %90 = arith.addf %89, %88 : vector<8x128xf32>
    %91 = arith.divf %89, %90 : vector<8x128xf32>
    %92 = math.tanh %86 : vector<8x128xf32>
    %93 = arith.select %13, %91, %92 : vector<8x128xi1>, vector<8x128xf32>
    %94 = vector.extract_strided_slice %93 {offsets = [0, 32], sizes = [8, 32], strides = [1, 1]} : vector<8x128xf32> to vector<8x32xf32>
    %95 = arith.mulf %94, %54 : vector<8x32xf32>
    %96 = vector.extract_strided_slice %93 {offsets = [0, 0], sizes = [8, 32], strides = [1, 1]} : vector<8x128xf32> to vector<8x32xf32>
    %97 = vector.extract_strided_slice %93 {offsets = [0, 96], sizes = [8, 32], strides = [1, 1]} : vector<8x128xf32> to vector<8x32xf32>
    %98 = arith.mulf %96, %97 : vector<8x32xf32>
    %99 = arith.addf %95, %98 : vector<8x32xf32>
    %100 = vector.extract_strided_slice %93 {offsets = [0, 64], sizes = [8, 32], strides = [1, 1]} : vector<8x128xf32> to vector<8x32xf32>
    %101 = math.tanh %99 : vector<8x32xf32>
    %102 = arith.mulf %100, %101 : vector<8x32xf32>
    %c8_36 = arith.constant 8 : index
    %c0_37 = arith.constant 0 : index
    %103 = vector.load %arg12[%c8_36, %c0_37] : memref<128x32xf32, #tpu.memory_space<vmem>>, vector<8x32xf32>
    tpu.vector_store %arg12[%c8_36, %c0_37], %102 {strides = array<i32>} : memref<128x32xf32, #tpu.memory_space<vmem>>, vector<8x32xf32>,
    %c16 = arith.constant 16 : index
    %c0_38 = arith.constant 0 : index
    %104 = vector.load %arg11[%c16, %c0_38] : memref<128x512xf32, #tpu.memory_space<vmem>>, vector<8x512xf32>
    %105 = arith.truncf %79 : vector<8x128xf32> to vector<8x128xbf16>
    %c0_39 = arith.constant 0 : index
    %c0_40 = arith.constant 0 : index
    %106 = vector.load %arg2[%c0_39, %c0_40] : memref<128x512xbf16, #tpu.memory_space<vmem>>, vector<128x512xbf16>
    %cst_41 = arith.constant dense<0.000000e+00> : vector<8x512xf32>
    %107 = tpu.matmul %105, %106, %cst_41 {dimension_numbers = #tpu.dot_dimension_numbers<[1], [0], [0], [1], [0, 0, 1, 1], [], []>} : vector<8x128xbf16>, vector<128x512xbf16>, vector<8x512xf32> -> vector<8x512xf32>
    %108 = arith.addf %104, %107 : vector<8x512xf32>
    %109 = vector.extract_strided_slice %108 {offsets = [0, 0], sizes = [8, 384], strides = [1, 1]} : vector<8x512xf32> to vector<8x384xf32>
    %110 = arith.negf %109 : vector<8x384xf32>
    %111 = math.exp %110 : vector<8x384xf32>
    %cst_42 = arith.constant 1.000000e+00 : f32
    %112 = vector.broadcast %cst_42 : f32 to vector<8x384xf32>
    %113 = arith.addf %112, %111 : vector<8x384xf32>
    %114 = arith.divf %112, %113 : vector<8x384xf32>
    %115 = vector.extract_strided_slice %108 {offsets = [0, 384], sizes = [8, 128], strides = [1, 1]} : vector<8x512xf32> to vector<8x128xf32>
    %116 = math.tanh %115 : vector<8x128xf32>
    %117 = vector.extract_strided_slice %114 {offsets = [0, 128], sizes = [8, 128], strides = [1, 1]} : vector<8x384xf32> to vector<8x128xf32>
    %118 = arith.mulf %117, %76 : vector<8x128xf32>
    %119 = vector.extract_strided_slice %114 {offsets = [0, 0], sizes = [8, 128], strides = [1, 1]} : vector<8x384xf32> to vector<8x128xf32>
    %120 = arith.mulf %119, %116 : vector<8x128xf32>
    %121 = arith.addf %118, %120 : vector<8x128xf32>
    %122 = vector.extract_strided_slice %114 {offsets = [0, 256], sizes = [8, 128], strides = [1, 1]} : vector<8x384xf32> to vector<8x128xf32>
    %123 = math.tanh %121 : vector<8x128xf32>
    %124 = arith.mulf %122, %123 : vector<8x128xf32>
    %125 = tpu.concatenate %124, %102 in 1 : vector<8x128xf32>, vector<8x32xf32> -> vector<8x160xf32>
    %126 = arith.truncf %125 : vector<8x160xf32> to vector<8x160xbf16>
    %c0_43 = arith.constant 0 : index
    %c0_44 = arith.constant 0 : index
    %127 = vector.load %arg4[%c0_43, %c0_44] : memref<160x128xbf16, #tpu.memory_space<vmem>>, vector<160x128xbf16>
    %cst_45 = arith.constant dense<0.000000e+00> : vector<8x128xf32>
    %128 = tpu.matmul %126, %127, %cst_45 {dimension_numbers = #tpu.dot_dimension_numbers<[1], [0], [0], [1], [0, 0, 1, 1], [], []>} : vector<8x160xbf16>, vector<160x128xbf16>, vector<8x128xf32> -> vector<8x128xf32>
    %c0_46 = arith.constant 0 : index
    %c0_47 = arith.constant 0 : index
    %129 = vector.load %arg5[%c0_46, %c0_47] : memref<1x128xf32, #tpu.memory_space<vmem>>, vector<1x128xf32>
    %130 = vector.broadcast %129 : vector<1x128xf32> to vector<8x128xf32>
    %131 = arith.addf %128, %130 : vector<8x128xf32>
    %132 = arith.negf %131 : vector<8x128xf32>
    %133 = math.exp %132 : vector<8x128xf32>
    %cst_48 = arith.constant 1.000000e+00 : f32
    %134 = vector.broadcast %cst_48 : f32 to vector<8x128xf32>
    %135 = arith.addf %134, %133 : vector<8x128xf32>
    %136 = arith.divf %134, %135 : vector<8x128xf32>
    %137 = math.tanh %131 : vector<8x128xf32>
    %138 = arith.select %13, %136, %137 : vector<8x128xi1>, vector<8x128xf32>
    %139 = vector.extract_strided_slice %138 {offsets = [0, 32], sizes = [8, 32], strides = [1, 1]} : vector<8x128xf32> to vector<8x32xf32>
    %140 = arith.mulf %139, %99 : vector<8x32xf32>
    %141 = vector.extract_strided_slice %138 {offsets = [0, 0], sizes = [8, 32], strides = [1, 1]} : vector<8x128xf32> to vector<8x32xf32>
    %142 = vector.extract_strided_slice %138 {offsets = [0, 96], sizes = [8, 32], strides = [1, 1]} : vector<8x128xf32> to vector<8x32xf32>
    %143 = arith.mulf %141, %142 : vector<8x32xf32>
    %144 = arith.addf %140, %143 : vector<8x32xf32>
    %145 = vector.extract_strided_slice %138 {offsets = [0, 64], sizes = [8, 32], strides = [1, 1]} : vector<8x128xf32> to vector<8x32xf32>
    %146 = math.tanh %144 : vector<8x32xf32>
    %147 = arith.mulf %145, %146 : vector<8x32xf32>
    %c16_49 = arith.constant 16 : index
    %c0_50 = arith.constant 0 : index
    %148 = vector.load %arg12[%c16_49, %c0_50] : memref<128x32xf32, #tpu.memory_space<vmem>>, vector<8x32xf32>
    tpu.vector_store %arg12[%c16_49, %c0_50], %147 {strides = array<i32>} : memref<128x32xf32, #tpu.memory_space<vmem>>, vector<8x32xf32>,
    %c24 = arith.constant 24 : index
    %c0_51 = arith.constant 0 : index
    %149 = vector.load %arg11[%c24, %c0_51] : memref<128x512xf32, #tpu.memory_space<vmem>>, vector<8x512xf32>
    %150 = arith.truncf %124 : vector<8x128xf32> to vector<8x128xbf16>
    %c0_52 = arith.constant 0 : index
    %c0_53 = arith.constant 0 : index
    %151 = vector.load %arg2[%c0_52, %c0_53] : memref<128x512xbf16, #tpu.memory_space<vmem>>, vector<128x512xbf16>
    %cst_54 = arith.constant dense<0.000000e+00> : vector<8x512xf32>
    %152 = tpu.matmul %150, %151, %cst_54 {dimension_numbers = #tpu.dot_dimension_numbers<[1], [0], [0], [1], [0, 0, 1, 1], [], []>} : vector<8x128xbf16>, vector<128x512xbf16>, vector<8x512xf32> -> vector<8x512xf32>
    %153 = arith.addf %149, %152 : vector<8x512xf32>
    %154 = vector.extract_strided_slice %153 {offsets = [0, 0], sizes = [8, 384], strides = [1, 1]} : vector<8x512xf32> to vector<8x384xf32>
    %155 = arith.negf %154 : vector<8x384xf32>
    %156 = math.exp %155 : vector<8x384xf32>
    %cst_55 = arith.constant 1.000000e+00 : f32
    %157 = vector.broadcast %cst_55 : f32 to vector<8x384xf32>
    %158 = arith.addf %157, %156 : vector<8x384xf32>
    %159 = arith.divf %157, %158 : vector<8x384xf32>
    %160 = vector.extract_strided_slice %153 {offsets = [0, 384], sizes = [8, 128], strides = [1, 1]} : vector<8x512xf32> to vector<8x128xf32>
    %161 = math.tanh %160 : vector<8x128xf32>
    %162 = vector.extract_strided_slice %159 {offsets = [0, 128], sizes = [8, 128], strides = [1, 1]} : vector<8x384xf32> to vector<8x128xf32>
    %163 = arith.mulf %162, %121 : vector<8x128xf32>
    %164 = vector.extract_strided_slice %159 {offsets = [0, 0], sizes = [8, 128], strides = [1, 1]} : vector<8x384xf32> to vector<8x128xf32>
    %165 = arith.mulf %164, %161 : vector<8x128xf32>
    %166 = arith.addf %163, %165 : vector<8x128xf32>
    %167 = vector.extract_strided_slice %159 {offsets = [0, 256], sizes = [8, 128], strides = [1, 1]} : vector<8x384xf32> to vector<8x128xf32>
    %168 = math.tanh %166 : vector<8x128xf32>
    %169 = arith.mulf %167, %168 : vector<8x128xf32>
    %170 = tpu.concatenate %169, %147 in 1 : vector<8x128xf32>, vector<8x32xf32> -> vector<8x160xf32>
    %171 = arith.truncf %170 : vector<8x160xf32> to vector<8x160xbf16>
    %c0_56 = arith.constant 0 : index
    %c0_57 = arith.constant 0 : index
    %172 = vector.load %arg4[%c0_56, %c0_57] : memref<160x128xbf16, #tpu.memory_space<vmem>>, vector<160x128xbf16>
    %cst_58 = arith.constant dense<0.000000e+00> : vector<8x128xf32>
    %173 = tpu.matmul %171, %172, %cst_58 {dimension_numbers = #tpu.dot_dimension_numbers<[1], [0], [0], [1], [0, 0, 1, 1], [], []>} : vector<8x160xbf16>, vector<160x128xbf16>, vector<8x128xf32> -> vector<8x128xf32>
    %c0_59 = arith.constant 0 : index
    %c0_60 = arith.constant 0 : index
    %174 = vector.load %arg5[%c0_59, %c0_60] : memref<1x128xf32, #tpu.memory_space<vmem>>, vector<1x128xf32>
    %175 = vector.broadcast %174 : vector<1x128xf32> to vector<8x128xf32>
    %176 = arith.addf %173, %175 : vector<8x128xf32>
    %177 = arith.negf %176 : vector<8x128xf32>
    %178 = math.exp %177 : vector<8x128xf32>
    %cst_61 = arith.constant 1.000000e+00 : f32
    %179 = vector.broadcast %cst_61 : f32 to vector<8x128xf32>
    %180 = arith.addf %179, %178 : vector<8x128xf32>
    %181 = arith.divf %179, %180 : vector<8x128xf32>
    %182 = math.tanh %176 : vector<8x128xf32>
    %183 = arith.select %13, %181, %182 : vector<8x128xi1>, vector<8x128xf32>
    %184 = vector.extract_strided_slice %183 {offsets = [0, 32], sizes = [8, 32], strides = [1, 1]} : vector<8x128xf32> to vector<8x32xf32>
    %185 = arith.mulf %184, %144 : vector<8x32xf32>
    %186 = vector.extract_strided_slice %183 {offsets = [0, 0], sizes = [8, 32], strides = [1, 1]} : vector<8x128xf32> to vector<8x32xf32>
    %187 = vector.extract_strided_slice %183 {offsets = [0, 96], sizes = [8, 32], strides = [1, 1]} : vector<8x128xf32> to vector<8x32xf32>
    %188 = arith.mulf %186, %187 : vector<8x32xf32>
    %189 = arith.addf %185, %188 : vector<8x32xf32>
    %190 = vector.extract_strided_slice %183 {offsets = [0, 64], sizes = [8, 32], strides = [1, 1]} : vector<8x128xf32> to vector<8x32xf32>
    %191 = math.tanh %189 : vector<8x32xf32>
    %192 = arith.mulf %190, %191 : vector<8x32xf32>
    %c24_62 = arith.constant 24 : index
    %c0_63 = arith.constant 0 : index
    %193 = vector.load %arg12[%c24_62, %c0_63] : memref<128x32xf32, #tpu.memory_space<vmem>>, vector<8x32xf32>
    tpu.vector_store %arg12[%c24_62, %c0_63], %192 {strides = array<i32>} : memref<128x32xf32, #tpu.memory_space<vmem>>, vector<8x32xf32>,
    %c32 = arith.constant 32 : index
    %c0_64 = arith.constant 0 : index
    %194 = vector.load %arg11[%c32, %c0_64] : memref<128x512xf32, #tpu.memory_space<vmem>>, vector<8x512xf32>
    %195 = arith.truncf %169 : vector<8x128xf32> to vector<8x128xbf16>
    %c0_65 = arith.constant 0 : index
    %c0_66 = arith.constant 0 : index
    %196 = vector.load %arg2[%c0_65, %c0_66] : memref<128x512xbf16, #tpu.memory_space<vmem>>, vector<128x512xbf16>
    %cst_67 = arith.constant dense<0.000000e+00> : vector<8x512xf32>
    %197 = tpu.matmul %195, %196, %cst_67 {dimension_numbers = #tpu.dot_dimension_numbers<[1], [0], [0], [1], [0, 0, 1, 1], [], []>} : vector<8x128xbf16>, vector<128x512xbf16>, vector<8x512xf32> -> vector<8x512xf32>
    %198 = arith.addf %194, %197 : vector<8x512xf32>
    %199 = vector.extract_strided_slice %198 {offsets = [0, 0], sizes = [8, 384], strides = [1, 1]} : vector<8x512xf32> to vector<8x384xf32>
    %200 = arith.negf %199 : vector<8x384xf32>
    %201 = math.exp %200 : vector<8x384xf32>
    %cst_68 = arith.constant 1.000000e+00 : f32
    %202 = vector.broadcast %cst_68 : f32 to vector<8x384xf32>
    %203 = arith.addf %202, %201 : vector<8x384xf32>
    %204 = arith.divf %202, %203 : vector<8x384xf32>
    %205 = vector.extract_strided_slice %198 {offsets = [0, 384], sizes = [8, 128], strides = [1, 1]} : vector<8x512xf32> to vector<8x128xf32>
    %206 = math.tanh %205 : vector<8x128xf32>
    %207 = vector.extract_strided_slice %204 {offsets = [0, 128], sizes = [8, 128], strides = [1, 1]} : vector<8x384xf32> to vector<8x128xf32>
    %208 = arith.mulf %207, %166 : vector<8x128xf32>
    %209 = vector.extract_strided_slice %204 {offsets = [0, 0], sizes = [8, 128], strides = [1, 1]} : vector<8x384xf32> to vector<8x128xf32>
    %210 = arith.mulf %209, %206 : vector<8x128xf32>
    %211 = arith.addf %208, %210 : vector<8x128xf32>
    %212 = vector.extract_strided_slice %204 {offsets = [0, 256], sizes = [8, 128], strides = [1, 1]} : vector<8x384xf32> to vector<8x128xf32>
    %213 = math.tanh %211 : vector<8x128xf32>
    %214 = arith.mulf %212, %213 : vector<8x128xf32>
    %215 = tpu.concatenate %214, %192 in 1 : vector<8x128xf32>, vector<8x32xf32> -> vector<8x160xf32>
    %216 = arith.truncf %215 : vector<8x160xf32> to vector<8x160xbf16>
    %c0_69 = arith.constant 0 : index
    %c0_70 = arith.constant 0 : index
    %217 = vector.load %arg4[%c0_69, %c0_70] : memref<160x128xbf16, #tpu.memory_space<vmem>>, vector<160x128xbf16>
    %cst_71 = arith.constant dense<0.000000e+00> : vector<8x128xf32>
    %218 = tpu.matmul %216, %217, %cst_71 {dimension_numbers = #tpu.dot_dimension_numbers<[1], [0], [0], [1], [0, 0, 1, 1], [], []>} : vector<8x160xbf16>, vector<160x128xbf16>, vector<8x128xf32> -> vector<8x128xf32>
    %c0_72 = arith.constant 0 : index
    %c0_73 = arith.constant 0 : index
    %219 = vector.load %arg5[%c0_72, %c0_73] : memref<1x128xf32, #tpu.memory_space<vmem>>, vector<1x128xf32>
    %220 = vector.broadcast %219 : vector<1x128xf32> to vector<8x128xf32>
    %221 = arith.addf %218, %220 : vector<8x128xf32>
    %222 = arith.negf %221 : vector<8x128xf32>
    %223 = math.exp %222 : vector<8x128xf32>
    %cst_74 = arith.constant 1.000000e+00 : f32
    %224 = vector.broadcast %cst_74 : f32 to vector<8x128xf32>
    %225 = arith.addf %224, %223 : vector<8x128xf32>
    %226 = arith.divf %224, %225 : vector<8x128xf32>
    %227 = math.tanh %221 : vector<8x128xf32>
    %228 = arith.select %13, %226, %227 : vector<8x128xi1>, vector<8x128xf32>
    %229 = vector.extract_strided_slice %228 {offsets = [0, 32], sizes = [8, 32], strides = [1, 1]} : vector<8x128xf32> to vector<8x32xf32>
    %230 = arith.mulf %229, %189 : vector<8x32xf32>
    %231 = vector.extract_strided_slice %228 {offsets = [0, 0], sizes = [8, 32], strides = [1, 1]} : vector<8x128xf32> to vector<8x32xf32>
    %232 = vector.extract_strided_slice %228 {offsets = [0, 96], sizes = [8, 32], strides = [1, 1]} : vector<8x128xf32> to vector<8x32xf32>
    %233 = arith.mulf %231, %232 : vector<8x32xf32>
    %234 = arith.addf %230, %233 : vector<8x32xf32>
    %235 = vector.extract_strided_slice %228 {offsets = [0, 64], sizes = [8, 32], strides = [1, 1]} : vector<8x128xf32> to vector<8x32xf32>
    %236 = math.tanh %234 : vector<8x32xf32>
    %237 = arith.mulf %235, %236 : vector<8x32xf32>
    %c32_75 = arith.constant 32 : index
    %c0_76 = arith.constant 0 : index
    %238 = vector.load %arg12[%c32_75, %c0_76] : memref<128x32xf32, #tpu.memory_space<vmem>>, vector<8x32xf32>
    tpu.vector_store %arg12[%c32_75, %c0_76], %237 {strides = array<i32>} : memref<128x32xf32, #tpu.memory_space<vmem>>, vector<8x32xf32>,
    %c40 = arith.constant 40 : index
    %c0_77 = arith.constant 0 : index
    %239 = vector.load %arg11[%c40, %c0_77] : memref<128x512xf32, #tpu.memory_space<vmem>>, vector<8x512xf32>
    %240 = arith.truncf %214 : vector<8x128xf32> to vector<8x128xbf16>
    %c0_78 = arith.constant 0 : index
    %c0_79 = arith.constant 0 : index
    %241 = vector.load %arg2[%c0_78, %c0_79] : memref<128x512xbf16, #tpu.memory_space<vmem>>, vector<128x512xbf16>
    %cst_80 = arith.constant dense<0.000000e+00> : vector<8x512xf32>
    %242 = tpu.matmul %240, %241, %cst_80 {dimension_numbers = #tpu.dot_dimension_numbers<[1], [0], [0], [1], [0, 0, 1, 1], [], []>} : vector<8x128xbf16>, vector<128x512xbf16>, vector<8x512xf32> -> vector<8x512xf32>
    %243 = arith.addf %239, %242 : vector<8x512xf32>
    %244 = vector.extract_strided_slice %243 {offsets = [0, 0], sizes = [8, 384], strides = [1, 1]} : vector<8x512xf32> to vector<8x384xf32>
    %245 = arith.negf %244 : vector<8x384xf32>
    %246 = math.exp %245 : vector<8x384xf32>
    %cst_81 = arith.constant 1.000000e+00 : f32
    %247 = vector.broadcast %cst_81 : f32 to vector<8x384xf32>
    %248 = arith.addf %247, %246 : vector<8x384xf32>
    %249 = arith.divf %247, %248 : vector<8x384xf32>
    %250 = vector.extract_strided_slice %243 {offsets = [0, 384], sizes = [8, 128], strides = [1, 1]} : vector<8x512xf32> to vector<8x128xf32>
    %251 = math.tanh %250 : vector<8x128xf32>
    %252 = vector.extract_strided_slice %249 {offsets = [0, 128], sizes = [8, 128], strides = [1, 1]} : vector<8x384xf32> to vector<8x128xf32>
    %253 = arith.mulf %252, %211 : vector<8x128xf32>
    %254 = vector.extract_strided_slice %249 {offsets = [0, 0], sizes = [8, 128], strides = [1, 1]} : vector<8x384xf32> to vector<8x128xf32>
    %255 = arith.mulf %254, %251 : vector<8x128xf32>
    %256 = arith.addf %253, %255 : vector<8x128xf32>
    %257 = vector.extract_strided_slice %249 {offsets = [0, 256], sizes = [8, 128], strides = [1, 1]} : vector<8x384xf32> to vector<8x128xf32>
    %258 = math.tanh %256 : vector<8x128xf32>
    %259 = arith.mulf %257, %258 : vector<8x128xf32>
    %260 = tpu.concatenate %259, %237 in 1 : vector<8x128xf32>, vector<8x32xf32> -> vector<8x160xf32>
    %261 = arith.truncf %260 : vector<8x160xf32> to vector<8x160xbf16>
    %c0_82 = arith.constant 0 : index
    %c0_83 = arith.constant 0 : index
    %262 = vector.load %arg4[%c0_82, %c0_83] : memref<160x128xbf16, #tpu.memory_space<vmem>>, vector<160x128xbf16>
    %cst_84 = arith.constant dense<0.000000e+00> : vector<8x128xf32>
    %263 = tpu.matmul %261, %262, %cst_84 {dimension_numbers = #tpu.dot_dimension_numbers<[1], [0], [0], [1], [0, 0, 1, 1], [], []>} : vector<8x160xbf16>, vector<160x128xbf16>, vector<8x128xf32> -> vector<8x128xf32>
    %c0_85 = arith.constant 0 : index
    %c0_86 = arith.constant 0 : index
    %264 = vector.load %arg5[%c0_85, %c0_86] : memref<1x128xf32, #tpu.memory_space<vmem>>, vector<1x128xf32>
    %265 = vector.broadcast %264 : vector<1x128xf32> to vector<8x128xf32>
    %266 = arith.addf %263, %265 : vector<8x128xf32>
    %267 = arith.negf %266 : vector<8x128xf32>
    %268 = math.exp %267 : vector<8x128xf32>
    %cst_87 = arith.constant 1.000000e+00 : f32
    %269 = vector.broadcast %cst_87 : f32 to vector<8x128xf32>
    %270 = arith.addf %269, %268 : vector<8x128xf32>
    %271 = arith.divf %269, %270 : vector<8x128xf32>
    %272 = math.tanh %266 : vector<8x128xf32>
    %273 = arith.select %13, %271, %272 : vector<8x128xi1>, vector<8x128xf32>
    %274 = vector.extract_strided_slice %273 {offsets = [0, 32], sizes = [8, 32], strides = [1, 1]} : vector<8x128xf32> to vector<8x32xf32>
    %275 = arith.mulf %274, %234 : vector<8x32xf32>
    %276 = vector.extract_strided_slice %273 {offsets = [0, 0], sizes = [8, 32], strides = [1, 1]} : vector<8x128xf32> to vector<8x32xf32>
    %277 = vector.extract_strided_slice %273 {offsets = [0, 96], sizes = [8, 32], strides = [1, 1]} : vector<8x128xf32> to vector<8x32xf32>
    %278 = arith.mulf %276, %277 : vector<8x32xf32>
    %279 = arith.addf %275, %278 : vector<8x32xf32>
    %280 = vector.extract_strided_slice %273 {offsets = [0, 64], sizes = [8, 32], strides = [1, 1]} : vector<8x128xf32> to vector<8x32xf32>
    %281 = math.tanh %279 : vector<8x32xf32>
    %282 = arith.mulf %280, %281 : vector<8x32xf32>
    %c40_88 = arith.constant 40 : index
    %c0_89 = arith.constant 0 : index
    %283 = vector.load %arg12[%c40_88, %c0_89] : memref<128x32xf32, #tpu.memory_space<vmem>>, vector<8x32xf32>
    tpu.vector_store %arg12[%c40_88, %c0_89], %282 {strides = array<i32>} : memref<128x32xf32, #tpu.memory_space<vmem>>, vector<8x32xf32>,
    %c48 = arith.constant 48 : index
    %c0_90 = arith.constant 0 : index
    %284 = vector.load %arg11[%c48, %c0_90] : memref<128x512xf32, #tpu.memory_space<vmem>>, vector<8x512xf32>
    %285 = arith.truncf %259 : vector<8x128xf32> to vector<8x128xbf16>
    %c0_91 = arith.constant 0 : index
    %c0_92 = arith.constant 0 : index
    %286 = vector.load %arg2[%c0_91, %c0_92] : memref<128x512xbf16, #tpu.memory_space<vmem>>, vector<128x512xbf16>
    %cst_93 = arith.constant dense<0.000000e+00> : vector<8x512xf32>
    %287 = tpu.matmul %285, %286, %cst_93 {dimension_numbers = #tpu.dot_dimension_numbers<[1], [0], [0], [1], [0, 0, 1, 1], [], []>} : vector<8x128xbf16>, vector<128x512xbf16>, vector<8x512xf32> -> vector<8x512xf32>
    %288 = arith.addf %284, %287 : vector<8x512xf32>
    %289 = vector.extract_strided_slice %288 {offsets = [0, 0], sizes = [8, 384], strides = [1, 1]} : vector<8x512xf32> to vector<8x384xf32>
    %290 = arith.negf %289 : vector<8x384xf32>
    %291 = math.exp %290 : vector<8x384xf32>
    %cst_94 = arith.constant 1.000000e+00 : f32
    %292 = vector.broadcast %cst_94 : f32 to vector<8x384xf32>
    %293 = arith.addf %292, %291 : vector<8x384xf32>
    %294 = arith.divf %292, %293 : vector<8x384xf32>
    %295 = vector.extract_strided_slice %288 {offsets = [0, 384], sizes = [8, 128], strides = [1, 1]} : vector<8x512xf32> to vector<8x128xf32>
    %296 = math.tanh %295 : vector<8x128xf32>
    %297 = vector.extract_strided_slice %294 {offsets = [0, 128], sizes = [8, 128], strides = [1, 1]} : vector<8x384xf32> to vector<8x128xf32>
    %298 = arith.mulf %297, %256 : vector<8x128xf32>
    %299 = vector.extract_strided_slice %294 {offsets = [0, 0], sizes = [8, 128], strides = [1, 1]} : vector<8x384xf32> to vector<8x128xf32>
    %300 = arith.mulf %299, %296 : vector<8x128xf32>
    %301 = arith.addf %298, %300 : vector<8x128xf32>
    %302 = vector.extract_strided_slice %294 {offsets = [0, 256], sizes = [8, 128], strides = [1, 1]} : vector<8x384xf32> to vector<8x128xf32>
    %303 = math.tanh %301 : vector<8x128xf32>
    %304 = arith.mulf %302, %303 : vector<8x128xf32>
    %305 = tpu.concatenate %304, %282 in 1 : vector<8x128xf32>, vector<8x32xf32> -> vector<8x160xf32>
    %306 = arith.truncf %305 : vector<8x160xf32> to vector<8x160xbf16>
    %c0_95 = arith.constant 0 : index
    %c0_96 = arith.constant 0 : index
    %307 = vector.load %arg4[%c0_95, %c0_96] : memref<160x128xbf16, #tpu.memory_space<vmem>>, vector<160x128xbf16>
    %cst_97 = arith.constant dense<0.000000e+00> : vector<8x128xf32>
    %308 = tpu.matmul %306, %307, %cst_97 {dimension_numbers = #tpu.dot_dimension_numbers<[1], [0], [0], [1], [0, 0, 1, 1], [], []>} : vector<8x160xbf16>, vector<160x128xbf16>, vector<8x128xf32> -> vector<8x128xf32>
    %c0_98 = arith.constant 0 : index
    %c0_99 = arith.constant 0 : index
    %309 = vector.load %arg5[%c0_98, %c0_99] : memref<1x128xf32, #tpu.memory_space<vmem>>, vector<1x128xf32>
    %310 = vector.broadcast %309 : vector<1x128xf32> to vector<8x128xf32>
    %311 = arith.addf %308, %310 : vector<8x128xf32>
    %312 = arith.negf %311 : vector<8x128xf32>
    %313 = math.exp %312 : vector<8x128xf32>
    %cst_100 = arith.constant 1.000000e+00 : f32
    %314 = vector.broadcast %cst_100 : f32 to vector<8x128xf32>
    %315 = arith.addf %314, %313 : vector<8x128xf32>
    %316 = arith.divf %314, %315 : vector<8x128xf32>
    %317 = math.tanh %311 : vector<8x128xf32>
    %318 = arith.select %13, %316, %317 : vector<8x128xi1>, vector<8x128xf32>
    %319 = vector.extract_strided_slice %318 {offsets = [0, 32], sizes = [8, 32], strides = [1, 1]} : vector<8x128xf32> to vector<8x32xf32>
    %320 = arith.mulf %319, %279 : vector<8x32xf32>
    %321 = vector.extract_strided_slice %318 {offsets = [0, 0], sizes = [8, 32], strides = [1, 1]} : vector<8x128xf32> to vector<8x32xf32>
    %322 = vector.extract_strided_slice %318 {offsets = [0, 96], sizes = [8, 32], strides = [1, 1]} : vector<8x128xf32> to vector<8x32xf32>
    %323 = arith.mulf %321, %322 : vector<8x32xf32>
    %324 = arith.addf %320, %323 : vector<8x32xf32>
    %325 = vector.extract_strided_slice %318 {offsets = [0, 64], sizes = [8, 32], strides = [1, 1]} : vector<8x128xf32> to vector<8x32xf32>
    %326 = math.tanh %324 : vector<8x32xf32>
    %327 = arith.mulf %325, %326 : vector<8x32xf32>
    %c48_101 = arith.constant 48 : index
    %c0_102 = arith.constant 0 : index
    %328 = vector.load %arg12[%c48_101, %c0_102] : memref<128x32xf32, #tpu.memory_space<vmem>>, vector<8x32xf32>
    tpu.vector_store %arg12[%c48_101, %c0_102], %327 {strides = array<i32>} : memref<128x32xf32, #tpu.memory_space<vmem>>, vector<8x32xf32>,
    %c56 = arith.constant 56 : index
    %c0_103 = arith.constant 0 : index
    %329 = vector.load %arg11[%c56, %c0_103] : memref<128x512xf32, #tpu.memory_space<vmem>>, vector<8x512xf32>
    %330 = arith.truncf %304 : vector<8x128xf32> to vector<8x128xbf16>
    %c0_104 = arith.constant 0 : index
    %c0_105 = arith.constant 0 : index
    %331 = vector.load %arg2[%c0_104, %c0_105] : memref<128x512xbf16, #tpu.memory_space<vmem>>, vector<128x512xbf16>
    %cst_106 = arith.constant dense<0.000000e+00> : vector<8x512xf32>
    %332 = tpu.matmul %330, %331, %cst_106 {dimension_numbers = #tpu.dot_dimension_numbers<[1], [0], [0], [1], [0, 0, 1, 1], [], []>} : vector<8x128xbf16>, vector<128x512xbf16>, vector<8x512xf32> -> vector<8x512xf32>
    %333 = arith.addf %329, %332 : vector<8x512xf32>
    %334 = vector.extract_strided_slice %333 {offsets = [0, 0], sizes = [8, 384], strides = [1, 1]} : vector<8x512xf32> to vector<8x384xf32>
    %335 = arith.negf %334 : vector<8x384xf32>
    %336 = math.exp %335 : vector<8x384xf32>
    %cst_107 = arith.constant 1.000000e+00 : f32
    %337 = vector.broadcast %cst_107 : f32 to vector<8x384xf32>
    %338 = arith.addf %337, %336 : vector<8x384xf32>
    %339 = arith.divf %337, %338 : vector<8x384xf32>
    %340 = vector.extract_strided_slice %333 {offsets = [0, 384], sizes = [8, 128], strides = [1, 1]} : vector<8x512xf32> to vector<8x128xf32>
    %341 = math.tanh %340 : vector<8x128xf32>
    %342 = vector.extract_strided_slice %339 {offsets = [0, 128], sizes = [8, 128], strides = [1, 1]} : vector<8x384xf32> to vector<8x128xf32>
    %343 = arith.mulf %342, %301 : vector<8x128xf32>
    %344 = vector.extract_strided_slice %339 {offsets = [0, 0], sizes = [8, 128], strides = [1, 1]} : vector<8x384xf32> to vector<8x128xf32>
    %345 = arith.mulf %344, %341 : vector<8x128xf32>
    %346 = arith.addf %343, %345 : vector<8x128xf32>
    %347 = vector.extract_strided_slice %339 {offsets = [0, 256], sizes = [8, 128], strides = [1, 1]} : vector<8x384xf32> to vector<8x128xf32>
    %348 = math.tanh %346 : vector<8x128xf32>
    %349 = arith.mulf %347, %348 : vector<8x128xf32>
    %350 = tpu.concatenate %349, %327 in 1 : vector<8x128xf32>, vector<8x32xf32> -> vector<8x160xf32>
    %351 = arith.truncf %350 : vector<8x160xf32> to vector<8x160xbf16>
    %c0_108 = arith.constant 0 : index
    %c0_109 = arith.constant 0 : index
    %352 = vector.load %arg4[%c0_108, %c0_109] : memref<160x128xbf16, #tpu.memory_space<vmem>>, vector<160x128xbf16>
    %cst_110 = arith.constant dense<0.000000e+00> : vector<8x128xf32>
    %353 = tpu.matmul %351, %352, %cst_110 {dimension_numbers = #tpu.dot_dimension_numbers<[1], [0], [0], [1], [0, 0, 1, 1], [], []>} : vector<8x160xbf16>, vector<160x128xbf16>, vector<8x128xf32> -> vector<8x128xf32>
    %c0_111 = arith.constant 0 : index
    %c0_112 = arith.constant 0 : index
    %354 = vector.load %arg5[%c0_111, %c0_112] : memref<1x128xf32, #tpu.memory_space<vmem>>, vector<1x128xf32>
    %355 = vector.broadcast %354 : vector<1x128xf32> to vector<8x128xf32>
    %356 = arith.addf %353, %355 : vector<8x128xf32>
    %357 = arith.negf %356 : vector<8x128xf32>
    %358 = math.exp %357 : vector<8x128xf32>
    %cst_113 = arith.constant 1.000000e+00 : f32
    %359 = vector.broadcast %cst_113 : f32 to vector<8x128xf32>
    %360 = arith.addf %359, %358 : vector<8x128xf32>
    %361 = arith.divf %359, %360 : vector<8x128xf32>
    %362 = math.tanh %356 : vector<8x128xf32>
    %363 = arith.select %13, %361, %362 : vector<8x128xi1>, vector<8x128xf32>
    %364 = vector.extract_strided_slice %363 {offsets = [0, 32], sizes = [8, 32], strides = [1, 1]} : vector<8x128xf32> to vector<8x32xf32>
    %365 = arith.mulf %364, %324 : vector<8x32xf32>
    %366 = vector.extract_strided_slice %363 {offsets = [0, 0], sizes = [8, 32], strides = [1, 1]} : vector<8x128xf32> to vector<8x32xf32>
    %367 = vector.extract_strided_slice %363 {offsets = [0, 96], sizes = [8, 32], strides = [1, 1]} : vector<8x128xf32> to vector<8x32xf32>
    %368 = arith.mulf %366, %367 : vector<8x32xf32>
    %369 = arith.addf %365, %368 : vector<8x32xf32>
    %370 = vector.extract_strided_slice %363 {offsets = [0, 64], sizes = [8, 32], strides = [1, 1]} : vector<8x128xf32> to vector<8x32xf32>
    %371 = math.tanh %369 : vector<8x32xf32>
    %372 = arith.mulf %370, %371 : vector<8x32xf32>
    %c56_114 = arith.constant 56 : index
    %c0_115 = arith.constant 0 : index
    %373 = vector.load %arg12[%c56_114, %c0_115] : memref<128x32xf32, #tpu.memory_space<vmem>>, vector<8x32xf32>
    tpu.vector_store %arg12[%c56_114, %c0_115], %372 {strides = array<i32>} : memref<128x32xf32, #tpu.memory_space<vmem>>, vector<8x32xf32>,
    %c64 = arith.constant 64 : index
    %c0_116 = arith.constant 0 : index
    %374 = vector.load %arg11[%c64, %c0_116] : memref<128x512xf32, #tpu.memory_space<vmem>>, vector<8x512xf32>
    %375 = arith.truncf %349 : vector<8x128xf32> to vector<8x128xbf16>
    %c0_117 = arith.constant 0 : index
    %c0_118 = arith.constant 0 : index
    %376 = vector.load %arg2[%c0_117, %c0_118] : memref<128x512xbf16, #tpu.memory_space<vmem>>, vector<128x512xbf16>
    %cst_119 = arith.constant dense<0.000000e+00> : vector<8x512xf32>
    %377 = tpu.matmul %375, %376, %cst_119 {dimension_numbers = #tpu.dot_dimension_numbers<[1], [0], [0], [1], [0, 0, 1, 1], [], []>} : vector<8x128xbf16>, vector<128x512xbf16>, vector<8x512xf32> -> vector<8x512xf32>
    %378 = arith.addf %374, %377 : vector<8x512xf32>
    %379 = vector.extract_strided_slice %378 {offsets = [0, 0], sizes = [8, 384], strides = [1, 1]} : vector<8x512xf32> to vector<8x384xf32>
    %380 = arith.negf %379 : vector<8x384xf32>
    %381 = math.exp %380 : vector<8x384xf32>
    %cst_120 = arith.constant 1.000000e+00 : f32
    %382 = vector.broadcast %cst_120 : f32 to vector<8x384xf32>
    %383 = arith.addf %382, %381 : vector<8x384xf32>
    %384 = arith.divf %382, %383 : vector<8x384xf32>
    %385 = vector.extract_strided_slice %378 {offsets = [0, 384], sizes = [8, 128], strides = [1, 1]} : vector<8x512xf32> to vector<8x128xf32>
    %386 = math.tanh %385 : vector<8x128xf32>
    %387 = vector.extract_strided_slice %384 {offsets = [0, 128], sizes = [8, 128], strides = [1, 1]} : vector<8x384xf32> to vector<8x128xf32>
    %388 = arith.mulf %387, %346 : vector<8x128xf32>
    %389 = vector.extract_strided_slice %384 {offsets = [0, 0], sizes = [8, 128], strides = [1, 1]} : vector<8x384xf32> to vector<8x128xf32>
    %390 = arith.mulf %389, %386 : vector<8x128xf32>
    %391 = arith.addf %388, %390 : vector<8x128xf32>
    %392 = vector.extract_strided_slice %384 {offsets = [0, 256], sizes = [8, 128], strides = [1, 1]} : vector<8x384xf32> to vector<8x128xf32>
    %393 = math.tanh %391 : vector<8x128xf32>
    %394 = arith.mulf %392, %393 : vector<8x128xf32>
    %395 = tpu.concatenate %394, %372 in 1 : vector<8x128xf32>, vector<8x32xf32> -> vector<8x160xf32>
    %396 = arith.truncf %395 : vector<8x160xf32> to vector<8x160xbf16>
    %c0_121 = arith.constant 0 : index
    %c0_122 = arith.constant 0 : index
    %397 = vector.load %arg4[%c0_121, %c0_122] : memref<160x128xbf16, #tpu.memory_space<vmem>>, vector<160x128xbf16>
    %cst_123 = arith.constant dense<0.000000e+00> : vector<8x128xf32>
    %398 = tpu.matmul %396, %397, %cst_123 {dimension_numbers = #tpu.dot_dimension_numbers<[1], [0], [0], [1], [0, 0, 1, 1], [], []>} : vector<8x160xbf16>, vector<160x128xbf16>, vector<8x128xf32> -> vector<8x128xf32>
    %c0_124 = arith.constant 0 : index
    %c0_125 = arith.constant 0 : index
    %399 = vector.load %arg5[%c0_124, %c0_125] : memref<1x128xf32, #tpu.memory_space<vmem>>, vector<1x128xf32>
    %400 = vector.broadcast %399 : vector<1x128xf32> to vector<8x128xf32>
    %401 = arith.addf %398, %400 : vector<8x128xf32>
    %402 = arith.negf %401 : vector<8x128xf32>
    %403 = math.exp %402 : vector<8x128xf32>
    %cst_126 = arith.constant 1.000000e+00 : f32
    %404 = vector.broadcast %cst_126 : f32 to vector<8x128xf32>
    %405 = arith.addf %404, %403 : vector<8x128xf32>
    %406 = arith.divf %404, %405 : vector<8x128xf32>
    %407 = math.tanh %401 : vector<8x128xf32>
    %408 = arith.select %13, %406, %407 : vector<8x128xi1>, vector<8x128xf32>
    %409 = vector.extract_strided_slice %408 {offsets = [0, 32], sizes = [8, 32], strides = [1, 1]} : vector<8x128xf32> to vector<8x32xf32>
    %410 = arith.mulf %409, %369 : vector<8x32xf32>
    %411 = vector.extract_strided_slice %408 {offsets = [0, 0], sizes = [8, 32], strides = [1, 1]} : vector<8x128xf32> to vector<8x32xf32>
    %412 = vector.extract_strided_slice %408 {offsets = [0, 96], sizes = [8, 32], strides = [1, 1]} : vector<8x128xf32> to vector<8x32xf32>
    %413 = arith.mulf %411, %412 : vector<8x32xf32>
    %414 = arith.addf %410, %413 : vector<8x32xf32>
    %415 = vector.extract_strided_slice %408 {offsets = [0, 64], sizes = [8, 32], strides = [1, 1]} : vector<8x128xf32> to vector<8x32xf32>
    %416 = math.tanh %414 : vector<8x32xf32>
    %417 = arith.mulf %415, %416 : vector<8x32xf32>
    %c64_127 = arith.constant 64 : index
    %c0_128 = arith.constant 0 : index
    %418 = vector.load %arg12[%c64_127, %c0_128] : memref<128x32xf32, #tpu.memory_space<vmem>>, vector<8x32xf32>
    tpu.vector_store %arg12[%c64_127, %c0_128], %417 {strides = array<i32>} : memref<128x32xf32, #tpu.memory_space<vmem>>, vector<8x32xf32>,
    %c72 = arith.constant 72 : index
    %c0_129 = arith.constant 0 : index
    %419 = vector.load %arg11[%c72, %c0_129] : memref<128x512xf32, #tpu.memory_space<vmem>>, vector<8x512xf32>
    %420 = arith.truncf %394 : vector<8x128xf32> to vector<8x128xbf16>
    %c0_130 = arith.constant 0 : index
    %c0_131 = arith.constant 0 : index
    %421 = vector.load %arg2[%c0_130, %c0_131] : memref<128x512xbf16, #tpu.memory_space<vmem>>, vector<128x512xbf16>
    %cst_132 = arith.constant dense<0.000000e+00> : vector<8x512xf32>
    %422 = tpu.matmul %420, %421, %cst_132 {dimension_numbers = #tpu.dot_dimension_numbers<[1], [0], [0], [1], [0, 0, 1, 1], [], []>} : vector<8x128xbf16>, vector<128x512xbf16>, vector<8x512xf32> -> vector<8x512xf32>
    %423 = arith.addf %419, %422 : vector<8x512xf32>
    %424 = vector.extract_strided_slice %423 {offsets = [0, 0], sizes = [8, 384], strides = [1, 1]} : vector<8x512xf32> to vector<8x384xf32>
    %425 = arith.negf %424 : vector<8x384xf32>
    %426 = math.exp %425 : vector<8x384xf32>
    %cst_133 = arith.constant 1.000000e+00 : f32
    %427 = vector.broadcast %cst_133 : f32 to vector<8x384xf32>
    %428 = arith.addf %427, %426 : vector<8x384xf32>
    %429 = arith.divf %427, %428 : vector<8x384xf32>
    %430 = vector.extract_strided_slice %423 {offsets = [0, 384], sizes = [8, 128], strides = [1, 1]} : vector<8x512xf32> to vector<8x128xf32>
    %431 = math.tanh %430 : vector<8x128xf32>
    %432 = vector.extract_strided_slice %429 {offsets = [0, 128], sizes = [8, 128], strides = [1, 1]} : vector<8x384xf32> to vector<8x128xf32>
    %433 = arith.mulf %432, %391 : vector<8x128xf32>
    %434 = vector.extract_strided_slice %429 {offsets = [0, 0], sizes = [8, 128], strides = [1, 1]} : vector<8x384xf32> to vector<8x128xf32>
    %435 = arith.mulf %434, %431 : vector<8x128xf32>
    %436 = arith.addf %433, %435 : vector<8x128xf32>
    %437 = vector.extract_strided_slice %429 {offsets = [0, 256], sizes = [8, 128], strides = [1, 1]} : vector<8x384xf32> to vector<8x128xf32>
    %438 = math.tanh %436 : vector<8x128xf32>
    %439 = arith.mulf %437, %438 : vector<8x128xf32>
    %440 = tpu.concatenate %439, %417 in 1 : vector<8x128xf32>, vector<8x32xf32> -> vector<8x160xf32>
    %441 = arith.truncf %440 : vector<8x160xf32> to vector<8x160xbf16>
    %c0_134 = arith.constant 0 : index
    %c0_135 = arith.constant 0 : index
    %442 = vector.load %arg4[%c0_134, %c0_135] : memref<160x128xbf16, #tpu.memory_space<vmem>>, vector<160x128xbf16>
    %cst_136 = arith.constant dense<0.000000e+00> : vector<8x128xf32>
    %443 = tpu.matmul %441, %442, %cst_136 {dimension_numbers = #tpu.dot_dimension_numbers<[1], [0], [0], [1], [0, 0, 1, 1], [], []>} : vector<8x160xbf16>, vector<160x128xbf16>, vector<8x128xf32> -> vector<8x128xf32>
    %c0_137 = arith.constant 0 : index
    %c0_138 = arith.constant 0 : index
    %444 = vector.load %arg5[%c0_137, %c0_138] : memref<1x128xf32, #tpu.memory_space<vmem>>, vector<1x128xf32>
    %445 = vector.broadcast %444 : vector<1x128xf32> to vector<8x128xf32>
    %446 = arith.addf %443, %445 : vector<8x128xf32>
    %447 = arith.negf %446 : vector<8x128xf32>
    %448 = math.exp %447 : vector<8x128xf32>
    %cst_139 = arith.constant 1.000000e+00 : f32
    %449 = vector.broadcast %cst_139 : f32 to vector<8x128xf32>
    %450 = arith.addf %449, %448 : vector<8x128xf32>
    %451 = arith.divf %449, %450 : vector<8x128xf32>
    %452 = math.tanh %446 : vector<8x128xf32>
    %453 = arith.select %13, %451, %452 : vector<8x128xi1>, vector<8x128xf32>
    %454 = vector.extract_strided_slice %453 {offsets = [0, 32], sizes = [8, 32], strides = [1, 1]} : vector<8x128xf32> to vector<8x32xf32>
    %455 = arith.mulf %454, %414 : vector<8x32xf32>
    %456 = vector.extract_strided_slice %453 {offsets = [0, 0], sizes = [8, 32], strides = [1, 1]} : vector<8x128xf32> to vector<8x32xf32>
    %457 = vector.extract_strided_slice %453 {offsets = [0, 96], sizes = [8, 32], strides = [1, 1]} : vector<8x128xf32> to vector<8x32xf32>
    %458 = arith.mulf %456, %457 : vector<8x32xf32>
    %459 = arith.addf %455, %458 : vector<8x32xf32>
    %460 = vector.extract_strided_slice %453 {offsets = [0, 64], sizes = [8, 32], strides = [1, 1]} : vector<8x128xf32> to vector<8x32xf32>
    %461 = math.tanh %459 : vector<8x32xf32>
    %462 = arith.mulf %460, %461 : vector<8x32xf32>
    %c72_140 = arith.constant 72 : index
    %c0_141 = arith.constant 0 : index
    %463 = vector.load %arg12[%c72_140, %c0_141] : memref<128x32xf32, #tpu.memory_space<vmem>>, vector<8x32xf32>
    tpu.vector_store %arg12[%c72_140, %c0_141], %462 {strides = array<i32>} : memref<128x32xf32, #tpu.memory_space<vmem>>, vector<8x32xf32>,
    %c80 = arith.constant 80 : index
    %c0_142 = arith.constant 0 : index
    %464 = vector.load %arg11[%c80, %c0_142] : memref<128x512xf32, #tpu.memory_space<vmem>>, vector<8x512xf32>
    %465 = arith.truncf %439 : vector<8x128xf32> to vector<8x128xbf16>
    %c0_143 = arith.constant 0 : index
    %c0_144 = arith.constant 0 : index
    %466 = vector.load %arg2[%c0_143, %c0_144] : memref<128x512xbf16, #tpu.memory_space<vmem>>, vector<128x512xbf16>
    %cst_145 = arith.constant dense<0.000000e+00> : vector<8x512xf32>
    %467 = tpu.matmul %465, %466, %cst_145 {dimension_numbers = #tpu.dot_dimension_numbers<[1], [0], [0], [1], [0, 0, 1, 1], [], []>} : vector<8x128xbf16>, vector<128x512xbf16>, vector<8x512xf32> -> vector<8x512xf32>
    %468 = arith.addf %464, %467 : vector<8x512xf32>
    %469 = vector.extract_strided_slice %468 {offsets = [0, 0], sizes = [8, 384], strides = [1, 1]} : vector<8x512xf32> to vector<8x384xf32>
    %470 = arith.negf %469 : vector<8x384xf32>
    %471 = math.exp %470 : vector<8x384xf32>
    %cst_146 = arith.constant 1.000000e+00 : f32
    %472 = vector.broadcast %cst_146 : f32 to vector<8x384xf32>
    %473 = arith.addf %472, %471 : vector<8x384xf32>
    %474 = arith.divf %472, %473 : vector<8x384xf32>
    %475 = vector.extract_strided_slice %468 {offsets = [0, 384], sizes = [8, 128], strides = [1, 1]} : vector<8x512xf32> to vector<8x128xf32>
    %476 = math.tanh %475 : vector<8x128xf32>
    %477 = vector.extract_strided_slice %474 {offsets = [0, 128], sizes = [8, 128], strides = [1, 1]} : vector<8x384xf32> to vector<8x128xf32>
    %478 = arith.mulf %477, %436 : vector<8x128xf32>
    %479 = vector.extract_strided_slice %474 {offsets = [0, 0], sizes = [8, 128], strides = [1, 1]} : vector<8x384xf32> to vector<8x128xf32>
    %480 = arith.mulf %479, %476 : vector<8x128xf32>
    %481 = arith.addf %478, %480 : vector<8x128xf32>
    %482 = vector.extract_strided_slice %474 {offsets = [0, 256], sizes = [8, 128], strides = [1, 1]} : vector<8x384xf32> to vector<8x128xf32>
    %483 = math.tanh %481 : vector<8x128xf32>
    %484 = arith.mulf %482, %483 : vector<8x128xf32>
    %485 = tpu.concatenate %484, %462 in 1 : vector<8x128xf32>, vector<8x32xf32> -> vector<8x160xf32>
    %486 = arith.truncf %485 : vector<8x160xf32> to vector<8x160xbf16>
    %c0_147 = arith.constant 0 : index
    %c0_148 = arith.constant 0 : index
    %487 = vector.load %arg4[%c0_147, %c0_148] : memref<160x128xbf16, #tpu.memory_space<vmem>>, vector<160x128xbf16>
    %cst_149 = arith.constant dense<0.000000e+00> : vector<8x128xf32>
    %488 = tpu.matmul %486, %487, %cst_149 {dimension_numbers = #tpu.dot_dimension_numbers<[1], [0], [0], [1], [0, 0, 1, 1], [], []>} : vector<8x160xbf16>, vector<160x128xbf16>, vector<8x128xf32> -> vector<8x128xf32>
    %c0_150 = arith.constant 0 : index
    %c0_151 = arith.constant 0 : index
    %489 = vector.load %arg5[%c0_150, %c0_151] : memref<1x128xf32, #tpu.memory_space<vmem>>, vector<1x128xf32>
    %490 = vector.broadcast %489 : vector<1x128xf32> to vector<8x128xf32>
    %491 = arith.addf %488, %490 : vector<8x128xf32>
    %492 = arith.negf %491 : vector<8x128xf32>
    %493 = math.exp %492 : vector<8x128xf32>
    %cst_152 = arith.constant 1.000000e+00 : f32
    %494 = vector.broadcast %cst_152 : f32 to vector<8x128xf32>
    %495 = arith.addf %494, %493 : vector<8x128xf32>
    %496 = arith.divf %494, %495 : vector<8x128xf32>
    %497 = math.tanh %491 : vector<8x128xf32>
    %498 = arith.select %13, %496, %497 : vector<8x128xi1>, vector<8x128xf32>
    %499 = vector.extract_strided_slice %498 {offsets = [0, 32], sizes = [8, 32], strides = [1, 1]} : vector<8x128xf32> to vector<8x32xf32>
    %500 = arith.mulf %499, %459 : vector<8x32xf32>
    %501 = vector.extract_strided_slice %498 {offsets = [0, 0], sizes = [8, 32], strides = [1, 1]} : vector<8x128xf32> to vector<8x32xf32>
    %502 = vector.extract_strided_slice %498 {offsets = [0, 96], sizes = [8, 32], strides = [1, 1]} : vector<8x128xf32> to vector<8x32xf32>
    %503 = arith.mulf %501, %502 : vector<8x32xf32>
    %504 = arith.addf %500, %503 : vector<8x32xf32>
    %505 = vector.extract_strided_slice %498 {offsets = [0, 64], sizes = [8, 32], strides = [1, 1]} : vector<8x128xf32> to vector<8x32xf32>
    %506 = math.tanh %504 : vector<8x32xf32>
    %507 = arith.mulf %505, %506 : vector<8x32xf32>
    %c80_153 = arith.constant 80 : index
    %c0_154 = arith.constant 0 : index
    %508 = vector.load %arg12[%c80_153, %c0_154] : memref<128x32xf32, #tpu.memory_space<vmem>>, vector<8x32xf32>
    tpu.vector_store %arg12[%c80_153, %c0_154], %507 {strides = array<i32>} : memref<128x32xf32, #tpu.memory_space<vmem>>, vector<8x32xf32>,
    %c88 = arith.constant 88 : index
    %c0_155 = arith.constant 0 : index
    %509 = vector.load %arg11[%c88, %c0_155] : memref<128x512xf32, #tpu.memory_space<vmem>>, vector<8x512xf32>
    %510 = arith.truncf %484 : vector<8x128xf32> to vector<8x128xbf16>
    %c0_156 = arith.constant 0 : index
    %c0_157 = arith.constant 0 : index
    %511 = vector.load %arg2[%c0_156, %c0_157] : memref<128x512xbf16, #tpu.memory_space<vmem>>, vector<128x512xbf16>
    %cst_158 = arith.constant dense<0.000000e+00> : vector<8x512xf32>
    %512 = tpu.matmul %510, %511, %cst_158 {dimension_numbers = #tpu.dot_dimension_numbers<[1], [0], [0], [1], [0, 0, 1, 1], [], []>} : vector<8x128xbf16>, vector<128x512xbf16>, vector<8x512xf32> -> vector<8x512xf32>
    %513 = arith.addf %509, %512 : vector<8x512xf32>
    %514 = vector.extract_strided_slice %513 {offsets = [0, 0], sizes = [8, 384], strides = [1, 1]} : vector<8x512xf32> to vector<8x384xf32>
    %515 = arith.negf %514 : vector<8x384xf32>
    %516 = math.exp %515 : vector<8x384xf32>
    %cst_159 = arith.constant 1.000000e+00 : f32
    %517 = vector.broadcast %cst_159 : f32 to vector<8x384xf32>
    %518 = arith.addf %517, %516 : vector<8x384xf32>
    %519 = arith.divf %517, %518 : vector<8x384xf32>
    %520 = vector.extract_strided_slice %513 {offsets = [0, 384], sizes = [8, 128], strides = [1, 1]} : vector<8x512xf32> to vector<8x128xf32>
    %521 = math.tanh %520 : vector<8x128xf32>
    %522 = vector.extract_strided_slice %519 {offsets = [0, 128], sizes = [8, 128], strides = [1, 1]} : vector<8x384xf32> to vector<8x128xf32>
    %523 = arith.mulf %522, %481 : vector<8x128xf32>
    %524 = vector.extract_strided_slice %519 {offsets = [0, 0], sizes = [8, 128], strides = [1, 1]} : vector<8x384xf32> to vector<8x128xf32>
    %525 = arith.mulf %524, %521 : vector<8x128xf32>
    %526 = arith.addf %523, %525 : vector<8x128xf32>
    %527 = vector.extract_strided_slice %519 {offsets = [0, 256], sizes = [8, 128], strides = [1, 1]} : vector<8x384xf32> to vector<8x128xf32>
    %528 = math.tanh %526 : vector<8x128xf32>
    %529 = arith.mulf %527, %528 : vector<8x128xf32>
    %530 = tpu.concatenate %529, %507 in 1 : vector<8x128xf32>, vector<8x32xf32> -> vector<8x160xf32>
    %531 = arith.truncf %530 : vector<8x160xf32> to vector<8x160xbf16>
    %c0_160 = arith.constant 0 : index
    %c0_161 = arith.constant 0 : index
    %532 = vector.load %arg4[%c0_160, %c0_161] : memref<160x128xbf16, #tpu.memory_space<vmem>>, vector<160x128xbf16>
    %cst_162 = arith.constant dense<0.000000e+00> : vector<8x128xf32>
    %533 = tpu.matmul %531, %532, %cst_162 {dimension_numbers = #tpu.dot_dimension_numbers<[1], [0], [0], [1], [0, 0, 1, 1], [], []>} : vector<8x160xbf16>, vector<160x128xbf16>, vector<8x128xf32> -> vector<8x128xf32>
    %c0_163 = arith.constant 0 : index
    %c0_164 = arith.constant 0 : index
    %534 = vector.load %arg5[%c0_163, %c0_164] : memref<1x128xf32, #tpu.memory_space<vmem>>, vector<1x128xf32>
    %535 = vector.broadcast %534 : vector<1x128xf32> to vector<8x128xf32>
    %536 = arith.addf %533, %535 : vector<8x128xf32>
    %537 = arith.negf %536 : vector<8x128xf32>
    %538 = math.exp %537 : vector<8x128xf32>
    %cst_165 = arith.constant 1.000000e+00 : f32
    %539 = vector.broadcast %cst_165 : f32 to vector<8x128xf32>
    %540 = arith.addf %539, %538 : vector<8x128xf32>
    %541 = arith.divf %539, %540 : vector<8x128xf32>
    %542 = math.tanh %536 : vector<8x128xf32>
    %543 = arith.select %13, %541, %542 : vector<8x128xi1>, vector<8x128xf32>
    %544 = vector.extract_strided_slice %543 {offsets = [0, 32], sizes = [8, 32], strides = [1, 1]} : vector<8x128xf32> to vector<8x32xf32>
    %545 = arith.mulf %544, %504 : vector<8x32xf32>
    %546 = vector.extract_strided_slice %543 {offsets = [0, 0], sizes = [8, 32], strides = [1, 1]} : vector<8x128xf32> to vector<8x32xf32>
    %547 = vector.extract_strided_slice %543 {offsets = [0, 96], sizes = [8, 32], strides = [1, 1]} : vector<8x128xf32> to vector<8x32xf32>
    %548 = arith.mulf %546, %547 : vector<8x32xf32>
    %549 = arith.addf %545, %548 : vector<8x32xf32>
    %550 = vector.extract_strided_slice %543 {offsets = [0, 64], sizes = [8, 32], strides = [1, 1]} : vector<8x128xf32> to vector<8x32xf32>
    %551 = math.tanh %549 : vector<8x32xf32>
    %552 = arith.mulf %550, %551 : vector<8x32xf32>
    %c88_166 = arith.constant 88 : index
    %c0_167 = arith.constant 0 : index
    %553 = vector.load %arg12[%c88_166, %c0_167] : memref<128x32xf32, #tpu.memory_space<vmem>>, vector<8x32xf32>
    tpu.vector_store %arg12[%c88_166, %c0_167], %552 {strides = array<i32>} : memref<128x32xf32, #tpu.memory_space<vmem>>, vector<8x32xf32>,
    %c96 = arith.constant 96 : index
    %c0_168 = arith.constant 0 : index
    %554 = vector.load %arg11[%c96, %c0_168] : memref<128x512xf32, #tpu.memory_space<vmem>>, vector<8x512xf32>
    %555 = arith.truncf %529 : vector<8x128xf32> to vector<8x128xbf16>
    %c0_169 = arith.constant 0 : index
    %c0_170 = arith.constant 0 : index
    %556 = vector.load %arg2[%c0_169, %c0_170] : memref<128x512xbf16, #tpu.memory_space<vmem>>, vector<128x512xbf16>
    %cst_171 = arith.constant dense<0.000000e+00> : vector<8x512xf32>
    %557 = tpu.matmul %555, %556, %cst_171 {dimension_numbers = #tpu.dot_dimension_numbers<[1], [0], [0], [1], [0, 0, 1, 1], [], []>} : vector<8x128xbf16>, vector<128x512xbf16>, vector<8x512xf32> -> vector<8x512xf32>
    %558 = arith.addf %554, %557 : vector<8x512xf32>
    %559 = vector.extract_strided_slice %558 {offsets = [0, 0], sizes = [8, 384], strides = [1, 1]} : vector<8x512xf32> to vector<8x384xf32>
    %560 = arith.negf %559 : vector<8x384xf32>
    %561 = math.exp %560 : vector<8x384xf32>
    %cst_172 = arith.constant 1.000000e+00 : f32
    %562 = vector.broadcast %cst_172 : f32 to vector<8x384xf32>
    %563 = arith.addf %562, %561 : vector<8x384xf32>
    %564 = arith.divf %562, %563 : vector<8x384xf32>
    %565 = vector.extract_strided_slice %558 {offsets = [0, 384], sizes = [8, 128], strides = [1, 1]} : vector<8x512xf32> to vector<8x128xf32>
    %566 = math.tanh %565 : vector<8x128xf32>
    %567 = vector.extract_strided_slice %564 {offsets = [0, 128], sizes = [8, 128], strides = [1, 1]} : vector<8x384xf32> to vector<8x128xf32>
    %568 = arith.mulf %567, %526 : vector<8x128xf32>
    %569 = vector.extract_strided_slice %564 {offsets = [0, 0], sizes = [8, 128], strides = [1, 1]} : vector<8x384xf32> to vector<8x128xf32>
    %570 = arith.mulf %569, %566 : vector<8x128xf32>
    %571 = arith.addf %568, %570 : vector<8x128xf32>
    %572 = vector.extract_strided_slice %564 {offsets = [0, 256], sizes = [8, 128], strides = [1, 1]} : vector<8x384xf32> to vector<8x128xf32>
    %573 = math.tanh %571 : vector<8x128xf32>
    %574 = arith.mulf %572, %573 : vector<8x128xf32>
    %575 = tpu.concatenate %574, %552 in 1 : vector<8x128xf32>, vector<8x32xf32> -> vector<8x160xf32>
    %576 = arith.truncf %575 : vector<8x160xf32> to vector<8x160xbf16>
    %c0_173 = arith.constant 0 : index
    %c0_174 = arith.constant 0 : index
    %577 = vector.load %arg4[%c0_173, %c0_174] : memref<160x128xbf16, #tpu.memory_space<vmem>>, vector<160x128xbf16>
    %cst_175 = arith.constant dense<0.000000e+00> : vector<8x128xf32>
    %578 = tpu.matmul %576, %577, %cst_175 {dimension_numbers = #tpu.dot_dimension_numbers<[1], [0], [0], [1], [0, 0, 1, 1], [], []>} : vector<8x160xbf16>, vector<160x128xbf16>, vector<8x128xf32> -> vector<8x128xf32>
    %c0_176 = arith.constant 0 : index
    %c0_177 = arith.constant 0 : index
    %579 = vector.load %arg5[%c0_176, %c0_177] : memref<1x128xf32, #tpu.memory_space<vmem>>, vector<1x128xf32>
    %580 = vector.broadcast %579 : vector<1x128xf32> to vector<8x128xf32>
    %581 = arith.addf %578, %580 : vector<8x128xf32>
    %582 = arith.negf %581 : vector<8x128xf32>
    %583 = math.exp %582 : vector<8x128xf32>
    %cst_178 = arith.constant 1.000000e+00 : f32
    %584 = vector.broadcast %cst_178 : f32 to vector<8x128xf32>
    %585 = arith.addf %584, %583 : vector<8x128xf32>
    %586 = arith.divf %584, %585 : vector<8x128xf32>
    %587 = math.tanh %581 : vector<8x128xf32>
    %588 = arith.select %13, %586, %587 : vector<8x128xi1>, vector<8x128xf32>
    %589 = vector.extract_strided_slice %588 {offsets = [0, 32], sizes = [8, 32], strides = [1, 1]} : vector<8x128xf32> to vector<8x32xf32>
    %590 = arith.mulf %589, %549 : vector<8x32xf32>
    %591 = vector.extract_strided_slice %588 {offsets = [0, 0], sizes = [8, 32], strides = [1, 1]} : vector<8x128xf32> to vector<8x32xf32>
    %592 = vector.extract_strided_slice %588 {offsets = [0, 96], sizes = [8, 32], strides = [1, 1]} : vector<8x128xf32> to vector<8x32xf32>
    %593 = arith.mulf %591, %592 : vector<8x32xf32>
    %594 = arith.addf %590, %593 : vector<8x32xf32>
    %595 = vector.extract_strided_slice %588 {offsets = [0, 64], sizes = [8, 32], strides = [1, 1]} : vector<8x128xf32> to vector<8x32xf32>
    %596 = math.tanh %594 : vector<8x32xf32>
    %597 = arith.mulf %595, %596 : vector<8x32xf32>
    %c96_179 = arith.constant 96 : index
    %c0_180 = arith.constant 0 : index
    %598 = vector.load %arg12[%c96_179, %c0_180] : memref<128x32xf32, #tpu.memory_space<vmem>>, vector<8x32xf32>
    tpu.vector_store %arg12[%c96_179, %c0_180], %597 {strides = array<i32>} : memref<128x32xf32, #tpu.memory_space<vmem>>, vector<8x32xf32>,
    %c104 = arith.constant 104 : index
    %c0_181 = arith.constant 0 : index
    %599 = vector.load %arg11[%c104, %c0_181] : memref<128x512xf32, #tpu.memory_space<vmem>>, vector<8x512xf32>
    %600 = arith.truncf %574 : vector<8x128xf32> to vector<8x128xbf16>
    %c0_182 = arith.constant 0 : index
    %c0_183 = arith.constant 0 : index
    %601 = vector.load %arg2[%c0_182, %c0_183] : memref<128x512xbf16, #tpu.memory_space<vmem>>, vector<128x512xbf16>
    %cst_184 = arith.constant dense<0.000000e+00> : vector<8x512xf32>
    %602 = tpu.matmul %600, %601, %cst_184 {dimension_numbers = #tpu.dot_dimension_numbers<[1], [0], [0], [1], [0, 0, 1, 1], [], []>} : vector<8x128xbf16>, vector<128x512xbf16>, vector<8x512xf32> -> vector<8x512xf32>
    %603 = arith.addf %599, %602 : vector<8x512xf32>
    %604 = vector.extract_strided_slice %603 {offsets = [0, 0], sizes = [8, 384], strides = [1, 1]} : vector<8x512xf32> to vector<8x384xf32>
    %605 = arith.negf %604 : vector<8x384xf32>
    %606 = math.exp %605 : vector<8x384xf32>
    %cst_185 = arith.constant 1.000000e+00 : f32
    %607 = vector.broadcast %cst_185 : f32 to vector<8x384xf32>
    %608 = arith.addf %607, %606 : vector<8x384xf32>
    %609 = arith.divf %607, %608 : vector<8x384xf32>
    %610 = vector.extract_strided_slice %603 {offsets = [0, 384], sizes = [8, 128], strides = [1, 1]} : vector<8x512xf32> to vector<8x128xf32>
    %611 = math.tanh %610 : vector<8x128xf32>
    %612 = vector.extract_strided_slice %609 {offsets = [0, 128], sizes = [8, 128], strides = [1, 1]} : vector<8x384xf32> to vector<8x128xf32>
    %613 = arith.mulf %612, %571 : vector<8x128xf32>
    %614 = vector.extract_strided_slice %609 {offsets = [0, 0], sizes = [8, 128], strides = [1, 1]} : vector<8x384xf32> to vector<8x128xf32>
    %615 = arith.mulf %614, %611 : vector<8x128xf32>
    %616 = arith.addf %613, %615 : vector<8x128xf32>
    %617 = vector.extract_strided_slice %609 {offsets = [0, 256], sizes = [8, 128], strides = [1, 1]} : vector<8x384xf32> to vector<8x128xf32>
    %618 = math.tanh %616 : vector<8x128xf32>
    %619 = arith.mulf %617, %618 : vector<8x128xf32>
    %620 = tpu.concatenate %619, %597 in 1 : vector<8x128xf32>, vector<8x32xf32> -> vector<8x160xf32>
    %621 = arith.truncf %620 : vector<8x160xf32> to vector<8x160xbf16>
    %c0_186 = arith.constant 0 : index
    %c0_187 = arith.constant 0 : index
    %622 = vector.load %arg4[%c0_186, %c0_187] : memref<160x128xbf16, #tpu.memory_space<vmem>>, vector<160x128xbf16>
    %cst_188 = arith.constant dense<0.000000e+00> : vector<8x128xf32>
    %623 = tpu.matmul %621, %622, %cst_188 {dimension_numbers = #tpu.dot_dimension_numbers<[1], [0], [0], [1], [0, 0, 1, 1], [], []>} : vector<8x160xbf16>, vector<160x128xbf16>, vector<8x128xf32> -> vector<8x128xf32>
    %c0_189 = arith.constant 0 : index
    %c0_190 = arith.constant 0 : index
    %624 = vector.load %arg5[%c0_189, %c0_190] : memref<1x128xf32, #tpu.memory_space<vmem>>, vector<1x128xf32>
    %625 = vector.broadcast %624 : vector<1x128xf32> to vector<8x128xf32>
    %626 = arith.addf %623, %625 : vector<8x128xf32>
    %627 = arith.negf %626 : vector<8x128xf32>
    %628 = math.exp %627 : vector<8x128xf32>
    %cst_191 = arith.constant 1.000000e+00 : f32
    %629 = vector.broadcast %cst_191 : f32 to vector<8x128xf32>
    %630 = arith.addf %629, %628 : vector<8x128xf32>
    %631 = arith.divf %629, %630 : vector<8x128xf32>
    %632 = math.tanh %626 : vector<8x128xf32>
    %633 = arith.select %13, %631, %632 : vector<8x128xi1>, vector<8x128xf32>
    %634 = vector.extract_strided_slice %633 {offsets = [0, 32], sizes = [8, 32], strides = [1, 1]} : vector<8x128xf32> to vector<8x32xf32>
    %635 = arith.mulf %634, %594 : vector<8x32xf32>
    %636 = vector.extract_strided_slice %633 {offsets = [0, 0], sizes = [8, 32], strides = [1, 1]} : vector<8x128xf32> to vector<8x32xf32>
    %637 = vector.extract_strided_slice %633 {offsets = [0, 96], sizes = [8, 32], strides = [1, 1]} : vector<8x128xf32> to vector<8x32xf32>
    %638 = arith.mulf %636, %637 : vector<8x32xf32>
    %639 = arith.addf %635, %638 : vector<8x32xf32>
    %640 = vector.extract_strided_slice %633 {offsets = [0, 64], sizes = [8, 32], strides = [1, 1]} : vector<8x128xf32> to vector<8x32xf32>
    %641 = math.tanh %639 : vector<8x32xf32>
    %642 = arith.mulf %640, %641 : vector<8x32xf32>
    %c104_192 = arith.constant 104 : index
    %c0_193 = arith.constant 0 : index
    %643 = vector.load %arg12[%c104_192, %c0_193] : memref<128x32xf32, #tpu.memory_space<vmem>>, vector<8x32xf32>
    tpu.vector_store %arg12[%c104_192, %c0_193], %642 {strides = array<i32>} : memref<128x32xf32, #tpu.memory_space<vmem>>, vector<8x32xf32>,
    %c112 = arith.constant 112 : index
    %c0_194 = arith.constant 0 : index
    %644 = vector.load %arg11[%c112, %c0_194] : memref<128x512xf32, #tpu.memory_space<vmem>>, vector<8x512xf32>
    %645 = arith.truncf %619 : vector<8x128xf32> to vector<8x128xbf16>
    %c0_195 = arith.constant 0 : index
    %c0_196 = arith.constant 0 : index
    %646 = vector.load %arg2[%c0_195, %c0_196] : memref<128x512xbf16, #tpu.memory_space<vmem>>, vector<128x512xbf16>
    %cst_197 = arith.constant dense<0.000000e+00> : vector<8x512xf32>
    %647 = tpu.matmul %645, %646, %cst_197 {dimension_numbers = #tpu.dot_dimension_numbers<[1], [0], [0], [1], [0, 0, 1, 1], [], []>} : vector<8x128xbf16>, vector<128x512xbf16>, vector<8x512xf32> -> vector<8x512xf32>
    %648 = arith.addf %644, %647 : vector<8x512xf32>
    %649 = vector.extract_strided_slice %648 {offsets = [0, 0], sizes = [8, 384], strides = [1, 1]} : vector<8x512xf32> to vector<8x384xf32>
    %650 = arith.negf %649 : vector<8x384xf32>
    %651 = math.exp %650 : vector<8x384xf32>
    %cst_198 = arith.constant 1.000000e+00 : f32
    %652 = vector.broadcast %cst_198 : f32 to vector<8x384xf32>
    %653 = arith.addf %652, %651 : vector<8x384xf32>
    %654 = arith.divf %652, %653 : vector<8x384xf32>
    %655 = vector.extract_strided_slice %648 {offsets = [0, 384], sizes = [8, 128], strides = [1, 1]} : vector<8x512xf32> to vector<8x128xf32>
    %656 = math.tanh %655 : vector<8x128xf32>
    %657 = vector.extract_strided_slice %654 {offsets = [0, 128], sizes = [8, 128], strides = [1, 1]} : vector<8x384xf32> to vector<8x128xf32>
    %658 = arith.mulf %657, %616 : vector<8x128xf32>
    %659 = vector.extract_strided_slice %654 {offsets = [0, 0], sizes = [8, 128], strides = [1, 1]} : vector<8x384xf32> to vector<8x128xf32>
    %660 = arith.mulf %659, %656 : vector<8x128xf32>
    %661 = arith.addf %658, %660 : vector<8x128xf32>
    %662 = vector.extract_strided_slice %654 {offsets = [0, 256], sizes = [8, 128], strides = [1, 1]} : vector<8x384xf32> to vector<8x128xf32>
    %663 = math.tanh %661 : vector<8x128xf32>
    %664 = arith.mulf %662, %663 : vector<8x128xf32>
    %665 = tpu.concatenate %664, %642 in 1 : vector<8x128xf32>, vector<8x32xf32> -> vector<8x160xf32>
    %666 = arith.truncf %665 : vector<8x160xf32> to vector<8x160xbf16>
    %c0_199 = arith.constant 0 : index
    %c0_200 = arith.constant 0 : index
    %667 = vector.load %arg4[%c0_199, %c0_200] : memref<160x128xbf16, #tpu.memory_space<vmem>>, vector<160x128xbf16>
    %cst_201 = arith.constant dense<0.000000e+00> : vector<8x128xf32>
    %668 = tpu.matmul %666, %667, %cst_201 {dimension_numbers = #tpu.dot_dimension_numbers<[1], [0], [0], [1], [0, 0, 1, 1], [], []>} : vector<8x160xbf16>, vector<160x128xbf16>, vector<8x128xf32> -> vector<8x128xf32>
    %c0_202 = arith.constant 0 : index
    %c0_203 = arith.constant 0 : index
    %669 = vector.load %arg5[%c0_202, %c0_203] : memref<1x128xf32, #tpu.memory_space<vmem>>, vector<1x128xf32>
    %670 = vector.broadcast %669 : vector<1x128xf32> to vector<8x128xf32>
    %671 = arith.addf %668, %670 : vector<8x128xf32>
    %672 = arith.negf %671 : vector<8x128xf32>
    %673 = math.exp %672 : vector<8x128xf32>
    %cst_204 = arith.constant 1.000000e+00 : f32
    %674 = vector.broadcast %cst_204 : f32 to vector<8x128xf32>
    %675 = arith.addf %674, %673 : vector<8x128xf32>
    %676 = arith.divf %674, %675 : vector<8x128xf32>
    %677 = math.tanh %671 : vector<8x128xf32>
    %678 = arith.select %13, %676, %677 : vector<8x128xi1>, vector<8x128xf32>
    %679 = vector.extract_strided_slice %678 {offsets = [0, 32], sizes = [8, 32], strides = [1, 1]} : vector<8x128xf32> to vector<8x32xf32>
    %680 = arith.mulf %679, %639 : vector<8x32xf32>
    %681 = vector.extract_strided_slice %678 {offsets = [0, 0], sizes = [8, 32], strides = [1, 1]} : vector<8x128xf32> to vector<8x32xf32>
    %682 = vector.extract_strided_slice %678 {offsets = [0, 96], sizes = [8, 32], strides = [1, 1]} : vector<8x128xf32> to vector<8x32xf32>
    %683 = arith.mulf %681, %682 : vector<8x32xf32>
    %684 = arith.addf %680, %683 : vector<8x32xf32>
    %685 = vector.extract_strided_slice %678 {offsets = [0, 64], sizes = [8, 32], strides = [1, 1]} : vector<8x128xf32> to vector<8x32xf32>
    %686 = math.tanh %684 : vector<8x32xf32>
    %687 = arith.mulf %685, %686 : vector<8x32xf32>
    %c112_205 = arith.constant 112 : index
    %c0_206 = arith.constant 0 : index
    %688 = vector.load %arg12[%c112_205, %c0_206] : memref<128x32xf32, #tpu.memory_space<vmem>>, vector<8x32xf32>
    tpu.vector_store %arg12[%c112_205, %c0_206], %687 {strides = array<i32>} : memref<128x32xf32, #tpu.memory_space<vmem>>, vector<8x32xf32>,
    %c120 = arith.constant 120 : index
    %c0_207 = arith.constant 0 : index
    %689 = vector.load %arg11[%c120, %c0_207] : memref<128x512xf32, #tpu.memory_space<vmem>>, vector<8x512xf32>
    %690 = arith.truncf %664 : vector<8x128xf32> to vector<8x128xbf16>
    %c0_208 = arith.constant 0 : index
    %c0_209 = arith.constant 0 : index
    %691 = vector.load %arg2[%c0_208, %c0_209] : memref<128x512xbf16, #tpu.memory_space<vmem>>, vector<128x512xbf16>
    %cst_210 = arith.constant dense<0.000000e+00> : vector<8x512xf32>
    %692 = tpu.matmul %690, %691, %cst_210 {dimension_numbers = #tpu.dot_dimension_numbers<[1], [0], [0], [1], [0, 0, 1, 1], [], []>} : vector<8x128xbf16>, vector<128x512xbf16>, vector<8x512xf32> -> vector<8x512xf32>
    %693 = arith.addf %689, %692 : vector<8x512xf32>
    %694 = vector.extract_strided_slice %693 {offsets = [0, 0], sizes = [8, 384], strides = [1, 1]} : vector<8x512xf32> to vector<8x384xf32>
    %695 = arith.negf %694 : vector<8x384xf32>
    %696 = math.exp %695 : vector<8x384xf32>
    %cst_211 = arith.constant 1.000000e+00 : f32
    %697 = vector.broadcast %cst_211 : f32 to vector<8x384xf32>
    %698 = arith.addf %697, %696 : vector<8x384xf32>
    %699 = arith.divf %697, %698 : vector<8x384xf32>
    %700 = vector.extract_strided_slice %693 {offsets = [0, 384], sizes = [8, 128], strides = [1, 1]} : vector<8x512xf32> to vector<8x128xf32>
    %701 = math.tanh %700 : vector<8x128xf32>
    %702 = vector.extract_strided_slice %699 {offsets = [0, 128], sizes = [8, 128], strides = [1, 1]} : vector<8x384xf32> to vector<8x128xf32>
    %703 = arith.mulf %702, %661 : vector<8x128xf32>
    %704 = vector.extract_strided_slice %699 {offsets = [0, 0], sizes = [8, 128], strides = [1, 1]} : vector<8x384xf32> to vector<8x128xf32>
    %705 = arith.mulf %704, %701 : vector<8x128xf32>
    %706 = arith.addf %703, %705 : vector<8x128xf32>
    %707 = vector.extract_strided_slice %699 {offsets = [0, 256], sizes = [8, 128], strides = [1, 1]} : vector<8x384xf32> to vector<8x128xf32>
    %708 = math.tanh %706 : vector<8x128xf32>
    %709 = arith.mulf %707, %708 : vector<8x128xf32>
    %710 = tpu.concatenate %709, %687 in 1 : vector<8x128xf32>, vector<8x32xf32> -> vector<8x160xf32>
    %711 = arith.truncf %710 : vector<8x160xf32> to vector<8x160xbf16>
    %c0_212 = arith.constant 0 : index
    %c0_213 = arith.constant 0 : index
    %712 = vector.load %arg4[%c0_212, %c0_213] : memref<160x128xbf16, #tpu.memory_space<vmem>>, vector<160x128xbf16>
    %cst_214 = arith.constant dense<0.000000e+00> : vector<8x128xf32>
    %713 = tpu.matmul %711, %712, %cst_214 {dimension_numbers = #tpu.dot_dimension_numbers<[1], [0], [0], [1], [0, 0, 1, 1], [], []>} : vector<8x160xbf16>, vector<160x128xbf16>, vector<8x128xf32> -> vector<8x128xf32>
    %c0_215 = arith.constant 0 : index
    %c0_216 = arith.constant 0 : index
    %714 = vector.load %arg5[%c0_215, %c0_216] : memref<1x128xf32, #tpu.memory_space<vmem>>, vector<1x128xf32>
    %715 = vector.broadcast %714 : vector<1x128xf32> to vector<8x128xf32>
    %716 = arith.addf %713, %715 : vector<8x128xf32>
    %717 = arith.negf %716 : vector<8x128xf32>
    %718 = math.exp %717 : vector<8x128xf32>
    %cst_217 = arith.constant 1.000000e+00 : f32
    %719 = vector.broadcast %cst_217 : f32 to vector<8x128xf32>
    %720 = arith.addf %719, %718 : vector<8x128xf32>
    %721 = arith.divf %719, %720 : vector<8x128xf32>
    %722 = math.tanh %716 : vector<8x128xf32>
    %723 = arith.select %13, %721, %722 : vector<8x128xi1>, vector<8x128xf32>
    %724 = vector.extract_strided_slice %723 {offsets = [0, 32], sizes = [8, 32], strides = [1, 1]} : vector<8x128xf32> to vector<8x32xf32>
    %725 = arith.mulf %724, %684 : vector<8x32xf32>
    %726 = vector.extract_strided_slice %723 {offsets = [0, 0], sizes = [8, 32], strides = [1, 1]} : vector<8x128xf32> to vector<8x32xf32>
    %727 = vector.extract_strided_slice %723 {offsets = [0, 96], sizes = [8, 32], strides = [1, 1]} : vector<8x128xf32> to vector<8x32xf32>
    %728 = arith.mulf %726, %727 : vector<8x32xf32>
    %729 = arith.addf %725, %728 : vector<8x32xf32>
    %730 = vector.extract_strided_slice %723 {offsets = [0, 64], sizes = [8, 32], strides = [1, 1]} : vector<8x128xf32> to vector<8x32xf32>
    %731 = math.tanh %729 : vector<8x32xf32>
    %732 = arith.mulf %730, %731 : vector<8x32xf32>
    %c120_218 = arith.constant 120 : index
    %c0_219 = arith.constant 0 : index
    %733 = vector.load %arg12[%c120_218, %c0_219] : memref<128x32xf32, #tpu.memory_space<vmem>>, vector<8x32xf32>
    tpu.vector_store %arg12[%c120_218, %c0_219], %732 {strides = array<i32>} : memref<128x32xf32, #tpu.memory_space<vmem>>, vector<8x32xf32>,
    %c0_220 = arith.constant 0 : index
    %c0_221 = arith.constant 0 : index
    %734 = vector.load %arg12[%c0_220, %c0_221] : memref<128x32xf32, #tpu.memory_space<vmem>>, vector<128x32xf32>
    %735 = arith.truncf %734 : vector<128x32xf32> to vector<128x32xbf16>
    %c0_222 = arith.constant 0 : index
    %c0_223 = arith.constant 0 : index
    %736 = vector.load %arg6[%c0_222, %c0_223] : memref<32x16xbf16, #tpu.memory_space<vmem>>, vector<32x16xbf16>
    %cst_224 = arith.constant dense<0.000000e+00> : vector<128x16xf32>
    %737 = tpu.matmul %735, %736, %cst_224 {dimension_numbers = #tpu.dot_dimension_numbers<[1], [0], [0], [1], [0, 0, 1, 1], [], []>} : vector<128x32xbf16>, vector<32x16xbf16>, vector<128x16xf32> -> vector<128x16xf32>
    %c0_225 = arith.constant 0 : index
    %c0_226 = arith.constant 0 : index
    %738 = vector.load %arg7[%c0_225, %c0_226] : memref<1x16xf32, #tpu.memory_space<vmem>>, vector<1x16xf32>
    %739 = vector.broadcast %738 : vector<1x16xf32> to vector<128x16xf32>
    %740 = arith.addf %737, %739 : vector<128x16xf32>
    %cst_227 = arith.constant 0.000000e+00 : f32
    %741 = vector.broadcast %cst_227 : f32 to vector<128x16xf32>
    %742 = arith.maximumf %740, %741 : vector<128x16xf32>
    %c0_228 = arith.constant 0 : index
    %c0_229 = arith.constant 0 : index
    %743 = vector.load %arg8[%c0_228, %c0_229] : memref<1x16xf32, #tpu.memory_space<vmem>>, vector<1x16xf32>
    %744 = vector.broadcast %743 : vector<1x16xf32> to vector<128x16xf32>
    %745 = arith.mulf %742, %744 : vector<128x16xf32>
    %cst_230 = arith.constant dense<0.000000e+00> : vector<128xf32>
    %746 = vector.multi_reduction <add>, %745, %cst_230 [1] : vector<128x16xf32> to vector<128xf32>
    %747 = vector.shape_cast %746 : vector<128xf32> to vector<128x1xf32>
    %c0_231 = arith.constant 0 : index
    %c0_232 = arith.constant 0 : index
    %748 = vector.load %arg9[%c0_231, %c0_232] : memref<1x1xf32, #tpu.memory_space<vmem>>, vector<1x1xf32>
    %749 = vector.broadcast %748 : vector<1x1xf32> to vector<128x1xf32>
    %750 = arith.addf %747, %749 : vector<128x1xf32>
    %751 = arith.negf %750 : vector<128x1xf32>
    %752 = math.exp %751 : vector<128x1xf32>
    %cst_233 = arith.constant 1.000000e+00 : f32
    %753 = vector.broadcast %cst_233 : f32 to vector<128x1xf32>
    %754 = arith.addf %753, %752 : vector<128x1xf32>
    %755 = arith.divf %753, %754 : vector<128x1xf32>
    %c0_234 = arith.constant 0 : index
    %c0_235 = arith.constant 0 : index
    %756 = vector.load %arg10[%c0_234, %c0_235] : memref<128x1xf32, #tpu.memory_space<vmem>>, vector<128x1xf32>
    tpu.vector_store %arg10[%c0_234, %c0_235], %755 {strides = array<i32>} : memref<128x1xf32, #tpu.memory_space<vmem>>, vector<128x1xf32>,
    return
  }
}

</mosaic_0001>

<llo_original>
// kernel: squeeze.9
$region0: #{squeeze.9}
  %s0 = inlined_call_operand.vmem [shape: f32[128], index: 0, kind: input, shape index: {}]
  %s1 = inlined_call_operand.vmem [shape: f32[16,8], index: 1, kind: output, shape index: {}]
  $region1: #{squeeze.9} parent=0
    #allocation0 [shape = 'u8[4096]{0}', space=vmem, size = 0x1000, scoped, tag = 'scoped mem for input reshape']
    %s3 = sshll.u32 1, 1
    %s4 = ssub.s32 %s3, 1
    %v5 = vld [vmem:[%s0] sm:%s4]
    %6 = vst [vmem:[#allocation0] sm:%s4] %v5
    %v7 = vld [vmem:[#allocation0] sm:$0x1]
    %vm8 = vcmask 64512
    %9 = vst.msk [vmem:[%s1] sm:$0x1] %vm8, %v7
    %v10 = vld [vmem:[#allocation0] sm:$0x1]
    %11 = vrot.lane.b32.xlu0 %v10, 120
    %v12 = vpop.permute.xlu0 %11
    %vm13 = vcmask 64512
    %s14 = scalar_lea.vmem %s1, 1
    %15 = vst.msk [vmem:[%s14] sm:$0x1] %vm13, %v12
    %v16 = vld [vmem:[#allocation0] sm:$0x1]
    %17 = vrot.lane.b32.xlu0 %v16, 112
    %v18 = vpop.permute.xlu0 %17
    %vm19 = vcmask 64512
    %s20 = scalar_lea.vmem %s1, 2
    %21 = vst.msk [vmem:[%s20] sm:$0x1] %vm19, %v18
    %v22 = vld [vmem:[#allocation0] sm:$0x1]
    %23 = vrot.lane.b32.xlu0 %v22, 104
    %v24 = vpop.permute.xlu0 %23
    %vm25 = vcmask 64512
    %s26 = scalar_lea.vmem %s1, 3
    %27 = vst.msk [vmem:[%s26] sm:$0x1] %vm25, %v24
    %v28 = vld [vmem:[#allocation0] sm:$0x1]
    %29 = vrot.lane.b32.xlu0 %v28, 96
    %v30 = vpop.permute.xlu0 %29
    %vm31 = vcmask 64512
    %s32 = scalar_lea.vmem %s1, 4
    %33 = vst.msk [vmem:[%s32] sm:$0x1] %vm31, %v30
    %v34 = vld [vmem:[#allocation0] sm:$0x1]
    %35 = vrot.lane.b32.xlu0 %v34, 88
    %v36 = vpop.permute.xlu0 %35
    %vm37 = vcmask 64512
    %s38 = scalar_lea.vmem %s1, 5
    %39 = vst.msk [vmem:[%s38] sm:$0x1] %vm37, %v36
    %v40 = vld [vmem:[#allocation0] sm:$0x1]
    %41 = vrot.lane.b32.xlu0 %v40, 80
    %v42 = vpop.permute.xlu0 %41
    %vm43 = vcmask 64512
    %s44 = scalar_lea.vmem %s1, 6
    %45 = vst.msk [vmem:[%s44] sm:$0x1] %vm43, %v42
    %v46 = vld [vmem:[#allocation0] sm:$0x1]
    %47 = vrot.lane.b32.xlu0 %v46, 72
    %v48 = vpop.permute.xlu0 %47
    %vm49 = vcmask 64512
    %s50 = scalar_lea.vmem %s1, 7
    %51 = vst.msk [vmem:[%s50] sm:$0x1] %vm49, %v48
    %v52 = vld [vmem:[#allocation0] sm:$0x1]
    %53 = vrot.lane.b32.xlu0 %v52, 64
    %v54 = vpop.permute.xlu0 %53
    %vm55 = vcmask 64512
    %s56 = scalar_lea.vmem %s1, 8
    %57 = vst.msk [vmem:[%s56] sm:$0x1] %vm55, %v54
    %v58 = vld [vmem:[#allocation0] sm:$0x1]
    %59 = vrot.lane.b32.xlu0 %v58, 56
    %v60 = vpop.permute.xlu0 %59
    %vm61 = vcmask 64512
    %s62 = scalar_lea.vmem %s1, 9
    %63 = vst.msk [vmem:[%s62] sm:$0x1] %vm61, %v60
    %v64 = vld [vmem:[#allocation0] sm:$0x1]
    %65 = vrot.lane.b32.xlu0 %v64, 48
    %v66 = vpop.permute.xlu0 %65
    %vm67 = vcmask 64512
    %s68 = scalar_lea.vmem %s1, 10
    %69 = vst.msk [vmem:[%s68] sm:$0x1] %vm67, %v66
    %v70 = vld [vmem:[#allocation0] sm:$0x1]
    %71 = vrot.lane.b32.xlu0 %v70, 40
    %v72 = vpop.permute.xlu0 %71
    %vm73 = vcmask 64512
    %s74 = scalar_lea.vmem %s1, 11
    %75 = vst.msk [vmem:[%s74] sm:$0x1] %vm73, %v72
    %v76 = vld [vmem:[#allocation0] sm:$0x1]
    %77 = vrot.lane.b32.xlu0 %v76, 32
    %v78 = vpop.permute.xlu0 %77
    %vm79 = vcmask 64512
    %s80 = scalar_lea.vmem %s1, 12
    %81 = vst.msk [vmem:[%s80] sm:$0x1] %vm79, %v78
    %v82 = vld [vmem:[#allocation0] sm:$0x1]
    %83 = vrot.lane.b32.xlu0 %v82, 24
    %v84 = vpop.permute.xlu0 %83
    %vm85 = vcmask 64512
    %s86 = scalar_lea.vmem %s1, 13
    %87 = vst.msk [vmem:[%s86] sm:$0x1] %vm85, %v84
    %v88 = vld [vmem:[#allocation0] sm:$0x1]
    %89 = vrot.lane.b32.xlu0 %v88, 16
    %v90 = vpop.permute.xlu0 %89
    %vm91 = vcmask 64512
    %s92 = scalar_lea.vmem %s1, 14
    %93 = vst.msk [vmem:[%s92] sm:$0x1] %vm91, %v90
    %v94 = vld [vmem:[#allocation0] sm:$0x1]
    %95 = vrot.lane.b32.xlu0 %v94, 8
    %v96 = vpop.permute.xlu0 %95
    %vm97 = vcmask 64512
    %s98 = scalar_lea.vmem %s1, 15
    %99 = vst.msk [vmem:[%s98] sm:$0x1] %vm97, %v96

// kernel: forward.1
$region0: #{forward.1}
  #allocation0 [shape = 'u32[]', space=smem, size = 0x4, offset = 0x4, fixed_abs, tag = 'smem constant byte address 0x4 - core index']
  #allocation1 [shape = 'u32[144,128]{1,0:T(1,128)}', space=vmem, size = 0x12000, scoped, tag = 'internal scratch']
  #allocation2 [shape = 'f32[128,512]{1,0:T(8,128)}', space=vmem, size = 0x40000, scoped, tag = 'scratch operand']
  #allocation3 [shape = 'f32[128,32]{1,0:T(8,128)}', space=vmem, size = 0x10000, scoped, tag = 'scratch operand']
  #allocation4 [shape = 'f32[1,1]{1,0:T(1,128)S(1)}', space=vmem, size = 0x200, scoped, tag = 'scoped memory for forward.1']
  %s0 = inlined_call_operand.vmem [shape: bf16[128,144], index: 0, kind: input, shape index: {}]
  %s1 = inlined_call_operand.vmem [shape: bf16[144,512], index: 1, kind: input, shape index: {}]
  %s2 = inlined_call_operand.vmem [shape: bf16[128,512], index: 2, kind: input, shape index: {}]
  %s3 = inlined_call_operand.vmem [shape: f32[1,512], index: 3, kind: input, shape index: {}]
  %s4 = inlined_call_operand.vmem [shape: bf16[160,128], index: 4, kind: input, shape index: {}]
  %s5 = inlined_call_operand.vmem [shape: f32[1,128], index: 5, kind: input, shape index: {}]
  %s6 = inlined_call_operand.vmem [shape: bf16[32,16], index: 6, kind: input, shape index: {}]
  %s7 = inlined_call_operand.vmem [shape: f32[1,16], index: 7, kind: input, shape index: {}]
  %s8 = inlined_call_operand.vmem [shape: f32[1,16], index: 8, kind: input, shape index: {}]
  %s9 = inlined_call_operand.<no memory space> [shape: f32[1,1], index: 9, kind: input, shape index: {}]
  %s10 = inlined_call_operand.vmem [shape: f32[128,1], index: 10, kind: output, shape index: {}]
  %s11 = sld [smem:[#allocation0]]
  $region50: #{forward.1} parent=0
    _
  %s13 = ssub.s32 1, %s11
  %s14 = scalar_select 0, %s13, %s11
  %v15 = vstv %s9
  %16 = vst [vmem:[#allocation4] sm:$0x1] %v15
  // Predicated region
  $region2: #{forward.1} parent=0 // pred_check
    _
  $region3: #{forward.1} parent=0 // pred_check_branch
    %18 = sbr.rel (0) target = $region5
  $region4: #{forward.1} parent=0 // pred_region
    _
  $region5: #{forward.1} parent=0 // pred_fallthru
    _
  // Predicated region
  $region6: #{forward.1} parent=0 // pred_check
    _
  $region7: #{forward.1} parent=0 // pred_check_branch
    %20 = sbr.rel (0) target = $region9
  $region8: #{forward.1} parent=0 // pred_region
    _
  $region9: #{forward.1} parent=0 // pred_fallthru
    _
  // Predicated region
  $region10: #{forward.1} parent=0 // pred_check
    _
  $region11: #{forward.1} parent=0 // pred_check_branch
    %22 = sbr.rel (0) target = $region13
  $region12: #{forward.1} parent=0 // pred_region
    _
  $region13: #{forward.1} parent=0 // pred_fallthru
    _
  // Predicated region
  $region14: #{forward.1} parent=0 // pred_check
    _
  $region15: #{forward.1} parent=0 // pred_check_branch
    %24 = sbr.rel (0) target = $region17
  $region16: #{forward.1} parent=0 // pred_region
    _
  $region17: #{forward.1} parent=0 // pred_fallthru
    _
  // Predicated region
  $region18: #{forward.1} parent=0 // pred_check
    _
  $region19: #{forward.1} parent=0 // pred_check_branch
    %26 = sbr.rel (0) target = $region21
  $region20: #{forward.1} parent=0 // pred_region
    _
  $region21: #{forward.1} parent=0 // pred_fallthru
    _
  // Predicated region
  $region22: #{forward.1} parent=0 // pred_check
    _
  $region23: #{forward.1} parent=0 // pred_check_branch
    %28 = sbr.rel (0) target = $region25
  $region24: #{forward.1} parent=0 // pred_region
    _
  $region25: #{forward.1} parent=0 // pred_fallthru
    _
  // Predicated region
  $region26: #{forward.1} parent=0 // pred_check
    _
  $region27: #{forward.1} parent=0 // pred_check_branch
    %30 = sbr.rel (0) target = $region29
  $region28: #{forward.1} parent=0 // pred_region
    _
  $region29: #{forward.1} parent=0 // pred_fallthru
    _
  // Predicated region
  $region30: #{forward.1} parent=0 // pred_check
    _
  $region31: #{forward.1} parent=0 // pred_check_branch
    %32 = sbr.rel (0) target = $region33
  $region32: #{forward.1} parent=0 // pred_region
    _
  $region33: #{forward.1} parent=0 // pred_fallthru
    _
  // Predicated region
  $region34: #{forward.1} parent=0 // pred_check
    _
  $region35: #{forward.1} parent=0 // pred_check_branch
    %34 = sbr.rel (0) target = $region37
  $region36: #{forward.1} parent=0 // pred_region
    _
  $region37: #{forward.1} parent=0 // pred_fallthru
    _
  // Predicated region
  $region38: #{forward.1} parent=0 // pred_check
    _
  $region39: #{forward.1} parent=0 // pred_check_branch
    %36 = sbr.rel (0) target = $region41
  $region40: #{forward.1} parent=0 // pred_region
    _
  $region41: #{forward.1} parent=0 // pred_fallthru
    _
  %v38 = vld [vmem:[%s0] sm:$0xff]
  %v39 = vld [vmem:[%s0 + $0x8] sm:$0xff]
  %v40 = vld [vmem:[%s0 + $0x10] sm:$0xff]
  %v41 = vld [vmem:[%s0 + $0x18] sm:$0xff]
  %v42 = vld [vmem:[%s0 + $0x20] sm:$0xff]
  %v43 = vld [vmem:[%s0 + $0x28] sm:$0xff]
  %v44 = vld [vmem:[%s0 + $0x30] sm:$0xff]
  %v45 = vld [vmem:[%s0 + $0x38] sm:$0xff]
  %v46 = vld [vmem:[%s0 + $0x40] sm:$0xff]
  %v47 = vld [vmem:[%s0 + $0x48] sm:$0xff]
  %v48 = vld [vmem:[%s0 + $0x50] sm:$0xff]
  %v49 = vld [vmem:[%s0 + $0x58] sm:$0xff]
  %v50 = vld [vmem:[%s0 + $0x60] sm:$0xff]
  %v51 = vld [vmem:[%s0 + $0x68] sm:$0xff]
  %v52 = vld [vmem:[%s0 + $0x70] sm:$0xff]
  %v53 = vld [vmem:[%s0 + $0x78] sm:$0xff]
  %v54 = vld [vmem:[%s1] sm:$0xff]
  %v55 = vld [vmem:[%s1 + $0x8] sm:$0xff]
  %v56 = vld [vmem:[%s1 + $0x10] sm:$0xff]
  %v57 = vld [vmem:[%s1 + $0x18] sm:$0xff]
  %v58 = vld [vmem:[%s1 + $0x20] sm:$0xff]
  %v59 = vld [vmem:[%s1 + $0x28] sm:$0xff]
  %v60 = vld [vmem:[%s1 + $0x30] sm:$0xff]
  %v61 = vld [vmem:[%s1 + $0x38] sm:$0xff]
  %v62 = vld [vmem:[%s1 + $0x40] sm:$0xff]
  %v63 = vld [vmem:[%s1 + $0x48] sm:$0xff]
  %v64 = vld [vmem:[%s1 + $0x50] sm:$0xff]
  %v65 = vld [vmem:[%s1 + $0x58] sm:$0xff]
  %v66 = vld [vmem:[%s1 + $0x60] sm:$0xff]
  %v67 = vld [vmem:[%s1 + $0x68] sm:$0xff]
  %v68 = vld [vmem:[%s1 + $0x70] sm:$0xff]
  %v69 = vld [vmem:[%s1 + $0x78] sm:$0xff]
  %v70 = vld [vmem:[%s1 + $0x80] sm:$0xff]
  %v71 = vld [vmem:[%s1 + $0x88] sm:$0xff]
  %v72 = vld [vmem:[%s1 + $0x90] sm:$0xff]
  %v73 = vld [vmem:[%s1 + $0x98] sm:$0xff]
  %v74 = vld [vmem:[%s1 + $0xa0] sm:$0xff]
  %v75 = vld [vmem:[%s1 + $0xa8] sm:$0xff]
  %v76 = vld [vmem:[%s1 + $0xb0] sm:$0xff]
  %v77 = vld [vmem:[%s1 + $0xb8] sm:$0xff]
  %v78 = vld [vmem:[%s1 + $0xc0] sm:$0xff]
  %v79 = vld [vmem:[%s1 + $0xc8] sm:$0xff]
  %v80 = vld [vmem:[%s1 + $0xd0] sm:$0xff]
  %v81 = vld [vmem:[%s1 + $0xd8] sm:$0xff]
  %v82 = vld [vmem:[%s1 + $0xe0] sm:$0xff]
  %v83 = vld [vmem:[%s1 + $0xe8] sm:$0xff]
  %v84 = vld [vmem:[%s1 + $0xf0] sm:$0xff]
  %v85 = vld [vmem:[%s1 + $0xf8] sm:$0xff]
  %v86 = vld [vmem:[%s1 + $0x100] sm:$0xff]
  %v87 = vld [vmem:[%s1 + $0x108] sm:$0xff]
  %v88 = vld [vmem:[%s1 + $0x110] sm:$0xff]
  %v89 = vld [vmem:[%s1 + $0x118] sm:$0xff]
  %v90 = vld [vmem:[%s3] sm:$0xf]
  %v92 = vlaneseq
  %v93 = vshrl.u32 %v92, 7
  %v94 = vsub.s32 0, %v93
  %v95 = vrot.slane %v90, %v94
  %v96 = vlaneseq
  %v97 = vshrl.u32 %v96, 7
  %v98 = vsub.s32 1, %v97
  %v99 = vrot.slane %v90, %v98
  %v100 = vlaneseq
  %v101 = vshrl.u32 %v100, 7
  %v102 = vsub.s32 2, %v101
  %v103 = vrot.slane %v90, %v102
  %v104 = vlaneseq
  %v105 = vshrl.u32 %v104, 7
  %v106 = vsub.s32 3, %v105
  %v107 = vrot.slane %v90, %v106
  %v128 = vunpack.c.l.b16 %v38
  %v129 = vunpack.c.h.b16 %v38
  %v130 = vunpack.c.l.b16 %v39
  %v131 = vunpack.c.h.b16 %v39
  %v132 = vunpack.c.l.b16 %v40
  %v133 = vunpack.c.h.b16 %v40
  %v134 = vunpack.c.l.b16 %v41
  %v135 = vunpack.c.h.b16 %v41
  %v136 = vunpack.c.l.b16 %v42
  %v137 = vunpack.c.h.b16 %v42
  %v138 = vunpack.c.l.b16 %v43
  %v139 = vunpack.c.h.b16 %v43
  %v140 = vunpack.c.l.b16 %v44
  %v141 = vunpack.c.h.b16 %v44
  %v142 = vunpack.c.l.b16 %v45
  %v143 = vunpack.c.h.b16 %v45
  %v144 = vunpack.c.l.b16 %v46
  %v145 = vunpack.c.h.b16 %v46
  %v146 = vunpack.c.l.b16 %v47
  %v147 = vunpack.c.h.b16 %v47
  %v148 = vunpack.c.l.b16 %v48
  %v149 = vunpack.c.h.b16 %v48
  %v150 = vunpack.c.l.b16 %v49
  %v151 = vunpack.c.h.b16 %v49
  %v152 = vunpack.c.l.b16 %v50
  %v153 = vunpack.c.h.b16 %v50
  %v154 = vunpack.c.l.b16 %v51
  %v155 = vunpack.c.h.b16 %v51
  %v156 = vunpack.c.l.b16 %v52
  %v157 = vunpack.c.h.b16 %v52
  %v158 = vunpack.c.l.b16 %v53
  %v159 = vunpack.c.h.b16 %v53
  %v160 = vpack.c.b16 %v130, %v128
  %v161 = vpack.c.b16 %v131, %v129
  %v162 = vpack.c.b16 %v134, %v132
  %v163 = vpack.c.b16 %v135, %v133
  %v164 = vpack.c.b16 %v138, %v136
  %v165 = vpack.c.b16 %v139, %v137
  %v166 = vpack.c.b16 %v142, %v140
  %v167 = vpack.c.b16 %v143, %v141
  %v168 = vpack.c.b16 %v146, %v144
  %v169 = vpack.c.b16 %v147, %v145
  %v170 = vpack.c.b16 %v150, %v148
  %v171 = vpack.c.b16 %v151, %v149
  %v172 = vpack.c.b16 %v154, %v152
  %v173 = vpack.c.b16 %v155, %v153
  %v174 = vpack.c.b16 %v158, %v156
  %v175 = vpack.c.b16 %v159, %v157
  %v220 = vunpack.c.l.b16 %v54
  %v221 = vunpack.c.h.b16 %v54
  %v222 = vunpack.c.l.b16 %v55
  %v223 = vunpack.c.h.b16 %v55
  %v224 = vunpack.c.l.b16 %v56
  %v225 = vunpack.c.h.b16 %v56
  %v226 = vunpack.c.l.b16 %v57
  %v227 = vunpack.c.h.b16 %v57
  %v228 = vunpack.c.l.b16 %v58
  %v229 = vunpack.c.h.b16 %v58
  %v230 = vunpack.c.l.b16 %v59
  %v231 = vunpack.c.h.b16 %v59
  %v232 = vunpack.c.l.b16 %v60
  %v233 = vunpack.c.h.b16 %v60
  %v234 = vunpack.c.l.b16 %v61
  %v235 = vunpack.c.h.b16 %v61
  %v236 = vunpack.c.l.b16 %v62
  %v237 = vunpack.c.h.b16 %v62
  %v238 = vunpack.c.l.b16 %v63
  %v239 = vunpack.c.h.b16 %v63
  %v240 = vunpack.c.l.b16 %v64
  %v241 = vunpack.c.h.b16 %v64
  %v242 = vunpack.c.l.b16 %v65
  %v243 = vunpack.c.h.b16 %v65
  %v244 = vunpack.c.l.b16 %v66
  %v245 = vunpack.c.h.b16 %v66
  %v246 = vunpack.c.l.b16 %v67
  %v247 = vunpack.c.h.b16 %v67
  %v248 = vunpack.c.l.b16 %v68
  %v249 = vunpack.c.h.b16 %v68
  %v250 = vunpack.c.l.b16 %v69
  %v251 = vunpack.c.h.b16 %v69
  %v252 = vunpack.c.l.b16 %v70
  %v253 = vunpack.c.h.b16 %v70
  %v254 = vunpack.c.l.b16 %v71
  %v255 = vunpack.c.h.b16 %v71
  %v256 = vunpack.c.l.b16 %v72
  %v257 = vunpack.c.h.b16 %v72
  %v258 = vunpack.c.l.b16 %v73
  %v259 = vunpack.c.h.b16 %v73
  %v260 = vunpack.c.l.b16 %v74
  %v261 = vunpack.c.h.b16 %v74
  %v262 = vunpack.c.l.b16 %v75
  %v263 = vunpack.c.h.b16 %v75
  %v264 = vunpack.c.l.b16 %v76
  %v265 = vunpack.c.h.b16 %v76
  %v266 = vunpack.c.l.b16 %v77
  %v267 = vunpack.c.h.b16 %v77
  %v268 = vunpack.c.l.b16 %v78
  %v269 = vunpack.c.h.b16 %v78
  %v270 = vunpack.c.l.b16 %v79
  %v271 = vunpack.c.h.b16 %v79
  %v272 = vunpack.c.l.b16 %v80
  %v273 = vunpack.c.h.b16 %v80
  %v274 = vunpack.c.l.b16 %v81
  %v275 = vunpack.c.h.b16 %v81
  %v276 = vunpack.c.l.b16 %v82
  %v277 = vunpack.c.h.b16 %v82
  %v278 = vunpack.c.l.b16 %v83
  %v279 = vunpack.c.h.b16 %v83
  %v280 = vunpack.c.l.b16 %v84
  %v281 = vunpack.c.h.b16 %v84
  %v282 = vunpack.c.l.b16 %v85
  %v283 = vunpack.c.h.b16 %v85
  %v284 = vunpack.c.l.b16 %v86
  %v285 = vunpack.c.h.b16 %v86
  %v286 = vunpack.c.l.b16 %v87
  %v287 = vunpack.c.h.b16 %v87
  %v288 = vunpack.c.l.b16 %v88
  %v289 = vunpack.c.h.b16 %v88
  %v290 = vunpack.c.l.b16 %v89
  %v291 = vunpack.c.h.b16 %v89
  %v292 = vpack.c.b16 %v224, %v220
  %v293 = vpack.c.b16 %v225, %v221
  %v294 = vpack.c.b16 %v226, %v222
  %v295 = vpack.c.b16 %v227, %v223
  %v296 = vpack.c.b16 %v232, %v228
  %v297 = vpack.c.b16 %v233, %v229
  %v298 = vpack.c.b16 %v234, %v230
  %v299 = vpack.c.b16 %v235, %v231
  %v300 = vpack.c.b16 %v240, %v236
  %v301 = vpack.c.b16 %v241, %v237
  %v302 = vpack.c.b16 %v242, %v238
  %v303 = vpack.c.b16 %v243, %v239
  %v304 = vpack.c.b16 %v248, %v244
  %v305 = vpack.c.b16 %v249, %v245
  %v306 = vpack.c.b16 %v250, %v246
  %v307 = vpack.c.b16 %v251, %v247
  %v308 = vpack.c.b16 %v256, %v252
  %v309 = vpack.c.b16 %v257, %v253
  %v310 = vpack.c.b16 %v258, %v254
  %v311 = vpack.c.b16 %v259, %v255
  %v312 = vpack.c.b16 %v264, %v260
  %v313 = vpack.c.b16 %v265, %v261
  %v314 = vpack.c.b16 %v266, %v262
  %v315 = vpack.c.b16 %v267, %v263
  %v316 = vpack.c.b16 %v272, %v268
  %v317 = vpack.c.b16 %v273, %v269
  %v318 = vpack.c.b16 %v274, %v270
  %v319 = vpack.c.b16 %v275, %v271
  %v320 = vpack.c.b16 %v280, %v276
  %v321 = vpack.c.b16 %v281, %v277
  %v322 = vpack.c.b16 %v282, %v278
  %v323 = vpack.c.b16 %v283, %v279
  %v324 = vpack.c.b16 %v288, %v284
  %v325 = vpack.c.b16 %v289, %v285
  %v326 = vpack.c.b16 %v290, %v286
  %v327 = vpack.c.b16 %v291, %v287
  %vm364 = vcmask 130048
  %v366 = vsel %vm364, %v161, 0
  %v369 = vsel %vm364, %v163, 0
  %v372 = vsel %vm364, %v165, 0
  %v375 = vsel %vm364, %v167, 0
  %v378 = vsel %vm364, %v169, 0
  %v381 = vsel %vm364, %v171, 0
  %v384 = vsel %vm364, %v173, 0
  %v387 = vsel %vm364, %v175, 0
  %389 = vmatprep.subr.bf16.mxu0 %v321
  %390 = vmatpush1.bf16.msra.mxu0 %v320
  %391 = vmatprep.subr.bf16.mxu0 %v317
  %392 = vmatpush1.bf16.msra.mxu0 %v316
  %393 = vmatprep.subr.bf16.mxu0 %v313
  %394 = vmatpush1.bf16.msra.mxu0 %v312
  %395 = vmatprep.subr.bf16.mxu0 %v309
  %396 = vmatpush1.bf16.msra.mxu0 %v308
  %397 = vmatprep.subr.bf16.mxu0 %v305
  %398 = vmatpush1.bf16.msra.mxu0 %v304
  %399 = vmatprep.subr.bf16.mxu0 %v301
  %400 = vmatpush1.bf16.msra.mxu0 %v300
  %401 = vmatprep.subr.bf16.mxu0 %v297
  %402 = vmatpush1.bf16.msra.mxu0 %v296
  %403 = vmatprep.subr.bf16.mxu0 %v293
  %404 = vmatpush1.bf16.msra.mxu0 %v292
  %405 = vmatprep.subr.bf16.mxu0 0
  %406 = vmatpush2.bf16.msra.mxu0 0
  %407 = vmatprep.subr.bf16.mxu0 0
  %408 = vmatpush2.bf16.msra.mxu0 0
  %409 = vmatprep.subr.bf16.mxu0 0
  %410 = vmatpush2.bf16.msra.mxu0 0
  %411 = vmatprep.subr.bf16.mxu0 0
  %412 = vmatpush2.bf16.msra.mxu0 0
  %413 = vmatprep.subr.bf16.mxu0 0
  %414 = vmatpush2.bf16.msra.mxu0 0
  %415 = vmatprep.subr.bf16.mxu0 0
  %416 = vmatpush2.bf16.msra.mxu0 0
  %417 = vmatprep.subr.bf16.mxu0 0
  %418 = vmatpush2.bf16.msra.mxu0 0
  %419 = vmatprep.subr.bf16.mxu0 %v325
  %420 = vmatpush2.bf16.msra.mxu0 %v324
  %421 = vmatprep.mubr.bf16.mxu0 %v366
  %422 = vmatmul.mubr.bf16.gmra.mxu0 %v160
  %v423 = vpop.f32.mrf.mxu0
  %v424 = vadd.f32 %v95, %v423
  %v425 = vpop.f32.mrf.mxu0
  %v426 = vadd.f32 %v99, %v425
  %v427 = vpop.f32.mrf.mxu0
  %v428 = vadd.f32 %v95, %v427
  %v429 = vpop.f32.mrf.mxu0
  %v430 = vadd.f32 %v99, %v429
  %431 = vmatprep.mubr.bf16.mxu0 %v369
  %432 = vmatmul.mubr.bf16.gmra.mxu0 %v162
  %v433 = vpop.f32.mrf.mxu0
  %v434 = vadd.f32 %v95, %v433
  %v435 = vpop.f32.mrf.mxu0
  %v436 = vadd.f32 %v99, %v435
  %v437 = vpop.f32.mrf.mxu0
  %v438 = vadd.f32 %v95, %v437
  %v439 = vpop.f32.mrf.mxu0
  %v440 = vadd.f32 %v99, %v439
  %441 = vmatprep.mubr.bf16.mxu0 %v372
  %442 = vmatmul.mubr.bf16.gmra.mxu0 %v164
  %v443 = vpop.f32.mrf.mxu0
  %v444 = vadd.f32 %v95, %v443
  %v445 = vpop.f32.mrf.mxu0
  %v446 = vadd.f32 %v99, %v445
  %v447 = vpop.f32.mrf.mxu0
  %v448 = vadd.f32 %v95, %v447
  %v449 = vpop.f32.mrf.mxu0
  %v450 = vadd.f32 %v99, %v449
  %451 = vmatprep.mubr.bf16.mxu0 %v375
  %452 = vmatmul.mubr.bf16.gmra.mxu0 %v166
  %v453 = vpop.f32.mrf.mxu0
  %v454 = vadd.f32 %v95, %v453
  %v455 = vpop.f32.mrf.mxu0
  %v456 = vadd.f32 %v99, %v455
  %v457 = vpop.f32.mrf.mxu0
  %v458 = vadd.f32 %v95, %v457
  %v459 = vpop.f32.mrf.mxu0
  %v460 = vadd.f32 %v99, %v459
  %461 = vmatprep.mubr.bf16.mxu0 %v378
  %462 = vmatmul.mubr.bf16.gmra.mxu0 %v168
  %v463 = vpop.f32.mrf.mxu0
  %v464 = vadd.f32 %v95, %v463
  %v465 = vpop.f32.mrf.mxu0
  %v466 = vadd.f32 %v99, %v465
  %v467 = vpop.f32.mrf.mxu0
  %v468 = vadd.f32 %v95, %v467
  %v469 = vpop.f32.mrf.mxu0
  %v470 = vadd.f32 %v99, %v469
  %471 = vmatprep.mubr.bf16.mxu0 %v381
  %472 = vmatmul.mubr.bf16.gmra.mxu0 %v170
  %v473 = vpop.f32.mrf.mxu0
  %v474 = vadd.f32 %v95, %v473
  %v475 = vpop.f32.mrf.mxu0
  %v476 = vadd.f32 %v99, %v475
  %v477 = vpop.f32.mrf.mxu0
  %v478 = vadd.f32 %v95, %v477
  %v479 = vpop.f32.mrf.mxu0
  %v480 = vadd.f32 %v99, %v479
  %481 = vmatprep.mubr.bf16.mxu0 %v384
  %482 = vmatmul.mubr.bf16.gmra.mxu0 %v172
  %v483 = vpop.f32.mrf.mxu0
  %v484 = vadd.f32 %v95, %v483
  %v485 = vpop.f32.mrf.mxu0
  %v486 = vadd.f32 %v99, %v485
  %v487 = vpop.f32.mrf.mxu0
  %v488 = vadd.f32 %v95, %v487
  %v489 = vpop.f32.mrf.mxu0
  %v490 = vadd.f32 %v99, %v489
  %491 = vmatprep.mubr.bf16.mxu0 %v387
  %492 = vmatmul.mubr.bf16.gmra.mxu0 %v174
  %v493 = vpop.f32.mrf.mxu0
  %v494 = vadd.f32 %v95, %v493
  %v495 = vpop.f32.mrf.mxu0
  %v496 = vadd.f32 %v99, %v495
  %v497 = vpop.f32.mrf.mxu0
  %v498 = vadd.f32 %v95, %v497
  %v499 = vpop.f32.mrf.mxu0
  %v500 = vadd.f32 %v99, %v499
  %501 = vdwg.mxu0
  %502 = vmatprep.subr.bf16.mxu0 %v323
  %503 = vmatpush1.bf16.msra.mxu0 %v322
  %504 = vmatprep.subr.bf16.mxu0 %v319
  %505 = vmatpush1.bf16.msra.mxu0 %v318
  %506 = vmatprep.subr.bf16.mxu0 %v315
  %507 = vmatpush1.bf16.msra.mxu0 %v314
  %508 = vmatprep.subr.bf16.mxu0 %v311
  %509 = vmatpush1.bf16.msra.mxu0 %v310
  %510 = vmatprep.subr.bf16.mxu0 %v307
  %511 = vmatpush1.bf16.msra.mxu0 %v306
  %512 = vmatprep.subr.bf16.mxu0 %v303
  %513 = vmatpush1.bf16.msra.mxu0 %v302
  %514 = vmatprep.subr.bf16.mxu0 %v299
  %515 = vmatpush1.bf16.msra.mxu0 %v298
  %516 = vmatprep.subr.bf16.mxu0 %v295
  %517 = vmatpush1.bf16.msra.mxu0 %v294
  %518 = vmatprep.subr.bf16.mxu0 0
  %519 = vmatpush2.bf16.msra.mxu0 0
  %520 = vmatprep.subr.bf16.mxu0 0
  %521 = vmatpush2.bf16.msra.mxu0 0
  %522 = vmatprep.subr.bf16.mxu0 0
  %523 = vmatpush2.bf16.msra.mxu0 0
  %524 = vmatprep.subr.bf16.mxu0 0
  %525 = vmatpush2.bf16.msra.mxu0 0
  %526 = vmatprep.subr.bf16.mxu0 0
  %527 = vmatpush2.bf16.msra.mxu0 0
  %528 = vmatprep.subr.bf16.mxu0 0
  %529 = vmatpush2.bf16.msra.mxu0 0
  %530 = vmatprep.subr.bf16.mxu0 0
  %531 = vmatpush2.bf16.msra.mxu0 0
  %532 = vmatprep.subr.bf16.mxu0 %v327
  %533 = vmatpush2.bf16.msra.mxu0 %v326
  %534 = vmatprep.mubr.bf16.mxu0 %v366
  %535 = vmatmul.mubr.bf16.gmra.mxu0 %v160
  %v536 = vpop.f32.mrf.mxu0
  %v537 = vadd.f32 %v103, %v536
  %v538 = vpop.f32.mrf.mxu0
  %v539 = vadd.f32 %v107, %v538
  %v540 = vpop.f32.mrf.mxu0
  %v541 = vadd.f32 %v103, %v540
  %v542 = vpop.f32.mrf.mxu0
  %v543 = vadd.f32 %v107, %v542
  %544 = vmatprep.mubr.bf16.mxu0 %v369
  %545 = vmatmul.mubr.bf16.gmra.mxu0 %v162
  %v546 = vpop.f32.mrf.mxu0
  %v547 = vadd.f32 %v103, %v546
  %v548 = vpop.f32.mrf.mxu0
  %v549 = vadd.f32 %v107, %v548
  %v550 = vpop.f32.mrf.mxu0
  %v551 = vadd.f32 %v103, %v550
  %v552 = vpop.f32.mrf.mxu0
  %v553 = vadd.f32 %v107, %v552
  %554 = vmatprep.mubr.bf16.mxu0 %v372
  %555 = vmatmul.mubr.bf16.gmra.mxu0 %v164
  %v556 = vpop.f32.mrf.mxu0
  %v557 = vadd.f32 %v103, %v556
  %v558 = vpop.f32.mrf.mxu0
  %v559 = vadd.f32 %v107, %v558
  %v560 = vpop.f32.mrf.mxu0
  %v561 = vadd.f32 %v103, %v560
  %v562 = vpop.f32.mrf.mxu0
  %v563 = vadd.f32 %v107, %v562
  %564 = vmatprep.mubr.bf16.mxu0 %v375
  %565 = vmatmul.mubr.bf16.gmra.mxu0 %v166
  %v566 = vpop.f32.mrf.mxu0
  %v567 = vadd.f32 %v103, %v566
  %v568 = vpop.f32.mrf.mxu0
  %v569 = vadd.f32 %v107, %v568
  %v570 = vpop.f32.mrf.mxu0
  %v571 = vadd.f32 %v103, %v570
  %v572 = vpop.f32.mrf.mxu0
  %v573 = vadd.f32 %v107, %v572
  %574 = vmatprep.mubr.bf16.mxu0 %v378
  %575 = vmatmul.mubr.bf16.gmra.mxu0 %v168
  %v576 = vpop.f32.mrf.mxu0
  %v577 = vadd.f32 %v103, %v576
  %v578 = vpop.f32.mrf.mxu0
  %v579 = vadd.f32 %v107, %v578
  %v580 = vpop.f32.mrf.mxu0
  %v581 = vadd.f32 %v103, %v580
  %v582 = vpop.f32.mrf.mxu0
  %v583 = vadd.f32 %v107, %v582
  %584 = vmatprep.mubr.bf16.mxu0 %v381
  %585 = vmatmul.mubr.bf16.gmra.mxu0 %v170
  %v586 = vpop.f32.mrf.mxu0
  %v587 = vadd.f32 %v103, %v586
  %v588 = vpop.f32.mrf.mxu0
  %v589 = vadd.f32 %v107, %v588
  %v590 = vpop.f32.mrf.mxu0
  %v591 = vadd.f32 %v103, %v590
  %v592 = vpop.f32.mrf.mxu0
  %v593 = vadd.f32 %v107, %v592
  %594 = vmatprep.mubr.bf16.mxu0 %v384
  %595 = vmatmul.mubr.bf16.gmra.mxu0 %v172
  %v596 = vpop.f32.mrf.mxu0
  %v597 = vadd.f32 %v103, %v596
  %v598 = vpop.f32.mrf.mxu0
  %v599 = vadd.f32 %v107, %v598
  %v600 = vpop.f32.mrf.mxu0
  %v601 = vadd.f32 %v103, %v600
  %v602 = vpop.f32.mrf.mxu0
  %v603 = vadd.f32 %v107, %v602
  %604 = vmatprep.mubr.bf16.mxu0 %v387
  %605 = vmatmul.mubr.bf16.gmra.mxu0 %v174
  %v606 = vpop.f32.mrf.mxu0
  %v607 = vadd.f32 %v103, %v606
  %v608 = vpop.f32.mrf.mxu0
  %v609 = vadd.f32 %v107, %v608
  %v610 = vpop.f32.mrf.mxu0
  %v611 = vadd.f32 %v103, %v610
  %v612 = vpop.f32.mrf.mxu0
  %v613 = vadd.f32 %v107, %v612
  %614 = vdwg.mxu0
  %615 = vst [vmem:[#allocation2] sm:$0xff] %v424
  %616 = vst [vmem:[#allocation2 + $0x8] sm:$0xff] %v426
  %617 = vst [vmem:[#allocation2 + $0x10] sm:$0xff] %v537
  %618 = vst [vmem:[#allocation2 + $0x18] sm:$0xff] %v539
  %619 = vst [vmem:[#allocation2 + $0x20] sm:$0xff] %v428
  %620 = vst [vmem:[#allocation2 + $0x28] sm:$0xff] %v430
  %621 = vst [vmem:[#allocation2 + $0x30] sm:$0xff] %v541
  %622 = vst [vmem:[#allocation2 + $0x38] sm:$0xff] %v543
  %623 = vst [vmem:[#allocation2 + $0x40] sm:$0xff] %v434
  %624 = vst [vmem:[#allocation2 + $0x48] sm:$0xff] %v436
  %625 = vst [vmem:[#allocation2 + $0x50] sm:$0xff] %v547
  %626 = vst [vmem:[#allocation2 + $0x58] sm:$0xff] %v549
  %627 = vst [vmem:[#allocation2 + $0x60] sm:$0xff] %v438
  %628 = vst [vmem:[#allocation2 + $0x68] sm:$0xff] %v440
  %629 = vst [vmem:[#allocation2 + $0x70] sm:$0xff] %v551
  %630 = vst [vmem:[#allocation2 + $0x78] sm:$0xff] %v553
  %631 = vst [vmem:[#allocation2 + $0x80] sm:$0xff] %v444
  %632 = vst [vmem:[#allocation2 + $0x88] sm:$0xff] %v446
  %633 = vst [vmem:[#allocation2 + $0x90] sm:$0xff] %v557
  %634 = vst [vmem:[#allocation2 + $0x98] sm:$0xff] %v559
  %635 = vst [vmem:[#allocation2 + $0xa0] sm:$0xff] %v448
  %636 = vst [vmem:[#allocation2 + $0xa8] sm:$0xff] %v450
  %637 = vst [vmem:[#allocation2 + $0xb0] sm:$0xff] %v561
  %638 = vst [vmem:[#allocation2 + $0xb8] sm:$0xff] %v563
  %639 = vst [vmem:[#allocation2 + $0xc0] sm:$0xff] %v454
  %640 = vst [vmem:[#allocation2 + $0xc8] sm:$0xff] %v456
  %641 = vst [vmem:[#allocation2 + $0xd0] sm:$0xff] %v567
  %642 = vst [vmem:[#allocation2 + $0xd8] sm:$0xff] %v569
  %643 = vst [vmem:[#allocation2 + $0xe0] sm:$0xff] %v458
  %644 = vst [vmem:[#allocation2 + $0xe8] sm:$0xff] %v460
  %645 = vst [vmem:[#allocation2 + $0xf0] sm:$0xff] %v571
  %646 = vst [vmem:[#allocation2 + $0xf8] sm:$0xff] %v573
  %647 = vst [vmem:[#allocation2 + $0x100] sm:$0xff] %v464
  %648 = vst [vmem:[#allocation2 + $0x108] sm:$0xff] %v466
  %649 = vst [vmem:[#allocation2 + $0x110] sm:$0xff] %v577
  %650 = vst [vmem:[#allocation2 + $0x118] sm:$0xff] %v579
  %651 = vst [vmem:[#allocation2 + $0x120] sm:$0xff] %v468
  %652 = vst [vmem:[#allocation2 + $0x128] sm:$0xff] %v470
  %653 = vst [vmem:[#allocation2 + $0x130] sm:$0xff] %v581
  %654 = vst [vmem:[#allocation2 + $0x138] sm:$0xff] %v583
  %655 = vst [vmem:[#allocation2 + $0x140] sm:$0xff] %v474
  %656 = vst [vmem:[#allocation2 + $0x148] sm:$0xff] %v476
  %657 = vst [vmem:[#allocation2 + $0x150] sm:$0xff] %v587
  %658 = vst [vmem:[#allocation2 + $0x158] sm:$0xff] %v589
  %659 = vst [vmem:[#allocation2 + $0x160] sm:$0xff] %v478
  %660 = vst [vmem:[#allocation2 + $0x168] sm:$0xff] %v480
  %661 = vst [vmem:[#allocation2 + $0x170] sm:$0xff] %v591
  %662 = vst [vmem:[#allocation2 + $0x178] sm:$0xff] %v593
  %663 = vst [vmem:[#allocation2 + $0x180] sm:$0xff] %v484
  %664 = vst [vmem:[#allocation2 + $0x188] sm:$0xff] %v486
  %665 = vst [vmem:[#allocation2 + $0x190] sm:$0xff] %v597
  %666 = vst [vmem:[#allocation2 + $0x198] sm:$0xff] %v599
  %667 = vst [vmem:[#allocation2 + $0x1a0] sm:$0xff] %v488
  %668 = vst [vmem:[#allocation2 + $0x1a8] sm:$0xff] %v490
  %669 = vst [vmem:[#allocation2 + $0x1b0] sm:$0xff] %v601
  %670 = vst [vmem:[#allocation2 + $0x1b8] sm:$0xff] %v603
  %671 = vst [vmem:[#allocation2 + $0x1c0] sm:$0xff] %v494
  %672 = vst [vmem:[#allocation2 + $0x1c8] sm:$0xff] %v496
  %673 = vst [vmem:[#allocation2 + $0x1d0] sm:$0xff] %v607
  %674 = vst [vmem:[#allocation2 + $0x1d8] sm:$0xff] %v609
  %675 = vst [vmem:[#allocation2 + $0x1e0] sm:$0xff] %v498
  %676 = vst [vmem:[#allocation2 + $0x1e8] sm:$0xff] %v500
  %677 = vst [vmem:[#allocation2 + $0x1f0] sm:$0xff] %v611
  %678 = vst [vmem:[#allocation2 + $0x1f8] sm:$0xff] %v613
  %v679 = vlaneseq
  %v680 = vand.u32 %v679, 127
  %vm681 = vcmp.lt.s32.totalorder %v680, 96
  %v682 = vld [vmem:[#allocation2] sm:$0xff]
  %v683 = vld [vmem:[#allocation2 + $0x8] sm:$0xff]
  %v684 = vld [vmem:[#allocation2 + $0x10] sm:$0xff]
  %v685 = vld [vmem:[#allocation2 + $0x18] sm:$0xff]
  %v686 = vld [vmem:[%s2] sm:$0xff]
  %v687 = vld [vmem:[%s2 + $0x8] sm:$0xff]
  %v688 = vld [vmem:[%s2 + $0x10] sm:$0xff]
  %v689 = vld [vmem:[%s2 + $0x18] sm:$0xff]
  %v690 = vld [vmem:[%s2 + $0x20] sm:$0xff]
  %v691 = vld [vmem:[%s2 + $0x28] sm:$0xff]
  %v692 = vld [vmem:[%s2 + $0x30] sm:$0xff]
  %v693 = vld [vmem:[%s2 + $0x38] sm:$0xff]
  %v694 = vld [vmem:[%s2 + $0x40] sm:$0xff]
  %v695 = vld [vmem:[%s2 + $0x48] sm:$0xff]
  %v696 = vld [vmem:[%s2 + $0x50] sm:$0xff]
  %v697 = vld [vmem:[%s2 + $0x58] sm:$0xff]
  %v698 = vld [vmem:[%s2 + $0x60] sm:$0xff]
  %v699 = vld [vmem:[%s2 + $0x68] sm:$0xff]
  %v700 = vld [vmem:[%s2 + $0x70] sm:$0xff]
  %v701 = vld [vmem:[%s2 + $0x78] sm:$0xff]
  %v702 = vld [vmem:[%s2 + $0x80] sm:$0xff]
  %v703 = vld [vmem:[%s2 + $0x88] sm:$0xff]
  %v704 = vld [vmem:[%s2 + $0x90] sm:$0xff]
  %v705 = vld [vmem:[%s2 + $0x98] sm:$0xff]
  %v706 = vld [vmem:[%s2 + $0xa0] sm:$0xff]
  %v707 = vld [vmem:[%s2 + $0xa8] sm:$0xff]
  %v708 = vld [vmem:[%s2 + $0xb0] sm:$0xff]
  %v709 = vld [vmem:[%s2 + $0xb8] sm:$0xff]
  %v710 = vld [vmem:[%s2 + $0xc0] sm:$0xff]
  %v711 = vld [vmem:[%s2 + $0xc8] sm:$0xff]
  %v712 = vld [vmem:[%s2 + $0xd0] sm:$0xff]
  %v713 = vld [vmem:[%s2 + $0xd8] sm:$0xff]
  %v714 = vld [vmem:[%s2 + $0xe0] sm:$0xff]
  %v715 = vld [vmem:[%s2 + $0xe8] sm:$0xff]
  %v716 = vld [vmem:[%s2 + $0xf0] sm:$0xff]
  %v717 = vld [vmem:[%s2 + $0xf8] sm:$0xff]
  %v750 = vunpack.c.l.b16 %v686
  %v751 = vunpack.c.h.b16 %v686
  %v752 = vunpack.c.l.b16 %v687
  %v753 = vunpack.c.h.b16 %v687
  %v754 = vunpack.c.l.b16 %v688
  %v755 = vunpack.c.h.b16 %v688
  %v756 = vunpack.c.l.b16 %v689
  %v757 = vunpack.c.h.b16 %v689
  %v758 = vunpack.c.l.b16 %v690
  %v759 = vunpack.c.h.b16 %v690
  %v760 = vunpack.c.l.b16 %v691
  %v761 = vunpack.c.h.b16 %v691
  %v762 = vunpack.c.l.b16 %v692
  %v763 = vunpack.c.h.b16 %v692
  %v764 = vunpack.c.l.b16 %v693
  %v765 = vunpack.c.h.b16 %v693
  %v766 = vunpack.c.l.b16 %v694
  %v767 = vunpack.c.h.b16 %v694
  %v768 = vunpack.c.l.b16 %v695
  %v769 = vunpack.c.h.b16 %v695
  %v770 = vunpack.c.l.b16 %v696
  %v771 = vunpack.c.h.b16 %v696
  %v772 = vunpack.c.l.b16 %v697
  %v773 = vunpack.c.h.b16 %v697
  %v774 = vunpack.c.l.b16 %v698
  %v775 = vunpack.c.h.b16 %v698
  %v776 = vunpack.c.l.b16 %v699
  %v777 = vunpack.c.h.b16 %v699
  %v778 = vunpack.c.l.b16 %v700
  %v779 = vunpack.c.h.b16 %v700
  %v780 = vunpack.c.l.b16 %v701
  %v781 = vunpack.c.h.b16 %v701
  %v782 = vunpack.c.l.b16 %v702
  %v783 = vunpack.c.h.b16 %v702
  %v784 = vunpack.c.l.b16 %v703
  %v785 = vunpack.c.h.b16 %v703
  %v786 = vunpack.c.l.b16 %v704
  %v787 = vunpack.c.h.b16 %v704
  %v788 = vunpack.c.l.b16 %v705
  %v789 = vunpack.c.h.b16 %v705
  %v790 = vunpack.c.l.b16 %v706
  %v791 = vunpack.c.h.b16 %v706
  %v792 = vunpack.c.l.b16 %v707
  %v793 = vunpack.c.h.b16 %v707
  %v794 = vunpack.c.l.b16 %v708
  %v795 = vunpack.c.h.b16 %v708
  %v796 = vunpack.c.l.b16 %v709
  %v797 = vunpack.c.h.b16 %v709
  %v798 = vunpack.c.l.b16 %v710
  %v799 = vunpack.c.h.b16 %v710
  %v800 = vunpack.c.l.b16 %v711
  %v801 = vunpack.c.h.b16 %v711
  %v802 = vunpack.c.l.b16 %v712
  %v803 = vunpack.c.h.b16 %v712
  %v804 = vunpack.c.l.b16 %v713
  %v805 = vunpack.c.h.b16 %v713
  %v806 = vunpack.c.l.b16 %v714
  %v807 = vunpack.c.h.b16 %v714
  %v808 = vunpack.c.l.b16 %v715
  %v809 = vunpack.c.h.b16 %v715
  %v810 = vunpack.c.l.b16 %v716
  %v811 = vunpack.c.h.b16 %v716
  %v812 = vunpack.c.l.b16 %v717
  %v813 = vunpack.c.h.b16 %v717
  %v814 = vpack.c.b16 %v754, %v750
  %v815 = vpack.c.b16 %v755, %v751
  %v816 = vpack.c.b16 %v756, %v752
  %v817 = vpack.c.b16 %v757, %v753
  %v818 = vpack.c.b16 %v762, %v758
  %v819 = vpack.c.b16 %v763, %v759
  %v820 = vpack.c.b16 %v764, %v760
  %v821 = vpack.c.b16 %v765, %v761
  %v822 = vpack.c.b16 %v770, %v766
  %v823 = vpack.c.b16 %v771, %v767
  %v824 = vpack.c.b16 %v772, %v768
  %v825 = vpack.c.b16 %v773, %v769
  %v826 = vpack.c.b16 %v778, %v774
  %v827 = vpack.c.b16 %v779, %v775
  %v828 = vpack.c.b16 %v780, %v776
  %v829 = vpack.c.b16 %v781, %v777
  %v830 = vpack.c.b16 %v786, %v782
  %v831 = vpack.c.b16 %v787, %v783
  %v832 = vpack.c.b16 %v788, %v784
  %v833 = vpack.c.b16 %v789, %v785
  %v834 = vpack.c.b16 %v794, %v790
  %v835 = vpack.c.b16 %v795, %v791
  %v836 = vpack.c.b16 %v796, %v792
  %v837 = vpack.c.b16 %v797, %v793
  %v838 = vpack.c.b16 %v802, %v798
  %v839 = vpack.c.b16 %v803, %v799
  %v840 = vpack.c.b16 %v804, %v800
  %v841 = vpack.c.b16 %v805, %v801
  %v842 = vpack.c.b16 %v810, %v806
  %v843 = vpack.c.b16 %v811, %v807
  %v844 = vpack.c.b16 %v812, %v808
  %v845 = vpack.c.b16 %v813, %v809
  %878 = vmatprep.subr.bf16.mxu0 %v843
  %879 = vmatpush1.bf16.msra.mxu0 %v842
  %880 = vmatprep.subr.bf16.mxu0 %v839
  %881 = vmatpush1.bf16.msra.mxu0 %v838
  %882 = vmatprep.subr.bf16.mxu0 %v835
  %883 = vmatpush1.bf16.msra.mxu0 %v834
  %884 = vmatprep.subr.bf16.mxu0 %v831
  %885 = vmatpush1.bf16.msra.mxu0 %v830
  %886 = vmatprep.subr.bf16.mxu0 %v827
  %887 = vmatpush1.bf16.msra.mxu0 %v826
  %888 = vmatprep.subr.bf16.mxu0 %v823
  %889 = vmatpush1.bf16.msra.mxu0 %v822
  %890 = vmatprep.subr.bf16.mxu0 %v819
  %891 = vmatpush1.bf16.msra.mxu0 %v818
  %892 = vmatprep.subr.bf16.mxu0 %v815
  %893 = vmatpush1.bf16.msra.mxu0 %v814
  %894 = vmatprep.subr.bf16.mxu0 0
  %895 = vmatpush2.bf16.msra.mxu0 0
  %896 = vmatprep.subr.bf16.mxu0 0
  %897 = vmatpush2.bf16.msra.mxu0 0
  %898 = vmatprep.subr.bf16.mxu0 0
  %899 = vmatpush2.bf16.msra.mxu0 0
  %900 = vmatprep.subr.bf16.mxu0 0
  %901 = vmatpush2.bf16.msra.mxu0 0
  %902 = vmatprep.subr.bf16.mxu0 0
  %903 = vmatpush2.bf16.msra.mxu0 0
  %904 = vmatprep.subr.bf16.mxu0 0
  %905 = vmatpush2.bf16.msra.mxu0 0
  %906 = vmatprep.subr.bf16.mxu0 0
  %907 = vmatpush2.bf16.msra.mxu0 0
  %908 = vmatprep.subr.bf16.mxu0 0
  %909 = vmatpush2.bf16.msra.mxu0 0
  %910 = vmatprep.mubr.bf16.mxu0 0
  %911 = vmatmul.mubr.bf16.gmra.mxu0 0
  %v912 = vpop.f32.mrf.mxu0
  %v913 = vadd.f32 0.0, %v912
  %v914 = vpop.f32.mrf.mxu0
  %v915 = vadd.f32 0.0, %v914
  %v916 = vpop.f32.mrf.mxu0
  %v917 = vpop.f32.mrf.mxu0
  %918 = vdwg.mxu0
  %919 = vmatprep.subr.bf16.mxu0 %v845
  %920 = vmatpush1.bf16.msra.mxu0 %v844
  %921 = vmatprep.subr.bf16.mxu0 %v841
  %922 = vmatpush1.bf16.msra.mxu0 %v840
  %923 = vmatprep.subr.bf16.mxu0 %v837
  %924 = vmatpush1.bf16.msra.mxu0 %v836
  %925 = vmatprep.subr.bf16.mxu0 %v833
  %926 = vmatpush1.bf16.msra.mxu0 %v832
  %927 = vmatprep.subr.bf16.mxu0 %v829
  %928 = vmatpush1.bf16.msra.mxu0 %v828
  %929 = vmatprep.subr.bf16.mxu0 %v825
  %930 = vmatpush1.bf16.msra.mxu0 %v824
  %931 = vmatprep.subr.bf16.mxu0 %v821
  %932 = vmatpush1.bf16.msra.mxu0 %v820
  %933 = vmatprep.subr.bf16.mxu0 %v817
  %934 = vmatpush1.bf16.msra.mxu0 %v816
  %935 = vmatprep.subr.bf16.mxu0 0
  %936 = vmatpush2.bf16.msra.mxu0 0
  %937 = vmatprep.subr.bf16.mxu0 0
  %938 = vmatpush2.bf16.msra.mxu0 0
  %939 = vmatprep.subr.bf16.mxu0 0
  %940 = vmatpush2.bf16.msra.mxu0 0
  %941 = vmatprep.subr.bf16.mxu0 0
  %942 = vmatpush2.bf16.msra.mxu0 0
  %943 = vmatprep.subr.bf16.mxu0 0
  %944 = vmatpush2.bf16.msra.mxu0 0
  %945 = vmatprep.subr.bf16.mxu0 0
  %946 = vmatpush2.bf16.msra.mxu0 0
  %947 = vmatprep.subr.bf16.mxu0 0
  %948 = vmatpush2.bf16.msra.mxu0 0
  %949 = vmatprep.subr.bf16.mxu0 0
  %950 = vmatpush2.bf16.msra.mxu0 0
  %951 = vmatprep.mubr.bf16.mxu0 0
  %952 = vmatmul.mubr.bf16.gmra.mxu0 0
  %v953 = vpop.f32.mrf.mxu0
  %v954 = vadd.f32 0.0, %v953
  %v955 = vpop.f32.mrf.mxu0
  %v956 = vadd.f32 0.0, %v955
  %v957 = vpop.f32.mrf.mxu0
  %v958 = vpop.f32.mrf.mxu0
  %959 = vdwg.mxu0
  %v960 = vadd.f32 %v682, %v913
  %v961 = vadd.f32 %v683, %v915
  %v962 = vadd.f32 %v684, %v954
  %v963 = vadd.f32 %v685, %v956
  %v964 = vxor.u32 %v960, 2147483648
  %v965 = vxor.u32 %v961, 2147483648
  %v966 = vxor.u32 %v962, 2147483648
  %v967 = vmul.f32 %v964, 1.442695
  %v968 = vpow.pop %v967
  %v969 = vmul.f32 %v965, 1.442695
  %v970 = vpow.pop %v969
  %v971 = vmul.f32 %v966, 1.442695
  %v972 = vpow.pop %v971
  %v973 = vadd.f32 %v968, 1.0
  %v974 = vadd.f32 %v970, 1.0
  %v975 = vadd.f32 %v972, 1.0
  %v976 = vrcp.pop %v973
  %v977 = vmul.f32 1.0, %v976
  %v978 = vrcp.pop %v974
  %v979 = vmul.f32 1.0, %v978
  %v980 = vrcp.pop %v975
  %v981 = vmul.f32 1.0, %v980
  %v982 = vtanh.pop %v963
  %v983 = vmul.f32 %v979, 0.0
  %v984 = vmul.f32 %v977, %v982
  %v985 = vadd.f32 %v983, %v984
  %v986 = vtanh.pop %v985
  %v987 = vmul.f32 %v981, %v986
  %v988 = vpack.c.bf16 %v987, %v987
  %v989 = vpack.c.bf16 0.0, 0.0
  %v990 = vld [vmem:[%s4] sm:$0xf]
  %v991 = vld [vmem:[%s4 + $0x4] sm:$0xf]
  %v992 = vld [vmem:[%s4 + $0x8] sm:$0xf]
  %v993 = vld [vmem:[%s4 + $0xc] sm:$0xf]
  %v994 = vld [vmem:[%s4 + $0x10] sm:$0xf]
  %v995 = vld [vmem:[%s4 + $0x14] sm:$0xf]
  %v996 = vld [vmem:[%s4 + $0x18] sm:$0xf]
  %v997 = vld [vmem:[%s4 + $0x1c] sm:$0xf]
  %v998 = vld [vmem:[%s4 + $0x20] sm:$0xf]
  %v999 = vld [vmem:[%s4 + $0x24] sm:$0xf]
  %v1000 = vld [vmem:[%s4 + $0x28] sm:$0xf]
  %v1001 = vld [vmem:[%s4 + $0x2c] sm:$0xf]
  %v1002 = vld [vmem:[%s4 + $0x30] sm:$0xf]
  %v1003 = vld [vmem:[%s4 + $0x34] sm:$0xf]
  %v1004 = vld [vmem:[%s4 + $0x38] sm:$0xf]
  %v1005 = vld [vmem:[%s4 + $0x3c] sm:$0xf]
  %v1006 = vld [vmem:[%s4 + $0x40] sm:$0xf]
  %v1007 = vld [vmem:[%s4 + $0x44] sm:$0xf]
  %v1008 = vld [vmem:[%s4 + $0x48] sm:$0xf]
  %v1009 = vld [vmem:[%s4 + $0x4c] sm:$0xf]
  %v1010 = vld [vmem:[%s5] sm:$0x1]
  %v1012 = vlaneseq
  %v1013 = vshrl.u32 %v1012, 7
  %v1014 = vsub.s32 0, %v1013
  %v1015 = vrot.slane %v1010, %v1014
  %v1037 = vunpack.c.l.b16 %v990
  %v1038 = vunpack.c.l.b16 %v991
  %v1039 = vunpack.c.l.b16 %v992
  %v1040 = vunpack.c.l.b16 %v993
  %v1041 = vunpack.c.l.b16 %v994
  %v1042 = vunpack.c.l.b16 %v995
  %v1043 = vunpack.c.l.b16 %v996
  %v1044 = vunpack.c.l.b16 %v997
  %v1045 = vunpack.c.l.b16 %v998
  %v1046 = vunpack.c.l.b16 %v999
  %v1047 = vunpack.c.l.b16 %v1000
  %v1048 = vunpack.c.l.b16 %v1001
  %v1049 = vunpack.c.l.b16 %v1002
  %v1050 = vunpack.c.l.b16 %v1003
  %v1051 = vunpack.c.l.b16 %v1004
  %v1052 = vunpack.c.l.b16 %v1005
  %v1053 = vunpack.c.l.b16 %v1006
  %v1054 = vunpack.c.l.b16 %v1007
  %v1055 = vunpack.c.l.b16 %v1008
  %v1056 = vunpack.c.l.b16 %v1009
  %v1057 = vpack.c.b16 %v1038, %v1037
  %v1058 = vpack.c.b16 %v1040, %v1039
  %v1059 = vpack.c.b16 %v1042, %v1041
  %v1060 = vpack.c.b16 %v1044, %v1043
  %v1061 = vpack.c.b16 %v1046, %v1045
  %v1062 = vpack.c.b16 %v1048, %v1047
  %v1063 = vpack.c.b16 %v1050, %v1049
  %v1064 = vpack.c.b16 %v1052, %v1051
  %v1065 = vpack.c.b16 %v1054, %v1053
  %v1066 = vpack.c.b16 %v1056, %v1055
  %vm1077 = vcmask 261120
  %v1079 = vsel %vm1077, %v989, 0
  %1081 = vmatprep.subr.bf16.mxu0 0
  %1082 = vmatpush1.bf16.msra.mxu0 %v1064
  %1083 = vmatprep.subr.bf16.mxu0 0
  %1084 = vmatpush1.bf16.msra.mxu0 %v1063
  %1085 = vmatprep.subr.bf16.mxu0 0
  %1086 = vmatpush1.bf16.msra.mxu0 %v1062
  %1087 = vmatprep.subr.bf16.mxu0 0
  %1088 = vmatpush1.bf16.msra.mxu0 %v1061
  %1089 = vmatprep.subr.bf16.mxu0 0
  %1090 = vmatpush1.bf16.msra.mxu0 %v1060
  %1091 = vmatprep.subr.bf16.mxu0 0
  %1092 = vmatpush1.bf16.msra.mxu0 %v1059
  %1093 = vmatprep.subr.bf16.mxu0 0
  %1094 = vmatpush1.bf16.msra.mxu0 %v1058
  %1095 = vmatprep.subr.bf16.mxu0 0
  %1096 = vmatpush1.bf16.msra.mxu0 %v1057
  %1097 = vmatprep.subr.bf16.mxu0 0
  %1098 = vmatpush2.bf16.msra.mxu0 0
  %1099 = vmatprep.subr.bf16.mxu0 0
  %1100 = vmatpush2.bf16.msra.mxu0 0
  %1101 = vmatprep.subr.bf16.mxu0 0
  %1102 = vmatpush2.bf16.msra.mxu0 0
  %1103 = vmatprep.subr.bf16.mxu0 0
  %1104 = vmatpush2.bf16.msra.mxu0 0
  %1105 = vmatprep.subr.bf16.mxu0 0
  %1106 = vmatpush2.bf16.msra.mxu0 0
  %1107 = vmatprep.subr.bf16.mxu0 0
  %1108 = vmatpush2.bf16.msra.mxu0 0
  %1109 = vmatprep.subr.bf16.mxu0 0
  %1110 = vmatpush2.bf16.msra.mxu0 %v1066
  %1111 = vmatprep.subr.bf16.mxu0 0
  %1112 = vmatpush2.bf16.msra.mxu0 %v1065
  %1113 = vmatprep.mubr.bf16.mxu0 %v1079
  %1114 = vmatmul.mubr.bf16.gmra.mxu0 %v988
  %v1115 = vpop.f32.mrf.mxu0
  %v1116 = vadd.f32 %v1015, %v1115
  %v1117 = vpop.f32.mrf.mxu0
  %v1118 = vpop.f32.mrf.mxu0
  %v1119 = vpop.f32.mrf.mxu0
  %1120 = vdwg.mxu0
  %v1121 = vxor.u32 %v1116, 2147483648
  %v1122 = vmul.f32 %v1121, 1.442695
  %v1123 = vpow.pop %v1122
  %v1124 = vadd.f32 %v1123, 1.0
  %v1125 = vrcp.pop %v1124
  %v1126 = vmul.f32 1.0, %v1125
  %v1127 = vtanh.pop %v1116
  %v1128 = vsel %vm681, %v1126, %v1127
  %v1129 = vmul.f32 %v1128, 0.0
  %1131 = vrot.lane.b32.xlu0 %v1128, 32
  %v1132 = vpop.permute.xlu0 %1131
  %v1134 = vmul.f32 %v1128, %v1132
  %1136 = vrot.lane.b32.xlu0 %v1134, 32
  %v1137 = vpop.permute.xlu0 %1136
  %v1139 = vadd.f32 %v1129, %v1137
  %v1140 = vtanh.pop %v1139
  %1142 = vrot.lane.b32.xlu0 %v1140, 32
  %v1143 = vpop.permute.xlu0 %1142
  %v1145 = vmul.f32 %v1128, %v1143
  %1147 = vrot.lane.b32.xlu0 %v1145, 64
  %v1148 = vpop.permute.xlu0 %1147
  %1150 = vst.msk [vmem:[#allocation3] sm:$0xff] %vm1077, %v1148
  %v1151 = vld [vmem:[#allocation2 + $0x20] sm:$0xff]
  %v1152 = vld [vmem:[#allocation2 + $0x28] sm:$0xff]
  %v1153 = vld [vmem:[#allocation2 + $0x30] sm:$0xff]
  %v1154 = vld [vmem:[#allocation2 + $0x38] sm:$0xff]
  %v1155 = vld [vmem:[%s2] sm:$0xff]
  %v1156 = vld [vmem:[%s2 + $0x8] sm:$0xff]
  %v1157 = vld [vmem:[%s2 + $0x10] sm:$0xff]
  %v1158 = vld [vmem:[%s2 + $0x18] sm:$0xff]
  %v1159 = vld [vmem:[%s2 + $0x20] sm:$0xff]
  %v1160 = vld [vmem:[%s2 + $0x28] sm:$0xff]
  %v1161 = vld [vmem:[%s2 + $0x30] sm:$0xff]
  %v1162 = vld [vmem:[%s2 + $0x38] sm:$0xff]
  %v1163 = vld [vmem:[%s2 + $0x40] sm:$0xff]
  %v1164 = vld [vmem:[%s2 + $0x48] sm:$0xff]
  %v1165 = vld [vmem:[%s2 + $0x50] sm:$0xff]
  %v1166 = vld [vmem:[%s2 + $0x58] sm:$0xff]
  %v1167 = vld [vmem:[%s2 + $0x60] sm:$0xff]
  %v1168 = vld [vmem:[%s2 + $0x68] sm:$0xff]
  %v1169 = vld [vmem:[%s2 + $0x70] sm:$0xff]
  %v1170 = vld [vmem:[%s2 + $0x78] sm:$0xff]
  %v1171 = vld [vmem:[%s2 + $0x80] sm:$0xff]
  %v1172 = vld [vmem:[%s2 + $0x88] sm:$0xff]
  %v1173 = vld [vmem:[%s2 + $0x90] sm:$0xff]
  %v1174 = vld [vmem:[%s2 + $0x98] sm:$0xff]
  %v1175 = vld [vmem:[%s2 + $0xa0] sm:$0xff]
  %v1176 = vld [vmem:[%s2 + $0xa8] sm:$0xff]
  %v1177 = vld [vmem:[%s2 + $0xb0] sm:$0xff]
  %v1178 = vld [vmem:[%s2 + $0xb8] sm:$0xff]
  %v1179 = vld [vmem:[%s2 + $0xc0] sm:$0xff]
  %v1180 = vld [vmem:[%s2 + $0xc8] sm:$0xff]
  %v1181 = vld [vmem:[%s2 + $0xd0] sm:$0xff]
  %v1182 = vld [vmem:[%s2 + $0xd8] sm:$0xff]
  %v1183 = vld [vmem:[%s2 + $0xe0] sm:$0xff]
  %v1184 = vld [vmem:[%s2 + $0xe8] sm:$0xff]
  %v1185 = vld [vmem:[%s2 + $0xf0] sm:$0xff]
  %v1186 = vld [vmem:[%s2 + $0xf8] sm:$0xff]
  %v1219 = vunpack.c.l.b16 %v1155
  %v1220 = vunpack.c.h.b16 %v1155
  %v1221 = vunpack.c.l.b16 %v1156
  %v1222 = vunpack.c.h.b16 %v1156
  %v1223 = vunpack.c.l.b16 %v1157
  %v1224 = vunpack.c.h.b16 %v1157
  %v1225 = vunpack.c.l.b16 %v1158
  %v1226 = vunpack.c.h.b16 %v1158
  %v1227 = vunpack.c.l.b16 %v1159
  %v1228 = vunpack.c.h.b16 %v1159
  %v1229 = vunpack.c.l.b16 %v1160
  %v1230 = vunpack.c.h.b16 %v1160
  %v1231 = vunpack.c.l.b16 %v1161
  %v1232 = vunpack.c.h.b16 %v1161
  %v1233 = vunpack.c.l.b16 %v1162
  %v1234 = vunpack.c.h.b16 %v1162
  %v1235 = vunpack.c.l.b16 %v1163
  %v1236 = vunpack.c.h.b16 %v1163
  %v1237 = vunpack.c.l.b16 %v1164
  %v1238 = vunpack.c.h.b16 %v1164
  %v1239 = vunpack.c.l.b16 %v1165
  %v1240 = vunpack.c.h.b16 %v1165
  %v1241 = vunpack.c.l.b16 %v1166
  %v1242 = vunpack.c.h.b16 %v1166
  %v1243 = vunpack.c.l.b16 %v1167
  %v1244 = vunpack.c.h.b16 %v1167
  %v1245 = vunpack.c.l.b16 %v1168
  %v1246 = vunpack.c.h.b16 %v1168
  %v1247 = vunpack.c.l.b16 %v1169
  %v1248 = vunpack.c.h.b16 %v1169
  %v1249 = vunpack.c.l.b16 %v1170
  %v1250 = vunpack.c.h.b16 %v1170
  %v1251 = vunpack.c.l.b16 %v1171
  %v1252 = vunpack.c.h.b16 %v1171
  %v1253 = vunpack.c.l.b16 %v1172
  %v1254 = vunpack.c.h.b16 %v1172
  %v1255 = vunpack.c.l.b16 %v1173
  %v1256 = vunpack.c.h.b16 %v1173
  %v1257 = vunpack.c.l.b16 %v1174
  %v1258 = vunpack.c.h.b16 %v1174
  %v1259 = vunpack.c.l.b16 %v1175
  %v1260 = vunpack.c.h.b16 %v1175
  %v1261 = vunpack.c.l.b16 %v1176
  %v1262 = vunpack.c.h.b16 %v1176
  %v1263 = vunpack.c.l.b16 %v1177
  %v1264 = vunpack.c.h.b16 %v1177
  %v1265 = vunpack.c.l.b16 %v1178
  %v1266 = vunpack.c.h.b16 %v1178
  %v1267 = vunpack.c.l.b16 %v1179
  %v1268 = vunpack.c.h.b16 %v1179
  %v1269 = vunpack.c.l.b16 %v1180
  %v1270 = vunpack.c.h.b16 %v1180
  %v1271 = vunpack.c.l.b16 %v1181
  %v1272 = vunpack.c.h.b16 %v1181
  %v1273 = vunpack.c.l.b16 %v1182
  %v1274 = vunpack.c.h.b16 %v1182
  %v1275 = vunpack.c.l.b16 %v1183
  %v1276 = vunpack.c.h.b16 %v1183
  %v1277 = vunpack.c.l.b16 %v1184
  %v1278 = vunpack.c.h.b16 %v1184
  %v1279 = vunpack.c.l.b16 %v1185
  %v1280 = vunpack.c.h.b16 %v1185
  %v1281 = vunpack.c.l.b16 %v1186
  %v1282 = vunpack.c.h.b16 %v1186
  %v1283 = vpack.c.b16 %v1223, %v1219
  %v1284 = vpack.c.b16 %v1224, %v1220
  %v1285 = vpack.c.b16 %v1225, %v1221
  %v1286 = vpack.c.b16 %v1226, %v1222
  %v1287 = vpack.c.b16 %v1231, %v1227
  %v1288 = vpack.c.b16 %v1232, %v1228
  %v1289 = vpack.c.b16 %v1233, %v1229
  %v1290 = vpack.c.b16 %v1234, %v1230
  %v1291 = vpack.c.b16 %v1239, %v1235
  %v1292 = vpack.c.b16 %v1240, %v1236
  %v1293 = vpack.c.b16 %v1241, %v1237
  %v1294 = vpack.c.b16 %v1242, %v1238
  %v1295 = vpack.c.b16 %v1247, %v1243
  %v1296 = vpack.c.b16 %v1248, %v1244
  %v1297 = vpack.c.b16 %v1249, %v1245
  %v1298 = vpack.c.b16 %v1250, %v1246
  %v1299 = vpack.c.b16 %v1255, %v1251
  %v1300 = vpack.c.b16 %v1256, %v1252
  %v1301 = vpack.c.b16 %v1257, %v1253
  %v1302 = vpack.c.b16 %v1258, %v1254
  %v1303 = vpack.c.b16 %v1263, %v1259
  %v1304 = vpack.c.b16 %v1264, %v1260
  %v1305 = vpack.c.b16 %v1265, %v1261
  %v1306 = vpack.c.b16 %v1266, %v1262
  %v1307 = vpack.c.b16 %v1271, %v1267
  %v1308 = vpack.c.b16 %v1272, %v1268
  %v1309 = vpack.c.b16 %v1273, %v1269
  %v1310 = vpack.c.b16 %v1274, %v1270
  %v1311 = vpack.c.b16 %v1279, %v1275
  %v1312 = vpack.c.b16 %v1280, %v1276
  %v1313 = vpack.c.b16 %v1281, %v1277
  %v1314 = vpack.c.b16 %v1282, %v1278
  %1347 = vmatprep.subr.bf16.mxu0 %v1312
  %1348 = vmatpush1.bf16.msra.mxu0 %v1311
  %1349 = vmatprep.subr.bf16.mxu0 %v1308
  %1350 = vmatpush1.bf16.msra.mxu0 %v1307
  %1351 = vmatprep.subr.bf16.mxu0 %v1304
  %1352 = vmatpush1.bf16.msra.mxu0 %v1303
  %1353 = vmatprep.subr.bf16.mxu0 %v1300
  %1354 = vmatpush1.bf16.msra.mxu0 %v1299
  %1355 = vmatprep.subr.bf16.mxu0 %v1296
  %1356 = vmatpush1.bf16.msra.mxu0 %v1295
  %1357 = vmatprep.subr.bf16.mxu0 %v1292
  %1358 = vmatpush1.bf16.msra.mxu0 %v1291
  %1359 = vmatprep.subr.bf16.mxu0 %v1288
  %1360 = vmatpush1.bf16.msra.mxu0 %v1287
  %1361 = vmatprep.subr.bf16.mxu0 %v1284
  %1362 = vmatpush1.bf16.msra.mxu0 %v1283
  %1363 = vmatprep.subr.bf16.mxu0 0
  %1364 = vmatpush2.bf16.msra.mxu0 0
  %1365 = vmatprep.subr.bf16.mxu0 0
  %1366 = vmatpush2.bf16.msra.mxu0 0
  %1367 = vmatprep.subr.bf16.mxu0 0
  %1368 = vmatpush2.bf16.msra.mxu0 0
  %1369 = vmatprep.subr.bf16.mxu0 0
  %1370 = vmatpush2.bf16.msra.mxu0 0
  %1371 = vmatprep.subr.bf16.mxu0 0
  %1372 = vmatpush2.bf16.msra.mxu0 0
  %1373 = vmatprep.subr.bf16.mxu0 0
  %1374 = vmatpush2.bf16.msra.mxu0 0
  %1375 = vmatprep.subr.bf16.mxu0 0
  %1376 = vmatpush2.bf16.msra.mxu0 0
  %1377 = vmatprep.subr.bf16.mxu0 0
  %1378 = vmatpush2.bf16.msra.mxu0 0
  %1379 = vmatprep.mubr.bf16.mxu0 0
  %1380 = vmatmul.mubr.bf16.gmra.mxu0 %v988
  %v1381 = vpop.f32.mrf.mxu0
  %v1382 = vadd.f32 0.0, %v1381
  %v1383 = vpop.f32.mrf.mxu0
  %v1384 = vadd.f32 0.0, %v1383
  %v1385 = vpop.f32.mrf.mxu0
  %v1386 = vpop.f32.mrf.mxu0
  %1387 = vdwg.mxu0
  %1388 = vmatprep.subr.bf16.mxu0 %v1314
  %1389 = vmatpush1.bf16.msra.mxu0 %v1313
  %1390 = vmatprep.subr.bf16.mxu0 %v1310
  %1391 = vmatpush1.bf16.msra.mxu0 %v1309
  %1392 = vmatprep.subr.bf16.mxu0 %v1306
  %1393 = vmatpush1.bf16.msra.mxu0 %v1305
  %1394 = vmatprep.subr.bf16.mxu0 %v1302
  %1395 = vmatpush1.bf16.msra.mxu0 %v1301
  %1396 = vmatprep.subr.bf16.mxu0 %v1298
  %1397 = vmatpush1.bf16.msra.mxu0 %v1297
  %1398 = vmatprep.subr.bf16.mxu0 %v1294
  %1399 = vmatpush1.bf16.msra.mxu0 %v1293
  %1400 = vmatprep.subr.bf16.mxu0 %v1290
  %1401 = vmatpush1.bf16.msra.mxu0 %v1289
  %1402 = vmatprep.subr.bf16.mxu0 %v1286
  %1403 = vmatpush1.bf16.msra.mxu0 %v1285
  %1404 = vmatprep.subr.bf16.mxu0 0
  %1405 = vmatpush2.bf16.msra.mxu0 0
  %1406 = vmatprep.subr.bf16.mxu0 0
  %1407 = vmatpush2.bf16.msra.mxu0 0
  %1408 = vmatprep.subr.bf16.mxu0 0
  %1409 = vmatpush2.bf16.msra.mxu0 0
  %1410 = vmatprep.subr.bf16.mxu0 0
  %1411 = vmatpush2.bf16.msra.mxu0 0
  %1412 = vmatprep.subr.bf16.mxu0 0
  %1413 = vmatpush2.bf16.msra.mxu0 0
  %1414 = vmatprep.subr.bf16.mxu0 0
  %1415 = vmatpush2.bf16.msra.mxu0 0
  %1416 = vmatprep.subr.bf16.mxu0 0
  %1417 = vmatpush2.bf16.msra.mxu0 0
  %1418 = vmatprep.subr.bf16.mxu0 0
  %1419 = vmatpush2.bf16.msra.mxu0 0
  %1420 = vmatprep.mubr.bf16.mxu0 0
  %1421 = vmatmul.mubr.bf16.gmra.mxu0 %v988
  %v1422 = vpop.f32.mrf.mxu0
  %v1423 = vadd.f32 0.0, %v1422
  %v1424 = vpop.f32.mrf.mxu0
  %v1425 = vadd.f32 0.0, %v1424
  %v1426 = vpop.f32.mrf.mxu0
  %v1427 = vpop.f32.mrf.mxu0
  %1428 = vdwg.mxu0
  %v1429 = vadd.f32 %v1151, %v1382
  %v1430 = vadd.f32 %v1152, %v1384
  %v1431 = vadd.f32 %v1153, %v1423
  %v1432 = vadd.f32 %v1154, %v1425
  %v1433 = vxor.u32 %v1429, 2147483648
  %v1434 = vxor.u32 %v1430, 2147483648
  %v1435 = vxor.u32 %v1431, 2147483648
  %v1436 = vmul.f32 %v1433, 1.442695
  %v1437 = vpow.pop %v1436
  %v1438 = vmul.f32 %v1434, 1.442695
  %v1439 = vpow.pop %v1438
  %v1440 = vmul.f32 %v1435, 1.442695
  %v1441 = vpow.pop %v1440
  %v1442 = vadd.f32 %v1437, 1.0
  %v1443 = vadd.f32 %v1439, 1.0
  %v1444 = vadd.f32 %v1441, 1.0
  %v1445 = vrcp.pop %v1442
  %v1446 = vmul.f32 1.0, %v1445
  %v1447 = vrcp.pop %v1443
  %v1448 = vmul.f32 1.0, %v1447
  %v1449 = vrcp.pop %v1444
  %v1450 = vmul.f32 1.0, %v1449
  %v1451 = vtanh.pop %v1432
  %v1452 = vmul.f32 %v1448, %v985
  %v1453 = vmul.f32 %v1446, %v1451
  %v1454 = vadd.f32 %v1452, %v1453
  %v1455 = vtanh.pop %v1454
  %v1456 = vmul.f32 %v1450, %v1455
  %v1457 = vpack.c.bf16 %v1456, %v1456
  %v1458 = vpack.c.bf16 %v1148, %v1148
  %v1459 = vld [vmem:[%s4] sm:$0xf]
  %v1460 = vld [vmem:[%s4 + $0x4] sm:$0xf]
  %v1461 = vld [vmem:[%s4 + $0x8] sm:$0xf]
  %v1462 = vld [vmem:[%s4 + $0xc] sm:$0xf]
  %v1463 = vld [vmem:[%s4 + $0x10] sm:$0xf]
  %v1464 = vld [vmem:[%s4 + $0x14] sm:$0xf]
  %v1465 = vld [vmem:[%s4 + $0x18] sm:$0xf]
  %v1466 = vld [vmem:[%s4 + $0x1c] sm:$0xf]
  %v1467 = vld [vmem:[%s4 + $0x20] sm:$0xf]
  %v1468 = vld [vmem:[%s4 + $0x24] sm:$0xf]
  %v1469 = vld [vmem:[%s4 + $0x28] sm:$0xf]
  %v1470 = vld [vmem:[%s4 + $0x2c] sm:$0xf]
  %v1471 = vld [vmem:[%s4 + $0x30] sm:$0xf]
  %v1472 = vld [vmem:[%s4 + $0x34] sm:$0xf]
  %v1473 = vld [vmem:[%s4 + $0x38] sm:$0xf]
  %v1474 = vld [vmem:[%s4 + $0x3c] sm:$0xf]
  %v1475 = vld [vmem:[%s4 + $0x40] sm:$0xf]
  %v1476 = vld [vmem:[%s4 + $0x44] sm:$0xf]
  %v1477 = vld [vmem:[%s4 + $0x48] sm:$0xf]
  %v1478 = vld [vmem:[%s4 + $0x4c] sm:$0xf]
  %v1479 = vld [vmem:[%s5] sm:$0x1]
  %v1481 = vlaneseq
  %v1482 = vshrl.u32 %v1481, 7
  %v1483 = vsub.s32 0, %v1482
  %v1484 = vrot.slane %v1479, %v1483
  %v1506 = vunpack.c.l.b16 %v1459
  %v1507 = vunpack.c.l.b16 %v1460
  %v1508 = vunpack.c.l.b16 %v1461
  %v1509 = vunpack.c.l.b16 %v1462
  %v1510 = vunpack.c.l.b16 %v1463
  %v1511 = vunpack.c.l.b16 %v1464
  %v1512 = vunpack.c.l.b16 %v1465
  %v1513 = vunpack.c.l.b16 %v1466
  %v1514 = vunpack.c.l.b16 %v1467
  %v1515 = vunpack.c.l.b16 %v1468
  %v1516 = vunpack.c.l.b16 %v1469
  %v1517 = vunpack.c.l.b16 %v1470
  %v1518 = vunpack.c.l.b16 %v1471
  %v1519 = vunpack.c.l.b16 %v1472
  %v1520 = vunpack.c.l.b16 %v1473
  %v1521 = vunpack.c.l.b16 %v1474
  %v1522 = vunpack.c.l.b16 %v1475
  %v1523 = vunpack.c.l.b16 %v1476
  %v1524 = vunpack.c.l.b16 %v1477
  %v1525 = vunpack.c.l.b16 %v1478
  %v1526 = vpack.c.b16 %v1507, %v1506
  %v1527 = vpack.c.b16 %v1509, %v1508
  %v1528 = vpack.c.b16 %v1511, %v1510
  %v1529 = vpack.c.b16 %v1513, %v1512
  %v1530 = vpack.c.b16 %v1515, %v1514
  %v1531 = vpack.c.b16 %v1517, %v1516
  %v1532 = vpack.c.b16 %v1519, %v1518
  %v1533 = vpack.c.b16 %v1521, %v1520
  %v1534 = vpack.c.b16 %v1523, %v1522
  %v1535 = vpack.c.b16 %v1525, %v1524
  %v1547 = vsel %vm1077, %v1458, 0
  %1549 = vmatprep.subr.bf16.mxu0 0
  %1550 = vmatpush1.bf16.msra.mxu0 %v1533
  %1551 = vmatprep.subr.bf16.mxu0 0
  %1552 = vmatpush1.bf16.msra.mxu0 %v1532
  %1553 = vmatprep.subr.bf16.mxu0 0
  %1554 = vmatpush1.bf16.msra.mxu0 %v1531
  %1555 = vmatprep.subr.bf16.mxu0 0
  %1556 = vmatpush1.bf16.msra.mxu0 %v1530
  %1557 = vmatprep.subr.bf16.mxu0 0
  %1558 = vmatpush1.bf16.msra.mxu0 %v1529
  %1559 = vmatprep.subr.bf16.mxu0 0
  %1560 = vmatpush1.bf16.msra.mxu0 %v1528
  %1561 = vmatprep.subr.bf16.mxu0 0
  %1562 = vmatpush1.bf16.msra.mxu0 %v1527
  %1563 = vmatprep.subr.bf16.mxu0 0
  %1564 = vmatpush1.bf16.msra.mxu0 %v1526
  %1565 = vmatprep.subr.bf16.mxu0 0
  %1566 = vmatpush2.bf16.msra.mxu0 0
  %1567 = vmatprep.subr.bf16.mxu0 0
  %1568 = vmatpush2.bf16.msra.mxu0 0
  %1569 = vmatprep.subr.bf16.mxu0 0
  %1570 = vmatpush2.bf16.msra.mxu0 0
  %1571 = vmatprep.subr.bf16.mxu0 0
  %1572 = vmatpush2.bf16.msra.mxu0 0
  %1573 = vmatprep.subr.bf16.mxu0 0
  %1574 = vmatpush2.bf16.msra.mxu0 0
  %1575 = vmatprep.subr.bf16.mxu0 0
  %1576 = vmatpush2.bf16.msra.mxu0 0
  %1577 = vmatprep.subr.bf16.mxu0 0
  %1578 = vmatpush2.bf16.msra.mxu0 %v1535
  %1579 = vmatprep.subr.bf16.mxu0 0
  %1580 = vmatpush2.bf16.msra.mxu0 %v1534
  %1581 = vmatprep.mubr.bf16.mxu0 %v1547
  %1582 = vmatmul.mubr.bf16.gmra.mxu0 %v1457
  %v1583 = vpop.f32.mrf.mxu0
  %v1584 = vadd.f32 %v1484, %v1583
  %v1585 = vpop.f32.mrf.mxu0
  %v1586 = vpop.f32.mrf.mxu0
  %v1587 = vpop.f32.mrf.mxu0
  %1588 = vdwg.mxu0
  %v1589 = vxor.u32 %v1584, 2147483648
  %v1590 = vmul.f32 %v1589, 1.442695
  %v1591 = vpow.pop %v1590
  %v1592 = vadd.f32 %v1591, 1.0
  %v1593 = vrcp.pop %v1592
  %v1594 = vmul.f32 1.0, %v1593
  %v1595 = vtanh.pop %v1584
  %v1596 = vsel %vm681, %v1594, %v1595
  %v1597 = vmul.f32 %v1596, %v1139
  %1599 = vrot.lane.b32.xlu0 %v1596, 32
  %v1600 = vpop.permute.xlu0 %1599
  %v1602 = vmul.f32 %v1596, %v1600
  %1604 = vrot.lane.b32.xlu0 %v1602, 32
  %v1605 = vpop.permute.xlu0 %1604
  %v1607 = vadd.f32 %v1597, %v1605
  %v1608 = vtanh.pop %v1607
  %1610 = vrot.lane.b32.xlu0 %v1608, 32
  %v1611 = vpop.permute.xlu0 %1610
  %v1613 = vmul.f32 %v1596, %v1611
  %1615 = vrot.lane.b32.xlu0 %v1613, 64
  %v1616 = vpop.permute.xlu0 %1615
  %1618 = vst.msk [vmem:[#allocation3 + $0x8] sm:$0xff] %vm1077, %v1616
  %v1619 = vld [vmem:[#allocation2 + $0x40] sm:$0xff]
  %v1620 = vld [vmem:[#allocation2 + $0x48] sm:$0xff]
  %v1621 = vld [vmem:[#allocation2 + $0x50] sm:$0xff]
  %v1622 = vld [vmem:[#allocation2 + $0x58] sm:$0xff]
  %v1623 = vld [vmem:[%s2] sm:$0xff]
  %v1624 = vld [vmem:[%s2 + $0x8] sm:$0xff]
  %v1625 = vld [vmem:[%s2 + $0x10] sm:$0xff]
  %v1626 = vld [vmem:[%s2 + $0x18] sm:$0xff]
  %v1627 = vld [vmem:[%s2 + $0x20] sm:$0xff]
  %v1628 = vld [vmem:[%s2 + $0x28] sm:$0xff]
  %v1629 = vld [vmem:[%s2 + $0x30] sm:$0xff]
  %v1630 = vld [vmem:[%s2 + $0x38] sm:$0xff]
  %v1631 = vld [vmem:[%s2 + $0x40] sm:$0xff]
  %v1632 = vld [vmem:[%s2 + $0x48] sm:$0xff]
  %v1633 = vld [vmem:[%s2 + $0x50] sm:$0xff]
  %v1634 = vld [vmem:[%s2 + $0x58] sm:$0xff]
  %v1635 = vld [vmem:[%s2 + $0x60] sm:$0xff]
  %v1636 = vld [vmem:[%s2 + $0x68] sm:$0xff]
  %v1637 = vld [vmem:[%s2 + $0x70] sm:$0xff]
  %v1638 = vld [vmem:[%s2 + $0x78] sm:$0xff]
  %v1639 = vld [vmem:[%s2 + $0x80] sm:$0xff]
  %v1640 = vld [vmem:[%s2 + $0x88] sm:$0xff]
  %v1641 = vld [vmem:[%s2 + $0x90] sm:$0xff]
  %v1642 = vld [vmem:[%s2 + $0x98] sm:$0xff]
  %v1643 = vld [vmem:[%s2 + $0xa0] sm:$0xff]
  %v1644 = vld [vmem:[%s2 + $0xa8] sm:$0xff]
  %v1645 = vld [vmem:[%s2 + $0xb0] sm:$0xff]
  %v1646 = vld [vmem:[%s2 + $0xb8] sm:$0xff]
  %v1647 = vld [vmem:[%s2 + $0xc0] sm:$0xff]
  %v1648 = vld [vmem:[%s2 + $0xc8] sm:$0xff]
  %v1649 = vld [vmem:[%s2 + $0xd0] sm:$0xff]
  %v1650 = vld [vmem:[%s2 + $0xd8] sm:$0xff]
  %v1651 = vld [vmem:[%s2 + $0xe0] sm:$0xff]
  %v1652 = vld [vmem:[%s2 + $0xe8] sm:$0xff]
  %v1653 = vld [vmem:[%s2 + $0xf0] sm:$0xff]
  %v1654 = vld [vmem:[%s2 + $0xf8] sm:$0xff]
  %v1687 = vunpack.c.l.b16 %v1623
  %v1688 = vunpack.c.h.b16 %v1623
  %v1689 = vunpack.c.l.b16 %v1624
  %v1690 = vunpack.c.h.b16 %v1624
  %v1691 = vunpack.c.l.b16 %v1625
  %v1692 = vunpack.c.h.b16 %v1625
  %v1693 = vunpack.c.l.b16 %v1626
  %v1694 = vunpack.c.h.b16 %v1626
  %v1695 = vunpack.c.l.b16 %v1627
  %v1696 = vunpack.c.h.b16 %v1627
  %v1697 = vunpack.c.l.b16 %v1628
  %v1698 = vunpack.c.h.b16 %v1628
  %v1699 = vunpack.c.l.b16 %v1629
  %v1700 = vunpack.c.h.b16 %v1629
  %v1701 = vunpack.c.l.b16 %v1630
  %v1702 = vunpack.c.h.b16 %v1630
  %v1703 = vunpack.c.l.b16 %v1631
  %v1704 = vunpack.c.h.b16 %v1631
  %v1705 = vunpack.c.l.b16 %v1632
  %v1706 = vunpack.c.h.b16 %v1632
  %v1707 = vunpack.c.l.b16 %v1633
  %v1708 = vunpack.c.h.b16 %v1633
  %v1709 = vunpack.c.l.b16 %v1634
  %v1710 = vunpack.c.h.b16 %v1634
  %v1711 = vunpack.c.l.b16 %v1635
  %v1712 = vunpack.c.h.b16 %v1635
  %v1713 = vunpack.c.l.b16 %v1636
  %v1714 = vunpack.c.h.b16 %v1636
  %v1715 = vunpack.c.l.b16 %v1637
  %v1716 = vunpack.c.h.b16 %v1637
  %v1717 = vunpack.c.l.b16 %v1638
  %v1718 = vunpack.c.h.b16 %v1638
  %v1719 = vunpack.c.l.b16 %v1639
  %v1720 = vunpack.c.h.b16 %v1639
  %v1721 = vunpack.c.l.b16 %v1640
  %v1722 = vunpack.c.h.b16 %v1640
  %v1723 = vunpack.c.l.b16 %v1641
  %v1724 = vunpack.c.h.b16 %v1641
  %v1725 = vunpack.c.l.b16 %v1642
  %v1726 = vunpack.c.h.b16 %v1642
  %v1727 = vunpack.c.l.b16 %v1643
  %v1728 = vunpack.c.h.b16 %v1643
  %v1729 = vunpack.c.l.b16 %v1644
  %v1730 = vunpack.c.h.b16 %v1644
  %v1731 = vunpack.c.l.b16 %v1645
  %v1732 = vunpack.c.h.b16 %v1645
  %v1733 = vunpack.c.l.b16 %v1646
  %v1734 = vunpack.c.h.b16 %v1646
  %v1735 = vunpack.c.l.b16 %v1647
  %v1736 = vunpack.c.h.b16 %v1647
  %v1737 = vunpack.c.l.b16 %v1648
  %v1738 = vunpack.c.h.b16 %v1648
  %v1739 = vunpack.c.l.b16 %v1649
  %v1740 = vunpack.c.h.b16 %v1649
  %v1741 = vunpack.c.l.b16 %v1650
  %v1742 = vunpack.c.h.b16 %v1650
  %v1743 = vunpack.c.l.b16 %v1651
  %v1744 = vunpack.c.h.b16 %v1651
  %v1745 = vunpack.c.l.b16 %v1652
  %v1746 = vunpack.c.h.b16 %v1652
  %v1747 = vunpack.c.l.b16 %v1653
  %v1748 = vunpack.c.h.b16 %v1653
  %v1749 = vunpack.c.l.b16 %v1654
  %v1750 = vunpack.c.h.b16 %v1654
  %v1751 = vpack.c.b16 %v1691, %v1687
  %v1752 = vpack.c.b16 %v1692, %v1688
  %v1753 = vpack.c.b16 %v1693, %v1689
  %v1754 = vpack.c.b16 %v1694, %v1690
  %v1755 = vpack.c.b16 %v1699, %v1695
  %v1756 = vpack.c.b16 %v1700, %v1696
  %v1757 = vpack.c.b16 %v1701, %v1697
  %v1758 = vpack.c.b16 %v1702, %v1698
  %v1759 = vpack.c.b16 %v1707, %v1703
  %v1760 = vpack.c.b16 %v1708, %v1704
  %v1761 = vpack.c.b16 %v1709, %v1705
  %v1762 = vpack.c.b16 %v1710, %v1706
  %v1763 = vpack.c.b16 %v1715, %v1711
  %v1764 = vpack.c.b16 %v1716, %v1712
  %v1765 = vpack.c.b16 %v1717, %v1713
  %v1766 = vpack.c.b16 %v1718, %v1714
  %v1767 = vpack.c.b16 %v1723, %v1719
  %v1768 = vpack.c.b16 %v1724, %v1720
  %v1769 = vpack.c.b16 %v1725, %v1721
  %v1770 = vpack.c.b16 %v1726, %v1722
  %v1771 = vpack.c.b16 %v1731, %v1727
  %v1772 = vpack.c.b16 %v1732, %v1728
  %v1773 = vpack.c.b16 %v1733, %v1729
  %v1774 = vpack.c.b16 %v1734, %v1730
  %v1775 = vpack.c.b16 %v1739, %v1735
  %v1776 = vpack.c.b16 %v1740, %v1736
  %v1777 = vpack.c.b16 %v1741, %v1737
  %v1778 = vpack.c.b16 %v1742, %v1738
  %v1779 = vpack.c.b16 %v1747, %v1743
  %v1780 = vpack.c.b16 %v1748, %v1744
  %v1781 = vpack.c.b16 %v1749, %v1745
  %v1782 = vpack.c.b16 %v1750, %v1746
  %1815 = vmatprep.subr.bf16.mxu0 %v1780
  %1816 = vmatpush1.bf16.msra.mxu0 %v1779
  %1817 = vmatprep.subr.bf16.mxu0 %v1776
  %1818 = vmatpush1.bf16.msra.mxu0 %v1775
  %1819 = vmatprep.subr.bf16.mxu0 %v1772
  %1820 = vmatpush1.bf16.msra.mxu0 %v1771
  %1821 = vmatprep.subr.bf16.mxu0 %v1768
  %1822 = vmatpush1.bf16.msra.mxu0 %v1767
  %1823 = vmatprep.subr.bf16.mxu0 %v1764
  %1824 = vmatpush1.bf16.msra.mxu0 %v1763
  %1825 = vmatprep.subr.bf16.mxu0 %v1760
  %1826 = vmatpush1.bf16.msra.mxu0 %v1759
  %1827 = vmatprep.subr.bf16.mxu0 %v1756
  %1828 = vmatpush1.bf16.msra.mxu0 %v1755
  %1829 = vmatprep.subr.bf16.mxu0 %v1752
  %1830 = vmatpush1.bf16.msra.mxu0 %v1751
  %1831 = vmatprep.subr.bf16.mxu0 0
  %1832 = vmatpush2.bf16.msra.mxu0 0
  %1833 = vmatprep.subr.bf16.mxu0 0
  %1834 = vmatpush2.bf16.msra.mxu0 0
  %1835 = vmatprep.subr.bf16.mxu0 0
  %1836 = vmatpush2.bf16.msra.mxu0 0
  %1837 = vmatprep.subr.bf16.mxu0 0
  %1838 = vmatpush2.bf16.msra.mxu0 0
  %1839 = vmatprep.subr.bf16.mxu0 0
  %1840 = vmatpush2.bf16.msra.mxu0 0
  %1841 = vmatprep.subr.bf16.mxu0 0
  %1842 = vmatpush2.bf16.msra.mxu0 0
  %1843 = vmatprep.subr.bf16.mxu0 0
  %1844 = vmatpush2.bf16.msra.mxu0 0
  %1845 = vmatprep.subr.bf16.mxu0 0
  %1846 = vmatpush2.bf16.msra.mxu0 0
  %1847 = vmatprep.mubr.bf16.mxu0 0
  %1848 = vmatmul.mubr.bf16.gmra.mxu0 %v1457
  %v1849 = vpop.f32.mrf.mxu0
  %v1850 = vadd.f32 0.0, %v1849
  %v1851 = vpop.f32.mrf.mxu0
  %v1852 = vadd.f32 0.0, %v1851
  %v1853 = vpop.f32.mrf.mxu0
  %v1854 = vpop.f32.mrf.mxu0
  %1855 = vdwg.mxu0
  %1856 = vmatprep.subr.bf16.mxu0 %v1782
  %1857 = vmatpush1.bf16.msra.mxu0 %v1781
  %1858 = vmatprep.subr.bf16.mxu0 %v1778
  %1859 = vmatpush1.bf16.msra.mxu0 %v1777
  %1860 = vmatprep.subr.bf16.mxu0 %v1774
  %1861 = vmatpush1.bf16.msra.mxu0 %v1773
  %1862 = vmatprep.subr.bf16.mxu0 %v1770
  %1863 = vmatpush1.bf16.msra.mxu0 %v1769
  %1864 = vmatprep.subr.bf16.mxu0 %v1766
  %1865 = vmatpush1.bf16.msra.mxu0 %v1765
  %1866 = vmatprep.subr.bf16.mxu0 %v1762
  %1867 = vmatpush1.bf16.msra.mxu0 %v1761
  %1868 = vmatprep.subr.bf16.mxu0 %v1758
  %1869 = vmatpush1.bf16.msra.mxu0 %v1757
  %1870 = vmatprep.subr.bf16.mxu0 %v1754
  %1871 = vmatpush1.bf16.msra.mxu0 %v1753
  %1872 = vmatprep.subr.bf16.mxu0 0
  %1873 = vmatpush2.bf16.msra.mxu0 0
  %1874 = vmatprep.subr.bf16.mxu0 0
  %1875 = vmatpush2.bf16.msra.mxu0 0
  %1876 = vmatprep.subr.bf16.mxu0 0
  %1877 = vmatpush2.bf16.msra.mxu0 0
  %1878 = vmatprep.subr.bf16.mxu0 0
  %1879 = vmatpush2.bf16.msra.mxu0 0
  %1880 = vmatprep.subr.bf16.mxu0 0
  %1881 = vmatpush2.bf16.msra.mxu0 0
  %1882 = vmatprep.subr.bf16.mxu0 0
  %1883 = vmatpush2.bf16.msra.mxu0 0
  %1884 = vmatprep.subr.bf16.mxu0 0
  %1885 = vmatpush2.bf16.msra.mxu0 0
  %1886 = vmatprep.subr.bf16.mxu0 0
  %1887 = vmatpush2.bf16.msra.mxu0 0
  %1888 = vmatprep.mubr.bf16.mxu0 0
  %1889 = vmatmul.mubr.bf16.gmra.mxu0 %v1457
  %v1890 = vpop.f32.mrf.mxu0
  %v1891 = vadd.f32 0.0, %v1890
  %v1892 = vpop.f32.mrf.mxu0
  %v1893 = vadd.f32 0.0, %v1892
  %v1894 = vpop.f32.mrf.mxu0
  %v1895 = vpop.f32.mrf.mxu0
  %1896 = vdwg.mxu0
  %v1897 = vadd.f32 %v1619, %v1850
  %v1898 = vadd.f32 %v1620, %v1852
  %v1899 = vadd.f32 %v1621, %v1891
  %v1900 = vadd.f32 %v1622, %v1893
  %v1901 = vxor.u32 %v1897, 2147483648
  %v1902 = vxor.u32 %v1898, 2147483648
  %v1903 = vxor.u32 %v1899, 2147483648
  %v1904 = vmul.f32 %v1901, 1.442695
  %v1905 = vpow.pop %v1904
  %v1906 = vmul.f32 %v1902, 1.442695
  %v1907 = vpow.pop %v1906
  %v1908 = vmul.f32 %v1903, 1.442695
  %v1909 = vpow.pop %v1908
  %v1910 = vadd.f32 %v1905, 1.0
  %v1911 = vadd.f32 %v1907, 1.0
  %v1912 = vadd.f32 %v1909, 1.0
  %v1913 = vrcp.pop %v1910
  %v1914 = vmul.f32 1.0, %v1913
  %v1915 = vrcp.pop %v1911
  %v1916 = vmul.f32 1.0, %v1915
  %v1917 = vrcp.pop %v1912
  %v1918 = vmul.f32 1.0, %v1917
  %v1919 = vtanh.pop %v1900
  %v1920 = vmul.f32 %v1916, %v1454
  %v1921 = vmul.f32 %v1914, %v1919
  %v1922 = vadd.f32 %v1920, %v1921
  %v1923 = vtanh.pop %v1922
  %v1924 = vmul.f32 %v1918, %v1923
  %v1925 = vpack.c.bf16 %v1924, %v1924
  %v1926 = vpack.c.bf16 %v1616, %v1616
  %v1927 = vld [vmem:[%s4] sm:$0xf]
  %v1928 = vld [vmem:[%s4 + $0x4] sm:$0xf]
  %v1929 = vld [vmem:[%s4 + $0x8] sm:$0xf]
  %v1930 = vld [vmem:[%s4 + $0xc] sm:$0xf]
  %v1931 = vld [vmem:[%s4 + $0x10] sm:$0xf]
  %v1932 = vld [vmem:[%s4 + $0x14] sm:$0xf]
  %v1933 = vld [vmem:[%s4 + $0x18] sm:$0xf]
  %v1934 = vld [vmem:[%s4 + $0x1c] sm:$0xf]
  %v1935 = vld [vmem:[%s4 + $0x20] sm:$0xf]
  %v1936 = vld [vmem:[%s4 + $0x24] sm:$0xf]
  %v1937 = vld [vmem:[%s4 + $0x28] sm:$0xf]
  %v1938 = vld [vmem:[%s4 + $0x2c] sm:$0xf]
  %v1939 = vld [vmem:[%s4 + $0x30] sm:$0xf]
  %v1940 = vld [vmem:[%s4 + $0x34] sm:$0xf]
  %v1941 = vld [vmem:[%s4 + $0x38] sm:$0xf]
  %v1942 = vld [vmem:[%s4 + $0x3c] sm:$0xf]
  %v1943 = vld [vmem:[%s4 + $0x40] sm:$0xf]
  %v1944 = vld [vmem:[%s4 + $0x44] sm:$0xf]
  %v1945 = vld [vmem:[%s4 + $0x48] sm:$0xf]
  %v1946 = vld [vmem:[%s4 + $0x4c] sm:$0xf]
  %v1947 = vld [vmem:[%s5] sm:$0x1]
  %v1949 = vlaneseq
  %v1950 = vshrl.u32 %v1949, 7
  %v1951 = vsub.s32 0, %v1950
  %v1952 = vrot.slane %v1947, %v1951
  %v1974 = vunpack.c.l.b16 %v1927
  %v1975 = vunpack.c.l.b16 %v1928
  %v1976 = vunpack.c.l.b16 %v1929
  %v1977 = vunpack.c.l.b16 %v1930
  %v1978 = vunpack.c.l.b16 %v1931
  %v1979 = vunpack.c.l.b16 %v1932
  %v1980 = vunpack.c.l.b16 %v1933
  %v1981 = vunpack.c.l.b16 %v1934
  %v1982 = vunpack.c.l.b16 %v1935
  %v1983 = vunpack.c.l.b16 %v1936
  %v1984 = vunpack.c.l.b16 %v1937
  %v1985 = vunpack.c.l.b16 %v1938
  %v1986 = vunpack.c.l.b16 %v1939
  %v1987 = vunpack.c.l.b16 %v1940
  %v1988 = vunpack.c.l.b16 %v1941
  %v1989 = vunpack.c.l.b16 %v1942
  %v1990 = vunpack.c.l.b16 %v1943
  %v1991 = vunpack.c.l.b16 %v1944
  %v1992 = vunpack.c.l.b16 %v1945
  %v1993 = vunpack.c.l.b16 %v1946
  %v1994 = vpack.c.b16 %v1975, %v1974
  %v1995 = vpack.c.b16 %v1977, %v1976
  %v1996 = vpack.c.b16 %v1979, %v1978
  %v1997 = vpack.c.b16 %v1981, %v1980
  %v1998 = vpack.c.b16 %v1983, %v1982
  %v1999 = vpack.c.b16 %v1985, %v1984
  %v2000 = vpack.c.b16 %v1987, %v1986
  %v2001 = vpack.c.b16 %v1989, %v1988
  %v2002 = vpack.c.b16 %v1991, %v1990
  %v2003 = vpack.c.b16 %v1993, %v1992
  %v2015 = vsel %vm1077, %v1926, 0
  %2017 = vmatprep.subr.bf16.mxu0 0
  %2018 = vmatpush1.bf16.msra.mxu0 %v2001
  %2019 = vmatprep.subr.bf16.mxu0 0
  %2020 = vmatpush1.bf16.msra.mxu0 %v2000
  %2021 = vmatprep.subr.bf16.mxu0 0
  %2022 = vmatpush1.bf16.msra.mxu0 %v1999
  %2023 = vmatprep.subr.bf16.mxu0 0
  %2024 = vmatpush1.bf16.msra.mxu0 %v1998
  %2025 = vmatprep.subr.bf16.mxu0 0
  %2026 = vmatpush1.bf16.msra.mxu0 %v1997
  %2027 = vmatprep.subr.bf16.mxu0 0
  %2028 = vmatpush1.bf16.msra.mxu0 %v1996
  %2029 = vmatprep.subr.bf16.mxu0 0
  %2030 = vmatpush1.bf16.msra.mxu0 %v1995
  %2031 = vmatprep.subr.bf16.mxu0 0
  %2032 = vmatpush1.bf16.msra.mxu0 %v1994
  %2033 = vmatprep.subr.bf16.mxu0 0
  %2034 = vmatpush2.bf16.msra.mxu0 0
  %2035 = vmatprep.subr.bf16.mxu0 0
  %2036 = vmatpush2.bf16.msra.mxu0 0
  %2037 = vmatprep.subr.bf16.mxu0 0
  %2038 = vmatpush2.bf16.msra.mxu0 0
  %2039 = vmatprep.subr.bf16.mxu0 0
  %2040 = vmatpush2.bf16.msra.mxu0 0
  %2041 = vmatprep.subr.bf16.mxu0 0
  %2042 = vmatpush2.bf16.msra.mxu0 0
  %2043 = vmatprep.subr.bf16.mxu0 0
  %2044 = vmatpush2.bf16.msra.mxu0 0
  %2045 = vmatprep.subr.bf16.mxu0 0
  %2046 = vmatpush2.bf16.msra.mxu0 %v2003
  %2047 = vmatprep.subr.bf16.mxu0 0
  %2048 = vmatpush2.bf16.msra.mxu0 %v2002
  %2049 = vmatprep.mubr.bf16.mxu0 %v2015
  %2050 = vmatmul.mubr.bf16.gmra.mxu0 %v1925
  %v2051 = vpop.f32.mrf.mxu0
  %v2052 = vadd.f32 %v1952, %v2051
  %v2053 = vpop.f32.mrf.mxu0
  %v2054 = vpop.f32.mrf.mxu0
  %v2055 = vpop.f32.mrf.mxu0
  %2056 = vdwg.mxu0
  %v2057 = vxor.u32 %v2052, 2147483648
  %v2058 = vmul.f32 %v2057, 1.442695
  %v2059 = vpow.pop %v2058
  %v2060 = vadd.f32 %v2059, 1.0
  %v2061 = vrcp.pop %v2060
  %v2062 = vmul.f32 1.0, %v2061
  %v2063 = vtanh.pop %v2052
  %v2064 = vsel %vm681, %v2062, %v2063
  %v2065 = vmul.f32 %v2064, %v1607
  %2067 = vrot.lane.b32.xlu0 %v2064, 32
  %v2068 = vpop.permute.xlu0 %2067
  %v2070 = vmul.f32 %v2064, %v2068
  %2072 = vrot.lane.b32.xlu0 %v2070, 32
  %v2073 = vpop.permute.xlu0 %2072
  %v2075 = vadd.f32 %v2065, %v2073
  %v2076 = vtanh.pop %v2075
  %2078 = vrot.lane.b32.xlu0 %v2076, 32
  %v2079 = vpop.permute.xlu0 %2078
  %v2081 = vmul.f32 %v2064, %v2079
  %2083 = vrot.lane.b32.xlu0 %v2081, 64
  %v2084 = vpop.permute.xlu0 %2083
  %2086 = vst.msk [vmem:[#allocation3 + $0x10] sm:$0xff] %vm1077, %v2084
  %v2087 = vld [vmem:[#allocation2 + $0x60] sm:$0xff]
  %v2088 = vld [vmem:[#allocation2 + $0x68] sm:$0xff]
  %v2089 = vld [vmem:[#allocation2 + $0x70] sm:$0xff]
  %v2090 = vld [vmem:[#allocation2 + $0x78] sm:$0xff]
  %v2091 = vld [vmem:[%s2] sm:$0xff]
  %v2092 = vld [vmem:[%s2 + $0x8] sm:$0xff]
  %v2093 = vld [vmem:[%s2 + $0x10] sm:$0xff]
  %v2094 = vld [vmem:[%s2 + $0x18] sm:$0xff]
  %v2095 = vld [vmem:[%s2 + $0x20] sm:$0xff]
  %v2096 = vld [vmem:[%s2 + $0x28] sm:$0xff]
  %v2097 = vld [vmem:[%s2 + $0x30] sm:$0xff]
  %v2098 = vld [vmem:[%s2 + $0x38] sm:$0xff]
  %v2099 = vld [vmem:[%s2 + $0x40] sm:$0xff]
  %v2100 = vld [vmem:[%s2 + $0x48] sm:$0xff]
  %v2101 = vld [vmem:[%s2 + $0x50] sm:$0xff]
  %v2102 = vld [vmem:[%s2 + $0x58] sm:$0xff]
  %v2103 = vld [vmem:[%s2 + $0x60] sm:$0xff]
  %v2104 = vld [vmem:[%s2 + $0x68] sm:$0xff]
  %v2105 = vld [vmem:[%s2 + $0x70] sm:$0xff]
  %v2106 = vld [vmem:[%s2 + $0x78] sm:$0xff]
  %v2107 = vld [vmem:[%s2 + $0x80] sm:$0xff]
  %v2108 = vld [vmem:[%s2 + $0x88] sm:$0xff]
  %v2109 = vld [vmem:[%s2 + $0x90] sm:$0xff]
  %v2110 = vld [vmem:[%s2 + $0x98] sm:$0xff]
  %v2111 = vld [vmem:[%s2 + $0xa0] sm:$0xff]
  %v2112 = vld [vmem:[%s2 + $0xa8] sm:$0xff]
  %v2113 = vld [vmem:[%s2 + $0xb0] sm:$0xff]
  %v2114 = vld [vmem:[%s2 + $0xb8] sm:$0xff]
  %v2115 = vld [vmem:[%s2 + $0xc0] sm:$0xff]
  %v2116 = vld [vmem:[%s2 + $0xc8] sm:$0xff]
  %v2117 = vld [vmem:[%s2 + $0xd0] sm:$0xff]
  %v2118 = vld [vmem:[%s2 + $0xd8] sm:$0xff]
  %v2119 = vld [vmem:[%s2 + $0xe0] sm:$0xff]
  %v2120 = vld [vmem:[%s2 + $0xe8] sm:$0xff]
  %v2121 = vld [vmem:[%s2 + $0xf0] sm:$0xff]
  %v2122 = vld [vmem:[%s2 + $0xf8] sm:$0xff]
  %v2155 = vunpack.c.l.b16 %v2091
  %v2156 = vunpack.c.h.b16 %v2091
  %v2157 = vunpack.c.l.b16 %v2092
  %v2158 = vunpack.c.h.b16 %v2092
  %v2159 = vunpack.c.l.b16 %v2093
  %v2160 = vunpack.c.h.b16 %v2093
  %v2161 = vunpack.c.l.b16 %v2094
  %v2162 = vunpack.c.h.b16 %v2094
  %v2163 = vunpack.c.l.b16 %v2095
  %v2164 = vunpack.c.h.b16 %v2095
  %v2165 = vunpack.c.l.b16 %v2096
  %v2166 = vunpack.c.h.b16 %v2096
  %v2167 = vunpack.c.l.b16 %v2097
  %v2168 = vunpack.c.h.b16 %v2097
  %v2169 = vunpack.c.l.b16 %v2098
  %v2170 = vunpack.c.h.b16 %v2098
  %v2171 = vunpack.c.l.b16 %v2099
  %v2172 = vunpack.c.h.b16 %v2099
  %v2173 = vunpack.c.l.b16 %v2100
  %v2174 = vunpack.c.h.b16 %v2100
  %v2175 = vunpack.c.l.b16 %v2101
  %v2176 = vunpack.c.h.b16 %v2101
  %v2177 = vunpack.c.l.b16 %v2102
  %v2178 = vunpack.c.h.b16 %v2102
  %v2179 = vunpack.c.l.b16 %v2103
  %v2180 = vunpack.c.h.b16 %v2103
  %v2181 = vunpack.c.l.b16 %v2104
  %v2182 = vunpack.c.h.b16 %v2104
  %v2183 = vunpack.c.l.b16 %v2105
  %v2184 = vunpack.c.h.b16 %v2105
  %v2185 = vunpack.c.l.b16 %v2106
  %v2186 = vunpack.c.h.b16 %v2106
  %v2187 = vunpack.c.l.b16 %v2107
  %v2188 = vunpack.c.h.b16 %v2107
  %v2189 = vunpack.c.l.b16 %v2108
  %v2190 = vunpack.c.h.b16 %v2108
  %v2191 = vunpack.c.l.b16 %v2109
  %v2192 = vunpack.c.h.b16 %v2109
  %v2193 = vunpack.c.l.b16 %v2110
  %v2194 = vunpack.c.h.b16 %v2110
  %v2195 = vunpack.c.l.b16 %v2111
  %v2196 = vunpack.c.h.b16 %v2111
  %v2197 = vunpack.c.l.b16 %v2112
  %v2198 = vunpack.c.h.b16 %v2112
  %v2199 = vunpack.c.l.b16 %v2113
  %v2200 = vunpack.c.h.b16 %v2113
  %v2201 = vunpack.c.l.b16 %v2114
  %v2202 = vunpack.c.h.b16 %v2114
  %v2203 = vunpack.c.l.b16 %v2115
  %v2204 = vunpack.c.h.b16 %v2115
  %v2205 = vunpack.c.l.b16 %v2116
  %v2206 = vunpack.c.h.b16 %v2116
  %v2207 = vunpack.c.l.b16 %v2117
  %v2208 = vunpack.c.h.b16 %v2117
  %v2209 = vunpack.c.l.b16 %v2118
  %v2210 = vunpack.c.h.b16 %v2118
  %v2211 = vunpack.c.l.b16 %v2119
  %v2212 = vunpack.c.h.b16 %v2119
  %v2213 = vunpack.c.l.b16 %v2120
  %v2214 = vunpack.c.h.b16 %v2120
  %v2215 = vunpack.c.l.b16 %v2121
  %v2216 = vunpack.c.h.b16 %v2121
  %v2217 = vunpack.c.l.b16 %v2122
  %v2218 = vunpack.c.h.b16 %v2122
  %v2219 = vpack.c.b16 %v2159, %v2155
  %v2220 = vpack.c.b16 %v2160, %v2156
  %v2221 = vpack.c.b16 %v2161, %v2157
  %v2222 = vpack.c.b16 %v2162, %v2158
  %v2223 = vpack.c.b16 %v2167, %v2163
  %v2224 = vpack.c.b16 %v2168, %v2164
  %v2225 = vpack.c.b16 %v2169, %v2165
  %v2226 = vpack.c.b16 %v2170, %v2166
  %v2227 = vpack.c.b16 %v2175, %v2171
  %v2228 = vpack.c.b16 %v2176, %v2172
  %v2229 = vpack.c.b16 %v2177, %v2173
  %v2230 = vpack.c.b16 %v2178, %v2174
  %v2231 = vpack.c.b16 %v2183, %v2179
  %v2232 = vpack.c.b16 %v2184, %v2180
  %v2233 = vpack.c.b16 %v2185, %v2181
  %v2234 = vpack.c.b16 %v2186, %v2182
  %v2235 = vpack.c.b16 %v2191, %v2187
  %v2236 = vpack.c.b16 %v2192, %v2188
  %v2237 = vpack.c.b16 %v2193, %v2189
  %v2238 = vpack.c.b16 %v2194, %v2190
  %v2239 = vpack.c.b16 %v2199, %v2195
  %v2240 = vpack.c.b16 %v2200, %v2196
  %v2241 = vpack.c.b16 %v2201, %v2197
  %v2242 = vpack.c.b16 %v2202, %v2198
  %v2243 = vpack.c.b16 %v2207, %v2203
  %v2244 = vpack.c.b16 %v2208, %v2204
  %v2245 = vpack.c.b16 %v2209, %v2205
  %v2246 = vpack.c.b16 %v2210, %v2206
  %v2247 = vpack.c.b16 %v2215, %v2211
  %v2248 = vpack.c.b16 %v2216, %v2212
  %v2249 = vpack.c.b16 %v2217, %v2213
  %v2250 = vpack.c.b16 %v2218, %v2214
  %2283 = vmatprep.subr.bf16.mxu0 %v2248
  %2284 = vmatpush1.bf16.msra.mxu0 %v2247
  %2285 = vmatprep.subr.bf16.mxu0 %v2244
  %2286 = vmatpush1.bf16.msra.mxu0 %v2243
  %2287 = vmatprep.subr.bf16.mxu0 %v2240
  %2288 = vmatpush1.bf16.msra.mxu0 %v2239
  %2289 = vmatprep.subr.bf16.mxu0 %v2236
  %2290 = vmatpush1.bf16.msra.mxu0 %v2235
  %2291 = vmatprep.subr.bf16.mxu0 %v2232
  %2292 = vmatpush1.bf16.msra.mxu0 %v2231
  %2293 = vmatprep.subr.bf16.mxu0 %v2228
  %2294 = vmatpush1.bf16.msra.mxu0 %v2227
  %2295 = vmatprep.subr.bf16.mxu0 %v2224
  %2296 = vmatpush1.bf16.msra.mxu0 %v2223
  %2297 = vmatprep.subr.bf16.mxu0 %v2220
  %2298 = vmatpush1.bf16.msra.mxu0 %v2219
  %2299 = vmatprep.subr.bf16.mxu0 0
  %2300 = vmatpush2.bf16.msra.mxu0 0
  %2301 = vmatprep.subr.bf16.mxu0 0
  %2302 = vmatpush2.bf16.msra.mxu0 0
  %2303 = vmatprep.subr.bf16.mxu0 0
  %2304 = vmatpush2.bf16.msra.mxu0 0
  %2305 = vmatprep.subr.bf16.mxu0 0
  %2306 = vmatpush2.bf16.msra.mxu0 0
  %2307 = vmatprep.subr.bf16.mxu0 0
  %2308 = vmatpush2.bf16.msra.mxu0 0
  %2309 = vmatprep.subr.bf16.mxu0 0
  %2310 = vmatpush2.bf16.msra.mxu0 0
  %2311 = vmatprep.subr.bf16.mxu0 0
  %2312 = vmatpush2.bf16.msra.mxu0 0
  %2313 = vmatprep.subr.bf16.mxu0 0
  %2314 = vmatpush2.bf16.msra.mxu0 0
  %2315 = vmatprep.mubr.bf16.mxu0 0
  %2316 = vmatmul.mubr.bf16.gmra.mxu0 %v1925
  %v2317 = vpop.f32.mrf.mxu0
  %v2318 = vadd.f32 0.0, %v2317
  %v2319 = vpop.f32.mrf.mxu0
  %v2320 = vadd.f32 0.0, %v2319
  %v2321 = vpop.f32.mrf.mxu0
  %v2322 = vpop.f32.mrf.mxu0
  %2323 = vdwg.mxu0
  %2324 = vmatprep.subr.bf16.mxu0 %v2250
  %2325 = vmatpush1.bf16.msra.mxu0 %v2249
  %2326 = vmatprep.subr.bf16.mxu0 %v2246
  %2327 = vmatpush1.bf16.msra.mxu0 %v2245
  %2328 = vmatprep.subr.bf16.mxu0 %v2242
  %2329 = vmatpush1.bf16.msra.mxu0 %v2241
  %2330 = vmatprep.subr.bf16.mxu0 %v2238
  %2331 = vmatpush1.bf16.msra.mxu0 %v2237
  %2332 = vmatprep.subr.bf16.mxu0 %v2234
  %2333 = vmatpush1.bf16.msra.mxu0 %v2233
  %2334 = vmatprep.subr.bf16.mxu0 %v2230
  %2335 = vmatpush1.bf16.msra.mxu0 %v2229
  %2336 = vmatprep.subr.bf16.mxu0 %v2226
  %2337 = vmatpush1.bf16.msra.mxu0 %v2225
  %2338 = vmatprep.subr.bf16.mxu0 %v2222
  %2339 = vmatpush1.bf16.msra.mxu0 %v2221
  %2340 = vmatprep.subr.bf16.mxu0 0
  %2341 = vmatpush2.bf16.msra.mxu0 0
  %2342 = vmatprep.subr.bf16.mxu0 0
  %2343 = vmatpush2.bf16.msra.mxu0 0
  %2344 = vmatprep.subr.bf16.mxu0 0
  %2345 = vmatpush2.bf16.msra.mxu0 0
  %2346 = vmatprep.subr.bf16.mxu0 0
  %2347 = vmatpush2.bf16.msra.mxu0 0
  %2348 = vmatprep.subr.bf16.mxu0 0
  %2349 = vmatpush2.bf16.msra.mxu0 0
  %2350 = vmatprep.subr.bf16.mxu0 0
  %2351 = vmatpush2.bf16.msra.mxu0 0
  %2352 = vmatprep.subr.bf16.mxu0 0
  %2353 = vmatpush2.bf16.msra.mxu0 0
  %2354 = vmatprep.subr.bf16.mxu0 0
  %2355 = vmatpush2.bf16.msra.mxu0 0
  %2356 = vmatprep.mubr.bf16.mxu0 0
  %2357 = vmatmul.mubr.bf16.gmra.mxu0 %v1925
  %v2358 = vpop.f32.mrf.mxu0
  %v2359 = vadd.f32 0.0, %v2358
  %v2360 = vpop.f32.mrf.mxu0
  %v2361 = vadd.f32 0.0, %v2360
  %v2362 = vpop.f32.mrf.mxu0
  %v2363 = vpop.f32.mrf.mxu0
  %2364 = vdwg.mxu0
  %v2365 = vadd.f32 %v2087, %v2318
  %v2366 = vadd.f32 %v2088, %v2320
  %v2367 = vadd.f32 %v2089, %v2359
  %v2368 = vadd.f32 %v2090, %v2361
  %v2369 = vxor.u32 %v2365, 2147483648
  %v2370 = vxor.u32 %v2366, 2147483648
  %v2371 = vxor.u32 %v2367, 2147483648
  %v2372 = vmul.f32 %v2369, 1.442695
  %v2373 = vpow.pop %v2372
  %v2374 = vmul.f32 %v2370, 1.442695
  %v2375 = vpow.pop %v2374
  %v2376 = vmul.f32 %v2371, 1.442695
  %v2377 = vpow.pop %v2376
  %v2378 = vadd.f32 %v2373, 1.0
  %v2379 = vadd.f32 %v2375, 1.0
  %v2380 = vadd.f32 %v2377, 1.0
  %v2381 = vrcp.pop %v2378
  %v2382 = vmul.f32 1.0, %v2381
  %v2383 = vrcp.pop %v2379
  %v2384 = vmul.f32 1.0, %v2383
  %v2385 = vrcp.pop %v2380
  %v2386 = vmul.f32 1.0, %v2385
  %v2387 = vtanh.pop %v2368
  %v2388 = vmul.f32 %v2384, %v1922
  %v2389 = vmul.f32 %v2382, %v2387
  %v2390 = vadd.f32 %v2388, %v2389
  %v2391 = vtanh.pop %v2390
  %v2392 = vmul.f32 %v2386, %v2391
  %v2393 = vpack.c.bf16 %v2392, %v2392
  %v2394 = vpack.c.bf16 %v2084, %v2084
  %v2395 = vld [vmem:[%s4] sm:$0xf]
  %v2396 = vld [vmem:[%s4 + $0x4] sm:$0xf]
  %v2397 = vld [vmem:[%s4 + $0x8] sm:$0xf]
  %v2398 = vld [vmem:[%s4 + $0xc] sm:$0xf]
  %v2399 = vld [vmem:[%s4 + $0x10] sm:$0xf]
  %v2400 = vld [vmem:[%s4 + $0x14] sm:$0xf]
  %v2401 = vld [vmem:[%s4 + $0x18] sm:$0xf]
  %v2402 = vld [vmem:[%s4 + $0x1c] sm:$0xf]
  %v2403 = vld [vmem:[%s4 + $0x20] sm:$0xf]
  %v2404 = vld [vmem:[%s4 + $0x24] sm:$0xf]
  %v2405 = vld [vmem:[%s4 + $0x28] sm:$0xf]
  %v2406 = vld [vmem:[%s4 + $0x2c] sm:$0xf]
  %v2407 = vld [vmem:[%s4 + $0x30] sm:$0xf]
  %v2408 = vld [vmem:[%s4 + $0x34] sm:$0xf]
  %v2409 = vld [vmem:[%s4 + $0x38] sm:$0xf]
  %v2410 = vld [vmem:[%s4 + $0x3c] sm:$0xf]
  %v2411 = vld [vmem:[%s4 + $0x40] sm:$0xf]
  %v2412 = vld [vmem:[%s4 + $0x44] sm:$0xf]
  %v2413 = vld [vmem:[%s4 + $0x48] sm:$0xf]
  %v2414 = vld [vmem:[%s4 + $0x4c] sm:$0xf]
  %v2415 = vld [vmem:[%s5] sm:$0x1]
  %v2417 = vlaneseq
  %v2418 = vshrl.u32 %v2417, 7
  %v2419 = vsub.s32 0, %v2418
  %v2420 = vrot.slane %v2415, %v2419
  %v2442 = vunpack.c.l.b16 %v2395
  %v2443 = vunpack.c.l.b16 %v2396
  %v2444 = vunpack.c.l.b16 %v2397
  %v2445 = vunpack.c.l.b16 %v2398
  %v2446 = vunpack.c.l.b16 %v2399
  %v2447 = vunpack.c.l.b16 %v2400
  %v2448 = vunpack.c.l.b16 %v2401
  %v2449 = vunpack.c.l.b16 %v2402
  %v2450 = vunpack.c.l.b16 %v2403
  %v2451 = vunpack.c.l.b16 %v2404
  %v2452 = vunpack.c.l.b16 %v2405
  %v2453 = vunpack.c.l.b16 %v2406
  %v2454 = vunpack.c.l.b16 %v2407
  %v2455 = vunpack.c.l.b16 %v2408
  %v2456 = vunpack.c.l.b16 %v2409
  %v2457 = vunpack.c.l.b16 %v2410
  %v2458 = vunpack.c.l.b16 %v2411
  %v2459 = vunpack.c.l.b16 %v2412
  %v2460 = vunpack.c.l.b16 %v2413
  %v2461 = vunpack.c.l.b16 %v2414
  %v2462 = vpack.c.b16 %v2443, %v2442
  %v2463 = vpack.c.b16 %v2445, %v2444
  %v2464 = vpack.c.b16 %v2447, %v2446
  %v2465 = vpack.c.b16 %v2449, %v2448
  %v2466 = vpack.c.b16 %v2451, %v2450
  %v2467 = vpack.c.b16 %v2453, %v2452
  %v2468 = vpack.c.b16 %v2455, %v2454
  %v2469 = vpack.c.b16 %v2457, %v2456
  %v2470 = vpack.c.b16 %v2459, %v2458
  %v2471 = vpack.c.b16 %v2461, %v2460
  %v2483 = vsel %vm1077, %v2394, 0
  %2485 = vmatprep.subr.bf16.mxu0 0
  %2486 = vmatpush1.bf16.msra.mxu0 %v2469
  %2487 = vmatprep.subr.bf16.mxu0 0
  %2488 = vmatpush1.bf16.msra.mxu0 %v2468
  %2489 = vmatprep.subr.bf16.mxu0 0
  %2490 = vmatpush1.bf16.msra.mxu0 %v2467
  %2491 = vmatprep.subr.bf16.mxu0 0
  %2492 = vmatpush1.bf16.msra.mxu0 %v2466
  %2493 = vmatprep.subr.bf16.mxu0 0
  %2494 = vmatpush1.bf16.msra.mxu0 %v2465
  %2495 = vmatprep.subr.bf16.mxu0 0
  %2496 = vmatpush1.bf16.msra.mxu0 %v2464
  %2497 = vmatprep.subr.bf16.mxu0 0
  %2498 = vmatpush1.bf16.msra.mxu0 %v2463
  %2499 = vmatprep.subr.bf16.mxu0 0
  %2500 = vmatpush1.bf16.msra.mxu0 %v2462
  %2501 = vmatprep.subr.bf16.mxu0 0
  %2502 = vmatpush2.bf16.msra.mxu0 0
  %2503 = vmatprep.subr.bf16.mxu0 0
  %2504 = vmatpush2.bf16.msra.mxu0 0
  %2505 = vmatprep.subr.bf16.mxu0 0
  %2506 = vmatpush2.bf16.msra.mxu0 0
  %2507 = vmatprep.subr.bf16.mxu0 0
  %2508 = vmatpush2.bf16.msra.mxu0 0
  %2509 = vmatprep.subr.bf16.mxu0 0
  %2510 = vmatpush2.bf16.msra.mxu0 0
  %2511 = vmatprep.subr.bf16.mxu0 0
  %2512 = vmatpush2.bf16.msra.mxu0 0
  %2513 = vmatprep.subr.bf16.mxu0 0
  %2514 = vmatpush2.bf16.msra.mxu0 %v2471
  %2515 = vmatprep.subr.bf16.mxu0 0
  %2516 = vmatpush2.bf16.msra.mxu0 %v2470
  %2517 = vmatprep.mubr.bf16.mxu0 %v2483
  %2518 = vmatmul.mubr.bf16.gmra.mxu0 %v2393
  %v2519 = vpop.f32.mrf.mxu0
  %v2520 = vadd.f32 %v2420, %v2519
  %v2521 = vpop.f32.mrf.mxu0
  %v2522 = vpop.f32.mrf.mxu0
  %v2523 = vpop.f32.mrf.mxu0
  %2524 = vdwg.mxu0
  %v2525 = vxor.u32 %v2520, 2147483648
  %v2526 = vmul.f32 %v2525, 1.442695
  %v2527 = vpow.pop %v2526
  %v2528 = vadd.f32 %v2527, 1.0
  %v2529 = vrcp.pop %v2528
  %v2530 = vmul.f32 1.0, %v2529
  %v2531 = vtanh.pop %v2520
  %v2532 = vsel %vm681, %v2530, %v2531
  %v2533 = vmul.f32 %v2532, %v2075
  %2535 = vrot.lane.b32.xlu0 %v2532, 32
  %v2536 = vpop.permute.xlu0 %2535
  %v2538 = vmul.f32 %v2532, %v2536
  %2540 = vrot.lane.b32.xlu0 %v2538, 32
  %v2541 = vpop.permute.xlu0 %2540
  %v2543 = vadd.f32 %v2533, %v2541
  %v2544 = vtanh.pop %v2543
  %2546 = vrot.lane.b32.xlu0 %v2544, 32
  %v2547 = vpop.permute.xlu0 %2546
  %v2549 = vmul.f32 %v2532, %v2547
  %2551 = vrot.lane.b32.xlu0 %v2549, 64
  %v2552 = vpop.permute.xlu0 %2551
  %2554 = vst.msk [vmem:[#allocation3 + $0x18] sm:$0xff] %vm1077, %v2552
  %v2555 = vld [vmem:[#allocation2 + $0x80] sm:$0xff]
  %v2556 = vld [vmem:[#allocation2 + $0x88] sm:$0xff]
  %v2557 = vld [vmem:[#allocation2 + $0x90] sm:$0xff]
  %v2558 = vld [vmem:[#allocation2 + $0x98] sm:$0xff]
  %v2559 = vld [vmem:[%s2] sm:$0xff]
  %v2560 = vld [vmem:[%s2 + $0x8] sm:$0xff]
  %v2561 = vld [vmem:[%s2 + $0x10] sm:$0xff]
  %v2562 = vld [vmem:[%s2 + $0x18] sm:$0xff]
  %v2563 = vld [vmem:[%s2 + $0x20] sm:$0xff]
  %v2564 = vld [vmem:[%s2 + $0x28] sm:$0xff]
  %v2565 = vld [vmem:[%s2 + $0x30] sm:$0xff]
  %v2566 = vld [vmem:[%s2 + $0x38] sm:$0xff]
  %v2567 = vld [vmem:[%s2 + $0x40] sm:$0xff]
  %v2568 = vld [vmem:[%s2 + $0x48] sm:$0xff]
  %v2569 = vld [vmem:[%s2 + $0x50] sm:$0xff]
  %v2570 = vld [vmem:[%s2 + $0x58] sm:$0xff]
  %v2571 = vld [vmem:[%s2 + $0x60] sm:$0xff]
  %v2572 = vld [vmem:[%s2 + $0x68] sm:$0xff]
  %v2573 = vld [vmem:[%s2 + $0x70] sm:$0xff]
  %v2574 = vld [vmem:[%s2 + $0x78] sm:$0xff]
  %v2575 = vld [vmem:[%s2 + $0x80] sm:$0xff]
  %v2576 = vld [vmem:[%s2 + $0x88] sm:$0xff]
  %v2577 = vld [vmem:[%s2 + $0x90] sm:$0xff]
  %v2578 = vld [vmem:[%s2 + $0x98] sm:$0xff]
  %v2579 = vld [vmem:[%s2 + $0xa0] sm:$0xff]
  %v2580 = vld [vmem:[%s2 + $0xa8] sm:$0xff]
  %v2581 = vld [vmem:[%s2 + $0xb0] sm:$0xff]
  %v2582 = vld [vmem:[%s2 + $0xb8] sm:$0xff]
  %v2583 = vld [vmem:[%s2 + $0xc0] sm:$0xff]
  %v2584 = vld [vmem:[%s2 + $0xc8] sm:$0xff]
  %v2585 = vld [vmem:[%s2 + $0xd0] sm:$0xff]
  %v2586 = vld [vmem:[%s2 + $0xd8] sm:$0xff]
  %v2587 = vld [vmem:[%s2 + $0xe0] sm:$0xff]
  %v2588 = vld [vmem:[%s2 + $0xe8] sm:$0xff]
  %v2589 = vld [vmem:[%s2 + $0xf0] sm:$0xff]
  %v2590 = vld [vmem:[%s2 + $0xf8] sm:$0xff]
  %v2623 = vunpack.c.l.b16 %v2559
  %v2624 = vunpack.c.h.b16 %v2559
  %v2625 = vunpack.c.l.b16 %v2560
  %v2626 = vunpack.c.h.b16 %v2560
  %v2627 = vunpack.c.l.b16 %v2561
  %v2628 = vunpack.c.h.b16 %v2561
  %v2629 = vunpack.c.l.b16 %v2562
  %v2630 = vunpack.c.h.b16 %v2562
  %v2631 = vunpack.c.l.b16 %v2563
  %v2632 = vunpack.c.h.b16 %v2563
  %v2633 = vunpack.c.l.b16 %v2564
  %v2634 = vunpack.c.h.b16 %v2564
  %v2635 = vunpack.c.l.b16 %v2565
  %v2636 = vunpack.c.h.b16 %v2565
  %v2637 = vunpack.c.l.b16 %v2566
  %v2638 = vunpack.c.h.b16 %v2566
  %v2639 = vunpack.c.l.b16 %v2567
  %v2640 = vunpack.c.h.b16 %v2567
  %v2641 = vunpack.c.l.b16 %v2568
  %v2642 = vunpack.c.h.b16 %v2568
  %v2643 = vunpack.c.l.b16 %v2569
  %v2644 = vunpack.c.h.b16 %v2569
  %v2645 = vunpack.c.l.b16 %v2570
  %v2646 = vunpack.c.h.b16 %v2570
  %v2647 = vunpack.c.l.b16 %v2571
  %v2648 = vunpack.c.h.b16 %v2571
  %v2649 = vunpack.c.l.b16 %v2572
  %v2650 = vunpack.c.h.b16 %v2572
  %v2651 = vunpack.c.l.b16 %v2573
  %v2652 = vunpack.c.h.b16 %v2573
  %v2653 = vunpack.c.l.b16 %v2574
  %v2654 = vunpack.c.h.b16 %v2574
  %v2655 = vunpack.c.l.b16 %v2575
  %v2656 = vunpack.c.h.b16 %v2575
  %v2657 = vunpack.c.l.b16 %v2576
  %v2658 = vunpack.c.h.b16 %v2576
  %v2659 = vunpack.c.l.b16 %v2577
  %v2660 = vunpack.c.h.b16 %v2577
  %v2661 = vunpack.c.l.b16 %v2578
  %v2662 = vunpack.c.h.b16 %v2578
  %v2663 = vunpack.c.l.b16 %v2579
  %v2664 = vunpack.c.h.b16 %v2579
  %v2665 = vunpack.c.l.b16 %v2580
  %v2666 = vunpack.c.h.b16 %v2580
  %v2667 = vunpack.c.l.b16 %v2581
  %v2668 = vunpack.c.h.b16 %v2581
  %v2669 = vunpack.c.l.b16 %v2582
  %v2670 = vunpack.c.h.b16 %v2582
  %v2671 = vunpack.c.l.b16 %v2583
  %v2672 = vunpack.c.h.b16 %v2583
  %v2673 = vunpack.c.l.b16 %v2584
  %v2674 = vunpack.c.h.b16 %v2584
  %v2675 = vunpack.c.l.b16 %v2585
  %v2676 = vunpack.c.h.b16 %v2585
  %v2677 = vunpack.c.l.b16 %v2586
  %v2678 = vunpack.c.h.b16 %v2586
  %v2679 = vunpack.c.l.b16 %v2587
  %v2680 = vunpack.c.h.b16 %v2587
  %v2681 = vunpack.c.l.b16 %v2588
  %v2682 = vunpack.c.h.b16 %v2588
  %v2683 = vunpack.c.l.b16 %v2589
  %v2684 = vunpack.c.h.b16 %v2589
  %v2685 = vunpack.c.l.b16 %v2590
  %v2686 = vunpack.c.h.b16 %v2590
  %v2687 = vpack.c.b16 %v2627, %v2623
  %v2688 = vpack.c.b16 %v2628, %v2624
  %v2689 = vpack.c.b16 %v2629, %v2625
  %v2690 = vpack.c.b16 %v2630, %v2626
  %v2691 = vpack.c.b16 %v2635, %v2631
  %v2692 = vpack.c.b16 %v2636, %v2632
  %v2693 = vpack.c.b16 %v2637, %v2633
  %v2694 = vpack.c.b16 %v2638, %v2634
  %v2695 = vpack.c.b16 %v2643, %v2639
  %v2696 = vpack.c.b16 %v2644, %v2640
  %v2697 = vpack.c.b16 %v2645, %v2641
  %v2698 = vpack.c.b16 %v2646, %v2642
  %v2699 = vpack.c.b16 %v2651, %v2647
  %v2700 = vpack.c.b16 %v2652, %v2648
  %v2701 = vpack.c.b16 %v2653, %v2649
  %v2702 = vpack.c.b16 %v2654, %v2650
  %v2703 = vpack.c.b16 %v2659, %v2655
  %v2704 = vpack.c.b16 %v2660, %v2656
  %v2705 = vpack.c.b16 %v2661, %v2657
  %v2706 = vpack.c.b16 %v2662, %v2658
  %v2707 = vpack.c.b16 %v2667, %v2663
  %v2708 = vpack.c.b16 %v2668, %v2664
  %v2709 = vpack.c.b16 %v2669, %v2665
  %v2710 = vpack.c.b16 %v2670, %v2666
  %v2711 = vpack.c.b16 %v2675, %v2671
  %v2712 = vpack.c.b16 %v2676, %v2672
  %v2713 = vpack.c.b16 %v2677, %v2673
  %v2714 = vpack.c.b16 %v2678, %v2674
  %v2715 = vpack.c.b16 %v2683, %v2679
  %v2716 = vpack.c.b16 %v2684, %v2680
  %v2717 = vpack.c.b16 %v2685, %v2681
  %v2718 = vpack.c.b16 %v2686, %v2682
  %2751 = vmatprep.subr.bf16.mxu0 %v2716
  %2752 = vmatpush1.bf16.msra.mxu0 %v2715
  %2753 = vmatprep.subr.bf16.mxu0 %v2712
  %2754 = vmatpush1.bf16.msra.mxu0 %v2711
  %2755 = vmatprep.subr.bf16.mxu0 %v2708
  %2756 = vmatpush1.bf16.msra.mxu0 %v2707
  %2757 = vmatprep.subr.bf16.mxu0 %v2704
  %2758 = vmatpush1.bf16.msra.mxu0 %v2703
  %2759 = vmatprep.subr.bf16.mxu0 %v2700
  %2760 = vmatpush1.bf16.msra.mxu0 %v2699
  %2761 = vmatprep.subr.bf16.mxu0 %v2696
  %2762 = vmatpush1.bf16.msra.mxu0 %v2695
  %2763 = vmatprep.subr.bf16.mxu0 %v2692
  %2764 = vmatpush1.bf16.msra.mxu0 %v2691
  %2765 = vmatprep.subr.bf16.mxu0 %v2688
  %2766 = vmatpush1.bf16.msra.mxu0 %v2687
  %2767 = vmatprep.subr.bf16.mxu0 0
  %2768 = vmatpush2.bf16.msra.mxu0 0
  %2769 = vmatprep.subr.bf16.mxu0 0
  %2770 = vmatpush2.bf16.msra.mxu0 0
  %2771 = vmatprep.subr.bf16.mxu0 0
  %2772 = vmatpush2.bf16.msra.mxu0 0
  %2773 = vmatprep.subr.bf16.mxu0 0
  %2774 = vmatpush2.bf16.msra.mxu0 0
  %2775 = vmatprep.subr.bf16.mxu0 0
  %2776 = vmatpush2.bf16.msra.mxu0 0
  %2777 = vmatprep.subr.bf16.mxu0 0
  %2778 = vmatpush2.bf16.msra.mxu0 0
  %2779 = vmatprep.subr.bf16.mxu0 0
  %2780 = vmatpush2.bf16.msra.mxu0 0
  %2781 = vmatprep.subr.bf16.mxu0 0
  %2782 = vmatpush2.bf16.msra.mxu0 0
  %2783 = vmatprep.mubr.bf16.mxu0 0
  %2784 = vmatmul.mubr.bf16.gmra.mxu0 %v2393
  %v2785 = vpop.f32.mrf.mxu0
  %v2786 = vadd.f32 0.0, %v2785
  %v2787 = vpop.f32.mrf.mxu0
  %v2788 = vadd.f32 0.0, %v2787
  %v2789 = vpop.f32.mrf.mxu0
  %v2790 = vpop.f32.mrf.mxu0
  %2791 = vdwg.mxu0
  %2792 = vmatprep.subr.bf16.mxu0 %v2718
  %2793 = vmatpush1.bf16.msra.mxu0 %v2717
  %2794 = vmatprep.subr.bf16.mxu0 %v2714
  %2795 = vmatpush1.bf16.msra.mxu0 %v2713
  %2796 = vmatprep.subr.bf16.mxu0 %v2710
  %2797 = vmatpush1.bf16.msra.mxu0 %v2709
  %2798 = vmatprep.subr.bf16.mxu0 %v2706
  %2799 = vmatpush1.bf16.msra.mxu0 %v2705
  %2800 = vmatprep.subr.bf16.mxu0 %v2702
  %2801 = vmatpush1.bf16.msra.mxu0 %v2701
  %2802 = vmatprep.subr.bf16.mxu0 %v2698
  %2803 = vmatpush1.bf16.msra.mxu0 %v2697
  %2804 = vmatprep.subr.bf16.mxu0 %v2694
  %2805 = vmatpush1.bf16.msra.mxu0 %v2693
  %2806 = vmatprep.subr.bf16.mxu0 %v2690
  %2807 = vmatpush1.bf16.msra.mxu0 %v2689
  %2808 = vmatprep.subr.bf16.mxu0 0
  %2809 = vmatpush2.bf16.msra.mxu0 0
  %2810 = vmatprep.subr.bf16.mxu0 0
  %2811 = vmatpush2.bf16.msra.mxu0 0
  %2812 = vmatprep.subr.bf16.mxu0 0
  %2813 = vmatpush2.bf16.msra.mxu0 0
  %2814 = vmatprep.subr.bf16.mxu0 0
  %2815 = vmatpush2.bf16.msra.mxu0 0
  %2816 = vmatprep.subr.bf16.mxu0 0
  %2817 = vmatpush2.bf16.msra.mxu0 0
  %2818 = vmatprep.subr.bf16.mxu0 0
  %2819 = vmatpush2.bf16.msra.mxu0 0
  %2820 = vmatprep.subr.bf16.mxu0 0
  %2821 = vmatpush2.bf16.msra.mxu0 0
  %2822 = vmatprep.subr.bf16.mxu0 0
  %2823 = vmatpush2.bf16.msra.mxu0 0
  %2824 = vmatprep.mubr.bf16.mxu0 0
  %2825 = vmatmul.mubr.bf16.gmra.mxu0 %v2393
  %v2826 = vpop.f32.mrf.mxu0
  %v2827 = vadd.f32 0.0, %v2826
  %v2828 = vpop.f32.mrf.mxu0
  %v2829 = vadd.f32 0.0, %v2828
  %v2830 = vpop.f32.mrf.mxu0
  %v2831 = vpop.f32.mrf.mxu0
  %2832 = vdwg.mxu0
  %v2833 = vadd.f32 %v2555, %v2786
  %v2834 = vadd.f32 %v2556, %v2788
  %v2835 = vadd.f32 %v2557, %v2827
  %v2836 = vadd.f32 %v2558, %v2829
  %v2837 = vxor.u32 %v2833, 2147483648
  %v2838 = vxor.u32 %v2834, 2147483648
  %v2839 = vxor.u32 %v2835, 2147483648
  %v2840 = vmul.f32 %v2837, 1.442695
  %v2841 = vpow.pop %v2840
  %v2842 = vmul.f32 %v2838, 1.442695
  %v2843 = vpow.pop %v2842
  %v2844 = vmul.f32 %v2839, 1.442695
  %v2845 = vpow.pop %v2844
  %v2846 = vadd.f32 %v2841, 1.0
  %v2847 = vadd.f32 %v2843, 1.0
  %v2848 = vadd.f32 %v2845, 1.0
  %v2849 = vrcp.pop %v2846
  %v2850 = vmul.f32 1.0, %v2849
  %v2851 = vrcp.pop %v2847
  %v2852 = vmul.f32 1.0, %v2851
  %v2853 = vrcp.pop %v2848
  %v2854 = vmul.f32 1.0, %v2853
  %v2855 = vtanh.pop %v2836
  %v2856 = vmul.f32 %v2852, %v2390
  %v2857 = vmul.f32 %v2850, %v2855
  %v2858 = vadd.f32 %v2856, %v2857
  %v2859 = vtanh.pop %v2858
  %v2860 = vmul.f32 %v2854, %v2859
  %v2861 = vpack.c.bf16 %v2860, %v2860
  %v2862 = vpack.c.bf16 %v2552, %v2552
  %v2863 = vld [vmem:[%s4] sm:$0xf]
  %v2864 = vld [vmem:[%s4 + $0x4] sm:$0xf]
  %v2865 = vld [vmem:[%s4 + $0x8] sm:$0xf]
  %v2866 = vld [vmem:[%s4 + $0xc] sm:$0xf]
  %v2867 = vld [vmem:[%s4 + $0x10] sm:$0xf]
  %v2868 = vld [vmem:[%s4 + $0x14] sm:$0xf]
  %v2869 = vld [vmem:[%s4 + $0x18] sm:$0xf]
  %v2870 = vld [vmem:[%s4 + $0x1c] sm:$0xf]
  %v2871 = vld [vmem:[%s4 + $0x20] sm:$0xf]
  %v2872 = vld [vmem:[%s4 + $0x24] sm:$0xf]
  %v2873 = vld [vmem:[%s4 + $0x28] sm:$0xf]
  %v2874 = vld [vmem:[%s4 + $0x2c] sm:$0xf]
  %v2875 = vld [vmem:[%s4 + $0x30] sm:$0xf]
  %v2876 = vld [vmem:[%s4 + $0x34] sm:$0xf]
  %v2877 = vld [vmem:[%s4 + $0x38] sm:$0xf]
  %v2878 = vld [vmem:[%s4 + $0x3c] sm:$0xf]
  %v2879 = vld [vmem:[%s4 + $0x40] sm:$0xf]
  %v2880 = vld [vmem:[%s4 + $0x44] sm:$0xf]
  %v2881 = vld [vmem:[%s4 + $0x48] sm:$0xf]
  %v2882 = vld [vmem:[%s4 + $0x4c] sm:$0xf]
  %v2883 = vld [vmem:[%s5] sm:$0x1]
  %v2885 = vlaneseq
  %v2886 = vshrl.u32 %v2885, 7
  %v2887 = vsub.s32 0, %v2886
  %v2888 = vrot.slane %v2883, %v2887
  %v2910 = vunpack.c.l.b16 %v2863
  %v2911 = vunpack.c.l.b16 %v2864
  %v2912 = vunpack.c.l.b16 %v2865
  %v2913 = vunpack.c.l.b16 %v2866
  %v2914 = vunpack.c.l.b16 %v2867
  %v2915 = vunpack.c.l.b16 %v2868
  %v2916 = vunpack.c.l.b16 %v2869
  %v2917 = vunpack.c.l.b16 %v2870
  %v2918 = vunpack.c.l.b16 %v2871
  %v2919 = vunpack.c.l.b16 %v2872
  %v2920 = vunpack.c.l.b16 %v2873
  %v2921 = vunpack.c.l.b16 %v2874
  %v2922 = vunpack.c.l.b16 %v2875
  %v2923 = vunpack.c.l.b16 %v2876
  %v2924 = vunpack.c.l.b16 %v2877
  %v2925 = vunpack.c.l.b16 %v2878
  %v2926 = vunpack.c.l.b16 %v2879
  %v2927 = vunpack.c.l.b16 %v2880
  %v2928 = vunpack.c.l.b16 %v2881
  %v2929 = vunpack.c.l.b16 %v2882
  %v2930 = vpack.c.b16 %v2911, %v2910
  %v2931 = vpack.c.b16 %v2913, %v2912
  %v2932 = vpack.c.b16 %v2915, %v2914
  %v2933 = vpack.c.b16 %v2917, %v2916
  %v2934 = vpack.c.b16 %v2919, %v2918
  %v2935 = vpack.c.b16 %v2921, %v2920
  %v2936 = vpack.c.b16 %v2923, %v2922
  %v2937 = vpack.c.b16 %v2925, %v2924
  %v2938 = vpack.c.b16 %v2927, %v2926
  %v2939 = vpack.c.b16 %v2929, %v2928
  %v2951 = vsel %vm1077, %v2862, 0
  %2953 = vmatprep.subr.bf16.mxu0 0
  %2954 = vmatpush1.bf16.msra.mxu0 %v2937
  %2955 = vmatprep.subr.bf16.mxu0 0
  %2956 = vmatpush1.bf16.msra.mxu0 %v2936
  %2957 = vmatprep.subr.bf16.mxu0 0
  %2958 = vmatpush1.bf16.msra.mxu0 %v2935
  %2959 = vmatprep.subr.bf16.mxu0 0
  %2960 = vmatpush1.bf16.msra.mxu0 %v2934
  %2961 = vmatprep.subr.bf16.mxu0 0
  %2962 = vmatpush1.bf16.msra.mxu0 %v2933
  %2963 = vmatprep.subr.bf16.mxu0 0
  %2964 = vmatpush1.bf16.msra.mxu0 %v2932
  %2965 = vmatprep.subr.bf16.mxu0 0
  %2966 = vmatpush1.bf16.msra.mxu0 %v2931
  %2967 = vmatprep.subr.bf16.mxu0 0
  %2968 = vmatpush1.bf16.msra.mxu0 %v2930
  %2969 = vmatprep.subr.bf16.mxu0 0
  %2970 = vmatpush2.bf16.msra.mxu0 0
  %2971 = vmatprep.subr.bf16.mxu0 0
  %2972 = vmatpush2.bf16.msra.mxu0 0
  %2973 = vmatprep.subr.bf16.mxu0 0
  %2974 = vmatpush2.bf16.msra.mxu0 0
  %2975 = vmatprep.subr.bf16.mxu0 0
  %2976 = vmatpush2.bf16.msra.mxu0 0
  %2977 = vmatprep.subr.bf16.mxu0 0
  %2978 = vmatpush2.bf16.msra.mxu0 0
  %2979 = vmatprep.subr.bf16.mxu0 0
  %2980 = vmatpush2.bf16.msra.mxu0 0
  %2981 = vmatprep.subr.bf16.mxu0 0
  %2982 = vmatpush2.bf16.msra.mxu0 %v2939
  %2983 = vmatprep.subr.bf16.mxu0 0
  %2984 = vmatpush2.bf16.msra.mxu0 %v2938
  %2985 = vmatprep.mubr.bf16.mxu0 %v2951
  %2986 = vmatmul.mubr.bf16.gmra.mxu0 %v2861
  %v2987 = vpop.f32.mrf.mxu0
  %v2988 = vadd.f32 %v2888, %v2987
  %v2989 = vpop.f32.mrf.mxu0
  %v2990 = vpop.f32.mrf.mxu0
  %v2991 = vpop.f32.mrf.mxu0
  %2992 = vdwg.mxu0
  %v2993 = vxor.u32 %v2988, 2147483648
  %v2994 = vmul.f32 %v2993, 1.442695
  %v2995 = vpow.pop %v2994
  %v2996 = vadd.f32 %v2995, 1.0
  %v2997 = vrcp.pop %v2996
  %v2998 = vmul.f32 1.0, %v2997
  %v2999 = vtanh.pop %v2988
  %v3000 = vsel %vm681, %v2998, %v2999
  %v3001 = vmul.f32 %v3000, %v2543
  %3003 = vrot.lane.b32.xlu0 %v3000, 32
  %v3004 = vpop.permute.xlu0 %3003
  %v3006 = vmul.f32 %v3000, %v3004
  %3008 = vrot.lane.b32.xlu0 %v3006, 32
  %v3009 = vpop.permute.xlu0 %3008
  %v3011 = vadd.f32 %v3001, %v3009
  %v3012 = vtanh.pop %v3011
  %3014 = vrot.lane.b32.xlu0 %v3012, 32
  %v3015 = vpop.permute.xlu0 %3014
  %v3017 = vmul.f32 %v3000, %v3015
  %3019 = vrot.lane.b32.xlu0 %v3017, 64
  %v3020 = vpop.permute.xlu0 %3019
  %3022 = vst.msk [vmem:[#allocation3 + $0x20] sm:$0xff] %vm1077, %v3020
  %v3023 = vld [vmem:[#allocation2 + $0xa0] sm:$0xff]
  %v3024 = vld [vmem:[#allocation2 + $0xa8] sm:$0xff]
  %v3025 = vld [vmem:[#allocation2 + $0xb0] sm:$0xff]
  %v3026 = vld [vmem:[#allocation2 + $0xb8] sm:$0xff]
  %v3027 = vld [vmem:[%s2] sm:$0xff]
  %v3028 = vld [vmem:[%s2 + $0x8] sm:$0xff]
  %v3029 = vld [vmem:[%s2 + $0x10] sm:$0xff]
  %v3030 = vld [vmem:[%s2 + $0x18] sm:$0xff]
  %v3031 = vld [vmem:[%s2 + $0x20] sm:$0xff]
  %v3032 = vld [vmem:[%s2 + $0x28] sm:$0xff]
  %v3033 = vld [vmem:[%s2 + $0x30] sm:$0xff]
  %v3034 = vld [vmem:[%s2 + $0x38] sm:$0xff]
  %v3035 = vld [vmem:[%s2 + $0x40] sm:$0xff]
  %v3036 = vld [vmem:[%s2 + $0x48] sm:$0xff]
  %v3037 = vld [vmem:[%s2 + $0x50] sm:$0xff]
  %v3038 = vld [vmem:[%s2 + $0x58] sm:$0xff]
  %v3039 = vld [vmem:[%s2 + $0x60] sm:$0xff]
  %v3040 = vld [vmem:[%s2 + $0x68] sm:$0xff]
  %v3041 = vld [vmem:[%s2 + $0x70] sm:$0xff]
  %v3042 = vld [vmem:[%s2 + $0x78] sm:$0xff]
  %v3043 = vld [vmem:[%s2 + $0x80] sm:$0xff]
  %v3044 = vld [vmem:[%s2 + $0x88] sm:$0xff]
  %v3045 = vld [vmem:[%s2 + $0x90] sm:$0xff]
  %v3046 = vld [vmem:[%s2 + $0x98] sm:$0xff]
  %v3047 = vld [vmem:[%s2 + $0xa0] sm:$0xff]
  %v3048 = vld [vmem:[%s2 + $0xa8] sm:$0xff]
  %v3049 = vld [vmem:[%s2 + $0xb0] sm:$0xff]
  %v3050 = vld [vmem:[%s2 + $0xb8] sm:$0xff]
  %v3051 = vld [vmem:[%s2 + $0xc0] sm:$0xff]
  %v3052 = vld [vmem:[%s2 + $0xc8] sm:$0xff]
  %v3053 = vld [vmem:[%s2 + $0xd0] sm:$0xff]
  %v3054 = vld [vmem:[%s2 + $0xd8] sm:$0xff]
  %v3055 = vld [vmem:[%s2 + $0xe0] sm:$0xff]
  %v3056 = vld [vmem:[%s2 + $0xe8] sm:$0xff]
  %v3057 = vld [vmem:[%s2 + $0xf0] sm:$0xff]
  %v3058 = vld [vmem:[%s2 + $0xf8] sm:$0xff]
  %v3091 = vunpack.c.l.b16 %v3027
  %v3092 = vunpack.c.h.b16 %v3027
  %v3093 = vunpack.c.l.b16 %v3028
  %v3094 = vunpack.c.h.b16 %v3028
  %v3095 = vunpack.c.l.b16 %v3029
  %v3096 = vunpack.c.h.b16 %v3029
  %v3097 = vunpack.c.l.b16 %v3030
  %v3098 = vunpack.c.h.b16 %v3030
  %v3099 = vunpack.c.l.b16 %v3031
  %v3100 = vunpack.c.h.b16 %v3031
  %v3101 = vunpack.c.l.b16 %v3032
  %v3102 = vunpack.c.h.b16 %v3032
  %v3103 = vunpack.c.l.b16 %v3033
  %v3104 = vunpack.c.h.b16 %v3033
  %v3105 = vunpack.c.l.b16 %v3034
  %v3106 = vunpack.c.h.b16 %v3034
  %v3107 = vunpack.c.l.b16 %v3035
  %v3108 = vunpack.c.h.b16 %v3035
  %v3109 = vunpack.c.l.b16 %v3036
  %v3110 = vunpack.c.h.b16 %v3036
  %v3111 = vunpack.c.l.b16 %v3037
  %v3112 = vunpack.c.h.b16 %v3037
  %v3113 = vunpack.c.l.b16 %v3038
  %v3114 = vunpack.c.h.b16 %v3038
  %v3115 = vunpack.c.l.b16 %v3039
  %v3116 = vunpack.c.h.b16 %v3039
  %v3117 = vunpack.c.l.b16 %v3040
  %v3118 = vunpack.c.h.b16 %v3040
  %v3119 = vunpack.c.l.b16 %v3041
  %v3120 = vunpack.c.h.b16 %v3041
  %v3121 = vunpack.c.l.b16 %v3042
  %v3122 = vunpack.c.h.b16 %v3042
  %v3123 = vunpack.c.l.b16 %v3043
  %v3124 = vunpack.c.h.b16 %v3043
  %v3125 = vunpack.c.l.b16 %v3044
  %v3126 = vunpack.c.h.b16 %v3044
  %v3127 = vunpack.c.l.b16 %v3045
  %v3128 = vunpack.c.h.b16 %v3045
  %v3129 = vunpack.c.l.b16 %v3046
  %v3130 = vunpack.c.h.b16 %v3046
  %v3131 = vunpack.c.l.b16 %v3047
  %v3132 = vunpack.c.h.b16 %v3047
  %v3133 = vunpack.c.l.b16 %v3048
  %v3134 = vunpack.c.h.b16 %v3048
  %v3135 = vunpack.c.l.b16 %v3049
  %v3136 = vunpack.c.h.b16 %v3049
  %v3137 = vunpack.c.l.b16 %v3050
  %v3138 = vunpack.c.h.b16 %v3050
  %v3139 = vunpack.c.l.b16 %v3051
  %v3140 = vunpack.c.h.b16 %v3051
  %v3141 = vunpack.c.l.b16 %v3052
  %v3142 = vunpack.c.h.b16 %v3052
  %v3143 = vunpack.c.l.b16 %v3053
  %v3144 = vunpack.c.h.b16 %v3053
  %v3145 = vunpack.c.l.b16 %v3054
  %v3146 = vunpack.c.h.b16 %v3054
  %v3147 = vunpack.c.l.b16 %v3055
  %v3148 = vunpack.c.h.b16 %v3055
  %v3149 = vunpack.c.l.b16 %v3056
  %v3150 = vunpack.c.h.b16 %v3056
  %v3151 = vunpack.c.l.b16 %v3057
  %v3152 = vunpack.c.h.b16 %v3057
  %v3153 = vunpack.c.l.b16 %v3058
  %v3154 = vunpack.c.h.b16 %v3058
  %v3155 = vpack.c.b16 %v3095, %v3091
  %v3156 = vpack.c.b16 %v3096, %v3092
  %v3157 = vpack.c.b16 %v3097, %v3093
  %v3158 = vpack.c.b16 %v3098, %v3094
  %v3159 = vpack.c.b16 %v3103, %v3099
  %v3160 = vpack.c.b16 %v3104, %v3100
  %v3161 = vpack.c.b16 %v3105, %v3101
  %v3162 = vpack.c.b16 %v3106, %v3102
  %v3163 = vpack.c.b16 %v3111, %v3107
  %v3164 = vpack.c.b16 %v3112, %v3108
  %v3165 = vpack.c.b16 %v3113, %v3109
  %v3166 = vpack.c.b16 %v3114, %v3110
  %v3167 = vpack.c.b16 %v3119, %v3115
  %v3168 = vpack.c.b16 %v3120, %v3116
  %v3169 = vpack.c.b16 %v3121, %v3117
  %v3170 = vpack.c.b16 %v3122, %v3118
  %v3171 = vpack.c.b16 %v3127, %v3123
  %v3172 = vpack.c.b16 %v3128, %v3124
  %v3173 = vpack.c.b16 %v3129, %v3125
  %v3174 = vpack.c.b16 %v3130, %v3126
  %v3175 = vpack.c.b16 %v3135, %v3131
  %v3176 = vpack.c.b16 %v3136, %v3132
  %v3177 = vpack.c.b16 %v3137, %v3133
  %v3178 = vpack.c.b16 %v3138, %v3134
  %v3179 = vpack.c.b16 %v3143, %v3139
  %v3180 = vpack.c.b16 %v3144, %v3140
  %v3181 = vpack.c.b16 %v3145, %v3141
  %v3182 = vpack.c.b16 %v3146, %v3142
  %v3183 = vpack.c.b16 %v3151, %v3147
  %v3184 = vpack.c.b16 %v3152, %v3148
  %v3185 = vpack.c.b16 %v3153, %v3149
  %v3186 = vpack.c.b16 %v3154, %v3150
  %3219 = vmatprep.subr.bf16.mxu0 %v3184
  %3220 = vmatpush1.bf16.msra.mxu0 %v3183
  %3221 = vmatprep.subr.bf16.mxu0 %v3180
  %3222 = vmatpush1.bf16.msra.mxu0 %v3179
  %3223 = vmatprep.subr.bf16.mxu0 %v3176
  %3224 = vmatpush1.bf16.msra.mxu0 %v3175
  %3225 = vmatprep.subr.bf16.mxu0 %v3172
  %3226 = vmatpush1.bf16.msra.mxu0 %v3171
  %3227 = vmatprep.subr.bf16.mxu0 %v3168
  %3228 = vmatpush1.bf16.msra.mxu0 %v3167
  %3229 = vmatprep.subr.bf16.mxu0 %v3164
  %3230 = vmatpush1.bf16.msra.mxu0 %v3163
  %3231 = vmatprep.subr.bf16.mxu0 %v3160
  %3232 = vmatpush1.bf16.msra.mxu0 %v3159
  %3233 = vmatprep.subr.bf16.mxu0 %v3156
  %3234 = vmatpush1.bf16.msra.mxu0 %v3155
  %3235 = vmatprep.subr.bf16.mxu0 0
  %3236 = vmatpush2.bf16.msra.mxu0 0
  %3237 = vmatprep.subr.bf16.mxu0 0
  %3238 = vmatpush2.bf16.msra.mxu0 0
  %3239 = vmatprep.subr.bf16.mxu0 0
  %3240 = vmatpush2.bf16.msra.mxu0 0
  %3241 = vmatprep.subr.bf16.mxu0 0
  %3242 = vmatpush2.bf16.msra.mxu0 0
  %3243 = vmatprep.subr.bf16.mxu0 0
  %3244 = vmatpush2.bf16.msra.mxu0 0
  %3245 = vmatprep.subr.bf16.mxu0 0
  %3246 = vmatpush2.bf16.msra.mxu0 0
  %3247 = vmatprep.subr.bf16.mxu0 0
  %3248 = vmatpush2.bf16.msra.mxu0 0
  %3249 = vmatprep.subr.bf16.mxu0 0
  %3250 = vmatpush2.bf16.msra.mxu0 0
  %3251 = vmatprep.mubr.bf16.mxu0 0
  %3252 = vmatmul.mubr.bf16.gmra.mxu0 %v2861
  %v3253 = vpop.f32.mrf.mxu0
  %v3254 = vadd.f32 0.0, %v3253
  %v3255 = vpop.f32.mrf.mxu0
  %v3256 = vadd.f32 0.0, %v3255
  %v3257 = vpop.f32.mrf.mxu0
  %v3258 = vpop.f32.mrf.mxu0
  %3259 = vdwg.mxu0
  %3260 = vmatprep.subr.bf16.mxu0 %v3186
  %3261 = vmatpush1.bf16.msra.mxu0 %v3185
  %3262 = vmatprep.subr.bf16.mxu0 %v3182
  %3263 = vmatpush1.bf16.msra.mxu0 %v3181
  %3264 = vmatprep.subr.bf16.mxu0 %v3178
  %3265 = vmatpush1.bf16.msra.mxu0 %v3177
  %3266 = vmatprep.subr.bf16.mxu0 %v3174
  %3267 = vmatpush1.bf16.msra.mxu0 %v3173
  %3268 = vmatprep.subr.bf16.mxu0 %v3170
  %3269 = vmatpush1.bf16.msra.mxu0 %v3169
  %3270 = vmatprep.subr.bf16.mxu0 %v3166
  %3271 = vmatpush1.bf16.msra.mxu0 %v3165
  %3272 = vmatprep.subr.bf16.mxu0 %v3162
  %3273 = vmatpush1.bf16.msra.mxu0 %v3161
  %3274 = vmatprep.subr.bf16.mxu0 %v3158
  %3275 = vmatpush1.bf16.msra.mxu0 %v3157
  %3276 = vmatprep.subr.bf16.mxu0 0
  %3277 = vmatpush2.bf16.msra.mxu0 0
  %3278 = vmatprep.subr.bf16.mxu0 0
  %3279 = vmatpush2.bf16.msra.mxu0 0
  %3280 = vmatprep.subr.bf16.mxu0 0
  %3281 = vmatpush2.bf16.msra.mxu0 0
  %3282 = vmatprep.subr.bf16.mxu0 0
  %3283 = vmatpush2.bf16.msra.mxu0 0
  %3284 = vmatprep.subr.bf16.mxu0 0
  %3285 = vmatpush2.bf16.msra.mxu0 0
  %3286 = vmatprep.subr.bf16.mxu0 0
  %3287 = vmatpush2.bf16.msra.mxu0 0
  %3288 = vmatprep.subr.bf16.mxu0 0
  %3289 = vmatpush2.bf16.msra.mxu0 0
  %3290 = vmatprep.subr.bf16.mxu0 0
  %3291 = vmatpush2.bf16.msra.mxu0 0
  %3292 = vmatprep.mubr.bf16.mxu0 0
  %3293 = vmatmul.mubr.bf16.gmra.mxu0 %v2861
  %v3294 = vpop.f32.mrf.mxu0
  %v3295 = vadd.f32 0.0, %v3294
  %v3296 = vpop.f32.mrf.mxu0
  %v3297 = vadd.f32 0.0, %v3296
  %v3298 = vpop.f32.mrf.mxu0
  %v3299 = vpop.f32.mrf.mxu0
  %3300 = vdwg.mxu0
  %v3301 = vadd.f32 %v3023, %v3254
  %v3302 = vadd.f32 %v3024, %v3256
  %v3303 = vadd.f32 %v3025, %v3295
  %v3304 = vadd.f32 %v3026, %v3297
  %v3305 = vxor.u32 %v3301, 2147483648
  %v3306 = vxor.u32 %v3302, 2147483648
  %v3307 = vxor.u32 %v3303, 2147483648
  %v3308 = vmul.f32 %v3305, 1.442695
  %v3309 = vpow.pop %v3308
  %v3310 = vmul.f32 %v3306, 1.442695
  %v3311 = vpow.pop %v3310
  %v3312 = vmul.f32 %v3307, 1.442695
  %v3313 = vpow.pop %v3312
  %v3314 = vadd.f32 %v3309, 1.0
  %v3315 = vadd.f32 %v3311, 1.0
  %v3316 = vadd.f32 %v3313, 1.0
  %v3317 = vrcp.pop %v3314
  %v3318 = vmul.f32 1.0, %v3317
  %v3319 = vrcp.pop %v3315
  %v3320 = vmul.f32 1.0, %v3319
  %v3321 = vrcp.pop %v3316
  %v3322 = vmul.f32 1.0, %v3321
  %v3323 = vtanh.pop %v3304
  %v3324 = vmul.f32 %v3320, %v2858
  %v3325 = vmul.f32 %v3318, %v3323
  %v3326 = vadd.f32 %v3324, %v3325
  %v3327 = vtanh.pop %v3326
  %v3328 = vmul.f32 %v3322, %v3327
  %v3329 = vpack.c.bf16 %v3328, %v3328
  %v3330 = vpack.c.bf16 %v3020, %v3020
  %v3331 = vld [vmem:[%s4] sm:$0xf]
  %v3332 = vld [vmem:[%s4 + $0x4] sm:$0xf]
  %v3333 = vld [vmem:[%s4 + $0x8] sm:$0xf]
  %v3334 = vld [vmem:[%s4 + $0xc] sm:$0xf]
  %v3335 = vld [vmem:[%s4 + $0x10] sm:$0xf]
  %v3336 = vld [vmem:[%s4 + $0x14] sm:$0xf]
  %v3337 = vld [vmem:[%s4 + $0x18] sm:$0xf]
  %v3338 = vld [vmem:[%s4 + $0x1c] sm:$0xf]
  %v3339 = vld [vmem:[%s4 + $0x20] sm:$0xf]
  %v3340 = vld [vmem:[%s4 + $0x24] sm:$0xf]
  %v3341 = vld [vmem:[%s4 + $0x28] sm:$0xf]
  %v3342 = vld [vmem:[%s4 + $0x2c] sm:$0xf]
  %v3343 = vld [vmem:[%s4 + $0x30] sm:$0xf]
  %v3344 = vld [vmem:[%s4 + $0x34] sm:$0xf]
  %v3345 = vld [vmem:[%s4 + $0x38] sm:$0xf]
  %v3346 = vld [vmem:[%s4 + $0x3c] sm:$0xf]
  %v3347 = vld [vmem:[%s4 + $0x40] sm:$0xf]
  %v3348 = vld [vmem:[%s4 + $0x44] sm:$0xf]
  %v3349 = vld [vmem:[%s4 + $0x48] sm:$0xf]
  %v3350 = vld [vmem:[%s4 + $0x4c] sm:$0xf]
  %v3351 = vld [vmem:[%s5] sm:$0x1]
  %v3353 = vlaneseq
  %v3354 = vshrl.u32 %v3353, 7
  %v3355 = vsub.s32 0, %v3354
  %v3356 = vrot.slane %v3351, %v3355
  %v3378 = vunpack.c.l.b16 %v3331
  %v3379 = vunpack.c.l.b16 %v3332
  %v3380 = vunpack.c.l.b16 %v3333
  %v3381 = vunpack.c.l.b16 %v3334
  %v3382 = vunpack.c.l.b16 %v3335
  %v3383 = vunpack.c.l.b16 %v3336
  %v3384 = vunpack.c.l.b16 %v3337
  %v3385 = vunpack.c.l.b16 %v3338
  %v3386 = vunpack.c.l.b16 %v3339
  %v3387 = vunpack.c.l.b16 %v3340
  %v3388 = vunpack.c.l.b16 %v3341
  %v3389 = vunpack.c.l.b16 %v3342
  %v3390 = vunpack.c.l.b16 %v3343
  %v3391 = vunpack.c.l.b16 %v3344
  %v3392 = vunpack.c.l.b16 %v3345
  %v3393 = vunpack.c.l.b16 %v3346
  %v3394 = vunpack.c.l.b16 %v3347
  %v3395 = vunpack.c.l.b16 %v3348
  %v3396 = vunpack.c.l.b16 %v3349
  %v3397 = vunpack.c.l.b16 %v3350
  %v3398 = vpack.c.b16 %v3379, %v3378
  %v3399 = vpack.c.b16 %v3381, %v3380
  %v3400 = vpack.c.b16 %v3383, %v3382
  %v3401 = vpack.c.b16 %v3385, %v3384
  %v3402 = vpack.c.b16 %v3387, %v3386
  %v3403 = vpack.c.b16 %v3389, %v3388
  %v3404 = vpack.c.b16 %v3391, %v3390
  %v3405 = vpack.c.b16 %v3393, %v3392
  %v3406 = vpack.c.b16 %v3395, %v3394
  %v3407 = vpack.c.b16 %v3397, %v3396
  %v3419 = vsel %vm1077, %v3330, 0
  %3421 = vmatprep.subr.bf16.mxu0 0
  %3422 = vmatpush1.bf16.msra.mxu0 %v3405
  %3423 = vmatprep.subr.bf16.mxu0 0
  %3424 = vmatpush1.bf16.msra.mxu0 %v3404
  %3425 = vmatprep.subr.bf16.mxu0 0
  %3426 = vmatpush1.bf16.msra.mxu0 %v3403
  %3427 = vmatprep.subr.bf16.mxu0 0
  %3428 = vmatpush1.bf16.msra.mxu0 %v3402
  %3429 = vmatprep.subr.bf16.mxu0 0
  %3430 = vmatpush1.bf16.msra.mxu0 %v3401
  %3431 = vmatprep.subr.bf16.mxu0 0
  %3432 = vmatpush1.bf16.msra.mxu0 %v3400
  %3433 = vmatprep.subr.bf16.mxu0 0
  %3434 = vmatpush1.bf16.msra.mxu0 %v3399
  %3435 = vmatprep.subr.bf16.mxu0 0
  %3436 = vmatpush1.bf16.msra.mxu0 %v3398
  %3437 = vmatprep.subr.bf16.mxu0 0
  %3438 = vmatpush2.bf16.msra.mxu0 0
  %3439 = vmatprep.subr.bf16.mxu0 0
  %3440 = vmatpush2.bf16.msra.mxu0 0
  %3441 = vmatprep.subr.bf16.mxu0 0
  %3442 = vmatpush2.bf16.msra.mxu0 0
  %3443 = vmatprep.subr.bf16.mxu0 0
  %3444 = vmatpush2.bf16.msra.mxu0 0
  %3445 = vmatprep.subr.bf16.mxu0 0
  %3446 = vmatpush2.bf16.msra.mxu0 0
  %3447 = vmatprep.subr.bf16.mxu0 0
  %3448 = vmatpush2.bf16.msra.mxu0 0
  %3449 = vmatprep.subr.bf16.mxu0 0
  %3450 = vmatpush2.bf16.msra.mxu0 %v3407
  %3451 = vmatprep.subr.bf16.mxu0 0
  %3452 = vmatpush2.bf16.msra.mxu0 %v3406
  %3453 = vmatprep.mubr.bf16.mxu0 %v3419
  %3454 = vmatmul.mubr.bf16.gmra.mxu0 %v3329
  %v3455 = vpop.f32.mrf.mxu0
  %v3456 = vadd.f32 %v3356, %v3455
  %v3457 = vpop.f32.mrf.mxu0
  %v3458 = vpop.f32.mrf.mxu0
  %v3459 = vpop.f32.mrf.mxu0
  %3460 = vdwg.mxu0
  %v3461 = vxor.u32 %v3456, 2147483648
  %v3462 = vmul.f32 %v3461, 1.442695
  %v3463 = vpow.pop %v3462
  %v3464 = vadd.f32 %v3463, 1.0
  %v3465 = vrcp.pop %v3464
  %v3466 = vmul.f32 1.0, %v3465
  %v3467 = vtanh.pop %v3456
  %v3468 = vsel %vm681, %v3466, %v3467
  %v3469 = vmul.f32 %v3468, %v3011
  %3471 = vrot.lane.b32.xlu0 %v3468, 32
  %v3472 = vpop.permute.xlu0 %3471
  %v3474 = vmul.f32 %v3468, %v3472
  %3476 = vrot.lane.b32.xlu0 %v3474, 32
  %v3477 = vpop.permute.xlu0 %3476
  %v3479 = vadd.f32 %v3469, %v3477
  %v3480 = vtanh.pop %v3479
  %3482 = vrot.lane.b32.xlu0 %v3480, 32
  %v3483 = vpop.permute.xlu0 %3482
  %v3485 = vmul.f32 %v3468, %v3483
  %3487 = vrot.lane.b32.xlu0 %v3485, 64
  %v3488 = vpop.permute.xlu0 %3487
  %3490 = vst.msk [vmem:[#allocation3 + $0x28] sm:$0xff] %vm1077, %v3488
  %v3491 = vld [vmem:[#allocation2 + $0xc0] sm:$0xff]
  %v3492 = vld [vmem:[#allocation2 + $0xc8] sm:$0xff]
  %v3493 = vld [vmem:[#allocation2 + $0xd0] sm:$0xff]
  %v3494 = vld [vmem:[#allocation2 + $0xd8] sm:$0xff]
  %v3495 = vld [vmem:[%s2] sm:$0xff]
  %v3496 = vld [vmem:[%s2 + $0x8] sm:$0xff]
  %v3497 = vld [vmem:[%s2 + $0x10] sm:$0xff]
  %v3498 = vld [vmem:[%s2 + $0x18] sm:$0xff]
  %v3499 = vld [vmem:[%s2 + $0x20] sm:$0xff]
  %v3500 = vld [vmem:[%s2 + $0x28] sm:$0xff]
  %v3501 = vld [vmem:[%s2 + $0x30] sm:$0xff]
  %v3502 = vld [vmem:[%s2 + $0x38] sm:$0xff]
  %v3503 = vld [vmem:[%s2 + $0x40] sm:$0xff]
  %v3504 = vld [vmem:[%s2 + $0x48] sm:$0xff]
  %v3505 = vld [vmem:[%s2 + $0x50] sm:$0xff]
  %v3506 = vld [vmem:[%s2 + $0x58] sm:$0xff]
  %v3507 = vld [vmem:[%s2 + $0x60] sm:$0xff]
  %v3508 = vld [vmem:[%s2 + $0x68] sm:$0xff]
  %v3509 = vld [vmem:[%s2 + $0x70] sm:$0xff]
  %v3510 = vld [vmem:[%s2 + $0x78] sm:$0xff]
  %v3511 = vld [vmem:[%s2 + $0x80] sm:$0xff]
  %v3512 = vld [vmem:[%s2 + $0x88] sm:$0xff]
  %v3513 = vld [vmem:[%s2 + $0x90] sm:$0xff]
  %v3514 = vld [vmem:[%s2 + $0x98] sm:$0xff]
  %v3515 = vld [vmem:[%s2 + $0xa0] sm:$0xff]
  %v3516 = vld [vmem:[%s2 + $0xa8] sm:$0xff]
  %v3517 = vld [vmem:[%s2 + $0xb0] sm:$0xff]
  %v3518 = vld [vmem:[%s2 + $0xb8] sm:$0xff]
  %v3519 = vld [vmem:[%s2 + $0xc0] sm:$0xff]
  %v3520 = vld [vmem:[%s2 + $0xc8] sm:$0xff]
  %v3521 = vld [vmem:[%s2 + $0xd0] sm:$0xff]
  %v3522 = vld [vmem:[%s2 + $0xd8] sm:$0xff]
  %v3523 = vld [vmem:[%s2 + $0xe0] sm:$0xff]
  %v3524 = vld [vmem:[%s2 + $0xe8] sm:$0xff]
  %v3525 = vld [vmem:[%s2 + $0xf0] sm:$0xff]
  %v3526 = vld [vmem:[%s2 + $0xf8] sm:$0xff]
  %v3559 = vunpack.c.l.b16 %v3495
  %v3560 = vunpack.c.h.b16 %v3495
  %v3561 = vunpack.c.l.b16 %v3496
  %v3562 = vunpack.c.h.b16 %v3496
  %v3563 = vunpack.c.l.b16 %v3497
  %v3564 = vunpack.c.h.b16 %v3497
  %v3565 = vunpack.c.l.b16 %v3498
  %v3566 = vunpack.c.h.b16 %v3498
  %v3567 = vunpack.c.l.b16 %v3499
  %v3568 = vunpack.c.h.b16 %v3499
  %v3569 = vunpack.c.l.b16 %v3500
  %v3570 = vunpack.c.h.b16 %v3500
  %v3571 = vunpack.c.l.b16 %v3501
  %v3572 = vunpack.c.h.b16 %v3501
  %v3573 = vunpack.c.l.b16 %v3502
  %v3574 = vunpack.c.h.b16 %v3502
  %v3575 = vunpack.c.l.b16 %v3503
  %v3576 = vunpack.c.h.b16 %v3503
  %v3577 = vunpack.c.l.b16 %v3504
  %v3578 = vunpack.c.h.b16 %v3504
  %v3579 = vunpack.c.l.b16 %v3505
  %v3580 = vunpack.c.h.b16 %v3505
  %v3581 = vunpack.c.l.b16 %v3506
  %v3582 = vunpack.c.h.b16 %v3506
  %v3583 = vunpack.c.l.b16 %v3507
  %v3584 = vunpack.c.h.b16 %v3507
  %v3585 = vunpack.c.l.b16 %v3508
  %v3586 = vunpack.c.h.b16 %v3508
  %v3587 = vunpack.c.l.b16 %v3509
  %v3588 = vunpack.c.h.b16 %v3509
  %v3589 = vunpack.c.l.b16 %v3510
  %v3590 = vunpack.c.h.b16 %v3510
  %v3591 = vunpack.c.l.b16 %v3511
  %v3592 = vunpack.c.h.b16 %v3511
  %v3593 = vunpack.c.l.b16 %v3512
  %v3594 = vunpack.c.h.b16 %v3512
  %v3595 = vunpack.c.l.b16 %v3513
  %v3596 = vunpack.c.h.b16 %v3513
  %v3597 = vunpack.c.l.b16 %v3514
  %v3598 = vunpack.c.h.b16 %v3514
  %v3599 = vunpack.c.l.b16 %v3515
  %v3600 = vunpack.c.h.b16 %v3515
  %v3601 = vunpack.c.l.b16 %v3516
  %v3602 = vunpack.c.h.b16 %v3516
  %v3603 = vunpack.c.l.b16 %v3517
  %v3604 = vunpack.c.h.b16 %v3517
  %v3605 = vunpack.c.l.b16 %v3518
  %v3606 = vunpack.c.h.b16 %v3518
  %v3607 = vunpack.c.l.b16 %v3519
  %v3608 = vunpack.c.h.b16 %v3519
  %v3609 = vunpack.c.l.b16 %v3520
  %v3610 = vunpack.c.h.b16 %v3520
  %v3611 = vunpack.c.l.b16 %v3521
  %v3612 = vunpack.c.h.b16 %v3521
  %v3613 = vunpack.c.l.b16 %v3522
  %v3614 = vunpack.c.h.b16 %v3522
  %v3615 = vunpack.c.l.b16 %v3523
  %v3616 = vunpack.c.h.b16 %v3523
  %v3617 = vunpack.c.l.b16 %v3524
  %v3618 = vunpack.c.h.b16 %v3524
  %v3619 = vunpack.c.l.b16 %v3525
  %v3620 = vunpack.c.h.b16 %v3525
  %v3621 = vunpack.c.l.b16 %v3526
  %v3622 = vunpack.c.h.b16 %v3526
  %v3623 = vpack.c.b16 %v3563, %v3559
  %v3624 = vpack.c.b16 %v3564, %v3560
  %v3625 = vpack.c.b16 %v3565, %v3561
  %v3626 = vpack.c.b16 %v3566, %v3562
  %v3627 = vpack.c.b16 %v3571, %v3567
  %v3628 = vpack.c.b16 %v3572, %v3568
  %v3629 = vpack.c.b16 %v3573, %v3569
  %v3630 = vpack.c.b16 %v3574, %v3570
  %v3631 = vpack.c.b16 %v3579, %v3575
  %v3632 = vpack.c.b16 %v3580, %v3576
  %v3633 = vpack.c.b16 %v3581, %v3577
  %v3634 = vpack.c.b16 %v3582, %v3578
  %v3635 = vpack.c.b16 %v3587, %v3583
  %v3636 = vpack.c.b16 %v3588, %v3584
  %v3637 = vpack.c.b16 %v3589, %v3585
  %v3638 = vpack.c.b16 %v3590, %v3586
  %v3639 = vpack.c.b16 %v3595, %v3591
  %v3640 = vpack.c.b16 %v3596, %v3592
  %v3641 = vpack.c.b16 %v3597, %v3593
  %v3642 = vpack.c.b16 %v3598, %v3594
  %v3643 = vpack.c.b16 %v3603, %v3599
  %v3644 = vpack.c.b16 %v3604, %v3600
  %v3645 = vpack.c.b16 %v3605, %v3601
  %v3646 = vpack.c.b16 %v3606, %v3602
  %v3647 = vpack.c.b16 %v3611, %v3607
  %v3648 = vpack.c.b16 %v3612, %v3608
  %v3649 = vpack.c.b16 %v3613, %v3609
  %v3650 = vpack.c.b16 %v3614, %v3610
  %v3651 = vpack.c.b16 %v3619, %v3615
  %v3652 = vpack.c.b16 %v3620, %v3616
  %v3653 = vpack.c.b16 %v3621, %v3617
  %v3654 = vpack.c.b16 %v3622, %v3618
  %3687 = vmatprep.subr.bf16.mxu0 %v3652
  %3688 = vmatpush1.bf16.msra.mxu0 %v3651
  %3689 = vmatprep.subr.bf16.mxu0 %v3648
  %3690 = vmatpush1.bf16.msra.mxu0 %v3647
  %3691 = vmatprep.subr.bf16.mxu0 %v3644
  %3692 = vmatpush1.bf16.msra.mxu0 %v3643
  %3693 = vmatprep.subr.bf16.mxu0 %v3640
  %3694 = vmatpush1.bf16.msra.mxu0 %v3639
  %3695 = vmatprep.subr.bf16.mxu0 %v3636
  %3696 = vmatpush1.bf16.msra.mxu0 %v3635
  %3697 = vmatprep.subr.bf16.mxu0 %v3632
  %3698 = vmatpush1.bf16.msra.mxu0 %v3631
  %3699 = vmatprep.subr.bf16.mxu0 %v3628
  %3700 = vmatpush1.bf16.msra.mxu0 %v3627
  %3701 = vmatprep.subr.bf16.mxu0 %v3624
  %3702 = vmatpush1.bf16.msra.mxu0 %v3623
  %3703 = vmatprep.subr.bf16.mxu0 0
  %3704 = vmatpush2.bf16.msra.mxu0 0
  %3705 = vmatprep.subr.bf16.mxu0 0
  %3706 = vmatpush2.bf16.msra.mxu0 0
  %3707 = vmatprep.subr.bf16.mxu0 0
  %3708 = vmatpush2.bf16.msra.mxu0 0
  %3709 = vmatprep.subr.bf16.mxu0 0
  %3710 = vmatpush2.bf16.msra.mxu0 0
  %3711 = vmatprep.subr.bf16.mxu0 0
  %3712 = vmatpush2.bf16.msra.mxu0 0
  %3713 = vmatprep.subr.bf16.mxu0 0
  %3714 = vmatpush2.bf16.msra.mxu0 0
  %3715 = vmatprep.subr.bf16.mxu0 0
  %3716 = vmatpush2.bf16.msra.mxu0 0
  %3717 = vmatprep.subr.bf16.mxu0 0
  %3718 = vmatpush2.bf16.msra.mxu0 0
  %3719 = vmatprep.mubr.bf16.mxu0 0
  %3720 = vmatmul.mubr.bf16.gmra.mxu0 %v3329
  %v3721 = vpop.f32.mrf.mxu0
  %v3722 = vadd.f32 0.0, %v3721
  %v3723 = vpop.f32.mrf.mxu0
  %v3724 = vadd.f32 0.0, %v3723
  %v3725 = vpop.f32.mrf.mxu0
  %v3726 = vpop.f32.mrf.mxu0
  %3727 = vdwg.mxu0
  %3728 = vmatprep.subr.bf16.mxu0 %v3654
  %3729 = vmatpush1.bf16.msra.mxu0 %v3653
  %3730 = vmatprep.subr.bf16.mxu0 %v3650
  %3731 = vmatpush1.bf16.msra.mxu0 %v3649
  %3732 = vmatprep.subr.bf16.mxu0 %v3646
  %3733 = vmatpush1.bf16.msra.mxu0 %v3645
  %3734 = vmatprep.subr.bf16.mxu0 %v3642
  %3735 = vmatpush1.bf16.msra.mxu0 %v3641
  %3736 = vmatprep.subr.bf16.mxu0 %v3638
  %3737 = vmatpush1.bf16.msra.mxu0 %v3637
  %3738 = vmatprep.subr.bf16.mxu0 %v3634
  %3739 = vmatpush1.bf16.msra.mxu0 %v3633
  %3740 = vmatprep.subr.bf16.mxu0 %v3630
  %3741 = vmatpush1.bf16.msra.mxu0 %v3629
  %3742 = vmatprep.subr.bf16.mxu0 %v3626
  %3743 = vmatpush1.bf16.msra.mxu0 %v3625
  %3744 = vmatprep.subr.bf16.mxu0 0
  %3745 = vmatpush2.bf16.msra.mxu0 0
  %3746 = vmatprep.subr.bf16.mxu0 0
  %3747 = vmatpush2.bf16.msra.mxu0 0
  %3748 = vmatprep.subr.bf16.mxu0 0
  %3749 = vmatpush2.bf16.msra.mxu0 0
  %3750 = vmatprep.subr.bf16.mxu0 0
  %3751 = vmatpush2.bf16.msra.mxu0 0
  %3752 = vmatprep.subr.bf16.mxu0 0
  %3753 = vmatpush2.bf16.msra.mxu0 0
  %3754 = vmatprep.subr.bf16.mxu0 0
  %3755 = vmatpush2.bf16.msra.mxu0 0
  %3756 = vmatprep.subr.bf16.mxu0 0
  %3757 = vmatpush2.bf16.msra.mxu0 0
  %3758 = vmatprep.subr.bf16.mxu0 0
  %3759 = vmatpush2.bf16.msra.mxu0 0
  %3760 = vmatprep.mubr.bf16.mxu0 0
  %3761 = vmatmul.mubr.bf16.gmra.mxu0 %v3329
  %v3762 = vpop.f32.mrf.mxu0
  %v3763 = vadd.f32 0.0, %v3762
  %v3764 = vpop.f32.mrf.mxu0
  %v3765 = vadd.f32 0.0, %v3764
  %v3766 = vpop.f32.mrf.mxu0
  %v3767 = vpop.f32.mrf.mxu0
  %3768 = vdwg.mxu0
  %v3769 = vadd.f32 %v3491, %v3722
  %v3770 = vadd.f32 %v3492, %v3724
  %v3771 = vadd.f32 %v3493, %v3763
  %v3772 = vadd.f32 %v3494, %v3765
  %v3773 = vxor.u32 %v3769, 2147483648
  %v3774 = vxor.u32 %v3770, 2147483648
  %v3775 = vxor.u32 %v3771, 2147483648
  %v3776 = vmul.f32 %v3773, 1.442695
  %v3777 = vpow.pop %v3776
  %v3778 = vmul.f32 %v3774, 1.442695
  %v3779 = vpow.pop %v3778
  %v3780 = vmul.f32 %v3775, 1.442695
  %v3781 = vpow.pop %v3780
  %v3782 = vadd.f32 %v3777, 1.0
  %v3783 = vadd.f32 %v3779, 1.0
  %v3784 = vadd.f32 %v3781, 1.0
  %v3785 = vrcp.pop %v3782
  %v3786 = vmul.f32 1.0, %v3785
  %v3787 = vrcp.pop %v3783
  %v3788 = vmul.f32 1.0, %v3787
  %v3789 = vrcp.pop %v3784
  %v3790 = vmul.f32 1.0, %v3789
  %v3791 = vtanh.pop %v3772
  %v3792 = vmul.f32 %v3788, %v3326
  %v3793 = vmul.f32 %v3786, %v3791
  %v3794 = vadd.f32 %v3792, %v3793
  %v3795 = vtanh.pop %v3794
  %v3796 = vmul.f32 %v3790, %v3795
  %v3797 = vpack.c.bf16 %v3796, %v3796
  %v3798 = vpack.c.bf16 %v3488, %v3488
  %v3799 = vld [vmem:[%s4] sm:$0xf]
  %v3800 = vld [vmem:[%s4 + $0x4] sm:$0xf]
  %v3801 = vld [vmem:[%s4 + $0x8] sm:$0xf]
  %v3802 = vld [vmem:[%s4 + $0xc] sm:$0xf]
  %v3803 = vld [vmem:[%s4 + $0x10] sm:$0xf]
  %v3804 = vld [vmem:[%s4 + $0x14] sm:$0xf]
  %v3805 = vld [vmem:[%s4 + $0x18] sm:$0xf]
  %v3806 = vld [vmem:[%s4 + $0x1c] sm:$0xf]
  %v3807 = vld [vmem:[%s4 + $0x20] sm:$0xf]
  %v3808 = vld [vmem:[%s4 + $0x24] sm:$0xf]
  %v3809 = vld [vmem:[%s4 + $0x28] sm:$0xf]
  %v3810 = vld [vmem:[%s4 + $0x2c] sm:$0xf]
  %v3811 = vld [vmem:[%s4 + $0x30] sm:$0xf]
  %v3812 = vld [vmem:[%s4 + $0x34] sm:$0xf]
  %v3813 = vld [vmem:[%s4 + $0x38] sm:$0xf]
  %v3814 = vld [vmem:[%s4 + $0x3c] sm:$0xf]
  %v3815 = vld [vmem:[%s4 + $0x40] sm:$0xf]
  %v3816 = vld [vmem:[%s4 + $0x44] sm:$0xf]
  %v3817 = vld [vmem:[%s4 + $0x48] sm:$0xf]
  %v3818 = vld [vmem:[%s4 + $0x4c] sm:$0xf]
  %v3819 = vld [vmem:[%s5] sm:$0x1]
  %v3821 = vlaneseq
  %v3822 = vshrl.u32 %v3821, 7
  %v3823 = vsub.s32 0, %v3822
  %v3824 = vrot.slane %v3819, %v3823
  %v3846 = vunpack.c.l.b16 %v3799
  %v3847 = vunpack.c.l.b16 %v3800
  %v3848 = vunpack.c.l.b16 %v3801
  %v3849 = vunpack.c.l.b16 %v3802
  %v3850 = vunpack.c.l.b16 %v3803
  %v3851 = vunpack.c.l.b16 %v3804
  %v3852 = vunpack.c.l.b16 %v3805
  %v3853 = vunpack.c.l.b16 %v3806
  %v3854 = vunpack.c.l.b16 %v3807
  %v3855 = vunpack.c.l.b16 %v3808
  %v3856 = vunpack.c.l.b16 %v3809
  %v3857 = vunpack.c.l.b16 %v3810
  %v3858 = vunpack.c.l.b16 %v3811
  %v3859 = vunpack.c.l.b16 %v3812
  %v3860 = vunpack.c.l.b16 %v3813
  %v3861 = vunpack.c.l.b16 %v3814
  %v3862 = vunpack.c.l.b16 %v3815
  %v3863 = vunpack.c.l.b16 %v3816
  %v3864 = vunpack.c.l.b16 %v3817
  %v3865 = vunpack.c.l.b16 %v3818
  %v3866 = vpack.c.b16 %v3847, %v3846
  %v3867 = vpack.c.b16 %v3849, %v3848
  %v3868 = vpack.c.b16 %v3851, %v3850
  %v3869 = vpack.c.b16 %v3853, %v3852
  %v3870 = vpack.c.b16 %v3855, %v3854
  %v3871 = vpack.c.b16 %v3857, %v3856
  %v3872 = vpack.c.b16 %v3859, %v3858
  %v3873 = vpack.c.b16 %v3861, %v3860
  %v3874 = vpack.c.b16 %v3863, %v3862
  %v3875 = vpack.c.b16 %v3865, %v3864
  %v3887 = vsel %vm1077, %v3798, 0
  %3889 = vmatprep.subr.bf16.mxu0 0
  %3890 = vmatpush1.bf16.msra.mxu0 %v3873
  %3891 = vmatprep.subr.bf16.mxu0 0
  %3892 = vmatpush1.bf16.msra.mxu0 %v3872
  %3893 = vmatprep.subr.bf16.mxu0 0
  %3894 = vmatpush1.bf16.msra.mxu0 %v3871
  %3895 = vmatprep.subr.bf16.mxu0 0
  %3896 = vmatpush1.bf16.msra.mxu0 %v3870
  %3897 = vmatprep.subr.bf16.mxu0 0
  %3898 = vmatpush1.bf16.msra.mxu0 %v3869
  %3899 = vmatprep.subr.bf16.mxu0 0
  %3900 = vmatpush1.bf16.msra.mxu0 %v3868
  %3901 = vmatprep.subr.bf16.mxu0 0
  %3902 = vmatpush1.bf16.msra.mxu0 %v3867
  %3903 = vmatprep.subr.bf16.mxu0 0
  %3904 = vmatpush1.bf16.msra.mxu0 %v3866
  %3905 = vmatprep.subr.bf16.mxu0 0
  %3906 = vmatpush2.bf16.msra.mxu0 0
  %3907 = vmatprep.subr.bf16.mxu0 0
  %3908 = vmatpush2.bf16.msra.mxu0 0
  %3909 = vmatprep.subr.bf16.mxu0 0
  %3910 = vmatpush2.bf16.msra.mxu0 0
  %3911 = vmatprep.subr.bf16.mxu0 0
  %3912 = vmatpush2.bf16.msra.mxu0 0
  %3913 = vmatprep.subr.bf16.mxu0 0
  %3914 = vmatpush2.bf16.msra.mxu0 0
  %3915 = vmatprep.subr.bf16.mxu0 0
  %3916 = vmatpush2.bf16.msra.mxu0 0
  %3917 = vmatprep.subr.bf16.mxu0 0
  %3918 = vmatpush2.bf16.msra.mxu0 %v3875
  %3919 = vmatprep.subr.bf16.mxu0 0
  %3920 = vmatpush2.bf16.msra.mxu0 %v3874
  %3921 = vmatprep.mubr.bf16.mxu0 %v3887
  %3922 = vmatmul.mubr.bf16.gmra.mxu0 %v3797
  %v3923 = vpop.f32.mrf.mxu0
  %v3924 = vadd.f32 %v3824, %v3923
  %v3925 = vpop.f32.mrf.mxu0
  %v3926 = vpop.f32.mrf.mxu0
  %v3927 = vpop.f32.mrf.mxu0
  %3928 = vdwg.mxu0
  %v3929 = vxor.u32 %v3924, 2147483648
  %v3930 = vmul.f32 %v3929, 1.442695
  %v3931 = vpow.pop %v3930
  %v3932 = vadd.f32 %v3931, 1.0
  %v3933 = vrcp.pop %v3932
  %v3934 = vmul.f32 1.0, %v3933
  %v3935 = vtanh.pop %v3924
  %v3936 = vsel %vm681, %v3934, %v3935
  %v3937 = vmul.f32 %v3936, %v3479
  %3939 = vrot.lane.b32.xlu0 %v3936, 32
  %v3940 = vpop.permute.xlu0 %3939
  %v3942 = vmul.f32 %v3936, %v3940
  %3944 = vrot.lane.b32.xlu0 %v3942, 32
  %v3945 = vpop.permute.xlu0 %3944
  %v3947 = vadd.f32 %v3937, %v3945
  %v3948 = vtanh.pop %v3947
  %3950 = vrot.lane.b32.xlu0 %v3948, 32
  %v3951 = vpop.permute.xlu0 %3950
  %v3953 = vmul.f32 %v3936, %v3951
  %3955 = vrot.lane.b32.xlu0 %v3953, 64
  %v3956 = vpop.permute.xlu0 %3955
  %3958 = vst.msk [vmem:[#allocation3 + $0x30] sm:$0xff] %vm1077, %v3956
  %v3959 = vld [vmem:[#allocation2 + $0xe0] sm:$0xff]
  %v3960 = vld [vmem:[#allocation2 + $0xe8] sm:$0xff]
  %v3961 = vld [vmem:[#allocation2 + $0xf0] sm:$0xff]
  %v3962 = vld [vmem:[#allocation2 + $0xf8] sm:$0xff]
  %v3963 = vld [vmem:[%s2] sm:$0xff]
  %v3964 = vld [vmem:[%s2 + $0x8] sm:$0xff]
  %v3965 = vld [vmem:[%s2 + $0x10] sm:$0xff]
  %v3966 = vld [vmem:[%s2 + $0x18] sm:$0xff]
  %v3967 = vld [vmem:[%s2 + $0x20] sm:$0xff]
  %v3968 = vld [vmem:[%s2 + $0x28] sm:$0xff]
  %v3969 = vld [vmem:[%s2 + $0x30] sm:$0xff]
  %v3970 = vld [vmem:[%s2 + $0x38] sm:$0xff]
  %v3971 = vld [vmem:[%s2 + $0x40] sm:$0xff]
  %v3972 = vld [vmem:[%s2 + $0x48] sm:$0xff]
  %v3973 = vld [vmem:[%s2 + $0x50] sm:$0xff]
  %v3974 = vld [vmem:[%s2 + $0x58] sm:$0xff]
  %v3975 = vld [vmem:[%s2 + $0x60] sm:$0xff]
  %v3976 = vld [vmem:[%s2 + $0x68] sm:$0xff]
  %v3977 = vld [vmem:[%s2 + $0x70] sm:$0xff]
  %v3978 = vld [vmem:[%s2 + $0x78] sm:$0xff]
  %v3979 = vld [vmem:[%s2 + $0x80] sm:$0xff]
  %v3980 = vld [vmem:[%s2 + $0x88] sm:$0xff]
  %v3981 = vld [vmem:[%s2 + $0x90] sm:$0xff]
  %v3982 = vld [vmem:[%s2 + $0x98] sm:$0xff]
  %v3983 = vld [vmem:[%s2 + $0xa0] sm:$0xff]
  %v3984 = vld [vmem:[%s2 + $0xa8] sm:$0xff]
  %v3985 = vld [vmem:[%s2 + $0xb0] sm:$0xff]
  %v3986 = vld [vmem:[%s2 + $0xb8] sm:$0xff]
  %v3987 = vld [vmem:[%s2 + $0xc0] sm:$0xff]
  %v3988 = vld [vmem:[%s2 + $0xc8] sm:$0xff]
  %v3989 = vld [vmem:[%s2 + $0xd0] sm:$0xff]
  %v3990 = vld [vmem:[%s2 + $0xd8] sm:$0xff]
  %v3991 = vld [vmem:[%s2 + $0xe0] sm:$0xff]
  %v3992 = vld [vmem:[%s2 + $0xe8] sm:$0xff]
  %v3993 = vld [vmem:[%s2 + $0xf0] sm:$0xff]
  %v3994 = vld [vmem:[%s2 + $0xf8] sm:$0xff]
  %v4027 = vunpack.c.l.b16 %v3963
  %v4028 = vunpack.c.h.b16 %v3963
  %v4029 = vunpack.c.l.b16 %v3964
  %v4030 = vunpack.c.h.b16 %v3964
  %v4031 = vunpack.c.l.b16 %v3965
  %v4032 = vunpack.c.h.b16 %v3965
  %v4033 = vunpack.c.l.b16 %v3966
  %v4034 = vunpack.c.h.b16 %v3966
  %v4035 = vunpack.c.l.b16 %v3967
  %v4036 = vunpack.c.h.b16 %v3967
  %v4037 = vunpack.c.l.b16 %v3968
  %v4038 = vunpack.c.h.b16 %v3968
  %v4039 = vunpack.c.l.b16 %v3969
  %v4040 = vunpack.c.h.b16 %v3969
  %v4041 = vunpack.c.l.b16 %v3970
  %v4042 = vunpack.c.h.b16 %v3970
  %v4043 = vunpack.c.l.b16 %v3971
  %v4044 = vunpack.c.h.b16 %v3971
  %v4045 = vunpack.c.l.b16 %v3972
  %v4046 = vunpack.c.h.b16 %v3972
  %v4047 = vunpack.c.l.b16 %v3973
  %v4048 = vunpack.c.h.b16 %v3973
  %v4049 = vunpack.c.l.b16 %v3974
  %v4050 = vunpack.c.h.b16 %v3974
  %v4051 = vunpack.c.l.b16 %v3975
  %v4052 = vunpack.c.h.b16 %v3975
  %v4053 = vunpack.c.l.b16 %v3976
  %v4054 = vunpack.c.h.b16 %v3976
  %v4055 = vunpack.c.l.b16 %v3977
  %v4056 = vunpack.c.h.b16 %v3977
  %v4057 = vunpack.c.l.b16 %v3978
  %v4058 = vunpack.c.h.b16 %v3978
  %v4059 = vunpack.c.l.b16 %v3979
  %v4060 = vunpack.c.h.b16 %v3979
  %v4061 = vunpack.c.l.b16 %v3980
  %v4062 = vunpack.c.h.b16 %v3980
  %v4063 = vunpack.c.l.b16 %v3981
  %v4064 = vunpack.c.h.b16 %v3981
  %v4065 = vunpack.c.l.b16 %v3982
  %v4066 = vunpack.c.h.b16 %v3982
  %v4067 = vunpack.c.l.b16 %v3983
  %v4068 = vunpack.c.h.b16 %v3983
  %v4069 = vunpack.c.l.b16 %v3984
  %v4070 = vunpack.c.h.b16 %v3984
  %v4071 = vunpack.c.l.b16 %v3985
  %v4072 = vunpack.c.h.b16 %v3985
  %v4073 = vunpack.c.l.b16 %v3986
  %v4074 = vunpack.c.h.b16 %v3986
  %v4075 = vunpack.c.l.b16 %v3987
  %v4076 = vunpack.c.h.b16 %v3987
  %v4077 = vunpack.c.l.b16 %v3988
  %v4078 = vunpack.c.h.b16 %v3988
  %v4079 = vunpack.c.l.b16 %v3989
  %v4080 = vunpack.c.h.b16 %v3989
  %v4081 = vunpack.c.l.b16 %v3990
  %v4082 = vunpack.c.h.b16 %v3990
  %v4083 = vunpack.c.l.b16 %v3991
  %v4084 = vunpack.c.h.b16 %v3991
  %v4085 = vunpack.c.l.b16 %v3992
  %v4086 = vunpack.c.h.b16 %v3992
  %v4087 = vunpack.c.l.b16 %v3993
  %v4088 = vunpack.c.h.b16 %v3993
  %v4089 = vunpack.c.l.b16 %v3994
  %v4090 = vunpack.c.h.b16 %v3994
  %v4091 = vpack.c.b16 %v4031, %v4027
  %v4092 = vpack.c.b16 %v4032, %v4028
  %v4093 = vpack.c.b16 %v4033, %v4029
  %v4094 = vpack.c.b16 %v4034, %v4030
  %v4095 = vpack.c.b16 %v4039, %v4035
  %v4096 = vpack.c.b16 %v4040, %v4036
  %v4097 = vpack.c.b16 %v4041, %v4037
  %v4098 = vpack.c.b16 %v4042, %v4038
  %v4099 = vpack.c.b16 %v4047, %v4043
  %v4100 = vpack.c.b16 %v4048, %v4044
  %v4101 = vpack.c.b16 %v4049, %v4045
  %v4102 = vpack.c.b16 %v4050, %v4046
  %v4103 = vpack.c.b16 %v4055, %v4051
  %v4104 = vpack.c.b16 %v4056, %v4052
  %v4105 = vpack.c.b16 %v4057, %v4053
  %v4106 = vpack.c.b16 %v4058, %v4054
  %v4107 = vpack.c.b16 %v4063, %v4059
  %v4108 = vpack.c.b16 %v4064, %v4060
  %v4109 = vpack.c.b16 %v4065, %v4061
  %v4110 = vpack.c.b16 %v4066, %v4062
  %v4111 = vpack.c.b16 %v4071, %v4067
  %v4112 = vpack.c.b16 %v4072, %v4068
  %v4113 = vpack.c.b16 %v4073, %v4069
  %v4114 = vpack.c.b16 %v4074, %v4070
  %v4115 = vpack.c.b16 %v4079, %v4075
  %v4116 = vpack.c.b16 %v4080, %v4076
  %v4117 = vpack.c.b16 %v4081, %v4077
  %v4118 = vpack.c.b16 %v4082, %v4078
  %v4119 = vpack.c.b16 %v4087, %v4083
  %v4120 = vpack.c.b16 %v4088, %v4084
  %v4121 = vpack.c.b16 %v4089, %v4085
  %v4122 = vpack.c.b16 %v4090, %v4086
  %4155 = vmatprep.subr.bf16.mxu0 %v4120
  %4156 = vmatpush1.bf16.msra.mxu0 %v4119
  %4157 = vmatprep.subr.bf16.mxu0 %v4116
  %4158 = vmatpush1.bf16.msra.mxu0 %v4115
  %4159 = vmatprep.subr.bf16.mxu0 %v4112
  %4160 = vmatpush1.bf16.msra.mxu0 %v4111
  %4161 = vmatprep.subr.bf16.mxu0 %v4108
  %4162 = vmatpush1.bf16.msra.mxu0 %v4107
  %4163 = vmatprep.subr.bf16.mxu0 %v4104
  %4164 = vmatpush1.bf16.msra.mxu0 %v4103
  %4165 = vmatprep.subr.bf16.mxu0 %v4100
  %4166 = vmatpush1.bf16.msra.mxu0 %v4099
  %4167 = vmatprep.subr.bf16.mxu0 %v4096
  %4168 = vmatpush1.bf16.msra.mxu0 %v4095
  %4169 = vmatprep.subr.bf16.mxu0 %v4092
  %4170 = vmatpush1.bf16.msra.mxu0 %v4091
  %4171 = vmatprep.subr.bf16.mxu0 0
  %4172 = vmatpush2.bf16.msra.mxu0 0
  %4173 = vmatprep.subr.bf16.mxu0 0
  %4174 = vmatpush2.bf16.msra.mxu0 0
  %4175 = vmatprep.subr.bf16.mxu0 0
  %4176 = vmatpush2.bf16.msra.mxu0 0
  %4177 = vmatprep.subr.bf16.mxu0 0
  %4178 = vmatpush2.bf16.msra.mxu0 0
  %4179 = vmatprep.subr.bf16.mxu0 0
  %4180 = vmatpush2.bf16.msra.mxu0 0
  %4181 = vmatprep.subr.bf16.mxu0 0
  %4182 = vmatpush2.bf16.msra.mxu0 0
  %4183 = vmatprep.subr.bf16.mxu0 0
  %4184 = vmatpush2.bf16.msra.mxu0 0
  %4185 = vmatprep.subr.bf16.mxu0 0
  %4186 = vmatpush2.bf16.msra.mxu0 0
  %4187 = vmatprep.mubr.bf16.mxu0 0
  %4188 = vmatmul.mubr.bf16.gmra.mxu0 %v3797
  %v4189 = vpop.f32.mrf.mxu0
  %v4190 = vadd.f32 0.0, %v4189
  %v4191 = vpop.f32.mrf.mxu0
  %v4192 = vadd.f32 0.0, %v4191
  %v4193 = vpop.f32.mrf.mxu0
  %v4194 = vpop.f32.mrf.mxu0
  %4195 = vdwg.mxu0
  %4196 = vmatprep.subr.bf16.mxu0 %v4122
  %4197 = vmatpush1.bf16.msra.mxu0 %v4121
  %4198 = vmatprep.subr.bf16.mxu0 %v4118
  %4199 = vmatpush1.bf16.msra.mxu0 %v4117
  %4200 = vmatprep.subr.bf16.mxu0 %v4114
  %4201 = vmatpush1.bf16.msra.mxu0 %v4113
  %4202 = vmatprep.subr.bf16.mxu0 %v4110
  %4203 = vmatpush1.bf16.msra.mxu0 %v4109
  %4204 = vmatprep.subr.bf16.mxu0 %v4106
  %4205 = vmatpush1.bf16.msra.mxu0 %v4105
  %4206 = vmatprep.subr.bf16.mxu0 %v4102
  %4207 = vmatpush1.bf16.msra.mxu0 %v4101
  %4208 = vmatprep.subr.bf16.mxu0 %v4098
  %4209 = vmatpush1.bf16.msra.mxu0 %v4097
  %4210 = vmatprep.subr.bf16.mxu0 %v4094
  %4211 = vmatpush1.bf16.msra.mxu0 %v4093
  %4212 = vmatprep.subr.bf16.mxu0 0
  %4213 = vmatpush2.bf16.msra.mxu0 0
  %4214 = vmatprep.subr.bf16.mxu0 0
  %4215 = vmatpush2.bf16.msra.mxu0 0
  %4216 = vmatprep.subr.bf16.mxu0 0
  %4217 = vmatpush2.bf16.msra.mxu0 0
  %4218 = vmatprep.subr.bf16.mxu0 0
  %4219 = vmatpush2.bf16.msra.mxu0 0
  %4220 = vmatprep.subr.bf16.mxu0 0
  %4221 = vmatpush2.bf16.msra.mxu0 0
  %4222 = vmatprep.subr.bf16.mxu0 0
  %4223 = vmatpush2.bf16.msra.mxu0 0
  %4224 = vmatprep.subr.bf16.mxu0 0
  %4225 = vmatpush2.bf16.msra.mxu0 0
  %4226 = vmatprep.subr.bf16.mxu0 0
  %4227 = vmatpush2.bf16.msra.mxu0 0
  %4228 = vmatprep.mubr.bf16.mxu0 0
  %4229 = vmatmul.mubr.bf16.gmra.mxu0 %v3797
  %v4230 = vpop.f32.mrf.mxu0
  %v4231 = vadd.f32 0.0, %v4230
  %v4232 = vpop.f32.mrf.mxu0
  %v4233 = vadd.f32 0.0, %v4232
  %v4234 = vpop.f32.mrf.mxu0
  %v4235 = vpop.f32.mrf.mxu0
  %4236 = vdwg.mxu0
  %v4237 = vadd.f32 %v3959, %v4190
  %v4238 = vadd.f32 %v3960, %v4192
  %v4239 = vadd.f32 %v3961, %v4231
  %v4240 = vadd.f32 %v3962, %v4233
  %v4241 = vxor.u32 %v4237, 2147483648
  %v4242 = vxor.u32 %v4238, 2147483648
  %v4243 = vxor.u32 %v4239, 2147483648
  %v4244 = vmul.f32 %v4241, 1.442695
  %v4245 = vpow.pop %v4244
  %v4246 = vmul.f32 %v4242, 1.442695
  %v4247 = vpow.pop %v4246
  %v4248 = vmul.f32 %v4243, 1.442695
  %v4249 = vpow.pop %v4248
  %v4250 = vadd.f32 %v4245, 1.0
  %v4251 = vadd.f32 %v4247, 1.0
  %v4252 = vadd.f32 %v4249, 1.0
  %v4253 = vrcp.pop %v4250
  %v4254 = vmul.f32 1.0, %v4253
  %v4255 = vrcp.pop %v4251
  %v4256 = vmul.f32 1.0, %v4255
  %v4257 = vrcp.pop %v4252
  %v4258 = vmul.f32 1.0, %v4257
  %v4259 = vtanh.pop %v4240
  %v4260 = vmul.f32 %v4256, %v3794
  %v4261 = vmul.f32 %v4254, %v4259
  %v4262 = vadd.f32 %v4260, %v4261
  %v4263 = vtanh.pop %v4262
  %v4264 = vmul.f32 %v4258, %v4263
  %v4265 = vpack.c.bf16 %v4264, %v4264
  %v4266 = vpack.c.bf16 %v3956, %v3956
  %v4267 = vld [vmem:[%s4] sm:$0xf]
  %v4268 = vld [vmem:[%s4 + $0x4] sm:$0xf]
  %v4269 = vld [vmem:[%s4 + $0x8] sm:$0xf]
  %v4270 = vld [vmem:[%s4 + $0xc] sm:$0xf]
  %v4271 = vld [vmem:[%s4 + $0x10] sm:$0xf]
  %v4272 = vld [vmem:[%s4 + $0x14] sm:$0xf]
  %v4273 = vld [vmem:[%s4 + $0x18] sm:$0xf]
  %v4274 = vld [vmem:[%s4 + $0x1c] sm:$0xf]
  %v4275 = vld [vmem:[%s4 + $0x20] sm:$0xf]
  %v4276 = vld [vmem:[%s4 + $0x24] sm:$0xf]
  %v4277 = vld [vmem:[%s4 + $0x28] sm:$0xf]
  %v4278 = vld [vmem:[%s4 + $0x2c] sm:$0xf]
  %v4279 = vld [vmem:[%s4 + $0x30] sm:$0xf]
  %v4280 = vld [vmem:[%s4 + $0x34] sm:$0xf]
  %v4281 = vld [vmem:[%s4 + $0x38] sm:$0xf]
  %v4282 = vld [vmem:[%s4 + $0x3c] sm:$0xf]
  %v4283 = vld [vmem:[%s4 + $0x40] sm:$0xf]
  %v4284 = vld [vmem:[%s4 + $0x44] sm:$0xf]
  %v4285 = vld [vmem:[%s4 + $0x48] sm:$0xf]
  %v4286 = vld [vmem:[%s4 + $0x4c] sm:$0xf]
  %v4287 = vld [vmem:[%s5] sm:$0x1]
  %v4289 = vlaneseq
  %v4290 = vshrl.u32 %v4289, 7
  %v4291 = vsub.s32 0, %v4290
  %v4292 = vrot.slane %v4287, %v4291
  %v4314 = vunpack.c.l.b16 %v4267
  %v4315 = vunpack.c.l.b16 %v4268
  %v4316 = vunpack.c.l.b16 %v4269
  %v4317 = vunpack.c.l.b16 %v4270
  %v4318 = vunpack.c.l.b16 %v4271
  %v4319 = vunpack.c.l.b16 %v4272
  %v4320 = vunpack.c.l.b16 %v4273
  %v4321 = vunpack.c.l.b16 %v4274
  %v4322 = vunpack.c.l.b16 %v4275
  %v4323 = vunpack.c.l.b16 %v4276
  %v4324 = vunpack.c.l.b16 %v4277
  %v4325 = vunpack.c.l.b16 %v4278
  %v4326 = vunpack.c.l.b16 %v4279
  %v4327 = vunpack.c.l.b16 %v4280
  %v4328 = vunpack.c.l.b16 %v4281
  %v4329 = vunpack.c.l.b16 %v4282
  %v4330 = vunpack.c.l.b16 %v4283
  %v4331 = vunpack.c.l.b16 %v4284
  %v4332 = vunpack.c.l.b16 %v4285
  %v4333 = vunpack.c.l.b16 %v4286
  %v4334 = vpack.c.b16 %v4315, %v4314
  %v4335 = vpack.c.b16 %v4317, %v4316
  %v4336 = vpack.c.b16 %v4319, %v4318
  %v4337 = vpack.c.b16 %v4321, %v4320
  %v4338 = vpack.c.b16 %v4323, %v4322
  %v4339 = vpack.c.b16 %v4325, %v4324
  %v4340 = vpack.c.b16 %v4327, %v4326
  %v4341 = vpack.c.b16 %v4329, %v4328
  %v4342 = vpack.c.b16 %v4331, %v4330
  %v4343 = vpack.c.b16 %v4333, %v4332
  %v4355 = vsel %vm1077, %v4266, 0
  %4357 = vmatprep.subr.bf16.mxu0 0
  %4358 = vmatpush1.bf16.msra.mxu0 %v4341
  %4359 = vmatprep.subr.bf16.mxu0 0
  %4360 = vmatpush1.bf16.msra.mxu0 %v4340
  %4361 = vmatprep.subr.bf16.mxu0 0
  %4362 = vmatpush1.bf16.msra.mxu0 %v4339
  %4363 = vmatprep.subr.bf16.mxu0 0
  %4364 = vmatpush1.bf16.msra.mxu0 %v4338
  %4365 = vmatprep.subr.bf16.mxu0 0
  %4366 = vmatpush1.bf16.msra.mxu0 %v4337
  %4367 = vmatprep.subr.bf16.mxu0 0
  %4368 = vmatpush1.bf16.msra.mxu0 %v4336
  %4369 = vmatprep.subr.bf16.mxu0 0
  %4370 = vmatpush1.bf16.msra.mxu0 %v4335
  %4371 = vmatprep.subr.bf16.mxu0 0
  %4372 = vmatpush1.bf16.msra.mxu0 %v4334
  %4373 = vmatprep.subr.bf16.mxu0 0
  %4374 = vmatpush2.bf16.msra.mxu0 0
  %4375 = vmatprep.subr.bf16.mxu0 0
  %4376 = vmatpush2.bf16.msra.mxu0 0
  %4377 = vmatprep.subr.bf16.mxu0 0
  %4378 = vmatpush2.bf16.msra.mxu0 0
  %4379 = vmatprep.subr.bf16.mxu0 0
  %4380 = vmatpush2.bf16.msra.mxu0 0
  %4381 = vmatprep.subr.bf16.mxu0 0
  %4382 = vmatpush2.bf16.msra.mxu0 0
  %4383 = vmatprep.subr.bf16.mxu0 0
  %4384 = vmatpush2.bf16.msra.mxu0 0
  %4385 = vmatprep.subr.bf16.mxu0 0
  %4386 = vmatpush2.bf16.msra.mxu0 %v4343
  %4387 = vmatprep.subr.bf16.mxu0 0
  %4388 = vmatpush2.bf16.msra.mxu0 %v4342
  %4389 = vmatprep.mubr.bf16.mxu0 %v4355
  %4390 = vmatmul.mubr.bf16.gmra.mxu0 %v4265
  %v4391 = vpop.f32.mrf.mxu0
  %v4392 = vadd.f32 %v4292, %v4391
  %v4393 = vpop.f32.mrf.mxu0
  %v4394 = vpop.f32.mrf.mxu0
  %v4395 = vpop.f32.mrf.mxu0
  %4396 = vdwg.mxu0
  %v4397 = vxor.u32 %v4392, 2147483648
  %v4398 = vmul.f32 %v4397, 1.442695
  %v4399 = vpow.pop %v4398
  %v4400 = vadd.f32 %v4399, 1.0
  %v4401 = vrcp.pop %v4400
  %v4402 = vmul.f32 1.0, %v4401
  %v4403 = vtanh.pop %v4392
  %v4404 = vsel %vm681, %v4402, %v4403
  %v4405 = vmul.f32 %v4404, %v3947
  %4407 = vrot.lane.b32.xlu0 %v4404, 32
  %v4408 = vpop.permute.xlu0 %4407
  %v4410 = vmul.f32 %v4404, %v4408
  %4412 = vrot.lane.b32.xlu0 %v4410, 32
  %v4413 = vpop.permute.xlu0 %4412
  %v4415 = vadd.f32 %v4405, %v4413
  %v4416 = vtanh.pop %v4415
  %4418 = vrot.lane.b32.xlu0 %v4416, 32
  %v4419 = vpop.permute.xlu0 %4418
  %v4421 = vmul.f32 %v4404, %v4419
  %4423 = vrot.lane.b32.xlu0 %v4421, 64
  %v4424 = vpop.permute.xlu0 %4423
  %4426 = vst.msk [vmem:[#allocation3 + $0x38] sm:$0xff] %vm1077, %v4424
  %v4427 = vld [vmem:[#allocation2 + $0x100] sm:$0xff]
  %v4428 = vld [vmem:[#allocation2 + $0x108] sm:$0xff]
  %v4429 = vld [vmem:[#allocation2 + $0x110] sm:$0xff]
  %v4430 = vld [vmem:[#allocation2 + $0x118] sm:$0xff]
  %v4431 = vld [vmem:[%s2] sm:$0xff]
  %v4432 = vld [vmem:[%s2 + $0x8] sm:$0xff]
  %v4433 = vld [vmem:[%s2 + $0x10] sm:$0xff]
  %v4434 = vld [vmem:[%s2 + $0x18] sm:$0xff]
  %v4435 = vld [vmem:[%s2 + $0x20] sm:$0xff]
  %v4436 = vld [vmem:[%s2 + $0x28] sm:$0xff]
  %v4437 = vld [vmem:[%s2 + $0x30] sm:$0xff]
  %v4438 = vld [vmem:[%s2 + $0x38] sm:$0xff]
  %v4439 = vld [vmem:[%s2 + $0x40] sm:$0xff]
  %v4440 = vld [vmem:[%s2 + $0x48] sm:$0xff]
  %v4441 = vld [vmem:[%s2 + $0x50] sm:$0xff]
  %v4442 = vld [vmem:[%s2 + $0x58] sm:$0xff]
  %v4443 = vld [vmem:[%s2 + $0x60] sm:$0xff]
  %v4444 = vld [vmem:[%s2 + $0x68] sm:$0xff]
  %v4445 = vld [vmem:[%s2 + $0x70] sm:$0xff]
  %v4446 = vld [vmem:[%s2 + $0x78] sm:$0xff]
  %v4447 = vld [vmem:[%s2 + $0x80] sm:$0xff]
  %v4448 = vld [vmem:[%s2 + $0x88] sm:$0xff]
  %v4449 = vld [vmem:[%s2 + $0x90] sm:$0xff]
  %v4450 = vld [vmem:[%s2 + $0x98] sm:$0xff]
  %v4451 = vld [vmem:[%s2 + $0xa0] sm:$0xff]
  %v4452 = vld [vmem:[%s2 + $0xa8] sm:$0xff]
  %v4453 = vld [vmem:[%s2 + $0xb0] sm:$0xff]
  %v4454 = vld [vmem:[%s2 + $0xb8] sm:$0xff]
  %v4455 = vld [vmem:[%s2 + $0xc0] sm:$0xff]
  %v4456 = vld [vmem:[%s2 + $0xc8] sm:$0xff]
  %v4457 = vld [vmem:[%s2 + $0xd0] sm:$0xff]
  %v4458 = vld [vmem:[%s2 + $0xd8] sm:$0xff]
  %v4459 = vld [vmem:[%s2 + $0xe0] sm:$0xff]
  %v4460 = vld [vmem:[%s2 + $0xe8] sm:$0xff]
  %v4461 = vld [vmem:[%s2 + $0xf0] sm:$0xff]
  %v4462 = vld [vmem:[%s2 + $0xf8] sm:$0xff]
  %v4495 = vunpack.c.l.b16 %v4431
  %v4496 = vunpack.c.h.b16 %v4431
  %v4497 = vunpack.c.l.b16 %v4432
  %v4498 = vunpack.c.h.b16 %v4432
  %v4499 = vunpack.c.l.b16 %v4433
  %v4500 = vunpack.c.h.b16 %v4433
  %v4501 = vunpack.c.l.b16 %v4434
  %v4502 = vunpack.c.h.b16 %v4434
  %v4503 = vunpack.c.l.b16 %v4435
  %v4504 = vunpack.c.h.b16 %v4435
  %v4505 = vunpack.c.l.b16 %v4436
  %v4506 = vunpack.c.h.b16 %v4436
  %v4507 = vunpack.c.l.b16 %v4437
  %v4508 = vunpack.c.h.b16 %v4437
  %v4509 = vunpack.c.l.b16 %v4438
  %v4510 = vunpack.c.h.b16 %v4438
  %v4511 = vunpack.c.l.b16 %v4439
  %v4512 = vunpack.c.h.b16 %v4439
  %v4513 = vunpack.c.l.b16 %v4440
  %v4514 = vunpack.c.h.b16 %v4440
  %v4515 = vunpack.c.l.b16 %v4441
  %v4516 = vunpack.c.h.b16 %v4441
  %v4517 = vunpack.c.l.b16 %v4442
  %v4518 = vunpack.c.h.b16 %v4442
  %v4519 = vunpack.c.l.b16 %v4443
  %v4520 = vunpack.c.h.b16 %v4443
  %v4521 = vunpack.c.l.b16 %v4444
  %v4522 = vunpack.c.h.b16 %v4444
  %v4523 = vunpack.c.l.b16 %v4445
  %v4524 = vunpack.c.h.b16 %v4445
  %v4525 = vunpack.c.l.b16 %v4446
  %v4526 = vunpack.c.h.b16 %v4446
  %v4527 = vunpack.c.l.b16 %v4447
  %v4528 = vunpack.c.h.b16 %v4447
  %v4529 = vunpack.c.l.b16 %v4448
  %v4530 = vunpack.c.h.b16 %v4448
  %v4531 = vunpack.c.l.b16 %v4449
  %v4532 = vunpack.c.h.b16 %v4449
  %v4533 = vunpack.c.l.b16 %v4450
  %v4534 = vunpack.c.h.b16 %v4450
  %v4535 = vunpack.c.l.b16 %v4451
  %v4536 = vunpack.c.h.b16 %v4451
  %v4537 = vunpack.c.l.b16 %v4452
  %v4538 = vunpack.c.h.b16 %v4452
  %v4539 = vunpack.c.l.b16 %v4453
  %v4540 = vunpack.c.h.b16 %v4453
  %v4541 = vunpack.c.l.b16 %v4454
  %v4542 = vunpack.c.h.b16 %v4454
  %v4543 = vunpack.c.l.b16 %v4455
  %v4544 = vunpack.c.h.b16 %v4455
  %v4545 = vunpack.c.l.b16 %v4456
  %v4546 = vunpack.c.h.b16 %v4456
  %v4547 = vunpack.c.l.b16 %v4457
  %v4548 = vunpack.c.h.b16 %v4457
  %v4549 = vunpack.c.l.b16 %v4458
  %v4550 = vunpack.c.h.b16 %v4458
  %v4551 = vunpack.c.l.b16 %v4459
  %v4552 = vunpack.c.h.b16 %v4459
  %v4553 = vunpack.c.l.b16 %v4460
  %v4554 = vunpack.c.h.b16 %v4460
  %v4555 = vunpack.c.l.b16 %v4461
  %v4556 = vunpack.c.h.b16 %v4461
  %v4557 = vunpack.c.l.b16 %v4462
  %v4558 = vunpack.c.h.b16 %v4462
  %v4559 = vpack.c.b16 %v4499, %v4495
  %v4560 = vpack.c.b16 %v4500, %v4496
  %v4561 = vpack.c.b16 %v4501, %v4497
  %v4562 = vpack.c.b16 %v4502, %v4498
  %v4563 = vpack.c.b16 %v4507, %v4503
  %v4564 = vpack.c.b16 %v4508, %v4504
  %v4565 = vpack.c.b16 %v4509, %v4505
  %v4566 = vpack.c.b16 %v4510, %v4506
  %v4567 = vpack.c.b16 %v4515, %v4511
  %v4568 = vpack.c.b16 %v4516, %v4512
  %v4569 = vpack.c.b16 %v4517, %v4513
  %v4570 = vpack.c.b16 %v4518, %v4514
  %v4571 = vpack.c.b16 %v4523, %v4519
  %v4572 = vpack.c.b16 %v4524, %v4520
  %v4573 = vpack.c.b16 %v4525, %v4521
  %v4574 = vpack.c.b16 %v4526, %v4522
  %v4575 = vpack.c.b16 %v4531, %v4527
  %v4576 = vpack.c.b16 %v4532, %v4528
  %v4577 = vpack.c.b16 %v4533, %v4529
  %v4578 = vpack.c.b16 %v4534, %v4530
  %v4579 = vpack.c.b16 %v4539, %v4535
  %v4580 = vpack.c.b16 %v4540, %v4536
  %v4581 = vpack.c.b16 %v4541, %v4537
  %v4582 = vpack.c.b16 %v4542, %v4538
  %v4583 = vpack.c.b16 %v4547, %v4543
  %v4584 = vpack.c.b16 %v4548, %v4544
  %v4585 = vpack.c.b16 %v4549, %v4545
  %v4586 = vpack.c.b16 %v4550, %v4546
  %v4587 = vpack.c.b16 %v4555, %v4551
  %v4588 = vpack.c.b16 %v4556, %v4552
  %v4589 = vpack.c.b16 %v4557, %v4553
  %v4590 = vpack.c.b16 %v4558, %v4554
  %4623 = vmatprep.subr.bf16.mxu0 %v4588
  %4624 = vmatpush1.bf16.msra.mxu0 %v4587
  %4625 = vmatprep.subr.bf16.mxu0 %v4584
  %4626 = vmatpush1.bf16.msra.mxu0 %v4583
  %4627 = vmatprep.subr.bf16.mxu0 %v4580
  %4628 = vmatpush1.bf16.msra.mxu0 %v4579
  %4629 = vmatprep.subr.bf16.mxu0 %v4576
  %4630 = vmatpush1.bf16.msra.mxu0 %v4575
  %4631 = vmatprep.subr.bf16.mxu0 %v4572
  %4632 = vmatpush1.bf16.msra.mxu0 %v4571
  %4633 = vmatprep.subr.bf16.mxu0 %v4568
  %4634 = vmatpush1.bf16.msra.mxu0 %v4567
  %4635 = vmatprep.subr.bf16.mxu0 %v4564
  %4636 = vmatpush1.bf16.msra.mxu0 %v4563
  %4637 = vmatprep.subr.bf16.mxu0 %v4560
  %4638 = vmatpush1.bf16.msra.mxu0 %v4559
  %4639 = vmatprep.subr.bf16.mxu0 0
  %4640 = vmatpush2.bf16.msra.mxu0 0
  %4641 = vmatprep.subr.bf16.mxu0 0
  %4642 = vmatpush2.bf16.msra.mxu0 0
  %4643 = vmatprep.subr.bf16.mxu0 0
  %4644 = vmatpush2.bf16.msra.mxu0 0
  %4645 = vmatprep.subr.bf16.mxu0 0
  %4646 = vmatpush2.bf16.msra.mxu0 0
  %4647 = vmatprep.subr.bf16.mxu0 0
  %4648 = vmatpush2.bf16.msra.mxu0 0
  %4649 = vmatprep.subr.bf16.mxu0 0
  %4650 = vmatpush2.bf16.msra.mxu0 0
  %4651 = vmatprep.subr.bf16.mxu0 0
  %4652 = vmatpush2.bf16.msra.mxu0 0
  %4653 = vmatprep.subr.bf16.mxu0 0
  %4654 = vmatpush2.bf16.msra.mxu0 0
  %4655 = vmatprep.mubr.bf16.mxu0 0
  %4656 = vmatmul.mubr.bf16.gmra.mxu0 %v4265
  %v4657 = vpop.f32.mrf.mxu0
  %v4658 = vadd.f32 0.0, %v4657
  %v4659 = vpop.f32.mrf.mxu0
  %v4660 = vadd.f32 0.0, %v4659
  %v4661 = vpop.f32.mrf.mxu0
  %v4662 = vpop.f32.mrf.mxu0
  %4663 = vdwg.mxu0
  %4664 = vmatprep.subr.bf16.mxu0 %v4590
  %4665 = vmatpush1.bf16.msra.mxu0 %v4589
  %4666 = vmatprep.subr.bf16.mxu0 %v4586
  %4667 = vmatpush1.bf16.msra.mxu0 %v4585
  %4668 = vmatprep.subr.bf16.mxu0 %v4582
  %4669 = vmatpush1.bf16.msra.mxu0 %v4581
  %4670 = vmatprep.subr.bf16.mxu0 %v4578
  %4671 = vmatpush1.bf16.msra.mxu0 %v4577
  %4672 = vmatprep.subr.bf16.mxu0 %v4574
  %4673 = vmatpush1.bf16.msra.mxu0 %v4573
  %4674 = vmatprep.subr.bf16.mxu0 %v4570
  %4675 = vmatpush1.bf16.msra.mxu0 %v4569
  %4676 = vmatprep.subr.bf16.mxu0 %v4566
  %4677 = vmatpush1.bf16.msra.mxu0 %v4565
  %4678 = vmatprep.subr.bf16.mxu0 %v4562
  %4679 = vmatpush1.bf16.msra.mxu0 %v4561
  %4680 = vmatprep.subr.bf16.mxu0 0
  %4681 = vmatpush2.bf16.msra.mxu0 0
  %4682 = vmatprep.subr.bf16.mxu0 0
  %4683 = vmatpush2.bf16.msra.mxu0 0
  %4684 = vmatprep.subr.bf16.mxu0 0
  %4685 = vmatpush2.bf16.msra.mxu0 0
  %4686 = vmatprep.subr.bf16.mxu0 0
  %4687 = vmatpush2.bf16.msra.mxu0 0
  %4688 = vmatprep.subr.bf16.mxu0 0
  %4689 = vmatpush2.bf16.msra.mxu0 0
  %4690 = vmatprep.subr.bf16.mxu0 0
  %4691 = vmatpush2.bf16.msra.mxu0 0
  %4692 = vmatprep.subr.bf16.mxu0 0
  %4693 = vmatpush2.bf16.msra.mxu0 0
  %4694 = vmatprep.subr.bf16.mxu0 0
  %4695 = vmatpush2.bf16.msra.mxu0 0
  %4696 = vmatprep.mubr.bf16.mxu0 0
  %4697 = vmatmul.mubr.bf16.gmra.mxu0 %v4265
  %v4698 = vpop.f32.mrf.mxu0
  %v4699 = vadd.f32 0.0, %v4698
  %v4700 = vpop.f32.mrf.mxu0
  %v4701 = vadd.f32 0.0, %v4700
  %v4702 = vpop.f32.mrf.mxu0
  %v4703 = vpop.f32.mrf.mxu0
  %4704 = vdwg.mxu0
  %v4705 = vadd.f32 %v4427, %v4658
  %v4706 = vadd.f32 %v4428, %v4660
  %v4707 = vadd.f32 %v4429, %v4699
  %v4708 = vadd.f32 %v4430, %v4701
  %v4709 = vxor.u32 %v4705, 2147483648
  %v4710 = vxor.u32 %v4706, 2147483648
  %v4711 = vxor.u32 %v4707, 2147483648
  %v4712 = vmul.f32 %v4709, 1.442695
  %v4713 = vpow.pop %v4712
  %v4714 = vmul.f32 %v4710, 1.442695
  %v4715 = vpow.pop %v4714
  %v4716 = vmul.f32 %v4711, 1.442695
  %v4717 = vpow.pop %v4716
  %v4718 = vadd.f32 %v4713, 1.0
  %v4719 = vadd.f32 %v4715, 1.0
  %v4720 = vadd.f32 %v4717, 1.0
  %v4721 = vrcp.pop %v4718
  %v4722 = vmul.f32 1.0, %v4721
  %v4723 = vrcp.pop %v4719
  %v4724 = vmul.f32 1.0, %v4723
  %v4725 = vrcp.pop %v4720
  %v4726 = vmul.f32 1.0, %v4725
  %v4727 = vtanh.pop %v4708
  %v4728 = vmul.f32 %v4724, %v4262
  %v4729 = vmul.f32 %v4722, %v4727
  %v4730 = vadd.f32 %v4728, %v4729
  %v4731 = vtanh.pop %v4730
  %v4732 = vmul.f32 %v4726, %v4731
  %v4733 = vpack.c.bf16 %v4732, %v4732
  %v4734 = vpack.c.bf16 %v4424, %v4424
  %v4735 = vld [vmem:[%s4] sm:$0xf]
  %v4736 = vld [vmem:[%s4 + $0x4] sm:$0xf]
  %v4737 = vld [vmem:[%s4 + $0x8] sm:$0xf]
  %v4738 = vld [vmem:[%s4 + $0xc] sm:$0xf]
  %v4739 = vld [vmem:[%s4 + $0x10] sm:$0xf]
  %v4740 = vld [vmem:[%s4 + $0x14] sm:$0xf]
  %v4741 = vld [vmem:[%s4 + $0x18] sm:$0xf]
  %v4742 = vld [vmem:[%s4 + $0x1c] sm:$0xf]
  %v4743 = vld [vmem:[%s4 + $0x20] sm:$0xf]
  %v4744 = vld [vmem:[%s4 + $0x24] sm:$0xf]
  %v4745 = vld [vmem:[%s4 + $0x28] sm:$0xf]
  %v4746 = vld [vmem:[%s4 + $0x2c] sm:$0xf]
  %v4747 = vld [vmem:[%s4 + $0x30] sm:$0xf]
  %v4748 = vld [vmem:[%s4 + $0x34] sm:$0xf]
  %v4749 = vld [vmem:[%s4 + $0x38] sm:$0xf]
  %v4750 = vld [vmem:[%s4 + $0x3c] sm:$0xf]
  %v4751 = vld [vmem:[%s4 + $0x40] sm:$0xf]
  %v4752 = vld [vmem:[%s4 + $0x44] sm:$0xf]
  %v4753 = vld [vmem:[%s4 + $0x48] sm:$0xf]
  %v4754 = vld [vmem:[%s4 + $0x4c] sm:$0xf]
  %v4755 = vld [vmem:[%s5] sm:$0x1]
  %v4757 = vlaneseq
  %v4758 = vshrl.u32 %v4757, 7
  %v4759 = vsub.s32 0, %v4758
  %v4760 = vrot.slane %v4755, %v4759
  %v4782 = vunpack.c.l.b16 %v4735
  %v4783 = vunpack.c.l.b16 %v4736
  %v4784 = vunpack.c.l.b16 %v4737
  %v4785 = vunpack.c.l.b16 %v4738
  %v4786 = vunpack.c.l.b16 %v4739
  %v4787 = vunpack.c.l.b16 %v4740
  %v4788 = vunpack.c.l.b16 %v4741
  %v4789 = vunpack.c.l.b16 %v4742
  %v4790 = vunpack.c.l.b16 %v4743
  %v4791 = vunpack.c.l.b16 %v4744
  %v4792 = vunpack.c.l.b16 %v4745
  %v4793 = vunpack.c.l.b16 %v4746
  %v4794 = vunpack.c.l.b16 %v4747
  %v4795 = vunpack.c.l.b16 %v4748
  %v4796 = vunpack.c.l.b16 %v4749
  %v4797 = vunpack.c.l.b16 %v4750
  %v4798 = vunpack.c.l.b16 %v4751
  %v4799 = vunpack.c.l.b16 %v4752
  %v4800 = vunpack.c.l.b16 %v4753
  %v4801 = vunpack.c.l.b16 %v4754
  %v4802 = vpack.c.b16 %v4783, %v4782
  %v4803 = vpack.c.b16 %v4785, %v4784
  %v4804 = vpack.c.b16 %v4787, %v4786
  %v4805 = vpack.c.b16 %v4789, %v4788
  %v4806 = vpack.c.b16 %v4791, %v4790
  %v4807 = vpack.c.b16 %v4793, %v4792
  %v4808 = vpack.c.b16 %v4795, %v4794
  %v4809 = vpack.c.b16 %v4797, %v4796
  %v4810 = vpack.c.b16 %v4799, %v4798
  %v4811 = vpack.c.b16 %v4801, %v4800
  %v4823 = vsel %vm1077, %v4734, 0
  %4825 = vmatprep.subr.bf16.mxu0 0
  %4826 = vmatpush1.bf16.msra.mxu0 %v4809
  %4827 = vmatprep.subr.bf16.mxu0 0
  %4828 = vmatpush1.bf16.msra.mxu0 %v4808
  %4829 = vmatprep.subr.bf16.mxu0 0
  %4830 = vmatpush1.bf16.msra.mxu0 %v4807
  %4831 = vmatprep.subr.bf16.mxu0 0
  %4832 = vmatpush1.bf16.msra.mxu0 %v4806
  %4833 = vmatprep.subr.bf16.mxu0 0
  %4834 = vmatpush1.bf16.msra.mxu0 %v4805
  %4835 = vmatprep.subr.bf16.mxu0 0
  %4836 = vmatpush1.bf16.msra.mxu0 %v4804
  %4837 = vmatprep.subr.bf16.mxu0 0
  %4838 = vmatpush1.bf16.msra.mxu0 %v4803
  %4839 = vmatprep.subr.bf16.mxu0 0
  %4840 = vmatpush1.bf16.msra.mxu0 %v4802
  %4841 = vmatprep.subr.bf16.mxu0 0
  %4842 = vmatpush2.bf16.msra.mxu0 0
  %4843 = vmatprep.subr.bf16.mxu0 0
  %4844 = vmatpush2.bf16.msra.mxu0 0
  %4845 = vmatprep.subr.bf16.mxu0 0
  %4846 = vmatpush2.bf16.msra.mxu0 0
  %4847 = vmatprep.subr.bf16.mxu0 0
  %4848 = vmatpush2.bf16.msra.mxu0 0
  %4849 = vmatprep.subr.bf16.mxu0 0
  %4850 = vmatpush2.bf16.msra.mxu0 0
  %4851 = vmatprep.subr.bf16.mxu0 0
  %4852 = vmatpush2.bf16.msra.mxu0 0
  %4853 = vmatprep.subr.bf16.mxu0 0
  %4854 = vmatpush2.bf16.msra.mxu0 %v4811
  %4855 = vmatprep.subr.bf16.mxu0 0
  %4856 = vmatpush2.bf16.msra.mxu0 %v4810
  %4857 = vmatprep.mubr.bf16.mxu0 %v4823
  %4858 = vmatmul.mubr.bf16.gmra.mxu0 %v4733
  %v4859 = vpop.f32.mrf.mxu0
  %v4860 = vadd.f32 %v4760, %v4859
  %v4861 = vpop.f32.mrf.mxu0
  %v4862 = vpop.f32.mrf.mxu0
  %v4863 = vpop.f32.mrf.mxu0
  %4864 = vdwg.mxu0
  %v4865 = vxor.u32 %v4860, 2147483648
  %v4866 = vmul.f32 %v4865, 1.442695
  %v4867 = vpow.pop %v4866
  %v4868 = vadd.f32 %v4867, 1.0
  %v4869 = vrcp.pop %v4868
  %v4870 = vmul.f32 1.0, %v4869
  %v4871 = vtanh.pop %v4860
  %v4872 = vsel %vm681, %v4870, %v4871
  %v4873 = vmul.f32 %v4872, %v4415
  %4875 = vrot.lane.b32.xlu0 %v4872, 32
  %v4876 = vpop.permute.xlu0 %4875
  %v4878 = vmul.f32 %v4872, %v4876
  %4880 = vrot.lane.b32.xlu0 %v4878, 32
  %v4881 = vpop.permute.xlu0 %4880
  %v4883 = vadd.f32 %v4873, %v4881
  %v4884 = vtanh.pop %v4883
  %4886 = vrot.lane.b32.xlu0 %v4884, 32
  %v4887 = vpop.permute.xlu0 %4886
  %v4889 = vmul.f32 %v4872, %v4887
  %4891 = vrot.lane.b32.xlu0 %v4889, 64
  %v4892 = vpop.permute.xlu0 %4891
  %4894 = vst.msk [vmem:[#allocation3 + $0x40] sm:$0xff] %vm1077, %v4892
  %v4895 = vld [vmem:[#allocation2 + $0x120] sm:$0xff]
  %v4896 = vld [vmem:[#allocation2 + $0x128] sm:$0xff]
  %v4897 = vld [vmem:[#allocation2 + $0x130] sm:$0xff]
  %v4898 = vld [vmem:[#allocation2 + $0x138] sm:$0xff]
  %v4899 = vld [vmem:[%s2] sm:$0xff]
  %v4900 = vld [vmem:[%s2 + $0x8] sm:$0xff]
  %v4901 = vld [vmem:[%s2 + $0x10] sm:$0xff]
  %v4902 = vld [vmem:[%s2 + $0x18] sm:$0xff]
  %v4903 = vld [vmem:[%s2 + $0x20] sm:$0xff]
  %v4904 = vld [vmem:[%s2 + $0x28] sm:$0xff]
  %v4905 = vld [vmem:[%s2 + $0x30] sm:$0xff]
  %v4906 = vld [vmem:[%s2 + $0x38] sm:$0xff]
  %v4907 = vld [vmem:[%s2 + $0x40] sm:$0xff]
  %v4908 = vld [vmem:[%s2 + $0x48] sm:$0xff]
  %v4909 = vld [vmem:[%s2 + $0x50] sm:$0xff]
  %v4910 = vld [vmem:[%s2 + $0x58] sm:$0xff]
  %v4911 = vld [vmem:[%s2 + $0x60] sm:$0xff]
  %v4912 = vld [vmem:[%s2 + $0x68] sm:$0xff]
  %v4913 = vld [vmem:[%s2 + $0x70] sm:$0xff]
  %v4914 = vld [vmem:[%s2 + $0x78] sm:$0xff]
  %v4915 = vld [vmem:[%s2 + $0x80] sm:$0xff]
  %v4916 = vld [vmem:[%s2 + $0x88] sm:$0xff]
  %v4917 = vld [vmem:[%s2 + $0x90] sm:$0xff]
  %v4918 = vld [vmem:[%s2 + $0x98] sm:$0xff]
  %v4919 = vld [vmem:[%s2 + $0xa0] sm:$0xff]
  %v4920 = vld [vmem:[%s2 + $0xa8] sm:$0xff]
  %v4921 = vld [vmem:[%s2 + $0xb0] sm:$0xff]
  %v4922 = vld [vmem:[%s2 + $0xb8] sm:$0xff]
  %v4923 = vld [vmem:[%s2 + $0xc0] sm:$0xff]
  %v4924 = vld [vmem:[%s2 + $0xc8] sm:$0xff]
  %v4925 = vld [vmem:[%s2 + $0xd0] sm:$0xff]
  %v4926 = vld [vmem:[%s2 + $0xd8] sm:$0xff]
  %v4927 = vld [vmem:[%s2 + $0xe0] sm:$0xff]
  %v4928 = vld [vmem:[%s2 + $0xe8] sm:$0xff]
  %v4929 = vld [vmem:[%s2 + $0xf0] sm:$0xff]
  %v4930 = vld [vmem:[%s2 + $0xf8] sm:$0xff]
  %v4963 = vunpack.c.l.b16 %v4899
  %v4964 = vunpack.c.h.b16 %v4899
  %v4965 = vunpack.c.l.b16 %v4900
  %v4966 = vunpack.c.h.b16 %v4900
  %v4967 = vunpack.c.l.b16 %v4901
  %v4968 = vunpack.c.h.b16 %v4901
  %v4969 = vunpack.c.l.b16 %v4902
  %v4970 = vunpack.c.h.b16 %v4902
  %v4971 = vunpack.c.l.b16 %v4903
  %v4972 = vunpack.c.h.b16 %v4903
  %v4973 = vunpack.c.l.b16 %v4904
  %v4974 = vunpack.c.h.b16 %v4904
  %v4975 = vunpack.c.l.b16 %v4905
  %v4976 = vunpack.c.h.b16 %v4905
  %v4977 = vunpack.c.l.b16 %v4906
  %v4978 = vunpack.c.h.b16 %v4906
  %v4979 = vunpack.c.l.b16 %v4907
  %v4980 = vunpack.c.h.b16 %v4907
  %v4981 = vunpack.c.l.b16 %v4908
  %v4982 = vunpack.c.h.b16 %v4908
  %v4983 = vunpack.c.l.b16 %v4909
  %v4984 = vunpack.c.h.b16 %v4909
  %v4985 = vunpack.c.l.b16 %v4910
  %v4986 = vunpack.c.h.b16 %v4910
  %v4987 = vunpack.c.l.b16 %v4911
  %v4988 = vunpack.c.h.b16 %v4911
  %v4989 = vunpack.c.l.b16 %v4912
  %v4990 = vunpack.c.h.b16 %v4912
  %v4991 = vunpack.c.l.b16 %v4913
  %v4992 = vunpack.c.h.b16 %v4913
  %v4993 = vunpack.c.l.b16 %v4914
  %v4994 = vunpack.c.h.b16 %v4914
  %v4995 = vunpack.c.l.b16 %v4915
  %v4996 = vunpack.c.h.b16 %v4915
  %v4997 = vunpack.c.l.b16 %v4916
  %v4998 = vunpack.c.h.b16 %v4916
  %v4999 = vunpack.c.l.b16 %v4917
  %v5000 = vunpack.c.h.b16 %v4917
  %v5001 = vunpack.c.l.b16 %v4918
  %v5002 = vunpack.c.h.b16 %v4918
  %v5003 = vunpack.c.l.b16 %v4919
  %v5004 = vunpack.c.h.b16 %v4919
  %v5005 = vunpack.c.l.b16 %v4920
  %v5006 = vunpack.c.h.b16 %v4920
  %v5007 = vunpack.c.l.b16 %v4921
  %v5008 = vunpack.c.h.b16 %v4921
  %v5009 = vunpack.c.l.b16 %v4922
  %v5010 = vunpack.c.h.b16 %v4922
  %v5011 = vunpack.c.l.b16 %v4923
  %v5012 = vunpack.c.h.b16 %v4923
  %v5013 = vunpack.c.l.b16 %v4924
  %v5014 = vunpack.c.h.b16 %v4924
  %v5015 = vunpack.c.l.b16 %v4925
  %v5016 = vunpack.c.h.b16 %v4925
  %v5017 = vunpack.c.l.b16 %v4926
  %v5018 = vunpack.c.h.b16 %v4926
  %v5019 = vunpack.c.l.b16 %v4927
  %v5020 = vunpack.c.h.b16 %v4927
  %v5021 = vunpack.c.l.b16 %v4928
  %v5022 = vunpack.c.h.b16 %v4928
  %v5023 = vunpack.c.l.b16 %v4929
  %v5024 = vunpack.c.h.b16 %v4929
  %v5025 = vunpack.c.l.b16 %v4930
  %v5026 = vunpack.c.h.b16 %v4930
  %v5027 = vpack.c.b16 %v4967, %v4963
  %v5028 = vpack.c.b16 %v4968, %v4964
  %v5029 = vpack.c.b16 %v4969, %v4965
  %v5030 = vpack.c.b16 %v4970, %v4966
  %v5031 = vpack.c.b16 %v4975, %v4971
  %v5032 = vpack.c.b16 %v4976, %v4972
  %v5033 = vpack.c.b16 %v4977, %v4973
  %v5034 = vpack.c.b16 %v4978, %v4974
  %v5035 = vpack.c.b16 %v4983, %v4979
  %v5036 = vpack.c.b16 %v4984, %v4980
  %v5037 = vpack.c.b16 %v4985, %v4981
  %v5038 = vpack.c.b16 %v4986, %v4982
  %v5039 = vpack.c.b16 %v4991, %v4987
  %v5040 = vpack.c.b16 %v4992, %v4988
  %v5041 = vpack.c.b16 %v4993, %v4989
  %v5042 = vpack.c.b16 %v4994, %v4990
  %v5043 = vpack.c.b16 %v4999, %v4995
  %v5044 = vpack.c.b16 %v5000, %v4996
  %v5045 = vpack.c.b16 %v5001, %v4997
  %v5046 = vpack.c.b16 %v5002, %v4998
  %v5047 = vpack.c.b16 %v5007, %v5003
  %v5048 = vpack.c.b16 %v5008, %v5004
  %v5049 = vpack.c.b16 %v5009, %v5005
  %v5050 = vpack.c.b16 %v5010, %v5006
  %v5051 = vpack.c.b16 %v5015, %v5011
  %v5052 = vpack.c.b16 %v5016, %v5012
  %v5053 = vpack.c.b16 %v5017, %v5013
  %v5054 = vpack.c.b16 %v5018, %v5014
  %v5055 = vpack.c.b16 %v5023, %v5019
  %v5056 = vpack.c.b16 %v5024, %v5020
  %v5057 = vpack.c.b16 %v5025, %v5021
  %v5058 = vpack.c.b16 %v5026, %v5022
  %5091 = vmatprep.subr.bf16.mxu0 %v5056
  %5092 = vmatpush1.bf16.msra.mxu0 %v5055
  %5093 = vmatprep.subr.bf16.mxu0 %v5052
  %5094 = vmatpush1.bf16.msra.mxu0 %v5051
  %5095 = vmatprep.subr.bf16.mxu0 %v5048
  %5096 = vmatpush1.bf16.msra.mxu0 %v5047
  %5097 = vmatprep.subr.bf16.mxu0 %v5044
  %5098 = vmatpush1.bf16.msra.mxu0 %v5043
  %5099 = vmatprep.subr.bf16.mxu0 %v5040
  %5100 = vmatpush1.bf16.msra.mxu0 %v5039
  %5101 = vmatprep.subr.bf16.mxu0 %v5036
  %5102 = vmatpush1.bf16.msra.mxu0 %v5035
  %5103 = vmatprep.subr.bf16.mxu0 %v5032
  %5104 = vmatpush1.bf16.msra.mxu0 %v5031
  %5105 = vmatprep.subr.bf16.mxu0 %v5028
  %5106 = vmatpush1.bf16.msra.mxu0 %v5027
  %5107 = vmatprep.subr.bf16.mxu0 0
  %5108 = vmatpush2.bf16.msra.mxu0 0
  %5109 = vmatprep.subr.bf16.mxu0 0
  %5110 = vmatpush2.bf16.msra.mxu0 0
  %5111 = vmatprep.subr.bf16.mxu0 0
  %5112 = vmatpush2.bf16.msra.mxu0 0
  %5113 = vmatprep.subr.bf16.mxu0 0
  %5114 = vmatpush2.bf16.msra.mxu0 0
  %5115 = vmatprep.subr.bf16.mxu0 0
  %5116 = vmatpush2.bf16.msra.mxu0 0
  %5117 = vmatprep.subr.bf16.mxu0 0
  %5118 = vmatpush2.bf16.msra.mxu0 0
  %5119 = vmatprep.subr.bf16.mxu0 0
  %5120 = vmatpush2.bf16.msra.mxu0 0
  %5121 = vmatprep.subr.bf16.mxu0 0
  %5122 = vmatpush2.bf16.msra.mxu0 0
  %5123 = vmatprep.mubr.bf16.mxu0 0
  %5124 = vmatmul.mubr.bf16.gmra.mxu0 %v4733
  %v5125 = vpop.f32.mrf.mxu0
  %v5126 = vadd.f32 0.0, %v5125
  %v5127 = vpop.f32.mrf.mxu0
  %v5128 = vadd.f32 0.0, %v5127
  %v5129 = vpop.f32.mrf.mxu0
  %v5130 = vpop.f32.mrf.mxu0
  %5131 = vdwg.mxu0
  %5132 = vmatprep.subr.bf16.mxu0 %v5058
  %5133 = vmatpush1.bf16.msra.mxu0 %v5057
  %5134 = vmatprep.subr.bf16.mxu0 %v5054
  %5135 = vmatpush1.bf16.msra.mxu0 %v5053
  %5136 = vmatprep.subr.bf16.mxu0 %v5050
  %5137 = vmatpush1.bf16.msra.mxu0 %v5049
  %5138 = vmatprep.subr.bf16.mxu0 %v5046
  %5139 = vmatpush1.bf16.msra.mxu0 %v5045
  %5140 = vmatprep.subr.bf16.mxu0 %v5042
  %5141 = vmatpush1.bf16.msra.mxu0 %v5041
  %5142 = vmatprep.subr.bf16.mxu0 %v5038
  %5143 = vmatpush1.bf16.msra.mxu0 %v5037
  %5144 = vmatprep.subr.bf16.mxu0 %v5034
  %5145 = vmatpush1.bf16.msra.mxu0 %v5033
  %5146 = vmatprep.subr.bf16.mxu0 %v5030
  %5147 = vmatpush1.bf16.msra.mxu0 %v5029
  %5148 = vmatprep.subr.bf16.mxu0 0
  %5149 = vmatpush2.bf16.msra.mxu0 0
  %5150 = vmatprep.subr.bf16.mxu0 0
  %5151 = vmatpush2.bf16.msra.mxu0 0
  %5152 = vmatprep.subr.bf16.mxu0 0
  %5153 = vmatpush2.bf16.msra.mxu0 0
  %5154 = vmatprep.subr.bf16.mxu0 0
  %5155 = vmatpush2.bf16.msra.mxu0 0
  %5156 = vmatprep.subr.bf16.mxu0 0
  %5157 = vmatpush2.bf16.msra.mxu0 0
  %5158 = vmatprep.subr.bf16.mxu0 0
  %5159 = vmatpush2.bf16.msra.mxu0 0
  %5160 = vmatprep.subr.bf16.mxu0 0
  %5161 = vmatpush2.bf16.msra.mxu0 0
  %5162 = vmatprep.subr.bf16.mxu0 0
  %5163 = vmatpush2.bf16.msra.mxu0 0
  %5164 = vmatprep.mubr.bf16.mxu0 0
  %5165 = vmatmul.mubr.bf16.gmra.mxu0 %v4733
  %v5166 = vpop.f32.mrf.mxu0
  %v5167 = vadd.f32 0.0, %v5166
  %v5168 = vpop.f32.mrf.mxu0
  %v5169 = vadd.f32 0.0, %v5168
  %v5170 = vpop.f32.mrf.mxu0
  %v5171 = vpop.f32.mrf.mxu0
  %5172 = vdwg.mxu0
  %v5173 = vadd.f32 %v4895, %v5126
  %v5174 = vadd.f32 %v4896, %v5128
  %v5175 = vadd.f32 %v4897, %v5167
  %v5176 = vadd.f32 %v4898, %v5169
  %v5177 = vxor.u32 %v5173, 2147483648
  %v5178 = vxor.u32 %v5174, 2147483648
  %v5179 = vxor.u32 %v5175, 2147483648
  %v5180 = vmul.f32 %v5177, 1.442695
  %v5181 = vpow.pop %v5180
  %v5182 = vmul.f32 %v5178, 1.442695
  %v5183 = vpow.pop %v5182
  %v5184 = vmul.f32 %v5179, 1.442695
  %v5185 = vpow.pop %v5184
  %v5186 = vadd.f32 %v5181, 1.0
  %v5187 = vadd.f32 %v5183, 1.0
  %v5188 = vadd.f32 %v5185, 1.0
  %v5189 = vrcp.pop %v5186
  %v5190 = vmul.f32 1.0, %v5189
  %v5191 = vrcp.pop %v5187
  %v5192 = vmul.f32 1.0, %v5191
  %v5193 = vrcp.pop %v5188
  %v5194 = vmul.f32 1.0, %v5193
  %v5195 = vtanh.pop %v5176
  %v5196 = vmul.f32 %v5192, %v4730
  %v5197 = vmul.f32 %v5190, %v5195
  %v5198 = vadd.f32 %v5196, %v5197
  %v5199 = vtanh.pop %v5198
  %v5200 = vmul.f32 %v5194, %v5199
  %v5201 = vpack.c.bf16 %v5200, %v5200
  %v5202 = vpack.c.bf16 %v4892, %v4892
  %v5203 = vld [vmem:[%s4] sm:$0xf]
  %v5204 = vld [vmem:[%s4 + $0x4] sm:$0xf]
  %v5205 = vld [vmem:[%s4 + $0x8] sm:$0xf]
  %v5206 = vld [vmem:[%s4 + $0xc] sm:$0xf]
  %v5207 = vld [vmem:[%s4 + $0x10] sm:$0xf]
  %v5208 = vld [vmem:[%s4 + $0x14] sm:$0xf]
  %v5209 = vld [vmem:[%s4 + $0x18] sm:$0xf]
  %v5210 = vld [vmem:[%s4 + $0x1c] sm:$0xf]
  %v5211 = vld [vmem:[%s4 + $0x20] sm:$0xf]
  %v5212 = vld [vmem:[%s4 + $0x24] sm:$0xf]
  %v5213 = vld [vmem:[%s4 + $0x28] sm:$0xf]
  %v5214 = vld [vmem:[%s4 + $0x2c] sm:$0xf]
  %v5215 = vld [vmem:[%s4 + $0x30] sm:$0xf]
  %v5216 = vld [vmem:[%s4 + $0x34] sm:$0xf]
  %v5217 = vld [vmem:[%s4 + $0x38] sm:$0xf]
  %v5218 = vld [vmem:[%s4 + $0x3c] sm:$0xf]
  %v5219 = vld [vmem:[%s4 + $0x40] sm:$0xf]
  %v5220 = vld [vmem:[%s4 + $0x44] sm:$0xf]
  %v5221 = vld [vmem:[%s4 + $0x48] sm:$0xf]
  %v5222 = vld [vmem:[%s4 + $0x4c] sm:$0xf]
  %v5223 = vld [vmem:[%s5] sm:$0x1]
  %v5225 = vlaneseq
  %v5226 = vshrl.u32 %v5225, 7
  %v5227 = vsub.s32 0, %v5226
  %v5228 = vrot.slane %v5223, %v5227
  %v5250 = vunpack.c.l.b16 %v5203
  %v5251 = vunpack.c.l.b16 %v5204
  %v5252 = vunpack.c.l.b16 %v5205
  %v5253 = vunpack.c.l.b16 %v5206
  %v5254 = vunpack.c.l.b16 %v5207
  %v5255 = vunpack.c.l.b16 %v5208
  %v5256 = vunpack.c.l.b16 %v5209
  %v5257 = vunpack.c.l.b16 %v5210
  %v5258 = vunpack.c.l.b16 %v5211
  %v5259 = vunpack.c.l.b16 %v5212
  %v5260 = vunpack.c.l.b16 %v5213
  %v5261 = vunpack.c.l.b16 %v5214
  %v5262 = vunpack.c.l.b16 %v5215
  %v5263 = vunpack.c.l.b16 %v5216
  %v5264 = vunpack.c.l.b16 %v5217
  %v5265 = vunpack.c.l.b16 %v5218
  %v5266 = vunpack.c.l.b16 %v5219
  %v5267 = vunpack.c.l.b16 %v5220
  %v5268 = vunpack.c.l.b16 %v5221
  %v5269 = vunpack.c.l.b16 %v5222
  %v5270 = vpack.c.b16 %v5251, %v5250
  %v5271 = vpack.c.b16 %v5253, %v5252
  %v5272 = vpack.c.b16 %v5255, %v5254
  %v5273 = vpack.c.b16 %v5257, %v5256
  %v5274 = vpack.c.b16 %v5259, %v5258
  %v5275 = vpack.c.b16 %v5261, %v5260
  %v5276 = vpack.c.b16 %v5263, %v5262
  %v5277 = vpack.c.b16 %v5265, %v5264
  %v5278 = vpack.c.b16 %v5267, %v5266
  %v5279 = vpack.c.b16 %v5269, %v5268
  %v5291 = vsel %vm1077, %v5202, 0
  %5293 = vmatprep.subr.bf16.mxu0 0
  %5294 = vmatpush1.bf16.msra.mxu0 %v5277
  %5295 = vmatprep.subr.bf16.mxu0 0
  %5296 = vmatpush1.bf16.msra.mxu0 %v5276
  %5297 = vmatprep.subr.bf16.mxu0 0
  %5298 = vmatpush1.bf16.msra.mxu0 %v5275
  %5299 = vmatprep.subr.bf16.mxu0 0
  %5300 = vmatpush1.bf16.msra.mxu0 %v5274
  %5301 = vmatprep.subr.bf16.mxu0 0
  %5302 = vmatpush1.bf16.msra.mxu0 %v5273
  %5303 = vmatprep.subr.bf16.mxu0 0
  %5304 = vmatpush1.bf16.msra.mxu0 %v5272
  %5305 = vmatprep.subr.bf16.mxu0 0
  %5306 = vmatpush1.bf16.msra.mxu0 %v5271
  %5307 = vmatprep.subr.bf16.mxu0 0
  %5308 = vmatpush1.bf16.msra.mxu0 %v5270
  %5309 = vmatprep.subr.bf16.mxu0 0
  %5310 = vmatpush2.bf16.msra.mxu0 0
  %5311 = vmatprep.subr.bf16.mxu0 0
  %5312 = vmatpush2.bf16.msra.mxu0 0
  %5313 = vmatprep.subr.bf16.mxu0 0
  %5314 = vmatpush2.bf16.msra.mxu0 0
  %5315 = vmatprep.subr.bf16.mxu0 0
  %5316 = vmatpush2.bf16.msra.mxu0 0
  %5317 = vmatprep.subr.bf16.mxu0 0
  %5318 = vmatpush2.bf16.msra.mxu0 0
  %5319 = vmatprep.subr.bf16.mxu0 0
  %5320 = vmatpush2.bf16.msra.mxu0 0
  %5321 = vmatprep.subr.bf16.mxu0 0
  %5322 = vmatpush2.bf16.msra.mxu0 %v5279
  %5323 = vmatprep.subr.bf16.mxu0 0
  %5324 = vmatpush2.bf16.msra.mxu0 %v5278
  %5325 = vmatprep.mubr.bf16.mxu0 %v5291
  %5326 = vmatmul.mubr.bf16.gmra.mxu0 %v5201
  %v5327 = vpop.f32.mrf.mxu0
  %v5328 = vadd.f32 %v5228, %v5327
  %v5329 = vpop.f32.mrf.mxu0
  %v5330 = vpop.f32.mrf.mxu0
  %v5331 = vpop.f32.mrf.mxu0
  %5332 = vdwg.mxu0
  %v5333 = vxor.u32 %v5328, 2147483648
  %v5334 = vmul.f32 %v5333, 1.442695
  %v5335 = vpow.pop %v5334
  %v5336 = vadd.f32 %v5335, 1.0
  %v5337 = vrcp.pop %v5336
  %v5338 = vmul.f32 1.0, %v5337
  %v5339 = vtanh.pop %v5328
  %v5340 = vsel %vm681, %v5338, %v5339
  %v5341 = vmul.f32 %v5340, %v4883
  %5343 = vrot.lane.b32.xlu0 %v5340, 32
  %v5344 = vpop.permute.xlu0 %5343
  %v5346 = vmul.f32 %v5340, %v5344
  %5348 = vrot.lane.b32.xlu0 %v5346, 32
  %v5349 = vpop.permute.xlu0 %5348
  %v5351 = vadd.f32 %v5341, %v5349
  %v5352 = vtanh.pop %v5351
  %5354 = vrot.lane.b32.xlu0 %v5352, 32
  %v5355 = vpop.permute.xlu0 %5354
  %v5357 = vmul.f32 %v5340, %v5355
  %5359 = vrot.lane.b32.xlu0 %v5357, 64
  %v5360 = vpop.permute.xlu0 %5359
  %5362 = vst.msk [vmem:[#allocation3 + $0x48] sm:$0xff] %vm1077, %v5360
  %v5363 = vld [vmem:[#allocation2 + $0x140] sm:$0xff]
  %v5364 = vld [vmem:[#allocation2 + $0x148] sm:$0xff]
  %v5365 = vld [vmem:[#allocation2 + $0x150] sm:$0xff]
  %v5366 = vld [vmem:[#allocation2 + $0x158] sm:$0xff]
  %v5367 = vld [vmem:[%s2] sm:$0xff]
  %v5368 = vld [vmem:[%s2 + $0x8] sm:$0xff]
  %v5369 = vld [vmem:[%s2 + $0x10] sm:$0xff]
  %v5370 = vld [vmem:[%s2 + $0x18] sm:$0xff]
  %v5371 = vld [vmem:[%s2 + $0x20] sm:$0xff]
  %v5372 = vld [vmem:[%s2 + $0x28] sm:$0xff]
  %v5373 = vld [vmem:[%s2 + $0x30] sm:$0xff]
  %v5374 = vld [vmem:[%s2 + $0x38] sm:$0xff]
  %v5375 = vld [vmem:[%s2 + $0x40] sm:$0xff]
  %v5376 = vld [vmem:[%s2 + $0x48] sm:$0xff]
  %v5377 = vld [vmem:[%s2 + $0x50] sm:$0xff]
  %v5378 = vld [vmem:[%s2 + $0x58] sm:$0xff]
  %v5379 = vld [vmem:[%s2 + $0x60] sm:$0xff]
  %v5380 = vld [vmem:[%s2 + $0x68] sm:$0xff]
  %v5381 = vld [vmem:[%s2 + $0x70] sm:$0xff]
  %v5382 = vld [vmem:[%s2 + $0x78] sm:$0xff]
  %v5383 = vld [vmem:[%s2 + $0x80] sm:$0xff]
  %v5384 = vld [vmem:[%s2 + $0x88] sm:$0xff]
  %v5385 = vld [vmem:[%s2 + $0x90] sm:$0xff]
  %v5386 = vld [vmem:[%s2 + $0x98] sm:$0xff]
  %v5387 = vld [vmem:[%s2 + $0xa0] sm:$0xff]
  %v5388 = vld [vmem:[%s2 + $0xa8] sm:$0xff]
  %v5389 = vld [vmem:[%s2 + $0xb0] sm:$0xff]
  %v5390 = vld [vmem:[%s2 + $0xb8] sm:$0xff]
  %v5391 = vld [vmem:[%s2 + $0xc0] sm:$0xff]
  %v5392 = vld [vmem:[%s2 + $0xc8] sm:$0xff]
  %v5393 = vld [vmem:[%s2 + $0xd0] sm:$0xff]
  %v5394 = vld [vmem:[%s2 + $0xd8] sm:$0xff]
  %v5395 = vld [vmem:[%s2 + $0xe0] sm:$0xff]
  %v5396 = vld [vmem:[%s2 + $0xe8] sm:$0xff]
  %v5397 = vld [vmem:[%s2 + $0xf0] sm:$0xff]
  %v5398 = vld [vmem:[%s2 + $0xf8] sm:$0xff]
  %v5431 = vunpack.c.l.b16 %v5367
  %v5432 = vunpack.c.h.b16 %v5367
  %v5433 = vunpack.c.l.b16 %v5368
  %v5434 = vunpack.c.h.b16 %v5368
  %v5435 = vunpack.c.l.b16 %v5369
  %v5436 = vunpack.c.h.b16 %v5369
  %v5437 = vunpack.c.l.b16 %v5370
  %v5438 = vunpack.c.h.b16 %v5370
  %v5439 = vunpack.c.l.b16 %v5371
  %v5440 = vunpack.c.h.b16 %v5371
  %v5441 = vunpack.c.l.b16 %v5372
  %v5442 = vunpack.c.h.b16 %v5372
  %v5443 = vunpack.c.l.b16 %v5373
  %v5444 = vunpack.c.h.b16 %v5373
  %v5445 = vunpack.c.l.b16 %v5374
  %v5446 = vunpack.c.h.b16 %v5374
  %v5447 = vunpack.c.l.b16 %v5375
  %v5448 = vunpack.c.h.b16 %v5375
  %v5449 = vunpack.c.l.b16 %v5376
  %v5450 = vunpack.c.h.b16 %v5376
  %v5451 = vunpack.c.l.b16 %v5377
  %v5452 = vunpack.c.h.b16 %v5377
  %v5453 = vunpack.c.l.b16 %v5378
  %v5454 = vunpack.c.h.b16 %v5378
  %v5455 = vunpack.c.l.b16 %v5379
  %v5456 = vunpack.c.h.b16 %v5379
  %v5457 = vunpack.c.l.b16 %v5380
  %v5458 = vunpack.c.h.b16 %v5380
  %v5459 = vunpack.c.l.b16 %v5381
  %v5460 = vunpack.c.h.b16 %v5381
  %v5461 = vunpack.c.l.b16 %v5382
  %v5462 = vunpack.c.h.b16 %v5382
  %v5463 = vunpack.c.l.b16 %v5383
  %v5464 = vunpack.c.h.b16 %v5383
  %v5465 = vunpack.c.l.b16 %v5384
  %v5466 = vunpack.c.h.b16 %v5384
  %v5467 = vunpack.c.l.b16 %v5385
  %v5468 = vunpack.c.h.b16 %v5385
  %v5469 = vunpack.c.l.b16 %v5386
  %v5470 = vunpack.c.h.b16 %v5386
  %v5471 = vunpack.c.l.b16 %v5387
  %v5472 = vunpack.c.h.b16 %v5387
  %v5473 = vunpack.c.l.b16 %v5388
  %v5474 = vunpack.c.h.b16 %v5388
  %v5475 = vunpack.c.l.b16 %v5389
  %v5476 = vunpack.c.h.b16 %v5389
  %v5477 = vunpack.c.l.b16 %v5390
  %v5478 = vunpack.c.h.b16 %v5390
  %v5479 = vunpack.c.l.b16 %v5391
  %v5480 = vunpack.c.h.b16 %v5391
  %v5481 = vunpack.c.l.b16 %v5392
  %v5482 = vunpack.c.h.b16 %v5392
  %v5483 = vunpack.c.l.b16 %v5393
  %v5484 = vunpack.c.h.b16 %v5393
  %v5485 = vunpack.c.l.b16 %v5394
  %v5486 = vunpack.c.h.b16 %v5394
  %v5487 = vunpack.c.l.b16 %v5395
  %v5488 = vunpack.c.h.b16 %v5395
  %v5489 = vunpack.c.l.b16 %v5396
  %v5490 = vunpack.c.h.b16 %v5396
  %v5491 = vunpack.c.l.b16 %v5397
  %v5492 = vunpack.c.h.b16 %v5397
  %v5493 = vunpack.c.l.b16 %v5398
  %v5494 = vunpack.c.h.b16 %v5398
  %v5495 = vpack.c.b16 %v5435, %v5431
  %v5496 = vpack.c.b16 %v5436, %v5432
  %v5497 = vpack.c.b16 %v5437, %v5433
  %v5498 = vpack.c.b16 %v5438, %v5434
  %v5499 = vpack.c.b16 %v5443, %v5439
  %v5500 = vpack.c.b16 %v5444, %v5440
  %v5501 = vpack.c.b16 %v5445, %v5441
  %v5502 = vpack.c.b16 %v5446, %v5442
  %v5503 = vpack.c.b16 %v5451, %v5447
  %v5504 = vpack.c.b16 %v5452, %v5448
  %v5505 = vpack.c.b16 %v5453, %v5449
  %v5506 = vpack.c.b16 %v5454, %v5450
  %v5507 = vpack.c.b16 %v5459, %v5455
  %v5508 = vpack.c.b16 %v5460, %v5456
  %v5509 = vpack.c.b16 %v5461, %v5457
  %v5510 = vpack.c.b16 %v5462, %v5458
  %v5511 = vpack.c.b16 %v5467, %v5463
  %v5512 = vpack.c.b16 %v5468, %v5464
  %v5513 = vpack.c.b16 %v5469, %v5465
  %v5514 = vpack.c.b16 %v5470, %v5466
  %v5515 = vpack.c.b16 %v5475, %v5471
  %v5516 = vpack.c.b16 %v5476, %v5472
  %v5517 = vpack.c.b16 %v5477, %v5473
  %v5518 = vpack.c.b16 %v5478, %v5474
  %v5519 = vpack.c.b16 %v5483, %v5479
  %v5520 = vpack.c.b16 %v5484, %v5480
  %v5521 = vpack.c.b16 %v5485, %v5481
  %v5522 = vpack.c.b16 %v5486, %v5482
  %v5523 = vpack.c.b16 %v5491, %v5487
  %v5524 = vpack.c.b16 %v5492, %v5488
  %v5525 = vpack.c.b16 %v5493, %v5489
  %v5526 = vpack.c.b16 %v5494, %v5490
  %5559 = vmatprep.subr.bf16.mxu0 %v5524
  %5560 = vmatpush1.bf16.msra.mxu0 %v5523
  %5561 = vmatprep.subr.bf16.mxu0 %v5520
  %5562 = vmatpush1.bf16.msra.mxu0 %v5519
  %5563 = vmatprep.subr.bf16.mxu0 %v5516
  %5564 = vmatpush1.bf16.msra.mxu0 %v5515
  %5565 = vmatprep.subr.bf16.mxu0 %v5512
  %5566 = vmatpush1.bf16.msra.mxu0 %v5511
  %5567 = vmatprep.subr.bf16.mxu0 %v5508
  %5568 = vmatpush1.bf16.msra.mxu0 %v5507
  %5569 = vmatprep.subr.bf16.mxu0 %v5504
  %5570 = vmatpush1.bf16.msra.mxu0 %v5503
  %5571 = vmatprep.subr.bf16.mxu0 %v5500
  %5572 = vmatpush1.bf16.msra.mxu0 %v5499
  %5573 = vmatprep.subr.bf16.mxu0 %v5496
  %5574 = vmatpush1.bf16.msra.mxu0 %v5495
  %5575 = vmatprep.subr.bf16.mxu0 0
  %5576 = vmatpush2.bf16.msra.mxu0 0
  %5577 = vmatprep.subr.bf16.mxu0 0
  %5578 = vmatpush2.bf16.msra.mxu0 0
  %5579 = vmatprep.subr.bf16.mxu0 0
  %5580 = vmatpush2.bf16.msra.mxu0 0
  %5581 = vmatprep.subr.bf16.mxu0 0
  %5582 = vmatpush2.bf16.msra.mxu0 0
  %5583 = vmatprep.subr.bf16.mxu0 0
  %5584 = vmatpush2.bf16.msra.mxu0 0
  %5585 = vmatprep.subr.bf16.mxu0 0
  %5586 = vmatpush2.bf16.msra.mxu0 0
  %5587 = vmatprep.subr.bf16.mxu0 0
  %5588 = vmatpush2.bf16.msra.mxu0 0
  %5589 = vmatprep.subr.bf16.mxu0 0
  %5590 = vmatpush2.bf16.msra.mxu0 0
  %5591 = vmatprep.mubr.bf16.mxu0 0
  %5592 = vmatmul.mubr.bf16.gmra.mxu0 %v5201
  %v5593 = vpop.f32.mrf.mxu0
  %v5594 = vadd.f32 0.0, %v5593
  %v5595 = vpop.f32.mrf.mxu0
  %v5596 = vadd.f32 0.0, %v5595
  %v5597 = vpop.f32.mrf.mxu0
  %v5598 = vpop.f32.mrf.mxu0
  %5599 = vdwg.mxu0
  %5600 = vmatprep.subr.bf16.mxu0 %v5526
  %5601 = vmatpush1.bf16.msra.mxu0 %v5525
  %5602 = vmatprep.subr.bf16.mxu0 %v5522
  %5603 = vmatpush1.bf16.msra.mxu0 %v5521
  %5604 = vmatprep.subr.bf16.mxu0 %v5518
  %5605 = vmatpush1.bf16.msra.mxu0 %v5517
  %5606 = vmatprep.subr.bf16.mxu0 %v5514
  %5607 = vmatpush1.bf16.msra.mxu0 %v5513
  %5608 = vmatprep.subr.bf16.mxu0 %v5510
  %5609 = vmatpush1.bf16.msra.mxu0 %v5509
  %5610 = vmatprep.subr.bf16.mxu0 %v5506
  %5611 = vmatpush1.bf16.msra.mxu0 %v5505
  %5612 = vmatprep.subr.bf16.mxu0 %v5502
  %5613 = vmatpush1.bf16.msra.mxu0 %v5501
  %5614 = vmatprep.subr.bf16.mxu0 %v5498
  %5615 = vmatpush1.bf16.msra.mxu0 %v5497
  %5616 = vmatprep.subr.bf16.mxu0 0
  %5617 = vmatpush2.bf16.msra.mxu0 0
  %5618 = vmatprep.subr.bf16.mxu0 0
  %5619 = vmatpush2.bf16.msra.mxu0 0
  %5620 = vmatprep.subr.bf16.mxu0 0
  %5621 = vmatpush2.bf16.msra.mxu0 0
  %5622 = vmatprep.subr.bf16.mxu0 0
  %5623 = vmatpush2.bf16.msra.mxu0 0
  %5624 = vmatprep.subr.bf16.mxu0 0
  %5625 = vmatpush2.bf16.msra.mxu0 0
  %5626 = vmatprep.subr.bf16.mxu0 0
  %5627 = vmatpush2.bf16.msra.mxu0 0
  %5628 = vmatprep.subr.bf16.mxu0 0
  %5629 = vmatpush2.bf16.msra.mxu0 0
  %5630 = vmatprep.subr.bf16.mxu0 0
  %5631 = vmatpush2.bf16.msra.mxu0 0
  %5632 = vmatprep.mubr.bf16.mxu0 0
  %5633 = vmatmul.mubr.bf16.gmra.mxu0 %v5201
  %v5634 = vpop.f32.mrf.mxu0
  %v5635 = vadd.f32 0.0, %v5634
  %v5636 = vpop.f32.mrf.mxu0
  %v5637 = vadd.f32 0.0, %v5636
  %v5638 = vpop.f32.mrf.mxu0
  %v5639 = vpop.f32.mrf.mxu0
  %5640 = vdwg.mxu0
  %v5641 = vadd.f32 %v5363, %v5594
  %v5642 = vadd.f32 %v5364, %v5596
  %v5643 = vadd.f32 %v5365, %v5635
  %v5644 = vadd.f32 %v5366, %v5637
  %v5645 = vxor.u32 %v5641, 2147483648
  %v5646 = vxor.u32 %v5642, 2147483648
  %v5647 = vxor.u32 %v5643, 2147483648
  %v5648 = vmul.f32 %v5645, 1.442695
  %v5649 = vpow.pop %v5648
  %v5650 = vmul.f32 %v5646, 1.442695
  %v5651 = vpow.pop %v5650
  %v5652 = vmul.f32 %v5647, 1.442695
  %v5653 = vpow.pop %v5652
  %v5654 = vadd.f32 %v5649, 1.0
  %v5655 = vadd.f32 %v5651, 1.0
  %v5656 = vadd.f32 %v5653, 1.0
  %v5657 = vrcp.pop %v5654
  %v5658 = vmul.f32 1.0, %v5657
  %v5659 = vrcp.pop %v5655
  %v5660 = vmul.f32 1.0, %v5659
  %v5661 = vrcp.pop %v5656
  %v5662 = vmul.f32 1.0, %v5661
  %v5663 = vtanh.pop %v5644
  %v5664 = vmul.f32 %v5660, %v5198
  %v5665 = vmul.f32 %v5658, %v5663
  %v5666 = vadd.f32 %v5664, %v5665
  %v5667 = vtanh.pop %v5666
  %v5668 = vmul.f32 %v5662, %v5667
  %v5669 = vpack.c.bf16 %v5668, %v5668
  %v5670 = vpack.c.bf16 %v5360, %v5360
  %v5671 = vld [vmem:[%s4] sm:$0xf]
  %v5672 = vld [vmem:[%s4 + $0x4] sm:$0xf]
  %v5673 = vld [vmem:[%s4 + $0x8] sm:$0xf]
  %v5674 = vld [vmem:[%s4 + $0xc] sm:$0xf]
  %v5675 = vld [vmem:[%s4 + $0x10] sm:$0xf]
  %v5676 = vld [vmem:[%s4 + $0x14] sm:$0xf]
  %v5677 = vld [vmem:[%s4 + $0x18] sm:$0xf]
  %v5678 = vld [vmem:[%s4 + $0x1c] sm:$0xf]
  %v5679 = vld [vmem:[%s4 + $0x20] sm:$0xf]
  %v5680 = vld [vmem:[%s4 + $0x24] sm:$0xf]
  %v5681 = vld [vmem:[%s4 + $0x28] sm:$0xf]
  %v5682 = vld [vmem:[%s4 + $0x2c] sm:$0xf]
  %v5683 = vld [vmem:[%s4 + $0x30] sm:$0xf]
  %v5684 = vld [vmem:[%s4 + $0x34] sm:$0xf]
  %v5685 = vld [vmem:[%s4 + $0x38] sm:$0xf]
  %v5686 = vld [vmem:[%s4 + $0x3c] sm:$0xf]
  %v5687 = vld [vmem:[%s4 + $0x40] sm:$0xf]
  %v5688 = vld [vmem:[%s4 + $0x44] sm:$0xf]
  %v5689 = vld [vmem:[%s4 + $0x48] sm:$0xf]
  %v5690 = vld [vmem:[%s4 + $0x4c] sm:$0xf]
  %v5691 = vld [vmem:[%s5] sm:$0x1]
  %v5693 = vlaneseq
  %v5694 = vshrl.u32 %v5693, 7
  %v5695 = vsub.s32 0, %v5694
  %v5696 = vrot.slane %v5691, %v5695
  %v5718 = vunpack.c.l.b16 %v5671
  %v5719 = vunpack.c.l.b16 %v5672
  %v5720 = vunpack.c.l.b16 %v5673
  %v5721 = vunpack.c.l.b16 %v5674
  %v5722 = vunpack.c.l.b16 %v5675
  %v5723 = vunpack.c.l.b16 %v5676
  %v5724 = vunpack.c.l.b16 %v5677
  %v5725 = vunpack.c.l.b16 %v5678
  %v5726 = vunpack.c.l.b16 %v5679
  %v5727 = vunpack.c.l.b16 %v5680
  %v5728 = vunpack.c.l.b16 %v5681
  %v5729 = vunpack.c.l.b16 %v5682
  %v5730 = vunpack.c.l.b16 %v5683
  %v5731 = vunpack.c.l.b16 %v5684
  %v5732 = vunpack.c.l.b16 %v5685
  %v5733 = vunpack.c.l.b16 %v5686
  %v5734 = vunpack.c.l.b16 %v5687
  %v5735 = vunpack.c.l.b16 %v5688
  %v5736 = vunpack.c.l.b16 %v5689
  %v5737 = vunpack.c.l.b16 %v5690
  %v5738 = vpack.c.b16 %v5719, %v5718
  %v5739 = vpack.c.b16 %v5721, %v5720
  %v5740 = vpack.c.b16 %v5723, %v5722
  %v5741 = vpack.c.b16 %v5725, %v5724
  %v5742 = vpack.c.b16 %v5727, %v5726
  %v5743 = vpack.c.b16 %v5729, %v5728
  %v5744 = vpack.c.b16 %v5731, %v5730
  %v5745 = vpack.c.b16 %v5733, %v5732
  %v5746 = vpack.c.b16 %v5735, %v5734
  %v5747 = vpack.c.b16 %v5737, %v5736
  %v5759 = vsel %vm1077, %v5670, 0
  %5761 = vmatprep.subr.bf16.mxu0 0
  %5762 = vmatpush1.bf16.msra.mxu0 %v5745
  %5763 = vmatprep.subr.bf16.mxu0 0
  %5764 = vmatpush1.bf16.msra.mxu0 %v5744
  %5765 = vmatprep.subr.bf16.mxu0 0
  %5766 = vmatpush1.bf16.msra.mxu0 %v5743
  %5767 = vmatprep.subr.bf16.mxu0 0
  %5768 = vmatpush1.bf16.msra.mxu0 %v5742
  %5769 = vmatprep.subr.bf16.mxu0 0
  %5770 = vmatpush1.bf16.msra.mxu0 %v5741
  %5771 = vmatprep.subr.bf16.mxu0 0
  %5772 = vmatpush1.bf16.msra.mxu0 %v5740
  %5773 = vmatprep.subr.bf16.mxu0 0
  %5774 = vmatpush1.bf16.msra.mxu0 %v5739
  %5775 = vmatprep.subr.bf16.mxu0 0
  %5776 = vmatpush1.bf16.msra.mxu0 %v5738
  %5777 = vmatprep.subr.bf16.mxu0 0
  %5778 = vmatpush2.bf16.msra.mxu0 0
  %5779 = vmatprep.subr.bf16.mxu0 0
  %5780 = vmatpush2.bf16.msra.mxu0 0
  %5781 = vmatprep.subr.bf16.mxu0 0
  %5782 = vmatpush2.bf16.msra.mxu0 0
  %5783 = vmatprep.subr.bf16.mxu0 0
  %5784 = vmatpush2.bf16.msra.mxu0 0
  %5785 = vmatprep.subr.bf16.mxu0 0
  %5786 = vmatpush2.bf16.msra.mxu0 0
  %5787 = vmatprep.subr.bf16.mxu0 0
  %5788 = vmatpush2.bf16.msra.mxu0 0
  %5789 = vmatprep.subr.bf16.mxu0 0
  %5790 = vmatpush2.bf16.msra.mxu0 %v5747
  %5791 = vmatprep.subr.bf16.mxu0 0
  %5792 = vmatpush2.bf16.msra.mxu0 %v5746
  %5793 = vmatprep.mubr.bf16.mxu0 %v5759
  %5794 = vmatmul.mubr.bf16.gmra.mxu0 %v5669
  %v5795 = vpop.f32.mrf.mxu0
  %v5796 = vadd.f32 %v5696, %v5795
  %v5797 = vpop.f32.mrf.mxu0
  %v5798 = vpop.f32.mrf.mxu0
  %v5799 = vpop.f32.mrf.mxu0
  %5800 = vdwg.mxu0
  %v5801 = vxor.u32 %v5796, 2147483648
  %v5802 = vmul.f32 %v5801, 1.442695
  %v5803 = vpow.pop %v5802
  %v5804 = vadd.f32 %v5803, 1.0
  %v5805 = vrcp.pop %v5804
  %v5806 = vmul.f32 1.0, %v5805
  %v5807 = vtanh.pop %v5796
  %v5808 = vsel %vm681, %v5806, %v5807
  %v5809 = vmul.f32 %v5808, %v5351
  %5811 = vrot.lane.b32.xlu0 %v5808, 32
  %v5812 = vpop.permute.xlu0 %5811
  %v5814 = vmul.f32 %v5808, %v5812
  %5816 = vrot.lane.b32.xlu0 %v5814, 32
  %v5817 = vpop.permute.xlu0 %5816
  %v5819 = vadd.f32 %v5809, %v5817
  %v5820 = vtanh.pop %v5819
  %5822 = vrot.lane.b32.xlu0 %v5820, 32
  %v5823 = vpop.permute.xlu0 %5822
  %v5825 = vmul.f32 %v5808, %v5823
  %5827 = vrot.lane.b32.xlu0 %v5825, 64
  %v5828 = vpop.permute.xlu0 %5827
  %5830 = vst.msk [vmem:[#allocation3 + $0x50] sm:$0xff] %vm1077, %v5828
  %v5831 = vld [vmem:[#allocation2 + $0x160] sm:$0xff]
  %v5832 = vld [vmem:[#allocation2 + $0x168] sm:$0xff]
  %v5833 = vld [vmem:[#allocation2 + $0x170] sm:$0xff]
  %v5834 = vld [vmem:[#allocation2 + $0x178] sm:$0xff]
  %v5835 = vld [vmem:[%s2] sm:$0xff]
  %v5836 = vld [vmem:[%s2 + $0x8] sm:$0xff]
  %v5837 = vld [vmem:[%s2 + $0x10] sm:$0xff]
  %v5838 = vld [vmem:[%s2 + $0x18] sm:$0xff]
  %v5839 = vld [vmem:[%s2 + $0x20] sm:$0xff]
  %v5840 = vld [vmem:[%s2 + $0x28] sm:$0xff]
  %v5841 = vld [vmem:[%s2 + $0x30] sm:$0xff]
  %v5842 = vld [vmem:[%s2 + $0x38] sm:$0xff]
  %v5843 = vld [vmem:[%s2 + $0x40] sm:$0xff]
  %v5844 = vld [vmem:[%s2 + $0x48] sm:$0xff]
  %v5845 = vld [vmem:[%s2 + $0x50] sm:$0xff]
  %v5846 = vld [vmem:[%s2 + $0x58] sm:$0xff]
  %v5847 = vld [vmem:[%s2 + $0x60] sm:$0xff]
  %v5848 = vld [vmem:[%s2 + $0x68] sm:$0xff]
  %v5849 = vld [vmem:[%s2 + $0x70] sm:$0xff]
  %v5850 = vld [vmem:[%s2 + $0x78] sm:$0xff]
  %v5851 = vld [vmem:[%s2 + $0x80] sm:$0xff]
  %v5852 = vld [vmem:[%s2 + $0x88] sm:$0xff]
  %v5853 = vld [vmem:[%s2 + $0x90] sm:$0xff]
  %v5854 = vld [vmem:[%s2 + $0x98] sm:$0xff]
  %v5855 = vld [vmem:[%s2 + $0xa0] sm:$0xff]
  %v5856 = vld [vmem:[%s2 + $0xa8] sm:$0xff]
  %v5857 = vld [vmem:[%s2 + $0xb0] sm:$0xff]
  %v5858 = vld [vmem:[%s2 + $0xb8] sm:$0xff]
  %v5859 = vld [vmem:[%s2 + $0xc0] sm:$0xff]
  %v5860 = vld [vmem:[%s2 + $0xc8] sm:$0xff]
  %v5861 = vld [vmem:[%s2 + $0xd0] sm:$0xff]
  %v5862 = vld [vmem:[%s2 + $0xd8] sm:$0xff]
  %v5863 = vld [vmem:[%s2 + $0xe0] sm:$0xff]
  %v5864 = vld [vmem:[%s2 + $0xe8] sm:$0xff]
  %v5865 = vld [vmem:[%s2 + $0xf0] sm:$0xff]
  %v5866 = vld [vmem:[%s2 + $0xf8] sm:$0xff]
  %v5899 = vunpack.c.l.b16 %v5835
  %v5900 = vunpack.c.h.b16 %v5835
  %v5901 = vunpack.c.l.b16 %v5836
  %v5902 = vunpack.c.h.b16 %v5836
  %v5903 = vunpack.c.l.b16 %v5837
  %v5904 = vunpack.c.h.b16 %v5837
  %v5905 = vunpack.c.l.b16 %v5838
  %v5906 = vunpack.c.h.b16 %v5838
  %v5907 = vunpack.c.l.b16 %v5839
  %v5908 = vunpack.c.h.b16 %v5839
  %v5909 = vunpack.c.l.b16 %v5840
  %v5910 = vunpack.c.h.b16 %v5840
  %v5911 = vunpack.c.l.b16 %v5841
  %v5912 = vunpack.c.h.b16 %v5841
  %v5913 = vunpack.c.l.b16 %v5842
  %v5914 = vunpack.c.h.b16 %v5842
  %v5915 = vunpack.c.l.b16 %v5843
  %v5916 = vunpack.c.h.b16 %v5843
  %v5917 = vunpack.c.l.b16 %v5844
  %v5918 = vunpack.c.h.b16 %v5844
  %v5919 = vunpack.c.l.b16 %v5845
  %v5920 = vunpack.c.h.b16 %v5845
  %v5921 = vunpack.c.l.b16 %v5846
  %v5922 = vunpack.c.h.b16 %v5846
  %v5923 = vunpack.c.l.b16 %v5847
  %v5924 = vunpack.c.h.b16 %v5847
  %v5925 = vunpack.c.l.b16 %v5848
  %v5926 = vunpack.c.h.b16 %v5848
  %v5927 = vunpack.c.l.b16 %v5849
  %v5928 = vunpack.c.h.b16 %v5849
  %v5929 = vunpack.c.l.b16 %v5850
  %v5930 = vunpack.c.h.b16 %v5850
  %v5931 = vunpack.c.l.b16 %v5851
  %v5932 = vunpack.c.h.b16 %v5851
  %v5933 = vunpack.c.l.b16 %v5852
  %v5934 = vunpack.c.h.b16 %v5852
  %v5935 = vunpack.c.l.b16 %v5853
  %v5936 = vunpack.c.h.b16 %v5853
  %v5937 = vunpack.c.l.b16 %v5854
  %v5938 = vunpack.c.h.b16 %v5854
  %v5939 = vunpack.c.l.b16 %v5855
  %v5940 = vunpack.c.h.b16 %v5855
  %v5941 = vunpack.c.l.b16 %v5856
  %v5942 = vunpack.c.h.b16 %v5856
  %v5943 = vunpack.c.l.b16 %v5857
  %v5944 = vunpack.c.h.b16 %v5857
  %v5945 = vunpack.c.l.b16 %v5858
  %v5946 = vunpack.c.h.b16 %v5858
  %v5947 = vunpack.c.l.b16 %v5859
  %v5948 = vunpack.c.h.b16 %v5859
  %v5949 = vunpack.c.l.b16 %v5860
  %v5950 = vunpack.c.h.b16 %v5860
  %v5951 = vunpack.c.l.b16 %v5861
  %v5952 = vunpack.c.h.b16 %v5861
  %v5953 = vunpack.c.l.b16 %v5862
  %v5954 = vunpack.c.h.b16 %v5862
  %v5955 = vunpack.c.l.b16 %v5863
  %v5956 = vunpack.c.h.b16 %v5863
  %v5957 = vunpack.c.l.b16 %v5864
  %v5958 = vunpack.c.h.b16 %v5864
  %v5959 = vunpack.c.l.b16 %v5865
  %v5960 = vunpack.c.h.b16 %v5865
  %v5961 = vunpack.c.l.b16 %v5866
  %v5962 = vunpack.c.h.b16 %v5866
  %v5963 = vpack.c.b16 %v5903, %v5899
  %v5964 = vpack.c.b16 %v5904, %v5900
  %v5965 = vpack.c.b16 %v5905, %v5901
  %v5966 = vpack.c.b16 %v5906, %v5902
  %v5967 = vpack.c.b16 %v5911, %v5907
  %v5968 = vpack.c.b16 %v5912, %v5908
  %v5969 = vpack.c.b16 %v5913, %v5909
  %v5970 = vpack.c.b16 %v5914, %v5910
  %v5971 = vpack.c.b16 %v5919, %v5915
  %v5972 = vpack.c.b16 %v5920, %v5916
  %v5973 = vpack.c.b16 %v5921, %v5917
  %v5974 = vpack.c.b16 %v5922, %v5918
  %v5975 = vpack.c.b16 %v5927, %v5923
  %v5976 = vpack.c.b16 %v5928, %v5924
  %v5977 = vpack.c.b16 %v5929, %v5925
  %v5978 = vpack.c.b16 %v5930, %v5926
  %v5979 = vpack.c.b16 %v5935, %v5931
  %v5980 = vpack.c.b16 %v5936, %v5932
  %v5981 = vpack.c.b16 %v5937, %v5933
  %v5982 = vpack.c.b16 %v5938, %v5934
  %v5983 = vpack.c.b16 %v5943, %v5939
  %v5984 = vpack.c.b16 %v5944, %v5940
  %v5985 = vpack.c.b16 %v5945, %v5941
  %v5986 = vpack.c.b16 %v5946, %v5942
  %v5987 = vpack.c.b16 %v5951, %v5947
  %v5988 = vpack.c.b16 %v5952, %v5948
  %v5989 = vpack.c.b16 %v5953, %v5949
  %v5990 = vpack.c.b16 %v5954, %v5950
  %v5991 = vpack.c.b16 %v5959, %v5955
  %v5992 = vpack.c.b16 %v5960, %v5956
  %v5993 = vpack.c.b16 %v5961, %v5957
  %v5994 = vpack.c.b16 %v5962, %v5958
  %6027 = vmatprep.subr.bf16.mxu0 %v5992
  %6028 = vmatpush1.bf16.msra.mxu0 %v5991
  %6029 = vmatprep.subr.bf16.mxu0 %v5988
  %6030 = vmatpush1.bf16.msra.mxu0 %v5987
  %6031 = vmatprep.subr.bf16.mxu0 %v5984
  %6032 = vmatpush1.bf16.msra.mxu0 %v5983
  %6033 = vmatprep.subr.bf16.mxu0 %v5980
  %6034 = vmatpush1.bf16.msra.mxu0 %v5979
  %6035 = vmatprep.subr.bf16.mxu0 %v5976
  %6036 = vmatpush1.bf16.msra.mxu0 %v5975
  %6037 = vmatprep.subr.bf16.mxu0 %v5972
  %6038 = vmatpush1.bf16.msra.mxu0 %v5971
  %6039 = vmatprep.subr.bf16.mxu0 %v5968
  %6040 = vmatpush1.bf16.msra.mxu0 %v5967
  %6041 = vmatprep.subr.bf16.mxu0 %v5964
  %6042 = vmatpush1.bf16.msra.mxu0 %v5963
  %6043 = vmatprep.subr.bf16.mxu0 0
  %6044 = vmatpush2.bf16.msra.mxu0 0
  %6045 = vmatprep.subr.bf16.mxu0 0
  %6046 = vmatpush2.bf16.msra.mxu0 0
  %6047 = vmatprep.subr.bf16.mxu0 0
  %6048 = vmatpush2.bf16.msra.mxu0 0
  %6049 = vmatprep.subr.bf16.mxu0 0
  %6050 = vmatpush2.bf16.msra.mxu0 0
  %6051 = vmatprep.subr.bf16.mxu0 0
  %6052 = vmatpush2.bf16.msra.mxu0 0
  %6053 = vmatprep.subr.bf16.mxu0 0
  %6054 = vmatpush2.bf16.msra.mxu0 0
  %6055 = vmatprep.subr.bf16.mxu0 0
  %6056 = vmatpush2.bf16.msra.mxu0 0
  %6057 = vmatprep.subr.bf16.mxu0 0
  %6058 = vmatpush2.bf16.msra.mxu0 0
  %6059 = vmatprep.mubr.bf16.mxu0 0
  %6060 = vmatmul.mubr.bf16.gmra.mxu0 %v5669
  %v6061 = vpop.f32.mrf.mxu0
  %v6062 = vadd.f32 0.0, %v6061
  %v6063 = vpop.f32.mrf.mxu0
  %v6064 = vadd.f32 0.0, %v6063
  %v6065 = vpop.f32.mrf.mxu0
  %v6066 = vpop.f32.mrf.mxu0
  %6067 = vdwg.mxu0
  %6068 = vmatprep.subr.bf16.mxu0 %v5994
  %6069 = vmatpush1.bf16.msra.mxu0 %v5993
  %6070 = vmatprep.subr.bf16.mxu0 %v5990
  %6071 = vmatpush1.bf16.msra.mxu0 %v5989
  %6072 = vmatprep.subr.bf16.mxu0 %v5986
  %6073 = vmatpush1.bf16.msra.mxu0 %v5985
  %6074 = vmatprep.subr.bf16.mxu0 %v5982
  %6075 = vmatpush1.bf16.msra.mxu0 %v5981
  %6076 = vmatprep.subr.bf16.mxu0 %v5978
  %6077 = vmatpush1.bf16.msra.mxu0 %v5977
  %6078 = vmatprep.subr.bf16.mxu0 %v5974
  %6079 = vmatpush1.bf16.msra.mxu0 %v5973
  %6080 = vmatprep.subr.bf16.mxu0 %v5970
  %6081 = vmatpush1.bf16.msra.mxu0 %v5969
  %6082 = vmatprep.subr.bf16.mxu0 %v5966
  %6083 = vmatpush1.bf16.msra.mxu0 %v5965
  %6084 = vmatprep.subr.bf16.mxu0 0
  %6085 = vmatpush2.bf16.msra.mxu0 0
  %6086 = vmatprep.subr.bf16.mxu0 0
  %6087 = vmatpush2.bf16.msra.mxu0 0
  %6088 = vmatprep.subr.bf16.mxu0 0
  %6089 = vmatpush2.bf16.msra.mxu0 0
  %6090 = vmatprep.subr.bf16.mxu0 0
  %6091 = vmatpush2.bf16.msra.mxu0 0
  %6092 = vmatprep.subr.bf16.mxu0 0
  %6093 = vmatpush2.bf16.msra.mxu0 0
  %6094 = vmatprep.subr.bf16.mxu0 0
  %6095 = vmatpush2.bf16.msra.mxu0 0
  %6096 = vmatprep.subr.bf16.mxu0 0
  %6097 = vmatpush2.bf16.msra.mxu0 0
  %6098 = vmatprep.subr.bf16.mxu0 0
  %6099 = vmatpush2.bf16.msra.mxu0 0
  %6100 = vmatprep.mubr.bf16.mxu0 0
  %6101 = vmatmul.mubr.bf16.gmra.mxu0 %v5669
  %v6102 = vpop.f32.mrf.mxu0
  %v6103 = vadd.f32 0.0, %v6102
  %v6104 = vpop.f32.mrf.mxu0
  %v6105 = vadd.f32 0.0, %v6104
  %v6106 = vpop.f32.mrf.mxu0
  %v6107 = vpop.f32.mrf.mxu0
  %6108 = vdwg.mxu0
  %v6109 = vadd.f32 %v5831, %v6062
  %v6110 = vadd.f32 %v5832, %v6064
  %v6111 = vadd.f32 %v5833, %v6103
  %v6112 = vadd.f32 %v5834, %v6105
  %v6113 = vxor.u32 %v6109, 2147483648
  %v6114 = vxor.u32 %v6110, 2147483648
  %v6115 = vxor.u32 %v6111, 2147483648
  %v6116 = vmul.f32 %v6113, 1.442695
  %v6117 = vpow.pop %v6116
  %v6118 = vmul.f32 %v6114, 1.442695
  %v6119 = vpow.pop %v6118
  %v6120 = vmul.f32 %v6115, 1.442695
  %v6121 = vpow.pop %v6120
  %v6122 = vadd.f32 %v6117, 1.0
  %v6123 = vadd.f32 %v6119, 1.0
  %v6124 = vadd.f32 %v6121, 1.0
  %v6125 = vrcp.pop %v6122
  %v6126 = vmul.f32 1.0, %v6125
  %v6127 = vrcp.pop %v6123
  %v6128 = vmul.f32 1.0, %v6127
  %v6129 = vrcp.pop %v6124
  %v6130 = vmul.f32 1.0, %v6129
  %v6131 = vtanh.pop %v6112
  %v6132 = vmul.f32 %v6128, %v5666
  %v6133 = vmul.f32 %v6126, %v6131
  %v6134 = vadd.f32 %v6132, %v6133
  %v6135 = vtanh.pop %v6134
  %v6136 = vmul.f32 %v6130, %v6135
  %v6137 = vpack.c.bf16 %v6136, %v6136
  %v6138 = vpack.c.bf16 %v5828, %v5828
  %v6139 = vld [vmem:[%s4] sm:$0xf]
  %v6140 = vld [vmem:[%s4 + $0x4] sm:$0xf]
  %v6141 = vld [vmem:[%s4 + $0x8] sm:$0xf]
  %v6142 = vld [vmem:[%s4 + $0xc] sm:$0xf]
  %v6143 = vld [vmem:[%s4 + $0x10] sm:$0xf]
  %v6144 = vld [vmem:[%s4 + $0x14] sm:$0xf]
  %v6145 = vld [vmem:[%s4 + $0x18] sm:$0xf]
  %v6146 = vld [vmem:[%s4 + $0x1c] sm:$0xf]
  %v6147 = vld [vmem:[%s4 + $0x20] sm:$0xf]
  %v6148 = vld [vmem:[%s4 + $0x24] sm:$0xf]
  %v6149 = vld [vmem:[%s4 + $0x28] sm:$0xf]
  %v6150 = vld [vmem:[%s4 + $0x2c] sm:$0xf]
  %v6151 = vld [vmem:[%s4 + $0x30] sm:$0xf]
  %v6152 = vld [vmem:[%s4 + $0x34] sm:$0xf]
  %v6153 = vld [vmem:[%s4 + $0x38] sm:$0xf]
  %v6154 = vld [vmem:[%s4 + $0x3c] sm:$0xf]
  %v6155 = vld [vmem:[%s4 + $0x40] sm:$0xf]
  %v6156 = vld [vmem:[%s4 + $0x44] sm:$0xf]
  %v6157 = vld [vmem:[%s4 + $0x48] sm:$0xf]
  %v6158 = vld [vmem:[%s4 + $0x4c] sm:$0xf]
  %v6159 = vld [vmem:[%s5] sm:$0x1]
  %v6161 = vlaneseq
  %v6162 = vshrl.u32 %v6161, 7
  %v6163 = vsub.s32 0, %v6162
  %v6164 = vrot.slane %v6159, %v6163
  %v6186 = vunpack.c.l.b16 %v6139
  %v6187 = vunpack.c.l.b16 %v6140
  %v6188 = vunpack.c.l.b16 %v6141
  %v6189 = vunpack.c.l.b16 %v6142
  %v6190 = vunpack.c.l.b16 %v6143
  %v6191 = vunpack.c.l.b16 %v6144
  %v6192 = vunpack.c.l.b16 %v6145
  %v6193 = vunpack.c.l.b16 %v6146
  %v6194 = vunpack.c.l.b16 %v6147
  %v6195 = vunpack.c.l.b16 %v6148
  %v6196 = vunpack.c.l.b16 %v6149
  %v6197 = vunpack.c.l.b16 %v6150
  %v6198 = vunpack.c.l.b16 %v6151
  %v6199 = vunpack.c.l.b16 %v6152
  %v6200 = vunpack.c.l.b16 %v6153
  %v6201 = vunpack.c.l.b16 %v6154
  %v6202 = vunpack.c.l.b16 %v6155
  %v6203 = vunpack.c.l.b16 %v6156
  %v6204 = vunpack.c.l.b16 %v6157
  %v6205 = vunpack.c.l.b16 %v6158
  %v6206 = vpack.c.b16 %v6187, %v6186
  %v6207 = vpack.c.b16 %v6189, %v6188
  %v6208 = vpack.c.b16 %v6191, %v6190
  %v6209 = vpack.c.b16 %v6193, %v6192
  %v6210 = vpack.c.b16 %v6195, %v6194
  %v6211 = vpack.c.b16 %v6197, %v6196
  %v6212 = vpack.c.b16 %v6199, %v6198
  %v6213 = vpack.c.b16 %v6201, %v6200
  %v6214 = vpack.c.b16 %v6203, %v6202
  %v6215 = vpack.c.b16 %v6205, %v6204
  %v6227 = vsel %vm1077, %v6138, 0
  %6229 = vmatprep.subr.bf16.mxu0 0
  %6230 = vmatpush1.bf16.msra.mxu0 %v6213
  %6231 = vmatprep.subr.bf16.mxu0 0
  %6232 = vmatpush1.bf16.msra.mxu0 %v6212
  %6233 = vmatprep.subr.bf16.mxu0 0
  %6234 = vmatpush1.bf16.msra.mxu0 %v6211
  %6235 = vmatprep.subr.bf16.mxu0 0
  %6236 = vmatpush1.bf16.msra.mxu0 %v6210
  %6237 = vmatprep.subr.bf16.mxu0 0
  %6238 = vmatpush1.bf16.msra.mxu0 %v6209
  %6239 = vmatprep.subr.bf16.mxu0 0
  %6240 = vmatpush1.bf16.msra.mxu0 %v6208
  %6241 = vmatprep.subr.bf16.mxu0 0
  %6242 = vmatpush1.bf16.msra.mxu0 %v6207
  %6243 = vmatprep.subr.bf16.mxu0 0
  %6244 = vmatpush1.bf16.msra.mxu0 %v6206
  %6245 = vmatprep.subr.bf16.mxu0 0
  %6246 = vmatpush2.bf16.msra.mxu0 0
  %6247 = vmatprep.subr.bf16.mxu0 0
  %6248 = vmatpush2.bf16.msra.mxu0 0
  %6249 = vmatprep.subr.bf16.mxu0 0
  %6250 = vmatpush2.bf16.msra.mxu0 0
  %6251 = vmatprep.subr.bf16.mxu0 0
  %6252 = vmatpush2.bf16.msra.mxu0 0
  %6253 = vmatprep.subr.bf16.mxu0 0
  %6254 = vmatpush2.bf16.msra.mxu0 0
  %6255 = vmatprep.subr.bf16.mxu0 0
  %6256 = vmatpush2.bf16.msra.mxu0 0
  %6257 = vmatprep.subr.bf16.mxu0 0
  %6258 = vmatpush2.bf16.msra.mxu0 %v6215
  %6259 = vmatprep.subr.bf16.mxu0 0
  %6260 = vmatpush2.bf16.msra.mxu0 %v6214
  %6261 = vmatprep.mubr.bf16.mxu0 %v6227
  %6262 = vmatmul.mubr.bf16.gmra.mxu0 %v6137
  %v6263 = vpop.f32.mrf.mxu0
  %v6264 = vadd.f32 %v6164, %v6263
  %v6265 = vpop.f32.mrf.mxu0
  %v6266 = vpop.f32.mrf.mxu0
  %v6267 = vpop.f32.mrf.mxu0
  %6268 = vdwg.mxu0
  %v6269 = vxor.u32 %v6264, 2147483648
  %v6270 = vmul.f32 %v6269, 1.442695
  %v6271 = vpow.pop %v6270
  %v6272 = vadd.f32 %v6271, 1.0
  %v6273 = vrcp.pop %v6272
  %v6274 = vmul.f32 1.0, %v6273
  %v6275 = vtanh.pop %v6264
  %v6276 = vsel %vm681, %v6274, %v6275
  %v6277 = vmul.f32 %v6276, %v5819
  %6279 = vrot.lane.b32.xlu0 %v6276, 32
  %v6280 = vpop.permute.xlu0 %6279
  %v6282 = vmul.f32 %v6276, %v6280
  %6284 = vrot.lane.b32.xlu0 %v6282, 32
  %v6285 = vpop.permute.xlu0 %6284
  %v6287 = vadd.f32 %v6277, %v6285
  %v6288 = vtanh.pop %v6287
  %6290 = vrot.lane.b32.xlu0 %v6288, 32
  %v6291 = vpop.permute.xlu0 %6290
  %v6293 = vmul.f32 %v6276, %v6291
  %6295 = vrot.lane.b32.xlu0 %v6293, 64
  %v6296 = vpop.permute.xlu0 %6295
  %6298 = vst.msk [vmem:[#allocation3 + $0x58] sm:$0xff] %vm1077, %v6296
  %v6299 = vld [vmem:[#allocation2 + $0x180] sm:$0xff]
  %v6300 = vld [vmem:[#allocation2 + $0x188] sm:$0xff]
  %v6301 = vld [vmem:[#allocation2 + $0x190] sm:$0xff]
  %v6302 = vld [vmem:[#allocation2 + $0x198] sm:$0xff]
  %v6303 = vld [vmem:[%s2] sm:$0xff]
  %v6304 = vld [vmem:[%s2 + $0x8] sm:$0xff]
  %v6305 = vld [vmem:[%s2 + $0x10] sm:$0xff]
  %v6306 = vld [vmem:[%s2 + $0x18] sm:$0xff]
  %v6307 = vld [vmem:[%s2 + $0x20] sm:$0xff]
  %v6308 = vld [vmem:[%s2 + $0x28] sm:$0xff]
  %v6309 = vld [vmem:[%s2 + $0x30] sm:$0xff]
  %v6310 = vld [vmem:[%s2 + $0x38] sm:$0xff]
  %v6311 = vld [vmem:[%s2 + $0x40] sm:$0xff]
  %v6312 = vld [vmem:[%s2 + $0x48] sm:$0xff]
  %v6313 = vld [vmem:[%s2 + $0x50] sm:$0xff]
  %v6314 = vld [vmem:[%s2 + $0x58] sm:$0xff]
  %v6315 = vld [vmem:[%s2 + $0x60] sm:$0xff]
  %v6316 = vld [vmem:[%s2 + $0x68] sm:$0xff]
  %v6317 = vld [vmem:[%s2 + $0x70] sm:$0xff]
  %v6318 = vld [vmem:[%s2 + $0x78] sm:$0xff]
  %v6319 = vld [vmem:[%s2 + $0x80] sm:$0xff]
  %v6320 = vld [vmem:[%s2 + $0x88] sm:$0xff]
  %v6321 = vld [vmem:[%s2 + $0x90] sm:$0xff]
  %v6322 = vld [vmem:[%s2 + $0x98] sm:$0xff]
  %v6323 = vld [vmem:[%s2 + $0xa0] sm:$0xff]
  %v6324 = vld [vmem:[%s2 + $0xa8] sm:$0xff]
  %v6325 = vld [vmem:[%s2 + $0xb0] sm:$0xff]
  %v6326 = vld [vmem:[%s2 + $0xb8] sm:$0xff]
  %v6327 = vld [vmem:[%s2 + $0xc0] sm:$0xff]
  %v6328 = vld [vmem:[%s2 + $0xc8] sm:$0xff]
  %v6329 = vld [vmem:[%s2 + $0xd0] sm:$0xff]
  %v6330 = vld [vmem:[%s2 + $0xd8] sm:$0xff]
  %v6331 = vld [vmem:[%s2 + $0xe0] sm:$0xff]
  %v6332 = vld [vmem:[%s2 + $0xe8] sm:$0xff]
  %v6333 = vld [vmem:[%s2 + $0xf0] sm:$0xff]
  %v6334 = vld [vmem:[%s2 + $0xf8] sm:$0xff]
  %v6367 = vunpack.c.l.b16 %v6303
  %v6368 = vunpack.c.h.b16 %v6303
  %v6369 = vunpack.c.l.b16 %v6304
  %v6370 = vunpack.c.h.b16 %v6304
  %v6371 = vunpack.c.l.b16 %v6305
  %v6372 = vunpack.c.h.b16 %v6305
  %v6373 = vunpack.c.l.b16 %v6306
  %v6374 = vunpack.c.h.b16 %v6306
  %v6375 = vunpack.c.l.b16 %v6307
  %v6376 = vunpack.c.h.b16 %v6307
  %v6377 = vunpack.c.l.b16 %v6308
  %v6378 = vunpack.c.h.b16 %v6308
  %v6379 = vunpack.c.l.b16 %v6309
  %v6380 = vunpack.c.h.b16 %v6309
  %v6381 = vunpack.c.l.b16 %v6310
  %v6382 = vunpack.c.h.b16 %v6310
  %v6383 = vunpack.c.l.b16 %v6311
  %v6384 = vunpack.c.h.b16 %v6311
  %v6385 = vunpack.c.l.b16 %v6312
  %v6386 = vunpack.c.h.b16 %v6312
  %v6387 = vunpack.c.l.b16 %v6313
  %v6388 = vunpack.c.h.b16 %v6313
  %v6389 = vunpack.c.l.b16 %v6314
  %v6390 = vunpack.c.h.b16 %v6314
  %v6391 = vunpack.c.l.b16 %v6315
  %v6392 = vunpack.c.h.b16 %v6315
  %v6393 = vunpack.c.l.b16 %v6316
  %v6394 = vunpack.c.h.b16 %v6316
  %v6395 = vunpack.c.l.b16 %v6317
  %v6396 = vunpack.c.h.b16 %v6317
  %v6397 = vunpack.c.l.b16 %v6318
  %v6398 = vunpack.c.h.b16 %v6318
  %v6399 = vunpack.c.l.b16 %v6319
  %v6400 = vunpack.c.h.b16 %v6319
  %v6401 = vunpack.c.l.b16 %v6320
  %v6402 = vunpack.c.h.b16 %v6320
  %v6403 = vunpack.c.l.b16 %v6321
  %v6404 = vunpack.c.h.b16 %v6321
  %v6405 = vunpack.c.l.b16 %v6322
  %v6406 = vunpack.c.h.b16 %v6322
  %v6407 = vunpack.c.l.b16 %v6323
  %v6408 = vunpack.c.h.b16 %v6323
  %v6409 = vunpack.c.l.b16 %v6324
  %v6410 = vunpack.c.h.b16 %v6324
  %v6411 = vunpack.c.l.b16 %v6325
  %v6412 = vunpack.c.h.b16 %v6325
  %v6413 = vunpack.c.l.b16 %v6326
  %v6414 = vunpack.c.h.b16 %v6326
  %v6415 = vunpack.c.l.b16 %v6327
  %v6416 = vunpack.c.h.b16 %v6327
  %v6417 = vunpack.c.l.b16 %v6328
  %v6418 = vunpack.c.h.b16 %v6328
  %v6419 = vunpack.c.l.b16 %v6329
  %v6420 = vunpack.c.h.b16 %v6329
  %v6421 = vunpack.c.l.b16 %v6330
  %v6422 = vunpack.c.h.b16 %v6330
  %v6423 = vunpack.c.l.b16 %v6331
  %v6424 = vunpack.c.h.b16 %v6331
  %v6425 = vunpack.c.l.b16 %v6332
  %v6426 = vunpack.c.h.b16 %v6332
  %v6427 = vunpack.c.l.b16 %v6333
  %v6428 = vunpack.c.h.b16 %v6333
  %v6429 = vunpack.c.l.b16 %v6334
  %v6430 = vunpack.c.h.b16 %v6334
  %v6431 = vpack.c.b16 %v6371, %v6367
  %v6432 = vpack.c.b16 %v6372, %v6368
  %v6433 = vpack.c.b16 %v6373, %v6369
  %v6434 = vpack.c.b16 %v6374, %v6370
  %v6435 = vpack.c.b16 %v6379, %v6375
  %v6436 = vpack.c.b16 %v6380, %v6376
  %v6437 = vpack.c.b16 %v6381, %v6377
  %v6438 = vpack.c.b16 %v6382, %v6378
  %v6439 = vpack.c.b16 %v6387, %v6383
  %v6440 = vpack.c.b16 %v6388, %v6384
  %v6441 = vpack.c.b16 %v6389, %v6385
  %v6442 = vpack.c.b16 %v6390, %v6386
  %v6443 = vpack.c.b16 %v6395, %v6391
  %v6444 = vpack.c.b16 %v6396, %v6392
  %v6445 = vpack.c.b16 %v6397, %v6393
  %v6446 = vpack.c.b16 %v6398, %v6394
  %v6447 = vpack.c.b16 %v6403, %v6399
  %v6448 = vpack.c.b16 %v6404, %v6400
  %v6449 = vpack.c.b16 %v6405, %v6401
  %v6450 = vpack.c.b16 %v6406, %v6402
  %v6451 = vpack.c.b16 %v6411, %v6407
  %v6452 = vpack.c.b16 %v6412, %v6408
  %v6453 = vpack.c.b16 %v6413, %v6409
  %v6454 = vpack.c.b16 %v6414, %v6410
  %v6455 = vpack.c.b16 %v6419, %v6415
  %v6456 = vpack.c.b16 %v6420, %v6416
  %v6457 = vpack.c.b16 %v6421, %v6417
  %v6458 = vpack.c.b16 %v6422, %v6418
  %v6459 = vpack.c.b16 %v6427, %v6423
  %v6460 = vpack.c.b16 %v6428, %v6424
  %v6461 = vpack.c.b16 %v6429, %v6425
  %v6462 = vpack.c.b16 %v6430, %v6426
  %6495 = vmatprep.subr.bf16.mxu0 %v6460
  %6496 = vmatpush1.bf16.msra.mxu0 %v6459
  %6497 = vmatprep.subr.bf16.mxu0 %v6456
  %6498 = vmatpush1.bf16.msra.mxu0 %v6455
  %6499 = vmatprep.subr.bf16.mxu0 %v6452
  %6500 = vmatpush1.bf16.msra.mxu0 %v6451
  %6501 = vmatprep.subr.bf16.mxu0 %v6448
  %6502 = vmatpush1.bf16.msra.mxu0 %v6447
  %6503 = vmatprep.subr.bf16.mxu0 %v6444
  %6504 = vmatpush1.bf16.msra.mxu0 %v6443
  %6505 = vmatprep.subr.bf16.mxu0 %v6440
  %6506 = vmatpush1.bf16.msra.mxu0 %v6439
  %6507 = vmatprep.subr.bf16.mxu0 %v6436
  %6508 = vmatpush1.bf16.msra.mxu0 %v6435
  %6509 = vmatprep.subr.bf16.mxu0 %v6432
  %6510 = vmatpush1.bf16.msra.mxu0 %v6431
  %6511 = vmatprep.subr.bf16.mxu0 0
  %6512 = vmatpush2.bf16.msra.mxu0 0
  %6513 = vmatprep.subr.bf16.mxu0 0
  %6514 = vmatpush2.bf16.msra.mxu0 0
  %6515 = vmatprep.subr.bf16.mxu0 0
  %6516 = vmatpush2.bf16.msra.mxu0 0
  %6517 = vmatprep.subr.bf16.mxu0 0
  %6518 = vmatpush2.bf16.msra.mxu0 0
  %6519 = vmatprep.subr.bf16.mxu0 0
  %6520 = vmatpush2.bf16.msra.mxu0 0
  %6521 = vmatprep.subr.bf16.mxu0 0
  %6522 = vmatpush2.bf16.msra.mxu0 0
  %6523 = vmatprep.subr.bf16.mxu0 0
  %6524 = vmatpush2.bf16.msra.mxu0 0
  %6525 = vmatprep.subr.bf16.mxu0 0
  %6526 = vmatpush2.bf16.msra.mxu0 0
  %6527 = vmatprep.mubr.bf16.mxu0 0
  %6528 = vmatmul.mubr.bf16.gmra.mxu0 %v6137
  %v6529 = vpop.f32.mrf.mxu0
  %v6530 = vadd.f32 0.0, %v6529
  %v6531 = vpop.f32.mrf.mxu0
  %v6532 = vadd.f32 0.0, %v6531
  %v6533 = vpop.f32.mrf.mxu0
  %v6534 = vpop.f32.mrf.mxu0
  %6535 = vdwg.mxu0
  %6536 = vmatprep.subr.bf16.mxu0 %v6462
  %6537 = vmatpush1.bf16.msra.mxu0 %v6461
  %6538 = vmatprep.subr.bf16.mxu0 %v6458
  %6539 = vmatpush1.bf16.msra.mxu0 %v6457
  %6540 = vmatprep.subr.bf16.mxu0 %v6454
  %6541 = vmatpush1.bf16.msra.mxu0 %v6453
  %6542 = vmatprep.subr.bf16.mxu0 %v6450
  %6543 = vmatpush1.bf16.msra.mxu0 %v6449
  %6544 = vmatprep.subr.bf16.mxu0 %v6446
  %6545 = vmatpush1.bf16.msra.mxu0 %v6445
  %6546 = vmatprep.subr.bf16.mxu0 %v6442
  %6547 = vmatpush1.bf16.msra.mxu0 %v6441
  %6548 = vmatprep.subr.bf16.mxu0 %v6438
  %6549 = vmatpush1.bf16.msra.mxu0 %v6437
  %6550 = vmatprep.subr.bf16.mxu0 %v6434
  %6551 = vmatpush1.bf16.msra.mxu0 %v6433
  %6552 = vmatprep.subr.bf16.mxu0 0
  %6553 = vmatpush2.bf16.msra.mxu0 0
  %6554 = vmatprep.subr.bf16.mxu0 0
  %6555 = vmatpush2.bf16.msra.mxu0 0
  %6556 = vmatprep.subr.bf16.mxu0 0
  %6557 = vmatpush2.bf16.msra.mxu0 0
  %6558 = vmatprep.subr.bf16.mxu0 0
  %6559 = vmatpush2.bf16.msra.mxu0 0
  %6560 = vmatprep.subr.bf16.mxu0 0
  %6561 = vmatpush2.bf16.msra.mxu0 0
  %6562 = vmatprep.subr.bf16.mxu0 0
  %6563 = vmatpush2.bf16.msra.mxu0 0
  %6564 = vmatprep.subr.bf16.mxu0 0
  %6565 = vmatpush2.bf16.msra.mxu0 0
  %6566 = vmatprep.subr.bf16.mxu0 0
  %6567 = vmatpush2.bf16.msra.mxu0 0
  %6568 = vmatprep.mubr.bf16.mxu0 0
  %6569 = vmatmul.mubr.bf16.gmra.mxu0 %v6137
  %v6570 = vpop.f32.mrf.mxu0
  %v6571 = vadd.f32 0.0, %v6570
  %v6572 = vpop.f32.mrf.mxu0
  %v6573 = vadd.f32 0.0, %v6572
  %v6574 = vpop.f32.mrf.mxu0
  %v6575 = vpop.f32.mrf.mxu0
  %6576 = vdwg.mxu0
  %v6577 = vadd.f32 %v6299, %v6530
  %v6578 = vadd.f32 %v6300, %v6532
  %v6579 = vadd.f32 %v6301, %v6571
  %v6580 = vadd.f32 %v6302, %v6573
  %v6581 = vxor.u32 %v6577, 2147483648
  %v6582 = vxor.u32 %v6578, 2147483648
  %v6583 = vxor.u32 %v6579, 2147483648
  %v6584 = vmul.f32 %v6581, 1.442695
  %v6585 = vpow.pop %v6584
  %v6586 = vmul.f32 %v6582, 1.442695
  %v6587 = vpow.pop %v6586
  %v6588 = vmul.f32 %v6583, 1.442695
  %v6589 = vpow.pop %v6588
  %v6590 = vadd.f32 %v6585, 1.0
  %v6591 = vadd.f32 %v6587, 1.0
  %v6592 = vadd.f32 %v6589, 1.0
  %v6593 = vrcp.pop %v6590
  %v6594 = vmul.f32 1.0, %v6593
  %v6595 = vrcp.pop %v6591
  %v6596 = vmul.f32 1.0, %v6595
  %v6597 = vrcp.pop %v6592
  %v6598 = vmul.f32 1.0, %v6597
  %v6599 = vtanh.pop %v6580
  %v6600 = vmul.f32 %v6596, %v6134
  %v6601 = vmul.f32 %v6594, %v6599
  %v6602 = vadd.f32 %v6600, %v6601
  %v6603 = vtanh.pop %v6602
  %v6604 = vmul.f32 %v6598, %v6603
  %v6605 = vpack.c.bf16 %v6604, %v6604
  %v6606 = vpack.c.bf16 %v6296, %v6296
  %v6607 = vld [vmem:[%s4] sm:$0xf]
  %v6608 = vld [vmem:[%s4 + $0x4] sm:$0xf]
  %v6609 = vld [vmem:[%s4 + $0x8] sm:$0xf]
  %v6610 = vld [vmem:[%s4 + $0xc] sm:$0xf]
  %v6611 = vld [vmem:[%s4 + $0x10] sm:$0xf]
  %v6612 = vld [vmem:[%s4 + $0x14] sm:$0xf]
  %v6613 = vld [vmem:[%s4 + $0x18] sm:$0xf]
  %v6614 = vld [vmem:[%s4 + $0x1c] sm:$0xf]
  %v6615 = vld [vmem:[%s4 + $0x20] sm:$0xf]
  %v6616 = vld [vmem:[%s4 + $0x24] sm:$0xf]
  %v6617 = vld [vmem:[%s4 + $0x28] sm:$0xf]
  %v6618 = vld [vmem:[%s4 + $0x2c] sm:$0xf]
  %v6619 = vld [vmem:[%s4 + $0x30] sm:$0xf]
  %v6620 = vld [vmem:[%s4 + $0x34] sm:$0xf]
  %v6621 = vld [vmem:[%s4 + $0x38] sm:$0xf]
  %v6622 = vld [vmem:[%s4 + $0x3c] sm:$0xf]
  %v6623 = vld [vmem:[%s4 + $0x40] sm:$0xf]
  %v6624 = vld [vmem:[%s4 + $0x44] sm:$0xf]
  %v6625 = vld [vmem:[%s4 + $0x48] sm:$0xf]
  %v6626 = vld [vmem:[%s4 + $0x4c] sm:$0xf]
  %v6627 = vld [vmem:[%s5] sm:$0x1]
  %v6629 = vlaneseq
  %v6630 = vshrl.u32 %v6629, 7
  %v6631 = vsub.s32 0, %v6630
  %v6632 = vrot.slane %v6627, %v6631
  %v6654 = vunpack.c.l.b16 %v6607
  %v6655 = vunpack.c.l.b16 %v6608
  %v6656 = vunpack.c.l.b16 %v6609
  %v6657 = vunpack.c.l.b16 %v6610
  %v6658 = vunpack.c.l.b16 %v6611
  %v6659 = vunpack.c.l.b16 %v6612
  %v6660 = vunpack.c.l.b16 %v6613
  %v6661 = vunpack.c.l.b16 %v6614
  %v6662 = vunpack.c.l.b16 %v6615
  %v6663 = vunpack.c.l.b16 %v6616
  %v6664 = vunpack.c.l.b16 %v6617
  %v6665 = vunpack.c.l.b16 %v6618
  %v6666 = vunpack.c.l.b16 %v6619
  %v6667 = vunpack.c.l.b16 %v6620
  %v6668 = vunpack.c.l.b16 %v6621
  %v6669 = vunpack.c.l.b16 %v6622
  %v6670 = vunpack.c.l.b16 %v6623
  %v6671 = vunpack.c.l.b16 %v6624
  %v6672 = vunpack.c.l.b16 %v6625
  %v6673 = vunpack.c.l.b16 %v6626
  %v6674 = vpack.c.b16 %v6655, %v6654
  %v6675 = vpack.c.b16 %v6657, %v6656
  %v6676 = vpack.c.b16 %v6659, %v6658
  %v6677 = vpack.c.b16 %v6661, %v6660
  %v6678 = vpack.c.b16 %v6663, %v6662
  %v6679 = vpack.c.b16 %v6665, %v6664
  %v6680 = vpack.c.b16 %v6667, %v6666
  %v6681 = vpack.c.b16 %v6669, %v6668
  %v6682 = vpack.c.b16 %v6671, %v6670
  %v6683 = vpack.c.b16 %v6673, %v6672
  %v6695 = vsel %vm1077, %v6606, 0
  %6697 = vmatprep.subr.bf16.mxu0 0
  %6698 = vmatpush1.bf16.msra.mxu0 %v6681
  %6699 = vmatprep.subr.bf16.mxu0 0
  %6700 = vmatpush1.bf16.msra.mxu0 %v6680
  %6701 = vmatprep.subr.bf16.mxu0 0
  %6702 = vmatpush1.bf16.msra.mxu0 %v6679
  %6703 = vmatprep.subr.bf16.mxu0 0
  %6704 = vmatpush1.bf16.msra.mxu0 %v6678
  %6705 = vmatprep.subr.bf16.mxu0 0
  %6706 = vmatpush1.bf16.msra.mxu0 %v6677
  %6707 = vmatprep.subr.bf16.mxu0 0
  %6708 = vmatpush1.bf16.msra.mxu0 %v6676
  %6709 = vmatprep.subr.bf16.mxu0 0
  %6710 = vmatpush1.bf16.msra.mxu0 %v6675
  %6711 = vmatprep.subr.bf16.mxu0 0
  %6712 = vmatpush1.bf16.msra.mxu0 %v6674
  %6713 = vmatprep.subr.bf16.mxu0 0
  %6714 = vmatpush2.bf16.msra.mxu0 0
  %6715 = vmatprep.subr.bf16.mxu0 0
  %6716 = vmatpush2.bf16.msra.mxu0 0
  %6717 = vmatprep.subr.bf16.mxu0 0
  %6718 = vmatpush2.bf16.msra.mxu0 0
  %6719 = vmatprep.subr.bf16.mxu0 0
  %6720 = vmatpush2.bf16.msra.mxu0 0
  %6721 = vmatprep.subr.bf16.mxu0 0
  %6722 = vmatpush2.bf16.msra.mxu0 0
  %6723 = vmatprep.subr.bf16.mxu0 0
  %6724 = vmatpush2.bf16.msra.mxu0 0
  %6725 = vmatprep.subr.bf16.mxu0 0
  %6726 = vmatpush2.bf16.msra.mxu0 %v6683
  %6727 = vmatprep.subr.bf16.mxu0 0
  %6728 = vmatpush2.bf16.msra.mxu0 %v6682
  %6729 = vmatprep.mubr.bf16.mxu0 %v6695
  %6730 = vmatmul.mubr.bf16.gmra.mxu0 %v6605
  %v6731 = vpop.f32.mrf.mxu0
  %v6732 = vadd.f32 %v6632, %v6731
  %v6733 = vpop.f32.mrf.mxu0
  %v6734 = vpop.f32.mrf.mxu0
  %v6735 = vpop.f32.mrf.mxu0
  %6736 = vdwg.mxu0
  %v6737 = vxor.u32 %v6732, 2147483648
  %v6738 = vmul.f32 %v6737, 1.442695
  %v6739 = vpow.pop %v6738
  %v6740 = vadd.f32 %v6739, 1.0
  %v6741 = vrcp.pop %v6740
  %v6742 = vmul.f32 1.0, %v6741
  %v6743 = vtanh.pop %v6732
  %v6744 = vsel %vm681, %v6742, %v6743
  %v6745 = vmul.f32 %v6744, %v6287
  %6747 = vrot.lane.b32.xlu0 %v6744, 32
  %v6748 = vpop.permute.xlu0 %6747
  %v6750 = vmul.f32 %v6744, %v6748
  %6752 = vrot.lane.b32.xlu0 %v6750, 32
  %v6753 = vpop.permute.xlu0 %6752
  %v6755 = vadd.f32 %v6745, %v6753
  %v6756 = vtanh.pop %v6755
  %6758 = vrot.lane.b32.xlu0 %v6756, 32
  %v6759 = vpop.permute.xlu0 %6758
  %v6761 = vmul.f32 %v6744, %v6759
  %6763 = vrot.lane.b32.xlu0 %v6761, 64
  %v6764 = vpop.permute.xlu0 %6763
  %6766 = vst.msk [vmem:[#allocation3 + $0x60] sm:$0xff] %vm1077, %v6764
  %v6767 = vld [vmem:[#allocation2 + $0x1a0] sm:$0xff]
  %v6768 = vld [vmem:[#allocation2 + $0x1a8] sm:$0xff]
  %v6769 = vld [vmem:[#allocation2 + $0x1b0] sm:$0xff]
  %v6770 = vld [vmem:[#allocation2 + $0x1b8] sm:$0xff]
  %v6771 = vld [vmem:[%s2] sm:$0xff]
  %v6772 = vld [vmem:[%s2 + $0x8] sm:$0xff]
  %v6773 = vld [vmem:[%s2 + $0x10] sm:$0xff]
  %v6774 = vld [vmem:[%s2 + $0x18] sm:$0xff]
  %v6775 = vld [vmem:[%s2 + $0x20] sm:$0xff]
  %v6776 = vld [vmem:[%s2 + $0x28] sm:$0xff]
  %v6777 = vld [vmem:[%s2 + $0x30] sm:$0xff]
  %v6778 = vld [vmem:[%s2 + $0x38] sm:$0xff]
  %v6779 = vld [vmem:[%s2 + $0x40] sm:$0xff]
  %v6780 = vld [vmem:[%s2 + $0x48] sm:$0xff]
  %v6781 = vld [vmem:[%s2 + $0x50] sm:$0xff]
  %v6782 = vld [vmem:[%s2 + $0x58] sm:$0xff]
  %v6783 = vld [vmem:[%s2 + $0x60] sm:$0xff]
  %v6784 = vld [vmem:[%s2 + $0x68] sm:$0xff]
  %v6785 = vld [vmem:[%s2 + $0x70] sm:$0xff]
  %v6786 = vld [vmem:[%s2 + $0x78] sm:$0xff]
  %v6787 = vld [vmem:[%s2 + $0x80] sm:$0xff]
  %v6788 = vld [vmem:[%s2 + $0x88] sm:$0xff]
  %v6789 = vld [vmem:[%s2 + $0x90] sm:$0xff]
  %v6790 = vld [vmem:[%s2 + $0x98] sm:$0xff]
  %v6791 = vld [vmem:[%s2 + $0xa0] sm:$0xff]
  %v6792 = vld [vmem:[%s2 + $0xa8] sm:$0xff]
  %v6793 = vld [vmem:[%s2 + $0xb0] sm:$0xff]
  %v6794 = vld [vmem:[%s2 + $0xb8] sm:$0xff]
  %v6795 = vld [vmem:[%s2 + $0xc0] sm:$0xff]
  %v6796 = vld [vmem:[%s2 + $0xc8] sm:$0xff]
  %v6797 = vld [vmem:[%s2 + $0xd0] sm:$0xff]
  %v6798 = vld [vmem:[%s2 + $0xd8] sm:$0xff]
  %v6799 = vld [vmem:[%s2 + $0xe0] sm:$0xff]
  %v6800 = vld [vmem:[%s2 + $0xe8] sm:$0xff]
  %v6801 = vld [vmem:[%s2 + $0xf0] sm:$0xff]
  %v6802 = vld [vmem:[%s2 + $0xf8] sm:$0xff]
  %v6835 = vunpack.c.l.b16 %v6771
  %v6836 = vunpack.c.h.b16 %v6771
  %v6837 = vunpack.c.l.b16 %v6772
  %v6838 = vunpack.c.h.b16 %v6772
  %v6839 = vunpack.c.l.b16 %v6773
  %v6840 = vunpack.c.h.b16 %v6773
  %v6841 = vunpack.c.l.b16 %v6774
  %v6842 = vunpack.c.h.b16 %v6774
  %v6843 = vunpack.c.l.b16 %v6775
  %v6844 = vunpack.c.h.b16 %v6775
  %v6845 = vunpack.c.l.b16 %v6776
  %v6846 = vunpack.c.h.b16 %v6776
  %v6847 = vunpack.c.l.b16 %v6777
  %v6848 = vunpack.c.h.b16 %v6777
  %v6849 = vunpack.c.l.b16 %v6778
  %v6850 = vunpack.c.h.b16 %v6778
  %v6851 = vunpack.c.l.b16 %v6779
  %v6852 = vunpack.c.h.b16 %v6779
  %v6853 = vunpack.c.l.b16 %v6780
  %v6854 = vunpack.c.h.b16 %v6780
  %v6855 = vunpack.c.l.b16 %v6781
  %v6856 = vunpack.c.h.b16 %v6781
  %v6857 = vunpack.c.l.b16 %v6782
  %v6858 = vunpack.c.h.b16 %v6782
  %v6859 = vunpack.c.l.b16 %v6783
  %v6860 = vunpack.c.h.b16 %v6783
  %v6861 = vunpack.c.l.b16 %v6784
  %v6862 = vunpack.c.h.b16 %v6784
  %v6863 = vunpack.c.l.b16 %v6785
  %v6864 = vunpack.c.h.b16 %v6785
  %v6865 = vunpack.c.l.b16 %v6786
  %v6866 = vunpack.c.h.b16 %v6786
  %v6867 = vunpack.c.l.b16 %v6787
  %v6868 = vunpack.c.h.b16 %v6787
  %v6869 = vunpack.c.l.b16 %v6788
  %v6870 = vunpack.c.h.b16 %v6788
  %v6871 = vunpack.c.l.b16 %v6789
  %v6872 = vunpack.c.h.b16 %v6789
  %v6873 = vunpack.c.l.b16 %v6790
  %v6874 = vunpack.c.h.b16 %v6790
  %v6875 = vunpack.c.l.b16 %v6791
  %v6876 = vunpack.c.h.b16 %v6791
  %v6877 = vunpack.c.l.b16 %v6792
  %v6878 = vunpack.c.h.b16 %v6792
  %v6879 = vunpack.c.l.b16 %v6793
  %v6880 = vunpack.c.h.b16 %v6793
  %v6881 = vunpack.c.l.b16 %v6794
  %v6882 = vunpack.c.h.b16 %v6794
  %v6883 = vunpack.c.l.b16 %v6795
  %v6884 = vunpack.c.h.b16 %v6795
  %v6885 = vunpack.c.l.b16 %v6796
  %v6886 = vunpack.c.h.b16 %v6796
  %v6887 = vunpack.c.l.b16 %v6797
  %v6888 = vunpack.c.h.b16 %v6797
  %v6889 = vunpack.c.l.b16 %v6798
  %v6890 = vunpack.c.h.b16 %v6798
  %v6891 = vunpack.c.l.b16 %v6799
  %v6892 = vunpack.c.h.b16 %v6799
  %v6893 = vunpack.c.l.b16 %v6800
  %v6894 = vunpack.c.h.b16 %v6800
  %v6895 = vunpack.c.l.b16 %v6801
  %v6896 = vunpack.c.h.b16 %v6801
  %v6897 = vunpack.c.l.b16 %v6802
  %v6898 = vunpack.c.h.b16 %v6802
  %v6899 = vpack.c.b16 %v6839, %v6835
  %v6900 = vpack.c.b16 %v6840, %v6836
  %v6901 = vpack.c.b16 %v6841, %v6837
  %v6902 = vpack.c.b16 %v6842, %v6838
  %v6903 = vpack.c.b16 %v6847, %v6843
  %v6904 = vpack.c.b16 %v6848, %v6844
  %v6905 = vpack.c.b16 %v6849, %v6845
  %v6906 = vpack.c.b16 %v6850, %v6846
  %v6907 = vpack.c.b16 %v6855, %v6851
  %v6908 = vpack.c.b16 %v6856, %v6852
  %v6909 = vpack.c.b16 %v6857, %v6853
  %v6910 = vpack.c.b16 %v6858, %v6854
  %v6911 = vpack.c.b16 %v6863, %v6859
  %v6912 = vpack.c.b16 %v6864, %v6860
  %v6913 = vpack.c.b16 %v6865, %v6861
  %v6914 = vpack.c.b16 %v6866, %v6862
  %v6915 = vpack.c.b16 %v6871, %v6867
  %v6916 = vpack.c.b16 %v6872, %v6868
  %v6917 = vpack.c.b16 %v6873, %v6869
  %v6918 = vpack.c.b16 %v6874, %v6870
  %v6919 = vpack.c.b16 %v6879, %v6875
  %v6920 = vpack.c.b16 %v6880, %v6876
  %v6921 = vpack.c.b16 %v6881, %v6877
  %v6922 = vpack.c.b16 %v6882, %v6878
  %v6923 = vpack.c.b16 %v6887, %v6883
  %v6924 = vpack.c.b16 %v6888, %v6884
  %v6925 = vpack.c.b16 %v6889, %v6885
  %v6926 = vpack.c.b16 %v6890, %v6886
  %v6927 = vpack.c.b16 %v6895, %v6891
  %v6928 = vpack.c.b16 %v6896, %v6892
  %v6929 = vpack.c.b16 %v6897, %v6893
  %v6930 = vpack.c.b16 %v6898, %v6894
  %6963 = vmatprep.subr.bf16.mxu0 %v6928
  %6964 = vmatpush1.bf16.msra.mxu0 %v6927
  %6965 = vmatprep.subr.bf16.mxu0 %v6924
  %6966 = vmatpush1.bf16.msra.mxu0 %v6923
  %6967 = vmatprep.subr.bf16.mxu0 %v6920
  %6968 = vmatpush1.bf16.msra.mxu0 %v6919
  %6969 = vmatprep.subr.bf16.mxu0 %v6916
  %6970 = vmatpush1.bf16.msra.mxu0 %v6915
  %6971 = vmatprep.subr.bf16.mxu0 %v6912
  %6972 = vmatpush1.bf16.msra.mxu0 %v6911
  %6973 = vmatprep.subr.bf16.mxu0 %v6908
  %6974 = vmatpush1.bf16.msra.mxu0 %v6907
  %6975 = vmatprep.subr.bf16.mxu0 %v6904
  %6976 = vmatpush1.bf16.msra.mxu0 %v6903
  %6977 = vmatprep.subr.bf16.mxu0 %v6900
  %6978 = vmatpush1.bf16.msra.mxu0 %v6899
  %6979 = vmatprep.subr.bf16.mxu0 0
  %6980 = vmatpush2.bf16.msra.mxu0 0
  %6981 = vmatprep.subr.bf16.mxu0 0
  %6982 = vmatpush2.bf16.msra.mxu0 0
  %6983 = vmatprep.subr.bf16.mxu0 0
  %6984 = vmatpush2.bf16.msra.mxu0 0
  %6985 = vmatprep.subr.bf16.mxu0 0
  %6986 = vmatpush2.bf16.msra.mxu0 0
  %6987 = vmatprep.subr.bf16.mxu0 0
  %6988 = vmatpush2.bf16.msra.mxu0 0
  %6989 = vmatprep.subr.bf16.mxu0 0
  %6990 = vmatpush2.bf16.msra.mxu0 0
  %6991 = vmatprep.subr.bf16.mxu0 0
  %6992 = vmatpush2.bf16.msra.mxu0 0
  %6993 = vmatprep.subr.bf16.mxu0 0
  %6994 = vmatpush2.bf16.msra.mxu0 0
  %6995 = vmatprep.mubr.bf16.mxu0 0
  %6996 = vmatmul.mubr.bf16.gmra.mxu0 %v6605
  %v6997 = vpop.f32.mrf.mxu0
  %v6998 = vadd.f32 0.0, %v6997
  %v6999 = vpop.f32.mrf.mxu0
  %v7000 = vadd.f32 0.0, %v6999
  %v7001 = vpop.f32.mrf.mxu0
  %v7002 = vpop.f32.mrf.mxu0
  %7003 = vdwg.mxu0
  %7004 = vmatprep.subr.bf16.mxu0 %v6930
  %7005 = vmatpush1.bf16.msra.mxu0 %v6929
  %7006 = vmatprep.subr.bf16.mxu0 %v6926
  %7007 = vmatpush1.bf16.msra.mxu0 %v6925
  %7008 = vmatprep.subr.bf16.mxu0 %v6922
  %7009 = vmatpush1.bf16.msra.mxu0 %v6921
  %7010 = vmatprep.subr.bf16.mxu0 %v6918
  %7011 = vmatpush1.bf16.msra.mxu0 %v6917
  %7012 = vmatprep.subr.bf16.mxu0 %v6914
  %7013 = vmatpush1.bf16.msra.mxu0 %v6913
  %7014 = vmatprep.subr.bf16.mxu0 %v6910
  %7015 = vmatpush1.bf16.msra.mxu0 %v6909
  %7016 = vmatprep.subr.bf16.mxu0 %v6906
  %7017 = vmatpush1.bf16.msra.mxu0 %v6905
  %7018 = vmatprep.subr.bf16.mxu0 %v6902
  %7019 = vmatpush1.bf16.msra.mxu0 %v6901
  %7020 = vmatprep.subr.bf16.mxu0 0
  %7021 = vmatpush2.bf16.msra.mxu0 0
  %7022 = vmatprep.subr.bf16.mxu0 0
  %7023 = vmatpush2.bf16.msra.mxu0 0
  %7024 = vmatprep.subr.bf16.mxu0 0
  %7025 = vmatpush2.bf16.msra.mxu0 0
  %7026 = vmatprep.subr.bf16.mxu0 0
  %7027 = vmatpush2.bf16.msra.mxu0 0
  %7028 = vmatprep.subr.bf16.mxu0 0
  %7029 = vmatpush2.bf16.msra.mxu0 0
  %7030 = vmatprep.subr.bf16.mxu0 0
  %7031 = vmatpush2.bf16.msra.mxu0 0
  %7032 = vmatprep.subr.bf16.mxu0 0
  %7033 = vmatpush2.bf16.msra.mxu0 0
  %7034 = vmatprep.subr.bf16.mxu0 0
  %7035 = vmatpush2.bf16.msra.mxu0 0
  %7036 = vmatprep.mubr.bf16.mxu0 0
  %7037 = vmatmul.mubr.bf16.gmra.mxu0 %v6605
  %v7038 = vpop.f32.mrf.mxu0
  %v7039 = vadd.f32 0.0, %v7038
  %v7040 = vpop.f32.mrf.mxu0
  %v7041 = vadd.f32 0.0, %v7040
  %v7042 = vpop.f32.mrf.mxu0
  %v7043 = vpop.f32.mrf.mxu0
  %7044 = vdwg.mxu0
  %v7045 = vadd.f32 %v6767, %v6998
  %v7046 = vadd.f32 %v6768, %v7000
  %v7047 = vadd.f32 %v6769, %v7039
  %v7048 = vadd.f32 %v6770, %v7041
  %v7049 = vxor.u32 %v7045, 2147483648
  %v7050 = vxor.u32 %v7046, 2147483648
  %v7051 = vxor.u32 %v7047, 2147483648
  %v7052 = vmul.f32 %v7049, 1.442695
  %v7053 = vpow.pop %v7052
  %v7054 = vmul.f32 %v7050, 1.442695
  %v7055 = vpow.pop %v7054
  %v7056 = vmul.f32 %v7051, 1.442695
  %v7057 = vpow.pop %v7056
  %v7058 = vadd.f32 %v7053, 1.0
  %v7059 = vadd.f32 %v7055, 1.0
  %v7060 = vadd.f32 %v7057, 1.0
  %v7061 = vrcp.pop %v7058
  %v7062 = vmul.f32 1.0, %v7061
  %v7063 = vrcp.pop %v7059
  %v7064 = vmul.f32 1.0, %v7063
  %v7065 = vrcp.pop %v7060
  %v7066 = vmul.f32 1.0, %v7065
  %v7067 = vtanh.pop %v7048
  %v7068 = vmul.f32 %v7064, %v6602
  %v7069 = vmul.f32 %v7062, %v7067
  %v7070 = vadd.f32 %v7068, %v7069
  %v7071 = vtanh.pop %v7070
  %v7072 = vmul.f32 %v7066, %v7071
  %v7073 = vpack.c.bf16 %v7072, %v7072
  %v7074 = vpack.c.bf16 %v6764, %v6764
  %v7075 = vld [vmem:[%s4] sm:$0xf]
  %v7076 = vld [vmem:[%s4 + $0x4] sm:$0xf]
  %v7077 = vld [vmem:[%s4 + $0x8] sm:$0xf]
  %v7078 = vld [vmem:[%s4 + $0xc] sm:$0xf]
  %v7079 = vld [vmem:[%s4 + $0x10] sm:$0xf]
  %v7080 = vld [vmem:[%s4 + $0x14] sm:$0xf]
  %v7081 = vld [vmem:[%s4 + $0x18] sm:$0xf]
  %v7082 = vld [vmem:[%s4 + $0x1c] sm:$0xf]
  %v7083 = vld [vmem:[%s4 + $0x20] sm:$0xf]
  %v7084 = vld [vmem:[%s4 + $0x24] sm:$0xf]
  %v7085 = vld [vmem:[%s4 + $0x28] sm:$0xf]
  %v7086 = vld [vmem:[%s4 + $0x2c] sm:$0xf]
  %v7087 = vld [vmem:[%s4 + $0x30] sm:$0xf]
  %v7088 = vld [vmem:[%s4 + $0x34] sm:$0xf]
  %v7089 = vld [vmem:[%s4 + $0x38] sm:$0xf]
  %v7090 = vld [vmem:[%s4 + $0x3c] sm:$0xf]
  %v7091 = vld [vmem:[%s4 + $0x40] sm:$0xf]
  %v7092 = vld [vmem:[%s4 + $0x44] sm:$0xf]
  %v7093 = vld [vmem:[%s4 + $0x48] sm:$0xf]
  %v7094 = vld [vmem:[%s4 + $0x4c] sm:$0xf]
  %v7095 = vld [vmem:[%s5] sm:$0x1]
  %v7097 = vlaneseq
  %v7098 = vshrl.u32 %v7097, 7
  %v7099 = vsub.s32 0, %v7098
  %v7100 = vrot.slane %v7095, %v7099
  %v7122 = vunpack.c.l.b16 %v7075
  %v7123 = vunpack.c.l.b16 %v7076
  %v7124 = vunpack.c.l.b16 %v7077
  %v7125 = vunpack.c.l.b16 %v7078
  %v7126 = vunpack.c.l.b16 %v7079
  %v7127 = vunpack.c.l.b16 %v7080
  %v7128 = vunpack.c.l.b16 %v7081
  %v7129 = vunpack.c.l.b16 %v7082
  %v7130 = vunpack.c.l.b16 %v7083
  %v7131 = vunpack.c.l.b16 %v7084
  %v7132 = vunpack.c.l.b16 %v7085
  %v7133 = vunpack.c.l.b16 %v7086
  %v7134 = vunpack.c.l.b16 %v7087
  %v7135 = vunpack.c.l.b16 %v7088
  %v7136 = vunpack.c.l.b16 %v7089
  %v7137 = vunpack.c.l.b16 %v7090
  %v7138 = vunpack.c.l.b16 %v7091
  %v7139 = vunpack.c.l.b16 %v7092
  %v7140 = vunpack.c.l.b16 %v7093
  %v7141 = vunpack.c.l.b16 %v7094
  %v7142 = vpack.c.b16 %v7123, %v7122
  %v7143 = vpack.c.b16 %v7125, %v7124
  %v7144 = vpack.c.b16 %v7127, %v7126
  %v7145 = vpack.c.b16 %v7129, %v7128
  %v7146 = vpack.c.b16 %v7131, %v7130
  %v7147 = vpack.c.b16 %v7133, %v7132
  %v7148 = vpack.c.b16 %v7135, %v7134
  %v7149 = vpack.c.b16 %v7137, %v7136
  %v7150 = vpack.c.b16 %v7139, %v7138
  %v7151 = vpack.c.b16 %v7141, %v7140
  %v7163 = vsel %vm1077, %v7074, 0
  %7165 = vmatprep.subr.bf16.mxu0 0
  %7166 = vmatpush1.bf16.msra.mxu0 %v7149
  %7167 = vmatprep.subr.bf16.mxu0 0
  %7168 = vmatpush1.bf16.msra.mxu0 %v7148
  %7169 = vmatprep.subr.bf16.mxu0 0
  %7170 = vmatpush1.bf16.msra.mxu0 %v7147
  %7171 = vmatprep.subr.bf16.mxu0 0
  %7172 = vmatpush1.bf16.msra.mxu0 %v7146
  %7173 = vmatprep.subr.bf16.mxu0 0
  %7174 = vmatpush1.bf16.msra.mxu0 %v7145
  %7175 = vmatprep.subr.bf16.mxu0 0
  %7176 = vmatpush1.bf16.msra.mxu0 %v7144
  %7177 = vmatprep.subr.bf16.mxu0 0
  %7178 = vmatpush1.bf16.msra.mxu0 %v7143
  %7179 = vmatprep.subr.bf16.mxu0 0
  %7180 = vmatpush1.bf16.msra.mxu0 %v7142
  %7181 = vmatprep.subr.bf16.mxu0 0
  %7182 = vmatpush2.bf16.msra.mxu0 0
  %7183 = vmatprep.subr.bf16.mxu0 0
  %7184 = vmatpush2.bf16.msra.mxu0 0
  %7185 = vmatprep.subr.bf16.mxu0 0
  %7186 = vmatpush2.bf16.msra.mxu0 0
  %7187 = vmatprep.subr.bf16.mxu0 0
  %7188 = vmatpush2.bf16.msra.mxu0 0
  %7189 = vmatprep.subr.bf16.mxu0 0
  %7190 = vmatpush2.bf16.msra.mxu0 0
  %7191 = vmatprep.subr.bf16.mxu0 0
  %7192 = vmatpush2.bf16.msra.mxu0 0
  %7193 = vmatprep.subr.bf16.mxu0 0
  %7194 = vmatpush2.bf16.msra.mxu0 %v7151
  %7195 = vmatprep.subr.bf16.mxu0 0
  %7196 = vmatpush2.bf16.msra.mxu0 %v7150
  %7197 = vmatprep.mubr.bf16.mxu0 %v7163
  %7198 = vmatmul.mubr.bf16.gmra.mxu0 %v7073
  %v7199 = vpop.f32.mrf.mxu0
  %v7200 = vadd.f32 %v7100, %v7199
  %v7201 = vpop.f32.mrf.mxu0
  %v7202 = vpop.f32.mrf.mxu0
  %v7203 = vpop.f32.mrf.mxu0
  %7204 = vdwg.mxu0
  %v7205 = vxor.u32 %v7200, 2147483648
  %v7206 = vmul.f32 %v7205, 1.442695
  %v7207 = vpow.pop %v7206
  %v7208 = vadd.f32 %v7207, 1.0
  %v7209 = vrcp.pop %v7208
  %v7210 = vmul.f32 1.0, %v7209
  %v7211 = vtanh.pop %v7200
  %v7212 = vsel %vm681, %v7210, %v7211
  %v7213 = vmul.f32 %v7212, %v6755
  %7215 = vrot.lane.b32.xlu0 %v7212, 32
  %v7216 = vpop.permute.xlu0 %7215
  %v7218 = vmul.f32 %v7212, %v7216
  %7220 = vrot.lane.b32.xlu0 %v7218, 32
  %v7221 = vpop.permute.xlu0 %7220
  %v7223 = vadd.f32 %v7213, %v7221
  %v7224 = vtanh.pop %v7223
  %7226 = vrot.lane.b32.xlu0 %v7224, 32
  %v7227 = vpop.permute.xlu0 %7226
  %v7229 = vmul.f32 %v7212, %v7227
  %7231 = vrot.lane.b32.xlu0 %v7229, 64
  %v7232 = vpop.permute.xlu0 %7231
  %7234 = vst.msk [vmem:[#allocation3 + $0x68] sm:$0xff] %vm1077, %v7232
  %v7235 = vld [vmem:[#allocation2 + $0x1c0] sm:$0xff]
  %v7236 = vld [vmem:[#allocation2 + $0x1c8] sm:$0xff]
  %v7237 = vld [vmem:[#allocation2 + $0x1d0] sm:$0xff]
  %v7238 = vld [vmem:[#allocation2 + $0x1d8] sm:$0xff]
  %v7239 = vld [vmem:[%s2] sm:$0xff]
  %v7240 = vld [vmem:[%s2 + $0x8] sm:$0xff]
  %v7241 = vld [vmem:[%s2 + $0x10] sm:$0xff]
  %v7242 = vld [vmem:[%s2 + $0x18] sm:$0xff]
  %v7243 = vld [vmem:[%s2 + $0x20] sm:$0xff]
  %v7244 = vld [vmem:[%s2 + $0x28] sm:$0xff]
  %v7245 = vld [vmem:[%s2 + $0x30] sm:$0xff]
  %v7246 = vld [vmem:[%s2 + $0x38] sm:$0xff]
  %v7247 = vld [vmem:[%s2 + $0x40] sm:$0xff]
  %v7248 = vld [vmem:[%s2 + $0x48] sm:$0xff]
  %v7249 = vld [vmem:[%s2 + $0x50] sm:$0xff]
  %v7250 = vld [vmem:[%s2 + $0x58] sm:$0xff]
  %v7251 = vld [vmem:[%s2 + $0x60] sm:$0xff]
  %v7252 = vld [vmem:[%s2 + $0x68] sm:$0xff]
  %v7253 = vld [vmem:[%s2 + $0x70] sm:$0xff]
  %v7254 = vld [vmem:[%s2 + $0x78] sm:$0xff]
  %v7255 = vld [vmem:[%s2 + $0x80] sm:$0xff]
  %v7256 = vld [vmem:[%s2 + $0x88] sm:$0xff]
  %v7257 = vld [vmem:[%s2 + $0x90] sm:$0xff]
  %v7258 = vld [vmem:[%s2 + $0x98] sm:$0xff]
  %v7259 = vld [vmem:[%s2 + $0xa0] sm:$0xff]
  %v7260 = vld [vmem:[%s2 + $0xa8] sm:$0xff]
  %v7261 = vld [vmem:[%s2 + $0xb0] sm:$0xff]
  %v7262 = vld [vmem:[%s2 + $0xb8] sm:$0xff]
  %v7263 = vld [vmem:[%s2 + $0xc0] sm:$0xff]
  %v7264 = vld [vmem:[%s2 + $0xc8] sm:$0xff]
  %v7265 = vld [vmem:[%s2 + $0xd0] sm:$0xff]
  %v7266 = vld [vmem:[%s2 + $0xd8] sm:$0xff]
  %v7267 = vld [vmem:[%s2 + $0xe0] sm:$0xff]
  %v7268 = vld [vmem:[%s2 + $0xe8] sm:$0xff]
  %v7269 = vld [vmem:[%s2 + $0xf0] sm:$0xff]
  %v7270 = vld [vmem:[%s2 + $0xf8] sm:$0xff]
  %v7303 = vunpack.c.l.b16 %v7239
  %v7304 = vunpack.c.h.b16 %v7239
  %v7305 = vunpack.c.l.b16 %v7240
  %v7306 = vunpack.c.h.b16 %v7240
  %v7307 = vunpack.c.l.b16 %v7241
  %v7308 = vunpack.c.h.b16 %v7241
  %v7309 = vunpack.c.l.b16 %v7242
  %v7310 = vunpack.c.h.b16 %v7242
  %v7311 = vunpack.c.l.b16 %v7243
  %v7312 = vunpack.c.h.b16 %v7243
  %v7313 = vunpack.c.l.b16 %v7244
  %v7314 = vunpack.c.h.b16 %v7244
  %v7315 = vunpack.c.l.b16 %v7245
  %v7316 = vunpack.c.h.b16 %v7245
  %v7317 = vunpack.c.l.b16 %v7246
  %v7318 = vunpack.c.h.b16 %v7246
  %v7319 = vunpack.c.l.b16 %v7247
  %v7320 = vunpack.c.h.b16 %v7247
  %v7321 = vunpack.c.l.b16 %v7248
  %v7322 = vunpack.c.h.b16 %v7248
  %v7323 = vunpack.c.l.b16 %v7249
  %v7324 = vunpack.c.h.b16 %v7249
  %v7325 = vunpack.c.l.b16 %v7250
  %v7326 = vunpack.c.h.b16 %v7250
  %v7327 = vunpack.c.l.b16 %v7251
  %v7328 = vunpack.c.h.b16 %v7251
  %v7329 = vunpack.c.l.b16 %v7252
  %v7330 = vunpack.c.h.b16 %v7252
  %v7331 = vunpack.c.l.b16 %v7253
  %v7332 = vunpack.c.h.b16 %v7253
  %v7333 = vunpack.c.l.b16 %v7254
  %v7334 = vunpack.c.h.b16 %v7254
  %v7335 = vunpack.c.l.b16 %v7255
  %v7336 = vunpack.c.h.b16 %v7255
  %v7337 = vunpack.c.l.b16 %v7256
  %v7338 = vunpack.c.h.b16 %v7256
  %v7339 = vunpack.c.l.b16 %v7257
  %v7340 = vunpack.c.h.b16 %v7257
  %v7341 = vunpack.c.l.b16 %v7258
  %v7342 = vunpack.c.h.b16 %v7258
  %v7343 = vunpack.c.l.b16 %v7259
  %v7344 = vunpack.c.h.b16 %v7259
  %v7345 = vunpack.c.l.b16 %v7260
  %v7346 = vunpack.c.h.b16 %v7260
  %v7347 = vunpack.c.l.b16 %v7261
  %v7348 = vunpack.c.h.b16 %v7261
  %v7349 = vunpack.c.l.b16 %v7262
  %v7350 = vunpack.c.h.b16 %v7262
  %v7351 = vunpack.c.l.b16 %v7263
  %v7352 = vunpack.c.h.b16 %v7263
  %v7353 = vunpack.c.l.b16 %v7264
  %v7354 = vunpack.c.h.b16 %v7264
  %v7355 = vunpack.c.l.b16 %v7265
  %v7356 = vunpack.c.h.b16 %v7265
  %v7357 = vunpack.c.l.b16 %v7266
  %v7358 = vunpack.c.h.b16 %v7266
  %v7359 = vunpack.c.l.b16 %v7267
  %v7360 = vunpack.c.h.b16 %v7267
  %v7361 = vunpack.c.l.b16 %v7268
  %v7362 = vunpack.c.h.b16 %v7268
  %v7363 = vunpack.c.l.b16 %v7269
  %v7364 = vunpack.c.h.b16 %v7269
  %v7365 = vunpack.c.l.b16 %v7270
  %v7366 = vunpack.c.h.b16 %v7270
  %v7367 = vpack.c.b16 %v7307, %v7303
  %v7368 = vpack.c.b16 %v7308, %v7304
  %v7369 = vpack.c.b16 %v7309, %v7305
  %v7370 = vpack.c.b16 %v7310, %v7306
  %v7371 = vpack.c.b16 %v7315, %v7311
  %v7372 = vpack.c.b16 %v7316, %v7312
  %v7373 = vpack.c.b16 %v7317, %v7313
  %v7374 = vpack.c.b16 %v7318, %v7314
  %v7375 = vpack.c.b16 %v7323, %v7319
  %v7376 = vpack.c.b16 %v7324, %v7320
  %v7377 = vpack.c.b16 %v7325, %v7321
  %v7378 = vpack.c.b16 %v7326, %v7322
  %v7379 = vpack.c.b16 %v7331, %v7327
  %v7380 = vpack.c.b16 %v7332, %v7328
  %v7381 = vpack.c.b16 %v7333, %v7329
  %v7382 = vpack.c.b16 %v7334, %v7330
  %v7383 = vpack.c.b16 %v7339, %v7335
  %v7384 = vpack.c.b16 %v7340, %v7336
  %v7385 = vpack.c.b16 %v7341, %v7337
  %v7386 = vpack.c.b16 %v7342, %v7338
  %v7387 = vpack.c.b16 %v7347, %v7343
  %v7388 = vpack.c.b16 %v7348, %v7344
  %v7389 = vpack.c.b16 %v7349, %v7345
  %v7390 = vpack.c.b16 %v7350, %v7346
  %v7391 = vpack.c.b16 %v7355, %v7351
  %v7392 = vpack.c.b16 %v7356, %v7352
  %v7393 = vpack.c.b16 %v7357, %v7353
  %v7394 = vpack.c.b16 %v7358, %v7354
  %v7395 = vpack.c.b16 %v7363, %v7359
  %v7396 = vpack.c.b16 %v7364, %v7360
  %v7397 = vpack.c.b16 %v7365, %v7361
  %v7398 = vpack.c.b16 %v7366, %v7362
  %7431 = vmatprep.subr.bf16.mxu0 %v7396
  %7432 = vmatpush1.bf16.msra.mxu0 %v7395
  %7433 = vmatprep.subr.bf16.mxu0 %v7392
  %7434 = vmatpush1.bf16.msra.mxu0 %v7391
  %7435 = vmatprep.subr.bf16.mxu0 %v7388
  %7436 = vmatpush1.bf16.msra.mxu0 %v7387
  %7437 = vmatprep.subr.bf16.mxu0 %v7384
  %7438 = vmatpush1.bf16.msra.mxu0 %v7383
  %7439 = vmatprep.subr.bf16.mxu0 %v7380
  %7440 = vmatpush1.bf16.msra.mxu0 %v7379
  %7441 = vmatprep.subr.bf16.mxu0 %v7376
  %7442 = vmatpush1.bf16.msra.mxu0 %v7375
  %7443 = vmatprep.subr.bf16.mxu0 %v7372
  %7444 = vmatpush1.bf16.msra.mxu0 %v7371
  %7445 = vmatprep.subr.bf16.mxu0 %v7368
  %7446 = vmatpush1.bf16.msra.mxu0 %v7367
  %7447 = vmatprep.subr.bf16.mxu0 0
  %7448 = vmatpush2.bf16.msra.mxu0 0
  %7449 = vmatprep.subr.bf16.mxu0 0
  %7450 = vmatpush2.bf16.msra.mxu0 0
  %7451 = vmatprep.subr.bf16.mxu0 0
  %7452 = vmatpush2.bf16.msra.mxu0 0
  %7453 = vmatprep.subr.bf16.mxu0 0
  %7454 = vmatpush2.bf16.msra.mxu0 0
  %7455 = vmatprep.subr.bf16.mxu0 0
  %7456 = vmatpush2.bf16.msra.mxu0 0
  %7457 = vmatprep.subr.bf16.mxu0 0
  %7458 = vmatpush2.bf16.msra.mxu0 0
  %7459 = vmatprep.subr.bf16.mxu0 0
  %7460 = vmatpush2.bf16.msra.mxu0 0
  %7461 = vmatprep.subr.bf16.mxu0 0
  %7462 = vmatpush2.bf16.msra.mxu0 0
  %7463 = vmatprep.mubr.bf16.mxu0 0
  %7464 = vmatmul.mubr.bf16.gmra.mxu0 %v7073
  %v7465 = vpop.f32.mrf.mxu0
  %v7466 = vadd.f32 0.0, %v7465
  %v7467 = vpop.f32.mrf.mxu0
  %v7468 = vadd.f32 0.0, %v7467
  %v7469 = vpop.f32.mrf.mxu0
  %v7470 = vpop.f32.mrf.mxu0
  %7471 = vdwg.mxu0
  %7472 = vmatprep.subr.bf16.mxu0 %v7398
  %7473 = vmatpush1.bf16.msra.mxu0 %v7397
  %7474 = vmatprep.subr.bf16.mxu0 %v7394
  %7475 = vmatpush1.bf16.msra.mxu0 %v7393
  %7476 = vmatprep.subr.bf16.mxu0 %v7390
  %7477 = vmatpush1.bf16.msra.mxu0 %v7389
  %7478 = vmatprep.subr.bf16.mxu0 %v7386
  %7479 = vmatpush1.bf16.msra.mxu0 %v7385
  %7480 = vmatprep.subr.bf16.mxu0 %v7382
  %7481 = vmatpush1.bf16.msra.mxu0 %v7381
  %7482 = vmatprep.subr.bf16.mxu0 %v7378
  %7483 = vmatpush1.bf16.msra.mxu0 %v7377
  %7484 = vmatprep.subr.bf16.mxu0 %v7374
  %7485 = vmatpush1.bf16.msra.mxu0 %v7373
  %7486 = vmatprep.subr.bf16.mxu0 %v7370
  %7487 = vmatpush1.bf16.msra.mxu0 %v7369
  %7488 = vmatprep.subr.bf16.mxu0 0
  %7489 = vmatpush2.bf16.msra.mxu0 0
  %7490 = vmatprep.subr.bf16.mxu0 0
  %7491 = vmatpush2.bf16.msra.mxu0 0
  %7492 = vmatprep.subr.bf16.mxu0 0
  %7493 = vmatpush2.bf16.msra.mxu0 0
  %7494 = vmatprep.subr.bf16.mxu0 0
  %7495 = vmatpush2.bf16.msra.mxu0 0
  %7496 = vmatprep.subr.bf16.mxu0 0
  %7497 = vmatpush2.bf16.msra.mxu0 0
  %7498 = vmatprep.subr.bf16.mxu0 0
  %7499 = vmatpush2.bf16.msra.mxu0 0
  %7500 = vmatprep.subr.bf16.mxu0 0
  %7501 = vmatpush2.bf16.msra.mxu0 0
  %7502 = vmatprep.subr.bf16.mxu0 0
  %7503 = vmatpush2.bf16.msra.mxu0 0
  %7504 = vmatprep.mubr.bf16.mxu0 0
  %7505 = vmatmul.mubr.bf16.gmra.mxu0 %v7073
  %v7506 = vpop.f32.mrf.mxu0
  %v7507 = vadd.f32 0.0, %v7506
  %v7508 = vpop.f32.mrf.mxu0
  %v7509 = vadd.f32 0.0, %v7508
  %v7510 = vpop.f32.mrf.mxu0
  %v7511 = vpop.f32.mrf.mxu0
  %7512 = vdwg.mxu0
  %v7513 = vadd.f32 %v7235, %v7466
  %v7514 = vadd.f32 %v7236, %v7468
  %v7515 = vadd.f32 %v7237, %v7507
  %v7516 = vadd.f32 %v7238, %v7509
  %v7517 = vxor.u32 %v7513, 2147483648
  %v7518 = vxor.u32 %v7514, 2147483648
  %v7519 = vxor.u32 %v7515, 2147483648
  %v7520 = vmul.f32 %v7517, 1.442695
  %v7521 = vpow.pop %v7520
  %v7522 = vmul.f32 %v7518, 1.442695
  %v7523 = vpow.pop %v7522
  %v7524 = vmul.f32 %v7519, 1.442695
  %v7525 = vpow.pop %v7524
  %v7526 = vadd.f32 %v7521, 1.0
  %v7527 = vadd.f32 %v7523, 1.0
  %v7528 = vadd.f32 %v7525, 1.0
  %v7529 = vrcp.pop %v7526
  %v7530 = vmul.f32 1.0, %v7529
  %v7531 = vrcp.pop %v7527
  %v7532 = vmul.f32 1.0, %v7531
  %v7533 = vrcp.pop %v7528
  %v7534 = vmul.f32 1.0, %v7533
  %v7535 = vtanh.pop %v7516
  %v7536 = vmul.f32 %v7532, %v7070
  %v7537 = vmul.f32 %v7530, %v7535
  %v7538 = vadd.f32 %v7536, %v7537
  %v7539 = vtanh.pop %v7538
  %v7540 = vmul.f32 %v7534, %v7539
  %v7541 = vpack.c.bf16 %v7540, %v7540
  %v7542 = vpack.c.bf16 %v7232, %v7232
  %v7543 = vld [vmem:[%s4] sm:$0xf]
  %v7544 = vld [vmem:[%s4 + $0x4] sm:$0xf]
  %v7545 = vld [vmem:[%s4 + $0x8] sm:$0xf]
  %v7546 = vld [vmem:[%s4 + $0xc] sm:$0xf]
  %v7547 = vld [vmem:[%s4 + $0x10] sm:$0xf]
  %v7548 = vld [vmem:[%s4 + $0x14] sm:$0xf]
  %v7549 = vld [vmem:[%s4 + $0x18] sm:$0xf]
  %v7550 = vld [vmem:[%s4 + $0x1c] sm:$0xf]
  %v7551 = vld [vmem:[%s4 + $0x20] sm:$0xf]
  %v7552 = vld [vmem:[%s4 + $0x24] sm:$0xf]
  %v7553 = vld [vmem:[%s4 + $0x28] sm:$0xf]
  %v7554 = vld [vmem:[%s4 + $0x2c] sm:$0xf]
  %v7555 = vld [vmem:[%s4 + $0x30] sm:$0xf]
  %v7556 = vld [vmem:[%s4 + $0x34] sm:$0xf]
  %v7557 = vld [vmem:[%s4 + $0x38] sm:$0xf]
  %v7558 = vld [vmem:[%s4 + $0x3c] sm:$0xf]
  %v7559 = vld [vmem:[%s4 + $0x40] sm:$0xf]
  %v7560 = vld [vmem:[%s4 + $0x44] sm:$0xf]
  %v7561 = vld [vmem:[%s4 + $0x48] sm:$0xf]
  %v7562 = vld [vmem:[%s4 + $0x4c] sm:$0xf]
  %v7563 = vld [vmem:[%s5] sm:$0x1]
  %v7565 = vlaneseq
  %v7566 = vshrl.u32 %v7565, 7
  %v7567 = vsub.s32 0, %v7566
  %v7568 = vrot.slane %v7563, %v7567
  %v7590 = vunpack.c.l.b16 %v7543
  %v7591 = vunpack.c.l.b16 %v7544
  %v7592 = vunpack.c.l.b16 %v7545
  %v7593 = vunpack.c.l.b16 %v7546
  %v7594 = vunpack.c.l.b16 %v7547
  %v7595 = vunpack.c.l.b16 %v7548
  %v7596 = vunpack.c.l.b16 %v7549
  %v7597 = vunpack.c.l.b16 %v7550
  %v7598 = vunpack.c.l.b16 %v7551
  %v7599 = vunpack.c.l.b16 %v7552
  %v7600 = vunpack.c.l.b16 %v7553
  %v7601 = vunpack.c.l.b16 %v7554
  %v7602 = vunpack.c.l.b16 %v7555
  %v7603 = vunpack.c.l.b16 %v7556
  %v7604 = vunpack.c.l.b16 %v7557
  %v7605 = vunpack.c.l.b16 %v7558
  %v7606 = vunpack.c.l.b16 %v7559
  %v7607 = vunpack.c.l.b16 %v7560
  %v7608 = vunpack.c.l.b16 %v7561
  %v7609 = vunpack.c.l.b16 %v7562
  %v7610 = vpack.c.b16 %v7591, %v7590
  %v7611 = vpack.c.b16 %v7593, %v7592
  %v7612 = vpack.c.b16 %v7595, %v7594
  %v7613 = vpack.c.b16 %v7597, %v7596
  %v7614 = vpack.c.b16 %v7599, %v7598
  %v7615 = vpack.c.b16 %v7601, %v7600
  %v7616 = vpack.c.b16 %v7603, %v7602
  %v7617 = vpack.c.b16 %v7605, %v7604
  %v7618 = vpack.c.b16 %v7607, %v7606
  %v7619 = vpack.c.b16 %v7609, %v7608
  %v7631 = vsel %vm1077, %v7542, 0
  %7633 = vmatprep.subr.bf16.mxu0 0
  %7634 = vmatpush1.bf16.msra.mxu0 %v7617
  %7635 = vmatprep.subr.bf16.mxu0 0
  %7636 = vmatpush1.bf16.msra.mxu0 %v7616
  %7637 = vmatprep.subr.bf16.mxu0 0
  %7638 = vmatpush1.bf16.msra.mxu0 %v7615
  %7639 = vmatprep.subr.bf16.mxu0 0
  %7640 = vmatpush1.bf16.msra.mxu0 %v7614
  %7641 = vmatprep.subr.bf16.mxu0 0
  %7642 = vmatpush1.bf16.msra.mxu0 %v7613
  %7643 = vmatprep.subr.bf16.mxu0 0
  %7644 = vmatpush1.bf16.msra.mxu0 %v7612
  %7645 = vmatprep.subr.bf16.mxu0 0
  %7646 = vmatpush1.bf16.msra.mxu0 %v7611
  %7647 = vmatprep.subr.bf16.mxu0 0
  %7648 = vmatpush1.bf16.msra.mxu0 %v7610
  %7649 = vmatprep.subr.bf16.mxu0 0
  %7650 = vmatpush2.bf16.msra.mxu0 0
  %7651 = vmatprep.subr.bf16.mxu0 0
  %7652 = vmatpush2.bf16.msra.mxu0 0
  %7653 = vmatprep.subr.bf16.mxu0 0
  %7654 = vmatpush2.bf16.msra.mxu0 0
  %7655 = vmatprep.subr.bf16.mxu0 0
  %7656 = vmatpush2.bf16.msra.mxu0 0
  %7657 = vmatprep.subr.bf16.mxu0 0
  %7658 = vmatpush2.bf16.msra.mxu0 0
  %7659 = vmatprep.subr.bf16.mxu0 0
  %7660 = vmatpush2.bf16.msra.mxu0 0
  %7661 = vmatprep.subr.bf16.mxu0 0
  %7662 = vmatpush2.bf16.msra.mxu0 %v7619
  %7663 = vmatprep.subr.bf16.mxu0 0
  %7664 = vmatpush2.bf16.msra.mxu0 %v7618
  %7665 = vmatprep.mubr.bf16.mxu0 %v7631
  %7666 = vmatmul.mubr.bf16.gmra.mxu0 %v7541
  %v7667 = vpop.f32.mrf.mxu0
  %v7668 = vadd.f32 %v7568, %v7667
  %v7669 = vpop.f32.mrf.mxu0
  %v7670 = vpop.f32.mrf.mxu0
  %v7671 = vpop.f32.mrf.mxu0
  %7672 = vdwg.mxu0
  %v7673 = vxor.u32 %v7668, 2147483648
  %v7674 = vmul.f32 %v7673, 1.442695
  %v7675 = vpow.pop %v7674
  %v7676 = vadd.f32 %v7675, 1.0
  %v7677 = vrcp.pop %v7676
  %v7678 = vmul.f32 1.0, %v7677
  %v7679 = vtanh.pop %v7668
  %v7680 = vsel %vm681, %v7678, %v7679
  %v7681 = vmul.f32 %v7680, %v7223
  %7683 = vrot.lane.b32.xlu0 %v7680, 32
  %v7684 = vpop.permute.xlu0 %7683
  %v7686 = vmul.f32 %v7680, %v7684
  %7688 = vrot.lane.b32.xlu0 %v7686, 32
  %v7689 = vpop.permute.xlu0 %7688
  %v7691 = vadd.f32 %v7681, %v7689
  %v7692 = vtanh.pop %v7691
  %7694 = vrot.lane.b32.xlu0 %v7692, 32
  %v7695 = vpop.permute.xlu0 %7694
  %v7697 = vmul.f32 %v7680, %v7695
  %7699 = vrot.lane.b32.xlu0 %v7697, 64
  %v7700 = vpop.permute.xlu0 %7699
  %7702 = vst.msk [vmem:[#allocation3 + $0x70] sm:$0xff] %vm1077, %v7700
  %v7703 = vld [vmem:[#allocation2 + $0x1e0] sm:$0xff]
  %v7704 = vld [vmem:[#allocation2 + $0x1e8] sm:$0xff]
  %v7705 = vld [vmem:[#allocation2 + $0x1f0] sm:$0xff]
  %v7706 = vld [vmem:[#allocation2 + $0x1f8] sm:$0xff]
  %v7707 = vld [vmem:[%s2] sm:$0xff]
  %v7708 = vld [vmem:[%s2 + $0x8] sm:$0xff]
  %v7709 = vld [vmem:[%s2 + $0x10] sm:$0xff]
  %v7710 = vld [vmem:[%s2 + $0x18] sm:$0xff]
  %v7711 = vld [vmem:[%s2 + $0x20] sm:$0xff]
  %v7712 = vld [vmem:[%s2 + $0x28] sm:$0xff]
  %v7713 = vld [vmem:[%s2 + $0x30] sm:$0xff]
  %v7714 = vld [vmem:[%s2 + $0x38] sm:$0xff]
  %v7715 = vld [vmem:[%s2 + $0x40] sm:$0xff]
  %v7716 = vld [vmem:[%s2 + $0x48] sm:$0xff]
  %v7717 = vld [vmem:[%s2 + $0x50] sm:$0xff]
  %v7718 = vld [vmem:[%s2 + $0x58] sm:$0xff]
  %v7719 = vld [vmem:[%s2 + $0x60] sm:$0xff]
  %v7720 = vld [vmem:[%s2 + $0x68] sm:$0xff]
  %v7721 = vld [vmem:[%s2 + $0x70] sm:$0xff]
  %v7722 = vld [vmem:[%s2 + $0x78] sm:$0xff]
  %v7723 = vld [vmem:[%s2 + $0x80] sm:$0xff]
  %v7724 = vld [vmem:[%s2 + $0x88] sm:$0xff]
  %v7725 = vld [vmem:[%s2 + $0x90] sm:$0xff]
  %v7726 = vld [vmem:[%s2 + $0x98] sm:$0xff]
  %v7727 = vld [vmem:[%s2 + $0xa0] sm:$0xff]
  %v7728 = vld [vmem:[%s2 + $0xa8] sm:$0xff]
  %v7729 = vld [vmem:[%s2 + $0xb0] sm:$0xff]
  %v7730 = vld [vmem:[%s2 + $0xb8] sm:$0xff]
  %v7731 = vld [vmem:[%s2 + $0xc0] sm:$0xff]
  %v7732 = vld [vmem:[%s2 + $0xc8] sm:$0xff]
  %v7733 = vld [vmem:[%s2 + $0xd0] sm:$0xff]
  %v7734 = vld [vmem:[%s2 + $0xd8] sm:$0xff]
  %v7735 = vld [vmem:[%s2 + $0xe0] sm:$0xff]
  %v7736 = vld [vmem:[%s2 + $0xe8] sm:$0xff]
  %v7737 = vld [vmem:[%s2 + $0xf0] sm:$0xff]
  %v7738 = vld [vmem:[%s2 + $0xf8] sm:$0xff]
  %v7771 = vunpack.c.l.b16 %v7707
  %v7772 = vunpack.c.h.b16 %v7707
  %v7773 = vunpack.c.l.b16 %v7708
  %v7774 = vunpack.c.h.b16 %v7708
  %v7775 = vunpack.c.l.b16 %v7709
  %v7776 = vunpack.c.h.b16 %v7709
  %v7777 = vunpack.c.l.b16 %v7710
  %v7778 = vunpack.c.h.b16 %v7710
  %v7779 = vunpack.c.l.b16 %v7711
  %v7780 = vunpack.c.h.b16 %v7711
  %v7781 = vunpack.c.l.b16 %v7712
  %v7782 = vunpack.c.h.b16 %v7712
  %v7783 = vunpack.c.l.b16 %v7713
  %v7784 = vunpack.c.h.b16 %v7713
  %v7785 = vunpack.c.l.b16 %v7714
  %v7786 = vunpack.c.h.b16 %v7714
  %v7787 = vunpack.c.l.b16 %v7715
  %v7788 = vunpack.c.h.b16 %v7715
  %v7789 = vunpack.c.l.b16 %v7716
  %v7790 = vunpack.c.h.b16 %v7716
  %v7791 = vunpack.c.l.b16 %v7717
  %v7792 = vunpack.c.h.b16 %v7717
  %v7793 = vunpack.c.l.b16 %v7718
  %v7794 = vunpack.c.h.b16 %v7718
  %v7795 = vunpack.c.l.b16 %v7719
  %v7796 = vunpack.c.h.b16 %v7719
  %v7797 = vunpack.c.l.b16 %v7720
  %v7798 = vunpack.c.h.b16 %v7720
  %v7799 = vunpack.c.l.b16 %v7721
  %v7800 = vunpack.c.h.b16 %v7721
  %v7801 = vunpack.c.l.b16 %v7722
  %v7802 = vunpack.c.h.b16 %v7722
  %v7803 = vunpack.c.l.b16 %v7723
  %v7804 = vunpack.c.h.b16 %v7723
  %v7805 = vunpack.c.l.b16 %v7724
  %v7806 = vunpack.c.h.b16 %v7724
  %v7807 = vunpack.c.l.b16 %v7725
  %v7808 = vunpack.c.h.b16 %v7725
  %v7809 = vunpack.c.l.b16 %v7726
  %v7810 = vunpack.c.h.b16 %v7726
  %v7811 = vunpack.c.l.b16 %v7727
  %v7812 = vunpack.c.h.b16 %v7727
  %v7813 = vunpack.c.l.b16 %v7728
  %v7814 = vunpack.c.h.b16 %v7728
  %v7815 = vunpack.c.l.b16 %v7729
  %v7816 = vunpack.c.h.b16 %v7729
  %v7817 = vunpack.c.l.b16 %v7730
  %v7818 = vunpack.c.h.b16 %v7730
  %v7819 = vunpack.c.l.b16 %v7731
  %v7820 = vunpack.c.h.b16 %v7731
  %v7821 = vunpack.c.l.b16 %v7732
  %v7822 = vunpack.c.h.b16 %v7732
  %v7823 = vunpack.c.l.b16 %v7733
  %v7824 = vunpack.c.h.b16 %v7733
  %v7825 = vunpack.c.l.b16 %v7734
  %v7826 = vunpack.c.h.b16 %v7734
  %v7827 = vunpack.c.l.b16 %v7735
  %v7828 = vunpack.c.h.b16 %v7735
  %v7829 = vunpack.c.l.b16 %v7736
  %v7830 = vunpack.c.h.b16 %v7736
  %v7831 = vunpack.c.l.b16 %v7737
  %v7832 = vunpack.c.h.b16 %v7737
  %v7833 = vunpack.c.l.b16 %v7738
  %v7834 = vunpack.c.h.b16 %v7738
  %v7835 = vpack.c.b16 %v7775, %v7771
  %v7836 = vpack.c.b16 %v7776, %v7772
  %v7837 = vpack.c.b16 %v7777, %v7773
  %v7838 = vpack.c.b16 %v7778, %v7774
  %v7839 = vpack.c.b16 %v7783, %v7779
  %v7840 = vpack.c.b16 %v7784, %v7780
  %v7841 = vpack.c.b16 %v7785, %v7781
  %v7842 = vpack.c.b16 %v7786, %v7782
  %v7843 = vpack.c.b16 %v7791, %v7787
  %v7844 = vpack.c.b16 %v7792, %v7788
  %v7845 = vpack.c.b16 %v7793, %v7789
  %v7846 = vpack.c.b16 %v7794, %v7790
  %v7847 = vpack.c.b16 %v7799, %v7795
  %v7848 = vpack.c.b16 %v7800, %v7796
  %v7849 = vpack.c.b16 %v7801, %v7797
  %v7850 = vpack.c.b16 %v7802, %v7798
  %v7851 = vpack.c.b16 %v7807, %v7803
  %v7852 = vpack.c.b16 %v7808, %v7804
  %v7853 = vpack.c.b16 %v7809, %v7805
  %v7854 = vpack.c.b16 %v7810, %v7806
  %v7855 = vpack.c.b16 %v7815, %v7811
  %v7856 = vpack.c.b16 %v7816, %v7812
  %v7857 = vpack.c.b16 %v7817, %v7813
  %v7858 = vpack.c.b16 %v7818, %v7814
  %v7859 = vpack.c.b16 %v7823, %v7819
  %v7860 = vpack.c.b16 %v7824, %v7820
  %v7861 = vpack.c.b16 %v7825, %v7821
  %v7862 = vpack.c.b16 %v7826, %v7822
  %v7863 = vpack.c.b16 %v7831, %v7827
  %v7864 = vpack.c.b16 %v7832, %v7828
  %v7865 = vpack.c.b16 %v7833, %v7829
  %v7866 = vpack.c.b16 %v7834, %v7830
  %7899 = vmatprep.subr.bf16.mxu0 %v7864
  %7900 = vmatpush1.bf16.msra.mxu0 %v7863
  %7901 = vmatprep.subr.bf16.mxu0 %v7860
  %7902 = vmatpush1.bf16.msra.mxu0 %v7859
  %7903 = vmatprep.subr.bf16.mxu0 %v7856
  %7904 = vmatpush1.bf16.msra.mxu0 %v7855
  %7905 = vmatprep.subr.bf16.mxu0 %v7852
  %7906 = vmatpush1.bf16.msra.mxu0 %v7851
  %7907 = vmatprep.subr.bf16.mxu0 %v7848
  %7908 = vmatpush1.bf16.msra.mxu0 %v7847
  %7909 = vmatprep.subr.bf16.mxu0 %v7844
  %7910 = vmatpush1.bf16.msra.mxu0 %v7843
  %7911 = vmatprep.subr.bf16.mxu0 %v7840
  %7912 = vmatpush1.bf16.msra.mxu0 %v7839
  %7913 = vmatprep.subr.bf16.mxu0 %v7836
  %7914 = vmatpush1.bf16.msra.mxu0 %v7835
  %7915 = vmatprep.subr.bf16.mxu0 0
  %7916 = vmatpush2.bf16.msra.mxu0 0
  %7917 = vmatprep.subr.bf16.mxu0 0
  %7918 = vmatpush2.bf16.msra.mxu0 0
  %7919 = vmatprep.subr.bf16.mxu0 0
  %7920 = vmatpush2.bf16.msra.mxu0 0
  %7921 = vmatprep.subr.bf16.mxu0 0
  %7922 = vmatpush2.bf16.msra.mxu0 0
  %7923 = vmatprep.subr.bf16.mxu0 0
  %7924 = vmatpush2.bf16.msra.mxu0 0
  %7925 = vmatprep.subr.bf16.mxu0 0
  %7926 = vmatpush2.bf16.msra.mxu0 0
  %7927 = vmatprep.subr.bf16.mxu0 0
  %7928 = vmatpush2.bf16.msra.mxu0 0
  %7929 = vmatprep.subr.bf16.mxu0 0
  %7930 = vmatpush2.bf16.msra.mxu0 0
  %7931 = vmatprep.mubr.bf16.mxu0 0
  %7932 = vmatmul.mubr.bf16.gmra.mxu0 %v7541
  %v7933 = vpop.f32.mrf.mxu0
  %v7934 = vadd.f32 0.0, %v7933
  %v7935 = vpop.f32.mrf.mxu0
  %v7936 = vadd.f32 0.0, %v7935
  %v7937 = vpop.f32.mrf.mxu0
  %v7938 = vpop.f32.mrf.mxu0
  %7939 = vdwg.mxu0
  %7940 = vmatprep.subr.bf16.mxu0 %v7866
  %7941 = vmatpush1.bf16.msra.mxu0 %v7865
  %7942 = vmatprep.subr.bf16.mxu0 %v7862
  %7943 = vmatpush1.bf16.msra.mxu0 %v7861
  %7944 = vmatprep.subr.bf16.mxu0 %v7858
  %7945 = vmatpush1.bf16.msra.mxu0 %v7857
  %7946 = vmatprep.subr.bf16.mxu0 %v7854
  %7947 = vmatpush1.bf16.msra.mxu0 %v7853
  %7948 = vmatprep.subr.bf16.mxu0 %v7850
  %7949 = vmatpush1.bf16.msra.mxu0 %v7849
  %7950 = vmatprep.subr.bf16.mxu0 %v7846
  %7951 = vmatpush1.bf16.msra.mxu0 %v7845
  %7952 = vmatprep.subr.bf16.mxu0 %v7842
  %7953 = vmatpush1.bf16.msra.mxu0 %v7841
  %7954 = vmatprep.subr.bf16.mxu0 %v7838
  %7955 = vmatpush1.bf16.msra.mxu0 %v7837
  %7956 = vmatprep.subr.bf16.mxu0 0
  %7957 = vmatpush2.bf16.msra.mxu0 0
  %7958 = vmatprep.subr.bf16.mxu0 0
  %7959 = vmatpush2.bf16.msra.mxu0 0
  %7960 = vmatprep.subr.bf16.mxu0 0
  %7961 = vmatpush2.bf16.msra.mxu0 0
  %7962 = vmatprep.subr.bf16.mxu0 0
  %7963 = vmatpush2.bf16.msra.mxu0 0
  %7964 = vmatprep.subr.bf16.mxu0 0
  %7965 = vmatpush2.bf16.msra.mxu0 0
  %7966 = vmatprep.subr.bf16.mxu0 0
  %7967 = vmatpush2.bf16.msra.mxu0 0
  %7968 = vmatprep.subr.bf16.mxu0 0
  %7969 = vmatpush2.bf16.msra.mxu0 0
  %7970 = vmatprep.subr.bf16.mxu0 0
  %7971 = vmatpush2.bf16.msra.mxu0 0
  %7972 = vmatprep.mubr.bf16.mxu0 0
  %7973 = vmatmul.mubr.bf16.gmra.mxu0 %v7541
  %v7974 = vpop.f32.mrf.mxu0
  %v7975 = vadd.f32 0.0, %v7974
  %v7976 = vpop.f32.mrf.mxu0
  %v7977 = vadd.f32 0.0, %v7976
  %v7978 = vpop.f32.mrf.mxu0
  %v7979 = vpop.f32.mrf.mxu0
  %7980 = vdwg.mxu0
  %v7981 = vadd.f32 %v7703, %v7934
  %v7982 = vadd.f32 %v7704, %v7936
  %v7983 = vadd.f32 %v7705, %v7975
  %v7984 = vadd.f32 %v7706, %v7977
  %v7985 = vxor.u32 %v7981, 2147483648
  %v7986 = vxor.u32 %v7982, 2147483648
  %v7987 = vxor.u32 %v7983, 2147483648
  %v7988 = vmul.f32 %v7985, 1.442695
  %v7989 = vpow.pop %v7988
  %v7990 = vmul.f32 %v7986, 1.442695
  %v7991 = vpow.pop %v7990
  %v7992 = vmul.f32 %v7987, 1.442695
  %v7993 = vpow.pop %v7992
  %v7994 = vadd.f32 %v7989, 1.0
  %v7995 = vadd.f32 %v7991, 1.0
  %v7996 = vadd.f32 %v7993, 1.0
  %v7997 = vrcp.pop %v7994
  %v7998 = vmul.f32 1.0, %v7997
  %v7999 = vrcp.pop %v7995
  %v8000 = vmul.f32 1.0, %v7999
  %v8001 = vrcp.pop %v7996
  %v8002 = vmul.f32 1.0, %v8001
  %v8003 = vtanh.pop %v7984
  %v8004 = vmul.f32 %v8000, %v7538
  %v8005 = vmul.f32 %v7998, %v8003
  %v8006 = vadd.f32 %v8004, %v8005
  %v8007 = vtanh.pop %v8006
  %v8008 = vmul.f32 %v8002, %v8007
  %v8009 = vpack.c.bf16 %v8008, %v8008
  %v8010 = vpack.c.bf16 %v7700, %v7700
  %v8011 = vld [vmem:[%s4] sm:$0xf]
  %v8012 = vld [vmem:[%s4 + $0x4] sm:$0xf]
  %v8013 = vld [vmem:[%s4 + $0x8] sm:$0xf]
  %v8014 = vld [vmem:[%s4 + $0xc] sm:$0xf]
  %v8015 = vld [vmem:[%s4 + $0x10] sm:$0xf]
  %v8016 = vld [vmem:[%s4 + $0x14] sm:$0xf]
  %v8017 = vld [vmem:[%s4 + $0x18] sm:$0xf]
  %v8018 = vld [vmem:[%s4 + $0x1c] sm:$0xf]
  %v8019 = vld [vmem:[%s4 + $0x20] sm:$0xf]
  %v8020 = vld [vmem:[%s4 + $0x24] sm:$0xf]
  %v8021 = vld [vmem:[%s4 + $0x28] sm:$0xf]
  %v8022 = vld [vmem:[%s4 + $0x2c] sm:$0xf]
  %v8023 = vld [vmem:[%s4 + $0x30] sm:$0xf]
  %v8024 = vld [vmem:[%s4 + $0x34] sm:$0xf]
  %v8025 = vld [vmem:[%s4 + $0x38] sm:$0xf]
  %v8026 = vld [vmem:[%s4 + $0x3c] sm:$0xf]
  %v8027 = vld [vmem:[%s4 + $0x40] sm:$0xf]
  %v8028 = vld [vmem:[%s4 + $0x44] sm:$0xf]
  %v8029 = vld [vmem:[%s4 + $0x48] sm:$0xf]
  %v8030 = vld [vmem:[%s4 + $0x4c] sm:$0xf]
  %v8031 = vld [vmem:[%s5] sm:$0x1]
  %v8033 = vlaneseq
  %v8034 = vshrl.u32 %v8033, 7
  %v8035 = vsub.s32 0, %v8034
  %v8036 = vrot.slane %v8031, %v8035
  %v8058 = vunpack.c.l.b16 %v8011
  %v8059 = vunpack.c.l.b16 %v8012
  %v8060 = vunpack.c.l.b16 %v8013
  %v8061 = vunpack.c.l.b16 %v8014
  %v8062 = vunpack.c.l.b16 %v8015
  %v8063 = vunpack.c.l.b16 %v8016
  %v8064 = vunpack.c.l.b16 %v8017
  %v8065 = vunpack.c.l.b16 %v8018
  %v8066 = vunpack.c.l.b16 %v8019
  %v8067 = vunpack.c.l.b16 %v8020
  %v8068 = vunpack.c.l.b16 %v8021
  %v8069 = vunpack.c.l.b16 %v8022
  %v8070 = vunpack.c.l.b16 %v8023
  %v8071 = vunpack.c.l.b16 %v8024
  %v8072 = vunpack.c.l.b16 %v8025
  %v8073 = vunpack.c.l.b16 %v8026
  %v8074 = vunpack.c.l.b16 %v8027
  %v8075 = vunpack.c.l.b16 %v8028
  %v8076 = vunpack.c.l.b16 %v8029
  %v8077 = vunpack.c.l.b16 %v8030
  %v8078 = vpack.c.b16 %v8059, %v8058
  %v8079 = vpack.c.b16 %v8061, %v8060
  %v8080 = vpack.c.b16 %v8063, %v8062
  %v8081 = vpack.c.b16 %v8065, %v8064
  %v8082 = vpack.c.b16 %v8067, %v8066
  %v8083 = vpack.c.b16 %v8069, %v8068
  %v8084 = vpack.c.b16 %v8071, %v8070
  %v8085 = vpack.c.b16 %v8073, %v8072
  %v8086 = vpack.c.b16 %v8075, %v8074
  %v8087 = vpack.c.b16 %v8077, %v8076
  %v8099 = vsel %vm1077, %v8010, 0
  %8101 = vmatprep.subr.bf16.mxu0 0
  %8102 = vmatpush1.bf16.msra.mxu0 %v8085
  %8103 = vmatprep.subr.bf16.mxu0 0
  %8104 = vmatpush1.bf16.msra.mxu0 %v8084
  %8105 = vmatprep.subr.bf16.mxu0 0
  %8106 = vmatpush1.bf16.msra.mxu0 %v8083
  %8107 = vmatprep.subr.bf16.mxu0 0
  %8108 = vmatpush1.bf16.msra.mxu0 %v8082
  %8109 = vmatprep.subr.bf16.mxu0 0
  %8110 = vmatpush1.bf16.msra.mxu0 %v8081
  %8111 = vmatprep.subr.bf16.mxu0 0
  %8112 = vmatpush1.bf16.msra.mxu0 %v8080
  %8113 = vmatprep.subr.bf16.mxu0 0
  %8114 = vmatpush1.bf16.msra.mxu0 %v8079
  %8115 = vmatprep.subr.bf16.mxu0 0
  %8116 = vmatpush1.bf16.msra.mxu0 %v8078
  %8117 = vmatprep.subr.bf16.mxu0 0
  %8118 = vmatpush2.bf16.msra.mxu0 0
  %8119 = vmatprep.subr.bf16.mxu0 0
  %8120 = vmatpush2.bf16.msra.mxu0 0
  %8121 = vmatprep.subr.bf16.mxu0 0
  %8122 = vmatpush2.bf16.msra.mxu0 0
  %8123 = vmatprep.subr.bf16.mxu0 0
  %8124 = vmatpush2.bf16.msra.mxu0 0
  %8125 = vmatprep.subr.bf16.mxu0 0
  %8126 = vmatpush2.bf16.msra.mxu0 0
  %8127 = vmatprep.subr.bf16.mxu0 0
  %8128 = vmatpush2.bf16.msra.mxu0 0
  %8129 = vmatprep.subr.bf16.mxu0 0
  %8130 = vmatpush2.bf16.msra.mxu0 %v8087
  %8131 = vmatprep.subr.bf16.mxu0 0
  %8132 = vmatpush2.bf16.msra.mxu0 %v8086
  %8133 = vmatprep.mubr.bf16.mxu0 %v8099
  %8134 = vmatmul.mubr.bf16.gmra.mxu0 %v8009
  %v8135 = vpop.f32.mrf.mxu0
  %v8136 = vadd.f32 %v8036, %v8135
  %v8137 = vpop.f32.mrf.mxu0
  %v8138 = vpop.f32.mrf.mxu0
  %v8139 = vpop.f32.mrf.mxu0
  %8140 = vdwg.mxu0
  %v8141 = vxor.u32 %v8136, 2147483648
  %v8142 = vmul.f32 %v8141, 1.442695
  %v8143 = vpow.pop %v8142
  %v8144 = vadd.f32 %v8143, 1.0
  %v8145 = vrcp.pop %v8144
  %v8146 = vmul.f32 1.0, %v8145
  %v8147 = vtanh.pop %v8136
  %v8148 = vsel %vm681, %v8146, %v8147
  %v8149 = vmul.f32 %v8148, %v7691
  %8151 = vrot.lane.b32.xlu0 %v8148, 32
  %v8152 = vpop.permute.xlu0 %8151
  %v8154 = vmul.f32 %v8148, %v8152
  %8156 = vrot.lane.b32.xlu0 %v8154, 32
  %v8157 = vpop.permute.xlu0 %8156
  %v8159 = vadd.f32 %v8149, %v8157
  %v8160 = vtanh.pop %v8159
  %8162 = vrot.lane.b32.xlu0 %v8160, 32
  %v8163 = vpop.permute.xlu0 %8162
  %v8165 = vmul.f32 %v8148, %v8163
  %8167 = vrot.lane.b32.xlu0 %v8165, 64
  %v8168 = vpop.permute.xlu0 %8167
  %8170 = vst.msk [vmem:[#allocation3 + $0x78] sm:$0xff] %vm1077, %v8168
  %v8171 = vld [vmem:[#allocation3] sm:$0xff]
  %v8172 = vld [vmem:[#allocation3 + $0x8] sm:$0xff]
  %v8173 = vld [vmem:[#allocation3 + $0x10] sm:$0xff]
  %v8174 = vld [vmem:[#allocation3 + $0x18] sm:$0xff]
  %v8175 = vld [vmem:[#allocation3 + $0x20] sm:$0xff]
  %v8176 = vld [vmem:[#allocation3 + $0x28] sm:$0xff]
  %v8177 = vld [vmem:[#allocation3 + $0x30] sm:$0xff]
  %v8178 = vld [vmem:[#allocation3 + $0x38] sm:$0xff]
  %v8179 = vld [vmem:[#allocation3 + $0x40] sm:$0xff]
  %v8180 = vld [vmem:[#allocation3 + $0x48] sm:$0xff]
  %v8181 = vld [vmem:[#allocation3 + $0x50] sm:$0xff]
  %v8182 = vld [vmem:[#allocation3 + $0x58] sm:$0xff]
  %v8183 = vld [vmem:[#allocation3 + $0x60] sm:$0xff]
  %v8184 = vld [vmem:[#allocation3 + $0x68] sm:$0xff]
  %v8185 = vld [vmem:[#allocation3 + $0x70] sm:$0xff]
  %v8186 = vld [vmem:[#allocation3 + $0x78] sm:$0xff]
  %v8187 = vpack.c.bf16 %v8172, %v8171
  %v8188 = vpack.c.bf16 %v8174, %v8173
  %v8189 = vpack.c.bf16 %v8176, %v8175
  %v8190 = vpack.c.bf16 %v8178, %v8177
  %v8191 = vpack.c.bf16 %v8180, %v8179
  %v8192 = vpack.c.bf16 %v8182, %v8181
  %v8193 = vpack.c.bf16 %v8184, %v8183
  %v8194 = vpack.c.bf16 %v8186, %v8185
  %v8195 = vld [vmem:[%s6] sm:$0xf]
  %v8196 = vld [vmem:[%s6 + $0x4] sm:$0xf]
  %v8197 = vld [vmem:[%s6 + $0x8] sm:$0xf]
  %v8198 = vld [vmem:[%s6 + $0xc] sm:$0xf]
  %v8199 = vld [vmem:[%s7] sm:$0x1]
  %v8201 = vlaneseq
  %v8202 = vshrl.u32 %v8201, 7
  %v8203 = vsub.s32 0, %v8202
  %v8204 = vrot.slane %v8199, %v8203
  %v8210 = vunpack.c.l.b16 %v8195
  %v8211 = vunpack.c.l.b16 %v8196
  %v8212 = vunpack.c.l.b16 %v8197
  %v8213 = vunpack.c.l.b16 %v8198
  %v8214 = vpack.c.b16 %v8211, %v8210
  %v8215 = vpack.c.b16 %v8213, %v8212
  %v8219 = vsel %vm1077, %v8187, 0
  %v8222 = vsel %vm1077, %v8188, 0
  %v8225 = vsel %vm1077, %v8189, 0
  %v8228 = vsel %vm1077, %v8190, 0
  %v8231 = vsel %vm1077, %v8191, 0
  %v8234 = vsel %vm1077, %v8192, 0
  %v8237 = vsel %vm1077, %v8193, 0
  %v8240 = vsel %vm1077, %v8194, 0
  %8242 = vmatprep.subr.bf16.mxu0 0
  %8243 = vmatpush1.bf16.msra.mxu0 0
  %8244 = vmatprep.subr.bf16.mxu0 0
  %8245 = vmatpush1.bf16.msra.mxu0 0
  %8246 = vmatprep.subr.bf16.mxu0 0
  %8247 = vmatpush1.bf16.msra.mxu0 0
  %8248 = vmatprep.subr.bf16.mxu0 0
  %8249 = vmatpush1.bf16.msra.mxu0 0
  %8250 = vmatprep.subr.bf16.mxu0 0
  %8251 = vmatpush1.bf16.msra.mxu0 0
  %8252 = vmatprep.subr.bf16.mxu0 0
  %8253 = vmatpush1.bf16.msra.mxu0 0
  %8254 = vmatprep.subr.bf16.mxu0 0
  %8255 = vmatpush1.bf16.msra.mxu0 %v8215
  %8256 = vmatprep.subr.bf16.mxu0 0
  %8257 = vmatpush1.bf16.msra.mxu0 %v8214
  %8258 = vmatprep.subr.bf16.mxu0 0
  %8259 = vmatpush2.bf16.msra.mxu0 0
  %8260 = vmatprep.subr.bf16.mxu0 0
  %8261 = vmatpush2.bf16.msra.mxu0 0
  %8262 = vmatprep.subr.bf16.mxu0 0
  %8263 = vmatpush2.bf16.msra.mxu0 0
  %8264 = vmatprep.subr.bf16.mxu0 0
  %8265 = vmatpush2.bf16.msra.mxu0 0
  %8266 = vmatprep.subr.bf16.mxu0 0
  %8267 = vmatpush2.bf16.msra.mxu0 0
  %8268 = vmatprep.subr.bf16.mxu0 0
  %8269 = vmatpush2.bf16.msra.mxu0 0
  %8270 = vmatprep.subr.bf16.mxu0 0
  %8271 = vmatpush2.bf16.msra.mxu0 0
  %8272 = vmatprep.subr.bf16.mxu0 0
  %8273 = vmatpush2.bf16.msra.mxu0 0
  %8274 = vmatprep.mubr.bf16.mxu0 0
  %8275 = vmatmul.mubr.bf16.gmra.mxu0 %v8219
  %v8276 = vpop.f32.mrf.mxu0
  %v8277 = vadd.f32 %v8204, %v8276
  %v8278 = vpop.f32.mrf.mxu0
  %v8279 = vpop.f32.mrf.mxu0
  %v8280 = vadd.f32 %v8204, %v8279
  %v8281 = vpop.f32.mrf.mxu0
  %8282 = vmatprep.mubr.bf16.mxu0 0
  %8283 = vmatmul.mubr.bf16.gmra.mxu0 %v8222
  %v8284 = vpop.f32.mrf.mxu0
  %v8285 = vadd.f32 %v8204, %v8284
  %v8286 = vpop.f32.mrf.mxu0
  %v8287 = vpop.f32.mrf.mxu0
  %v8288 = vadd.f32 %v8204, %v8287
  %v8289 = vpop.f32.mrf.mxu0
  %8290 = vmatprep.mubr.bf16.mxu0 0
  %8291 = vmatmul.mubr.bf16.gmra.mxu0 %v8225
  %v8292 = vpop.f32.mrf.mxu0
  %v8293 = vadd.f32 %v8204, %v8292
  %v8294 = vpop.f32.mrf.mxu0
  %v8295 = vpop.f32.mrf.mxu0
  %v8296 = vadd.f32 %v8204, %v8295
  %v8297 = vpop.f32.mrf.mxu0
  %8298 = vmatprep.mubr.bf16.mxu0 0
  %8299 = vmatmul.mubr.bf16.gmra.mxu0 %v8228
  %v8300 = vpop.f32.mrf.mxu0
  %v8301 = vadd.f32 %v8204, %v8300
  %v8302 = vpop.f32.mrf.mxu0
  %v8303 = vpop.f32.mrf.mxu0
  %v8304 = vadd.f32 %v8204, %v8303
  %v8305 = vpop.f32.mrf.mxu0
  %8306 = vmatprep.mubr.bf16.mxu0 0
  %8307 = vmatmul.mubr.bf16.gmra.mxu0 %v8231
  %v8308 = vpop.f32.mrf.mxu0
  %v8309 = vadd.f32 %v8204, %v8308
  %v8310 = vpop.f32.mrf.mxu0
  %v8311 = vpop.f32.mrf.mxu0
  %v8312 = vadd.f32 %v8204, %v8311
  %v8313 = vpop.f32.mrf.mxu0
  %8314 = vmatprep.mubr.bf16.mxu0 0
  %8315 = vmatmul.mubr.bf16.gmra.mxu0 %v8234
  %v8316 = vpop.f32.mrf.mxu0
  %v8317 = vadd.f32 %v8204, %v8316
  %v8318 = vpop.f32.mrf.mxu0
  %v8319 = vpop.f32.mrf.mxu0
  %v8320 = vadd.f32 %v8204, %v8319
  %v8321 = vpop.f32.mrf.mxu0
  %8322 = vmatprep.mubr.bf16.mxu0 0
  %8323 = vmatmul.mubr.bf16.gmra.mxu0 %v8237
  %v8324 = vpop.f32.mrf.mxu0
  %v8325 = vadd.f32 %v8204, %v8324
  %v8326 = vpop.f32.mrf.mxu0
  %v8327 = vpop.f32.mrf.mxu0
  %v8328 = vadd.f32 %v8204, %v8327
  %v8329 = vpop.f32.mrf.mxu0
  %8330 = vmatprep.mubr.bf16.mxu0 0
  %8331 = vmatmul.mubr.bf16.gmra.mxu0 %v8240
  %v8332 = vpop.f32.mrf.mxu0
  %v8333 = vadd.f32 %v8204, %v8332
  %v8334 = vpop.f32.mrf.mxu0
  %v8335 = vpop.f32.mrf.mxu0
  %v8336 = vadd.f32 %v8204, %v8335
  %v8337 = vpop.f32.mrf.mxu0
  %8338 = vdwg.mxu0
  %v8339 = vmax.f32 %v8277, 0.0
  %v8340 = vmax.f32 %v8280, 0.0
  %v8341 = vmax.f32 %v8285, 0.0
  %v8342 = vmax.f32 %v8288, 0.0
  %v8343 = vmax.f32 %v8293, 0.0
  %v8344 = vmax.f32 %v8296, 0.0
  %v8345 = vmax.f32 %v8301, 0.0
  %v8346 = vmax.f32 %v8304, 0.0
  %v8347 = vmax.f32 %v8309, 0.0
  %v8348 = vmax.f32 %v8312, 0.0
  %v8349 = vmax.f32 %v8317, 0.0
  %v8350 = vmax.f32 %v8320, 0.0
  %v8351 = vmax.f32 %v8325, 0.0
  %v8352 = vmax.f32 %v8328, 0.0
  %v8353 = vmax.f32 %v8333, 0.0
  %v8354 = vmax.f32 %v8336, 0.0
  %v8355 = vld [vmem:[%s8] sm:$0x1]
  %v8357 = vlaneseq
  %v8358 = vshrl.u32 %v8357, 7
  %v8359 = vsub.s32 0, %v8358
  %v8360 = vrot.slane %v8355, %v8359
  %v8362 = vmul.f32 %v8339, %v8360
  %v8363 = vmul.f32 %v8340, %v8360
  %v8364 = vmul.f32 %v8341, %v8360
  %v8365 = vmul.f32 %v8342, %v8360
  %v8366 = vmul.f32 %v8343, %v8360
  %v8367 = vmul.f32 %v8344, %v8360
  %v8368 = vmul.f32 %v8345, %v8360
  %v8369 = vmul.f32 %v8346, %v8360
  %v8370 = vmul.f32 %v8347, %v8360
  %v8371 = vmul.f32 %v8348, %v8360
  %v8372 = vmul.f32 %v8349, %v8360
  %v8373 = vmul.f32 %v8350, %v8360
  %v8374 = vmul.f32 %v8351, %v8360
  %v8375 = vmul.f32 %v8352, %v8360
  %v8376 = vmul.f32 %v8353, %v8360
  %v8377 = vmul.f32 %v8354, %v8360
  %v8378 = vsel %vm364, %v8362, 0.0
  %8379 = vadd.xlane.f32.xlu0 %v8378
  %v8380 = vpop.xlane.xlu0 %8379
  %v8381 = vsel %vm364, %v8363, 0.0
  %8382 = vadd.xlane.f32.xlu0 %v8381
  %v8383 = vpop.xlane.xlu0 %8382
  %v8384 = vsel %vm364, %v8364, 0.0
  %8385 = vadd.xlane.f32.xlu0 %v8384
  %v8386 = vpop.xlane.xlu0 %8385
  %v8387 = vsel %vm364, %v8365, 0.0
  %8388 = vadd.xlane.f32.xlu0 %v8387
  %v8389 = vpop.xlane.xlu0 %8388
  %v8390 = vsel %vm364, %v8366, 0.0
  %8391 = vadd.xlane.f32.xlu0 %v8390
  %v8392 = vpop.xlane.xlu0 %8391
  %v8393 = vsel %vm364, %v8367, 0.0
  %8394 = vadd.xlane.f32.xlu0 %v8393
  %v8395 = vpop.xlane.xlu0 %8394
  %v8396 = vsel %vm364, %v8368, 0.0
  %8397 = vadd.xlane.f32.xlu0 %v8396
  %v8398 = vpop.xlane.xlu0 %8397
  %v8399 = vsel %vm364, %v8369, 0.0
  %8400 = vadd.xlane.f32.xlu0 %v8399
  %v8401 = vpop.xlane.xlu0 %8400
  %v8402 = vsel %vm364, %v8370, 0.0
  %8403 = vadd.xlane.f32.xlu0 %v8402
  %v8404 = vpop.xlane.xlu0 %8403
  %v8405 = vsel %vm364, %v8371, 0.0
  %8406 = vadd.xlane.f32.xlu0 %v8405
  %v8407 = vpop.xlane.xlu0 %8406
  %v8408 = vsel %vm364, %v8372, 0.0
  %8409 = vadd.xlane.f32.xlu0 %v8408
  %v8410 = vpop.xlane.xlu0 %8409
  %v8411 = vsel %vm364, %v8373, 0.0
  %8412 = vadd.xlane.f32.xlu0 %v8411
  %v8413 = vpop.xlane.xlu0 %8412
  %v8414 = vsel %vm364, %v8374, 0.0
  %8415 = vadd.xlane.f32.xlu0 %v8414
  %v8416 = vpop.xlane.xlu0 %8415
  %v8417 = vsel %vm364, %v8375, 0.0
  %8418 = vadd.xlane.f32.xlu0 %v8417
  %v8419 = vpop.xlane.xlu0 %8418
  %v8420 = vsel %vm364, %v8376, 0.0
  %8421 = vadd.xlane.f32.xlu0 %v8420
  %v8422 = vpop.xlane.xlu0 %8421
  %v8423 = vsel %vm364, %v8377, 0.0
  %8424 = vadd.xlane.f32.xlu0 %v8423
  %v8425 = vpop.xlane.xlu0 %8424
  %v8426 = vld [vmem:[#allocation4] sm:$0x1]
  %v8428 = vlaneseq
  %v8429 = vshrl.u32 %v8428, 7
  %v8430 = vsub.s32 0, %v8429
  %v8431 = vrot.slane %v8426, %v8430
  %v8433 = vadd.f32 %v8380, %v8431
  %v8434 = vadd.f32 %v8383, %v8431
  %v8435 = vadd.f32 %v8386, %v8431
  %v8436 = vadd.f32 %v8389, %v8431
  %v8437 = vadd.f32 %v8392, %v8431
  %v8438 = vadd.f32 %v8395, %v8431
  %v8439 = vadd.f32 %v8398, %v8431
  %v8440 = vadd.f32 %v8401, %v8431
  %v8441 = vadd.f32 %v8404, %v8431
  %v8442 = vadd.f32 %v8407, %v8431
  %v8443 = vadd.f32 %v8410, %v8431
  %v8444 = vadd.f32 %v8413, %v8431
  %v8445 = vadd.f32 %v8416, %v8431
  %v8446 = vadd.f32 %v8419, %v8431
  %v8447 = vadd.f32 %v8422, %v8431
  %v8448 = vadd.f32 %v8425, %v8431
  %v8449 = vxor.u32 %v8433, 2147483648
  %v8450 = vxor.u32 %v8434, 2147483648
  %v8451 = vxor.u32 %v8435, 2147483648
  %v8452 = vxor.u32 %v8436, 2147483648
  %v8453 = vxor.u32 %v8437, 2147483648
  %v8454 = vxor.u32 %v8438, 2147483648
  %v8455 = vxor.u32 %v8439, 2147483648
  %v8456 = vxor.u32 %v8440, 2147483648
  %v8457 = vxor.u32 %v8441, 2147483648
  %v8458 = vxor.u32 %v8442, 2147483648
  %v8459 = vxor.u32 %v8443, 2147483648
  %v8460 = vxor.u32 %v8444, 2147483648
  %v8461 = vxor.u32 %v8445, 2147483648
  %v8462 = vxor.u32 %v8446, 2147483648
  %v8463 = vxor.u32 %v8447, 2147483648
  %v8464 = vxor.u32 %v8448, 2147483648
  %v8465 = vmul.f32 %v8449, 1.442695
  %v8466 = vpow.pop %v8465
  %v8467 = vmul.f32 %v8450, 1.442695
  %v8468 = vpow.pop %v8467
  %v8469 = vmul.f32 %v8451, 1.442695
  %v8470 = vpow.pop %v8469
  %v8471 = vmul.f32 %v8452, 1.442695
  %v8472 = vpow.pop %v8471
  %v8473 = vmul.f32 %v8453, 1.442695
  %v8474 = vpow.pop %v8473
  %v8475 = vmul.f32 %v8454, 1.442695
  %v8476 = vpow.pop %v8475
  %v8477 = vmul.f32 %v8455, 1.442695
  %v8478 = vpow.pop %v8477
  %v8479 = vmul.f32 %v8456, 1.442695
  %v8480 = vpow.pop %v8479
  %v8481 = vmul.f32 %v8457, 1.442695
  %v8482 = vpow.pop %v8481
  %v8483 = vmul.f32 %v8458, 1.442695
  %v8484 = vpow.pop %v8483
  %v8485 = vmul.f32 %v8459, 1.442695
  %v8486 = vpow.pop %v8485
  %v8487 = vmul.f32 %v8460, 1.442695
  %v8488 = vpow.pop %v8487
  %v8489 = vmul.f32 %v8461, 1.442695
  %v8490 = vpow.pop %v8489
  %v8491 = vmul.f32 %v8462, 1.442695
  %v8492 = vpow.pop %v8491
  %v8493 = vmul.f32 %v8463, 1.442695
  %v8494 = vpow.pop %v8493
  %v8495 = vmul.f32 %v8464, 1.442695
  %v8496 = vpow.pop %v8495
  %v8497 = vadd.f32 %v8466, 1.0
  %v8498 = vadd.f32 %v8468, 1.0
  %v8499 = vadd.f32 %v8470, 1.0
  %v8500 = vadd.f32 %v8472, 1.0
  %v8501 = vadd.f32 %v8474, 1.0
  %v8502 = vadd.f32 %v8476, 1.0
  %v8503 = vadd.f32 %v8478, 1.0
  %v8504 = vadd.f32 %v8480, 1.0
  %v8505 = vadd.f32 %v8482, 1.0
  %v8506 = vadd.f32 %v8484, 1.0
  %v8507 = vadd.f32 %v8486, 1.0
  %v8508 = vadd.f32 %v8488, 1.0
  %v8509 = vadd.f32 %v8490, 1.0
  %v8510 = vadd.f32 %v8492, 1.0
  %v8511 = vadd.f32 %v8494, 1.0
  %v8512 = vadd.f32 %v8496, 1.0
  %v8513 = vrcp.pop %v8497
  %v8514 = vmul.f32 1.0, %v8513
  %v8515 = vrcp.pop %v8498
  %v8516 = vmul.f32 1.0, %v8515
  %v8517 = vrcp.pop %v8499
  %v8518 = vmul.f32 1.0, %v8517
  %v8519 = vrcp.pop %v8500
  %v8520 = vmul.f32 1.0, %v8519
  %v8521 = vrcp.pop %v8501
  %v8522 = vmul.f32 1.0, %v8521
  %v8523 = vrcp.pop %v8502
  %v8524 = vmul.f32 1.0, %v8523
  %v8525 = vrcp.pop %v8503
  %v8526 = vmul.f32 1.0, %v8525
  %v8527 = vrcp.pop %v8504
  %v8528 = vmul.f32 1.0, %v8527
  %v8529 = vrcp.pop %v8505
  %v8530 = vmul.f32 1.0, %v8529
  %v8531 = vrcp.pop %v8506
  %v8532 = vmul.f32 1.0, %v8531
  %v8533 = vrcp.pop %v8507
  %v8534 = vmul.f32 1.0, %v8533
  %v8535 = vrcp.pop %v8508
  %v8536 = vmul.f32 1.0, %v8535
  %v8537 = vrcp.pop %v8509
  %v8538 = vmul.f32 1.0, %v8537
  %v8539 = vrcp.pop %v8510
  %v8540 = vmul.f32 1.0, %v8539
  %v8541 = vrcp.pop %v8511
  %v8542 = vmul.f32 1.0, %v8541
  %v8543 = vrcp.pop %v8512
  %v8544 = vmul.f32 1.0, %v8543
  %vm8545 = vcmask 7168
  %8546 = vst.msk [vmem:[%s10] sm:$0xff] %vm8545, %v8514
  %8547 = vst.msk [vmem:[%s10 + $0x8] sm:$0xff] %vm8545, %v8516
  %8548 = vst.msk [vmem:[%s10 + $0x10] sm:$0xff] %vm8545, %v8518
  %8549 = vst.msk [vmem:[%s10 + $0x18] sm:$0xff] %vm8545, %v8520
  %8550 = vst.msk [vmem:[%s10 + $0x20] sm:$0xff] %vm8545, %v8522
  %8551 = vst.msk [vmem:[%s10 + $0x28] sm:$0xff] %vm8545, %v8524
  %8552 = vst.msk [vmem:[%s10 + $0x30] sm:$0xff] %vm8545, %v8526
  %8553 = vst.msk [vmem:[%s10 + $0x38] sm:$0xff] %vm8545, %v8528
  %8554 = vst.msk [vmem:[%s10 + $0x40] sm:$0xff] %vm8545, %v8530
  %8555 = vst.msk [vmem:[%s10 + $0x48] sm:$0xff] %vm8545, %v8532
  %8556 = vst.msk [vmem:[%s10 + $0x50] sm:$0xff] %vm8545, %v8534
  %8557 = vst.msk [vmem:[%s10 + $0x58] sm:$0xff] %vm8545, %v8536
  %8558 = vst.msk [vmem:[%s10 + $0x60] sm:$0xff] %vm8545, %v8538
  %8559 = vst.msk [vmem:[%s10 + $0x68] sm:$0xff] %vm8545, %v8540
  %8560 = vst.msk [vmem:[%s10 + $0x70] sm:$0xff] %vm8545, %v8542
  %8561 = vst.msk [vmem:[%s10 + $0x78] sm:$0xff] %vm8545, %v8544
  // Predicated region
  $region42: #{forward.1} parent=0 // pred_check
    _
  $region43: #{forward.1} parent=0 // pred_check_branch
    %8563 = sbr.rel (0) target = $region45
  $region44: #{forward.1} parent=0 // pred_region
    _
  $region45: #{forward.1} parent=0 // pred_fallthru
    _
  // Predicated region
  $region46: #{forward.1} parent=0 // pred_check
    _
  $region47: #{forward.1} parent=0 // pred_check_branch
    %8565 = sbr.rel (0) target = $region49
  $region48: #{forward.1} parent=0 // pred_region
    _
  $region49: #{forward.1} parent=0 // pred_fallthru
    _

</llo_original>
